<compile_context>
chip_gen: v6e
topology: v6e:2x2x1
jax: 0.10.0
libtpu: 0.0.40
codegen_flags: <defaults>
</compile_context>

<pallas_src>
import functools

import jax
import jax.numpy as jnp
from jax.experimental import pallas as pl
from jax.experimental.pallas import tpu as pltpu

LANE = 128  # TPU lane width; channel dims are kept lane-dense (zero padded).


# ------------------------- in-kernel building blocks -------------------------


def _pool2x2(y, m_ref, *, ph, width):
    """2x2 / stride-2 max pool (floor mode) of a wide-flat f32 value.

    y:     (>= 2*ph*width, C) f32 value, wide-flat with row stride `width`.
    m_ref: f32 VMEM scratch with >= ph*width rows (vertical-max staging).
    Returns (ph*width//2, C) f32 value, wide-flat with row stride width//2.
    """
    c = y.shape[-1]
    rows = 2 * ph * width
    v = y[:rows].reshape(ph, 2, width, c)            # aligned split (width%8==0)
    v = jnp.maximum(v[:, 0], v[:, 1]).reshape(ph * width, c)   # vertical 2:1
    m_ref[0:ph * width, :] = v                       # one dense store
    half = ph * width // 2
    # Horizontal 2:1: two sublane-strided reads + one VPU max.  Because the
    # output stride is exactly width//2, the even/odd flat indices already form
    # the next stage's wide-flat layout (no reshape / relayout needed).
    even = m_ref[pl.ds(0, half, stride=2), :]
    odd = m_ref[pl.ds(1, half, stride=2), :]
    return jnp.maximum(even, odd)


def _conv3x3_relu(s_ref, w_ref, b, *, valid_h, width):
    """VALID 3x3 conv + bias + ReLU over a wide-flat bf16 input scratch.

    s_ref: (rows >= valid_h*width + width, C) bf16 wide-flat input.
    w_ref: (5, 2*C, Cout) bf16; pair p<4 stacks taps (2p, 2p+1) along K,
           pair 4 holds tap 8 in its first C rows (rest unused).
    b:     (1, Cout) f32 bias.
    Returns ((valid_h-2)*width, Cout) f32 value (garbage in the 2 right-most
    "wide" columns of every row; downstream stages never read those).
    """
    cin = s_ref.shape[-1]
    out_rows = (valid_h - 2) * width
    offs = [kh * width + kw for kh in range(3) for kw in range(3)]
    acc = None
    for p in range(4):                     # taps (0,1),(2,3),(4,5),(6,7): K=2*C
        a = s_ref[offs[2 * p]:offs[2 * p] + out_rows, :]
        bwin = s_ref[offs[2 * p + 1]:offs[2 * p + 1] + out_rows, :]
        lhs = jnp.concatenate([a, bwin], axis=-1)            # lane concat, free
        part = jnp.dot(lhs, w_ref[p], preferred_element_type=jnp.float32)
        acc = part if acc is None else acc + part
    # tap 8: K = C
    acc = acc + jnp.dot(s_ref[offs[8]:offs[8] + out_rows, :], w_ref[4, :cin, :],
                        preferred_element_type=jnp.float32)
    return jnp.maximum(acc + b, 0.0)


# ------------------------------ fused kernel --------------------------------


def _cnn_kernel(x_ref, w1r, b1r, w2r, b2r, w3r, b3r, w4r, b4r,
                wf1r, bf1r, wf2r, bf2r, o_ref, s2, s3, s4, m_scr,
                *, wide0, wide1, wide2, ph1, ph2, ph3, hin2, hin3, hin4):
    bf16 = jnp.bfloat16

    # conv1: single im2col matmul (K = 9*Cin) + bias + ReLU.
    y = jnp.dot(x_ref[0], w1r[...], preferred_element_type=jnp.float32)
    y = jnp.maximum(y + b1r[...], 0.0)                       # (rows1, 128) f32

    # pool1 -> conv2 input (wide-flat, stride wide0 -> wide1), bf16 + pad line.
    p = _pool2x2(y, m_scr, ph=ph1, width=wide0)
    n = p.shape[0]
    s2[0:n, :] = p.astype(bf16)
    s2[n:, :] = jnp.zeros((s2.shape[0] - n, LANE), bf16)

    # conv2 + ReLU (stride wide1), result becomes conv3's input.
    y = _conv3x3_relu(s2, w2r, b2r[...], valid_h=hin2, width=wide1)
    n = y.shape[0]
    s3[0:n, :] = y.astype(bf16)
    s3[n:, :] = jnp.zeros((s3.shape[0] - n, LANE), bf16)

    # conv3 + ReLU, then pool2 -> conv4 input (stride wide1 -> wide2).
    y = _conv3x3_relu(s3, w3r, b3r[...], valid_h=hin3, width=wide1)
    p = _pool2x2(y, m_scr, ph=ph2, width=wide1)
    n = p.shape[0]
    s4[0:n, :] = p.astype(bf16)
    s4[n:, :] = jnp.zeros((s4.shape[0] - n, LANE), bf16)

    # conv4 + ReLU, then pool3 -> (1,1,128) features.
    y = _conv3x3_relu(s4, w4r, b4r[...], valid_h=hin4, width=wide2)
    p = _pool2x2(y, m_scr, ph=ph3, width=wide2)
    feat = p[0:1, :].astype(bf16)                             # (1, 128)

    # fc1 + ReLU + Dropout(identity at inference) + fc2, all in-kernel.
    # TODO(synk): Dropout(0.1) is identity at inference time (no RNG needed).
    h = jnp.dot(feat, wf1r[...], preferred_element_type=jnp.float32)
    h = jnp.maximum(h + bf1r[...], 0.0).astype(bf16)
    out = jnp.dot(h, wf2r[...], preferred_element_type=jnp.float32) + bf2r[...]
    o_ref[0] = out                                            # (1, 128) f32


# ------------------------------ parameters ----------------------------------


def _final_spatial(s):
    s = s - 2          # conv1
    s = s // 2         # pool1
    s = s - 2          # conv2
    s = s - 2          # conv3
    s = s // 2         # pool2
    s = s - 2          # conv4
    s = s // 2         # pool3
    return s


def init_params(key, in_channels, h, w):
    """Deterministic synthetic parameters (shapes follow the nn.Module)."""
    def dense(k, fan_in, shape):
        return (jnp.sqrt(2.0 / fan_in) * jax.random.normal(k, shape)).astype(jnp.float32)

    ks = jax.random.split(key, 6)
    flat = 128 * _final_spatial(h) * _final_spatial(w)
    # TODO(synk): the reference declares Linear(in_features=576), which is
    # inconsistent with the 128-channel conv output; fc1 uses the actual
    # flattened size instead (128 for a 32x32 input).
    return {
        "w1": dense(ks[0], 9 * in_channels, (3, 3, in_channels, 32)),
        "b1": jnp.zeros((32,), jnp.float32),
        "w2": dense(ks[1], 9 * 32, (3, 3, 32, 128)),
        "b2": jnp.zeros((128,), jnp.float32),
        "w3": dense(ks[2], 9 * 128, (3, 3, 128, 128)),
        "b3": jnp.zeros((128,), jnp.float32),
        "w4": dense(ks[3], 9 * 128, (3, 3, 128, 128)),
        "b4": jnp.zeros((128,), jnp.float32),
        "wfc1": dense(ks[4], flat, (flat, 1024)),
        "bfc1": jnp.zeros((1024,), jnp.float32),
        "wfc2": dense(ks[5], 1024, (1024, 5)),
        "bfc2": jnp.zeros((5,), jnp.float32),
    }


def _pad_last(a, n):
    return jnp.pad(a, [(0, 0)] * (a.ndim - 1) + [(0, n - a.shape[-1])])


def _pack_tap_pairs(w):
    """(3,3,Cin,Cout) f32 -> (5, 2*Cin, Cout) bf16 tap-pair packing for K=2*Cin
    MXU calls (pair 4 holds tap 8 in its first Cin rows)."""
    cin, cout = w.shape[2], w.shape[3]
    w9 = w.reshape(9, cin, cout)
    pk = jnp.zeros((5, 2 * cin, cout), w.dtype)
    pk = pk.at[:4].set(w9[:8].reshape(4, 2 * cin, cout))
    pk = pk.at[4, :cin].set(w9[8])
    return pk.astype(jnp.bfloat16)


def prepare_params(p):
    """Kernel-ready params: conv1 as a (9*Cin, 128) im2col weight, conv2-4 as
    (5, 256, 128) tap pairs, narrow channel dims zero-padded to 128 lanes
    (numerically a no-op), matmul operands bf16, biases f32."""
    def bias(b, n_pad=None):
        if n_pad is not None:
            b = _pad_last(b, n_pad)
        return b.reshape(1, -1).astype(jnp.float32)

    cin0 = p["w1"].shape[2]
    w1k = _pad_last(p["w1"].reshape(9 * cin0, 32), LANE).astype(jnp.bfloat16)
    w2_pad = jnp.pad(p["w2"], ((0, 0), (0, 0), (0, LANE - p["w2"].shape[2]), (0, 0)))
    return {
        "w1": w1k, "b1": bias(p["b1"], LANE),
        "w2": _pack_tap_pairs(w2_pad), "b2": bias(p["b2"]),
        "w3": _pack_tap_pairs(p["w3"]), "b3": bias(p["b3"]),
        "w4": _pack_tap_pairs(p["w4"]), "b4": bias(p["b4"]),
        "wfc1": p["wfc1"].astype(jnp.bfloat16), "bfc1": bias(p["bfc1"]),
        "wfc2": _pad_last(p["wfc2"], LANE).astype(jnp.bfloat16),
        "bfc2": bias(p["bfc2"], LANE),
    }


# ------------------------------ model ---------------------------------------


def cnn_forward(params, x_nchw):
    """Forward pass matching CNNModel (inference)."""
    p = params
    bsz, cin, h, w = x_nchw.shape

    # Static stage geometry (wide-flat strides halve at each pool).
    wide0, wide1, wide2 = w, w // 2, w // 4
    vh1 = h - 2                      # conv1 out height
    ph1 = vh1 // 2                   # pool1 out height
    vh2 = ph1 - 2                    # conv2 out height
    vh3 = vh2 - 2                    # conv3 out height
    ph2 = vh3 // 2                   # pool2 out height
    vh4 = ph2 - 2                    # conv4 out height
    ph3 = vh4 // 2                   # pool3 out height
    pw_final = ((((w - 2) // 2 - 4) // 2) - 2) // 2
    assert wide0 % 8 == 0 and wide1 % 8 == 0 and wide2 % 8 == 0, "width must be /8"
    assert vh4 >= 2 and ph3 >= 1, "input too small for the conv/pool chain"
    # TODO(synk): for a final spatial size > 1x1 the NHWC flatten order differs
    # from PyTorch's NCHW flatten; 32x32 input ends at 1x1 so they coincide.
    assert ph3 == 1 and pw_final == 1, "only a 1x1 final map is supported"
    assert p["wfc1"].shape[0] == LANE * ph3 * pw_final

    # Wrapper-side im2col for conv1 only (tiny: ~68 KiB/image): lets the first
    # layer be one K=9*Cin MXU matmul with a single accumulator pass.
    out_rows1 = (h - 2) * w
    x_nhwc = jnp.transpose(x_nchw, (0, 2, 3, 1)).astype(jnp.bfloat16)
    xf = jnp.pad(x_nhwc.reshape(bsz, h * w, cin), ((0, 0), (0, 2 * w + 2), (0, 0)))
    taps = [xf[:, kh * w + kw: kh * w + kw + out_rows1, :]
            for kh in range(3) for kw in range(3)]
    im = jnp.concatenate(taps, axis=-1)                     # (B, out_rows1, 9*Cin)

    # VMEM scratch sizing (wide-flat inputs carry one zero pad line).
    s2_rows = ph1 * wide1 + wide1
    s3_rows = vh2 * wide1 + wide1
    s4_rows = ph2 * wide2 + wide2
    m_rows = max(ph1 * wide0, ph2 * wide1, ph3 * wide2)

    kernel = functools.partial(
        _cnn_kernel, wide0=wide0, wide1=wide1, wide2=wide2,
        ph1=ph1, ph2=ph2, ph3=ph3, hin2=ph1, hin3=vh2, hin4=ph2)
    const2 = lambda i: (0, 0)
    const3 = lambda i: (0, 0, 0)

    out = pl.pallas_call(
        kernel,
        out_shape=jax.ShapeDtypeStruct((bsz, 1, LANE), jnp.float32),
        grid=(bsz,),
        in_specs=[
            pl.BlockSpec((1, out_rows1, 9 * cin), lambda i: (i, 0, 0)),
            pl.BlockSpec(p["w1"].shape, const2),
            pl.BlockSpec(p["b1"].shape, const2),
            pl.BlockSpec(p["w2"].shape, const3),
            pl.BlockSpec(p["b2"].shape, const2),
            pl.BlockSpec(p["w3"].shape, const3),
            pl.BlockSpec(p["b3"].shape, const2),
            pl.BlockSpec(p["w4"].shape, const3),
            pl.BlockSpec(p["b4"].shape, const2),
            pl.BlockSpec(p["wfc1"].shape, const2),
            pl.BlockSpec(p["bfc1"].shape, const2),
            pl.BlockSpec(p["wfc2"].shape, const2),
            pl.BlockSpec(p["bfc2"].shape, const2),
        ],
        out_specs=pl.BlockSpec((1, 1, LANE), lambda i: (i, 0, 0)),
        scratch_shapes=[
            pltpu.VMEM((s2_rows, LANE), jnp.bfloat16),   # conv2 input
            pltpu.VMEM((s3_rows, LANE), jnp.bfloat16),   # conv3 input
            pltpu.VMEM((s4_rows, LANE), jnp.bfloat16),   # conv4 input
            pltpu.VMEM((m_rows, LANE), jnp.float32),     # pool staging
        ],
        compiler_params=pltpu.CompilerParams(
            dimension_semantics=("parallel",)),
    )(im, p["w1"], p["b1"], p["w2"], p["b2"], p["w3"], p["b3"],
      p["w4"], p["b4"], p["wfc1"], p["bfc1"], p["wfc2"], p["bfc2"])

    return out[:, 0, :5]


if __name__ == "__main__":
    key = jax.random.PRNGKey(0)
    k_x, k_p = jax.random.split(key)

    # 32x32 is the smallest convenient spatial size that survives the
    # 4 convs + 3 pools of the reference architecture (16x16 would not).
    B, C_IN, H, W = 2, 4, 32, 32
    x = jax.random.normal(k_x, (B, C_IN, H, W), dtype=jnp.float32)
    params = prepare_params(init_params(k_p, C_IN, H, W))

    fwd = jax.jit(cnn_forward)
    out = jax.block_until_ready(fwd(params, x))
    assert out.shape == (B, 5), out.shape
    assert bool(jnp.all(jnp.isfinite(out)))
    print("KERNEL_OK")
</pallas_src>

<mosaic_0001>
module attributes {stable_mosaic.version = 11 : i64} {
  func.func @_cnn_kernel(%arg0: i32, %arg1: memref<1x960x36xbf16, #tpu.memory_space<vmem>>, %arg2: memref<36x128xbf16, #tpu.memory_space<vmem>>, %arg3: memref<1x128xf32, #tpu.memory_space<vmem>>, %arg4: memref<5x256x128xbf16, #tpu.memory_space<vmem>>, %arg5: memref<1x128xf32, #tpu.memory_space<vmem>>, %arg6: memref<5x256x128xbf16, #tpu.memory_space<vmem>>, %arg7: memref<1x128xf32, #tpu.memory_space<vmem>>, %arg8: memref<5x256x128xbf16, #tpu.memory_space<vmem>>, %arg9: memref<1x128xf32, #tpu.memory_space<vmem>>, %arg10: memref<128x1024xbf16, #tpu.memory_space<vmem>>, %arg11: memref<1x1024xf32, #tpu.memory_space<vmem>>, %arg12: memref<1024x128xbf16, #tpu.memory_space<vmem>>, %arg13: memref<1x128xf32, #tpu.memory_space<vmem>>, %arg14: memref<1x1x128xf32, #tpu.memory_space<vmem>>, %arg15: memref<256x128xbf16, #tpu.memory_space<vmem>>, %arg16: memref<224x128xbf16, #tpu.memory_space<vmem>>, %arg17: memref<48x128xbf16, #tpu.memory_space<vmem>>, %arg18: memref<480x128xf32, #tpu.memory_space<vmem>>) attributes {dimension_semantics = [#tpu.dimension_semantics<parallel>], iteration_bounds = array<i64: 2>, scalar_prefetch = 0 : i64, scratch_operands = 4 : i64, tpu.core_type = #tpu.core_type<tc>, window_params = [{transform_indices = @transform_0, window_bounds = array<i64: 1, 960, 36>}, {pipeline_mode = #tpu.pipeline_mode<synchronous>, transform_indices = @transform_1, window_bounds = array<i64: 36, 128>}, {pipeline_mode = #tpu.pipeline_mode<synchronous>, transform_indices = @transform_2, window_bounds = array<i64: 1, 128>}, {pipeline_mode = #tpu.pipeline_mode<synchronous>, transform_indices = @transform_3, window_bounds = array<i64: 5, 256, 128>}, {pipeline_mode = #tpu.pipeline_mode<synchronous>, transform_indices = @transform_4, window_bounds = array<i64: 1, 128>}, {pipeline_mode = #tpu.pipeline_mode<synchronous>, transform_indices = @transform_5, window_bounds = array<i64: 5, 256, 128>}, {pipeline_mode = #tpu.pipeline_mode<synchronous>, transform_indices = @transform_6, window_bounds = array<i64: 1, 128>}, {pipeline_mode = #tpu.pipeline_mode<synchronous>, transform_indices = @transform_7, window_bounds = array<i64: 5, 256, 128>}, {pipeline_mode = #tpu.pipeline_mode<synchronous>, transform_indices = @transform_8, window_bounds = array<i64: 1, 128>}, {pipeline_mode = #tpu.pipeline_mode<synchronous>, transform_indices = @transform_9, window_bounds = array<i64: 128, 1024>}, {pipeline_mode = #tpu.pipeline_mode<synchronous>, transform_indices = @transform_10, window_bounds = array<i64: 1, 1024>}, {pipeline_mode = #tpu.pipeline_mode<synchronous>, transform_indices = @transform_11, window_bounds = array<i64: 1024, 128>}, {pipeline_mode = #tpu.pipeline_mode<synchronous>, transform_indices = @transform_12, window_bounds = array<i64: 1, 128>}, {transform_indices = @transform_13, window_bounds = array<i64: 1, 1, 128>}]} {
    %c0 = arith.constant 0 : index
    %c0_0 = arith.constant 0 : index
    %c0_1 = arith.constant 0 : index
    %0 = vector.load %arg1[%c0, %c0_0, %c0_1] : memref<1x960x36xbf16, #tpu.memory_space<vmem>>, vector<1x960x36xbf16>
    %1 = vector.shape_cast %0 : vector<1x960x36xbf16> to vector<960x36xbf16>
    %c0_2 = arith.constant 0 : index
    %c0_3 = arith.constant 0 : index
    %2 = vector.load %arg2[%c0_2, %c0_3] : memref<36x128xbf16, #tpu.memory_space<vmem>>, vector<36x128xbf16>
    %cst = arith.constant dense<0.000000e+00> : vector<960x128xf32>
    %3 = tpu.matmul %1, %2, %cst {dimension_numbers = #tpu.dot_dimension_numbers<[1], [0], [0], [1], [0, 0, 1, 1], [], []>} : vector<960x36xbf16>, vector<36x128xbf16>, vector<960x128xf32> -> vector<960x128xf32>
    %c0_4 = arith.constant 0 : index
    %c0_5 = arith.constant 0 : index
    %4 = vector.load %arg3[%c0_4, %c0_5] : memref<1x128xf32, #tpu.memory_space<vmem>>, vector<1x128xf32>
    %5 = vector.broadcast %4 : vector<1x128xf32> to vector<960x128xf32>
    %6 = arith.addf %3, %5 : vector<960x128xf32>
    %cst_6 = arith.constant 0.000000e+00 : f32
    %7 = vector.broadcast %cst_6 : f32 to vector<960x128xf32>
    %8 = arith.maximumf %6, %7 : vector<960x128xf32>
    %9 = vector.shape_cast %8 : vector<960x128xf32> to vector<15x2x32x128xf32>
    %10 = vector.extract_strided_slice %9 {offsets = [0, 0, 0, 0], sizes = [15, 1, 32, 128], strides = [1, 1, 1, 1]} : vector<15x2x32x128xf32> to vector<15x1x32x128xf32>
    %11 = vector.shape_cast %10 : vector<15x1x32x128xf32> to vector<15x32x128xf32>
    %12 = vector.extract_strided_slice %9 {offsets = [0, 1, 0, 0], sizes = [15, 1, 32, 128], strides = [1, 1, 1, 1]} : vector<15x2x32x128xf32> to vector<15x1x32x128xf32>
    %13 = vector.shape_cast %12 : vector<15x1x32x128xf32> to vector<15x32x128xf32>
    %14 = arith.maximumf %11, %13 : vector<15x32x128xf32>
    %15 = vector.shape_cast %14 : vector<15x32x128xf32> to vector<480x128xf32>
    %c0_7 = arith.constant 0 : index
    %c0_8 = arith.constant 0 : index
    %16 = vector.load %arg18[%c0_7, %c0_8] : memref<480x128xf32, #tpu.memory_space<vmem>>, vector<480x128xf32>
    tpu.vector_store %arg18[%c0_7, %c0_8], %15 {strides = array<i32>} : memref<480x128xf32, #tpu.memory_space<vmem>>, vector<480x128xf32>,
    %c0_9 = arith.constant 0 : index
    %c0_10 = arith.constant 0 : index
    %17 = tpu.strided_load %arg18[%c0_9, %c0_10] {strides = array<i32: 2, 1>} : memref<480x128xf32, #tpu.memory_space<vmem>>, vector<240x128xf32>
    %c1 = arith.constant 1 : index
    %c0_11 = arith.constant 0 : index
    %18 = tpu.strided_load %arg18[%c1, %c0_11] {strides = array<i32: 2, 1>} : memref<480x128xf32, #tpu.memory_space<vmem>>, vector<240x128xf32>
    %19 = arith.maximumf %17, %18 : vector<240x128xf32>
    %20 = arith.truncf %19 : vector<240x128xf32> to vector<240x128xbf16>
    %c0_12 = arith.constant 0 : index
    %c0_13 = arith.constant 0 : index
    %21 = vector.load %arg15[%c0_12, %c0_13] : memref<256x128xbf16, #tpu.memory_space<vmem>>, vector<240x128xbf16>
    tpu.vector_store %arg15[%c0_12, %c0_13], %20 {strides = array<i32>} : memref<256x128xbf16, #tpu.memory_space<vmem>>, vector<240x128xbf16>,
    %cst_14 = arith.constant 0.000000e+00 : bf16
    %22 = vector.broadcast %cst_14 : bf16 to vector<16x128xbf16>
    %c240 = arith.constant 240 : index
    %c0_15 = arith.constant 0 : index
    %23 = vector.load %arg15[%c240, %c0_15] : memref<256x128xbf16, #tpu.memory_space<vmem>>, vector<16x128xbf16>
    tpu.vector_store %arg15[%c240, %c0_15], %22 {strides = array<i32>} : memref<256x128xbf16, #tpu.memory_space<vmem>>, vector<16x128xbf16>,
    %c0_16 = arith.constant 0 : index
    %c0_17 = arith.constant 0 : index
    %24 = vector.load %arg5[%c0_16, %c0_17] : memref<1x128xf32, #tpu.memory_space<vmem>>, vector<1x128xf32>
    %c0_18 = arith.constant 0 : index
    %c0_19 = arith.constant 0 : index
    %25 = vector.load %arg15[%c0_18, %c0_19] : memref<256x128xbf16, #tpu.memory_space<vmem>>, vector<208x128xbf16>
    %c1_20 = arith.constant 1 : index
    %c0_21 = arith.constant 0 : index
    %26 = vector.load %arg15[%c1_20, %c0_21] : memref<256x128xbf16, #tpu.memory_space<vmem>>, vector<208x128xbf16>
    %27 = tpu.concatenate %25, %26 in 1 : vector<208x128xbf16>, vector<208x128xbf16> -> vector<208x256xbf16>
    %c0_22 = arith.constant 0 : index
    %c0_23 = arith.constant 0 : index
    %c0_24 = arith.constant 0 : index
    %28 = vector.load %arg4[%c0_22, %c0_23, %c0_24] : memref<5x256x128xbf16, #tpu.memory_space<vmem>>, vector<1x256x128xbf16>
    %29 = vector.shape_cast %28 : vector<1x256x128xbf16> to vector<256x128xbf16>
    %cst_25 = arith.constant dense<0.000000e+00> : vector<208x128xf32>
    %30 = tpu.matmul %27, %29, %cst_25 {dimension_numbers = #tpu.dot_dimension_numbers<[1], [0], [0], [1], [0, 0, 1, 1], [], []>} : vector<208x256xbf16>, vector<256x128xbf16>, vector<208x128xf32> -> vector<208x128xf32>
    %c2 = arith.constant 2 : index
    %c0_26 = arith.constant 0 : index
    %31 = vector.load %arg15[%c2, %c0_26] : memref<256x128xbf16, #tpu.memory_space<vmem>>, vector<208x128xbf16>
    %c16 = arith.constant 16 : index
    %c0_27 = arith.constant 0 : index
    %32 = vector.load %arg15[%c16, %c0_27] : memref<256x128xbf16, #tpu.memory_space<vmem>>, vector<208x128xbf16>
    %33 = tpu.concatenate %31, %32 in 1 : vector<208x128xbf16>, vector<208x128xbf16> -> vector<208x256xbf16>
    %c1_28 = arith.constant 1 : index
    %c0_29 = arith.constant 0 : index
    %c0_30 = arith.constant 0 : index
    %34 = vector.load %arg4[%c1_28, %c0_29, %c0_30] : memref<5x256x128xbf16, #tpu.memory_space<vmem>>, vector<1x256x128xbf16>
    %35 = vector.shape_cast %34 : vector<1x256x128xbf16> to vector<256x128xbf16>
    %cst_31 = arith.constant dense<0.000000e+00> : vector<208x128xf32>
    %36 = tpu.matmul %33, %35, %cst_31 {dimension_numbers = #tpu.dot_dimension_numbers<[1], [0], [0], [1], [0, 0, 1, 1], [], []>} : vector<208x256xbf16>, vector<256x128xbf16>, vector<208x128xf32> -> vector<208x128xf32>
    %37 = arith.addf %30, %36 : vector<208x128xf32>
    %c17 = arith.constant 17 : index
    %c0_32 = arith.constant 0 : index
    %38 = vector.load %arg15[%c17, %c0_32] : memref<256x128xbf16, #tpu.memory_space<vmem>>, vector<208x128xbf16>
    %c18 = arith.constant 18 : index
    %c0_33 = arith.constant 0 : index
    %39 = vector.load %arg15[%c18, %c0_33] : memref<256x128xbf16, #tpu.memory_space<vmem>>, vector<208x128xbf16>
    %40 = tpu.concatenate %38, %39 in 1 : vector<208x128xbf16>, vector<208x128xbf16> -> vector<208x256xbf16>
    %c2_34 = arith.constant 2 : index
    %c0_35 = arith.constant 0 : index
    %c0_36 = arith.constant 0 : index
    %41 = vector.load %arg4[%c2_34, %c0_35, %c0_36] : memref<5x256x128xbf16, #tpu.memory_space<vmem>>, vector<1x256x128xbf16>
    %42 = vector.shape_cast %41 : vector<1x256x128xbf16> to vector<256x128xbf16>
    %cst_37 = arith.constant dense<0.000000e+00> : vector<208x128xf32>
    %43 = tpu.matmul %40, %42, %cst_37 {dimension_numbers = #tpu.dot_dimension_numbers<[1], [0], [0], [1], [0, 0, 1, 1], [], []>} : vector<208x256xbf16>, vector<256x128xbf16>, vector<208x128xf32> -> vector<208x128xf32>
    %44 = arith.addf %37, %43 : vector<208x128xf32>
    %c32 = arith.constant 32 : index
    %c0_38 = arith.constant 0 : index
    %45 = vector.load %arg15[%c32, %c0_38] : memref<256x128xbf16, #tpu.memory_space<vmem>>, vector<208x128xbf16>
    %c33 = arith.constant 33 : index
    %c0_39 = arith.constant 0 : index
    %46 = vector.load %arg15[%c33, %c0_39] : memref<256x128xbf16, #tpu.memory_space<vmem>>, vector<208x128xbf16>
    %47 = tpu.concatenate %45, %46 in 1 : vector<208x128xbf16>, vector<208x128xbf16> -> vector<208x256xbf16>
    %c3 = arith.constant 3 : index
    %c0_40 = arith.constant 0 : index
    %c0_41 = arith.constant 0 : index
    %48 = vector.load %arg4[%c3, %c0_40, %c0_41] : memref<5x256x128xbf16, #tpu.memory_space<vmem>>, vector<1x256x128xbf16>
    %49 = vector.shape_cast %48 : vector<1x256x128xbf16> to vector<256x128xbf16>
    %cst_42 = arith.constant dense<0.000000e+00> : vector<208x128xf32>
    %50 = tpu.matmul %47, %49, %cst_42 {dimension_numbers = #tpu.dot_dimension_numbers<[1], [0], [0], [1], [0, 0, 1, 1], [], []>} : vector<208x256xbf16>, vector<256x128xbf16>, vector<208x128xf32> -> vector<208x128xf32>
    %51 = arith.addf %44, %50 : vector<208x128xf32>
    %c34 = arith.constant 34 : index
    %c0_43 = arith.constant 0 : index
    %52 = vector.load %arg15[%c34, %c0_43] : memref<256x128xbf16, #tpu.memory_space<vmem>>, vector<208x128xbf16>
    %c4 = arith.constant 4 : index
    %c0_44 = arith.constant 0 : index
    %c0_45 = arith.constant 0 : index
    %53 = vector.load %arg4[%c4, %c0_44, %c0_45] : memref<5x256x128xbf16, #tpu.memory_space<vmem>>, vector<1x128x128xbf16>
    %54 = vector.shape_cast %53 : vector<1x128x128xbf16> to vector<128x128xbf16>
    %cst_46 = arith.constant dense<0.000000e+00> : vector<208x128xf32>
    %55 = tpu.matmul %52, %54, %cst_46 {dimension_numbers = #tpu.dot_dimension_numbers<[1], [0], [0], [1], [0, 0, 1, 1], [], []>} : vector<208x128xbf16>, vector<128x128xbf16>, vector<208x128xf32> -> vector<208x128xf32>
    %56 = arith.addf %51, %55 : vector<208x128xf32>
    %57 = vector.broadcast %24 : vector<1x128xf32> to vector<208x128xf32>
    %58 = arith.addf %56, %57 : vector<208x128xf32>
    %cst_47 = arith.constant 0.000000e+00 : f32
    %59 = vector.broadcast %cst_47 : f32 to vector<208x128xf32>
    %60 = arith.maximumf %58, %59 : vector<208x128xf32>
    %61 = arith.truncf %60 : vector<208x128xf32> to vector<208x128xbf16>
    %c0_48 = arith.constant 0 : index
    %c0_49 = arith.constant 0 : index
    %62 = vector.load %arg16[%c0_48, %c0_49] : memref<224x128xbf16, #tpu.memory_space<vmem>>, vector<208x128xbf16>
    tpu.vector_store %arg16[%c0_48, %c0_49], %61 {strides = array<i32>} : memref<224x128xbf16, #tpu.memory_space<vmem>>, vector<208x128xbf16>,
    %cst_50 = arith.constant 0.000000e+00 : bf16
    %63 = vector.broadcast %cst_50 : bf16 to vector<16x128xbf16>
    %c208 = arith.constant 208 : index
    %c0_51 = arith.constant 0 : index
    %64 = vector.load %arg16[%c208, %c0_51] : memref<224x128xbf16, #tpu.memory_space<vmem>>, vector<16x128xbf16>
    tpu.vector_store %arg16[%c208, %c0_51], %63 {strides = array<i32>} : memref<224x128xbf16, #tpu.memory_space<vmem>>, vector<16x128xbf16>,
    %c0_52 = arith.constant 0 : index
    %c0_53 = arith.constant 0 : index
    %65 = vector.load %arg7[%c0_52, %c0_53] : memref<1x128xf32, #tpu.memory_space<vmem>>, vector<1x128xf32>
    %c0_54 = arith.constant 0 : index
    %c0_55 = arith.constant 0 : index
    %66 = vector.load %arg16[%c0_54, %c0_55] : memref<224x128xbf16, #tpu.memory_space<vmem>>, vector<176x128xbf16>
    %c1_56 = arith.constant 1 : index
    %c0_57 = arith.constant 0 : index
    %67 = vector.load %arg16[%c1_56, %c0_57] : memref<224x128xbf16, #tpu.memory_space<vmem>>, vector<176x128xbf16>
    %68 = tpu.concatenate %66, %67 in 1 : vector<176x128xbf16>, vector<176x128xbf16> -> vector<176x256xbf16>
    %c0_58 = arith.constant 0 : index
    %c0_59 = arith.constant 0 : index
    %c0_60 = arith.constant 0 : index
    %69 = vector.load %arg6[%c0_58, %c0_59, %c0_60] : memref<5x256x128xbf16, #tpu.memory_space<vmem>>, vector<1x256x128xbf16>
    %70 = vector.shape_cast %69 : vector<1x256x128xbf16> to vector<256x128xbf16>
    %cst_61 = arith.constant dense<0.000000e+00> : vector<176x128xf32>
    %71 = tpu.matmul %68, %70, %cst_61 {dimension_numbers = #tpu.dot_dimension_numbers<[1], [0], [0], [1], [0, 0, 1, 1], [], []>} : vector<176x256xbf16>, vector<256x128xbf16>, vector<176x128xf32> -> vector<176x128xf32>
    %c2_62 = arith.constant 2 : index
    %c0_63 = arith.constant 0 : index
    %72 = vector.load %arg16[%c2_62, %c0_63] : memref<224x128xbf16, #tpu.memory_space<vmem>>, vector<176x128xbf16>
    %c16_64 = arith.constant 16 : index
    %c0_65 = arith.constant 0 : index
    %73 = vector.load %arg16[%c16_64, %c0_65] : memref<224x128xbf16, #tpu.memory_space<vmem>>, vector<176x128xbf16>
    %74 = tpu.concatenate %72, %73 in 1 : vector<176x128xbf16>, vector<176x128xbf16> -> vector<176x256xbf16>
    %c1_66 = arith.constant 1 : index
    %c0_67 = arith.constant 0 : index
    %c0_68 = arith.constant 0 : index
    %75 = vector.load %arg6[%c1_66, %c0_67, %c0_68] : memref<5x256x128xbf16, #tpu.memory_space<vmem>>, vector<1x256x128xbf16>
    %76 = vector.shape_cast %75 : vector<1x256x128xbf16> to vector<256x128xbf16>
    %cst_69 = arith.constant dense<0.000000e+00> : vector<176x128xf32>
    %77 = tpu.matmul %74, %76, %cst_69 {dimension_numbers = #tpu.dot_dimension_numbers<[1], [0], [0], [1], [0, 0, 1, 1], [], []>} : vector<176x256xbf16>, vector<256x128xbf16>, vector<176x128xf32> -> vector<176x128xf32>
    %78 = arith.addf %71, %77 : vector<176x128xf32>
    %c17_70 = arith.constant 17 : index
    %c0_71 = arith.constant 0 : index
    %79 = vector.load %arg16[%c17_70, %c0_71] : memref<224x128xbf16, #tpu.memory_space<vmem>>, vector<176x128xbf16>
    %c18_72 = arith.constant 18 : index
    %c0_73 = arith.constant 0 : index
    %80 = vector.load %arg16[%c18_72, %c0_73] : memref<224x128xbf16, #tpu.memory_space<vmem>>, vector<176x128xbf16>
    %81 = tpu.concatenate %79, %80 in 1 : vector<176x128xbf16>, vector<176x128xbf16> -> vector<176x256xbf16>
    %c2_74 = arith.constant 2 : index
    %c0_75 = arith.constant 0 : index
    %c0_76 = arith.constant 0 : index
    %82 = vector.load %arg6[%c2_74, %c0_75, %c0_76] : memref<5x256x128xbf16, #tpu.memory_space<vmem>>, vector<1x256x128xbf16>
    %83 = vector.shape_cast %82 : vector<1x256x128xbf16> to vector<256x128xbf16>
    %cst_77 = arith.constant dense<0.000000e+00> : vector<176x128xf32>
    %84 = tpu.matmul %81, %83, %cst_77 {dimension_numbers = #tpu.dot_dimension_numbers<[1], [0], [0], [1], [0, 0, 1, 1], [], []>} : vector<176x256xbf16>, vector<256x128xbf16>, vector<176x128xf32> -> vector<176x128xf32>
    %85 = arith.addf %78, %84 : vector<176x128xf32>
    %c32_78 = arith.constant 32 : index
    %c0_79 = arith.constant 0 : index
    %86 = vector.load %arg16[%c32_78, %c0_79] : memref<224x128xbf16, #tpu.memory_space<vmem>>, vector<176x128xbf16>
    %c33_80 = arith.constant 33 : index
    %c0_81 = arith.constant 0 : index
    %87 = vector.load %arg16[%c33_80, %c0_81] : memref<224x128xbf16, #tpu.memory_space<vmem>>, vector<176x128xbf16>
    %88 = tpu.concatenate %86, %87 in 1 : vector<176x128xbf16>, vector<176x128xbf16> -> vector<176x256xbf16>
    %c3_82 = arith.constant 3 : index
    %c0_83 = arith.constant 0 : index
    %c0_84 = arith.constant 0 : index
    %89 = vector.load %arg6[%c3_82, %c0_83, %c0_84] : memref<5x256x128xbf16, #tpu.memory_space<vmem>>, vector<1x256x128xbf16>
    %90 = vector.shape_cast %89 : vector<1x256x128xbf16> to vector<256x128xbf16>
    %cst_85 = arith.constant dense<0.000000e+00> : vector<176x128xf32>
    %91 = tpu.matmul %88, %90, %cst_85 {dimension_numbers = #tpu.dot_dimension_numbers<[1], [0], [0], [1], [0, 0, 1, 1], [], []>} : vector<176x256xbf16>, vector<256x128xbf16>, vector<176x128xf32> -> vector<176x128xf32>
    %92 = arith.addf %85, %91 : vector<176x128xf32>
    %c34_86 = arith.constant 34 : index
    %c0_87 = arith.constant 0 : index
    %93 = vector.load %arg16[%c34_86, %c0_87] : memref<224x128xbf16, #tpu.memory_space<vmem>>, vector<176x128xbf16>
    %c4_88 = arith.constant 4 : index
    %c0_89 = arith.constant 0 : index
    %c0_90 = arith.constant 0 : index
    %94 = vector.load %arg6[%c4_88, %c0_89, %c0_90] : memref<5x256x128xbf16, #tpu.memory_space<vmem>>, vector<1x128x128xbf16>
    %95 = vector.shape_cast %94 : vector<1x128x128xbf16> to vector<128x128xbf16>
    %cst_91 = arith.constant dense<0.000000e+00> : vector<176x128xf32>
    %96 = tpu.matmul %93, %95, %cst_91 {dimension_numbers = #tpu.dot_dimension_numbers<[1], [0], [0], [1], [0, 0, 1, 1], [], []>} : vector<176x128xbf16>, vector<128x128xbf16>, vector<176x128xf32> -> vector<176x128xf32>
    %97 = arith.addf %92, %96 : vector<176x128xf32>
    %98 = vector.broadcast %65 : vector<1x128xf32> to vector<176x128xf32>
    %99 = arith.addf %97, %98 : vector<176x128xf32>
    %cst_92 = arith.constant 0.000000e+00 : f32
    %100 = vector.broadcast %cst_92 : f32 to vector<176x128xf32>
    %101 = arith.maximumf %99, %100 : vector<176x128xf32>
    %102 = vector.extract_strided_slice %101 {offsets = [0, 0], sizes = [160, 128], strides = [1, 1]} : vector<176x128xf32> to vector<160x128xf32>
    %103 = vector.shape_cast %102 : vector<160x128xf32> to vector<5x2x16x128xf32>
    %104 = vector.extract_strided_slice %103 {offsets = [0, 0, 0, 0], sizes = [5, 1, 16, 128], strides = [1, 1, 1, 1]} : vector<5x2x16x128xf32> to vector<5x1x16x128xf32>
    %105 = vector.shape_cast %104 : vector<5x1x16x128xf32> to vector<5x16x128xf32>
    %106 = vector.extract_strided_slice %103 {offsets = [0, 1, 0, 0], sizes = [5, 1, 16, 128], strides = [1, 1, 1, 1]} : vector<5x2x16x128xf32> to vector<5x1x16x128xf32>
    %107 = vector.shape_cast %106 : vector<5x1x16x128xf32> to vector<5x16x128xf32>
    %108 = arith.maximumf %105, %107 : vector<5x16x128xf32>
    %109 = vector.shape_cast %108 : vector<5x16x128xf32> to vector<80x128xf32>
    %c0_93 = arith.constant 0 : index
    %c0_94 = arith.constant 0 : index
    %110 = vector.load %arg18[%c0_93, %c0_94] : memref<480x128xf32, #tpu.memory_space<vmem>>, vector<80x128xf32>
    tpu.vector_store %arg18[%c0_93, %c0_94], %109 {strides = array<i32>} : memref<480x128xf32, #tpu.memory_space<vmem>>, vector<80x128xf32>,
    %c0_95 = arith.constant 0 : index
    %c0_96 = arith.constant 0 : index
    %111 = tpu.strided_load %arg18[%c0_95, %c0_96] {strides = array<i32: 2, 1>} : memref<480x128xf32, #tpu.memory_space<vmem>>, vector<40x128xf32>
    %c1_97 = arith.constant 1 : index
    %c0_98 = arith.constant 0 : index
    %112 = tpu.strided_load %arg18[%c1_97, %c0_98] {strides = array<i32: 2, 1>} : memref<480x128xf32, #tpu.memory_space<vmem>>, vector<40x128xf32>
    %113 = arith.maximumf %111, %112 : vector<40x128xf32>
    %114 = arith.truncf %113 : vector<40x128xf32> to vector<40x128xbf16>
    %c0_99 = arith.constant 0 : index
    %c0_100 = arith.constant 0 : index
    %115 = vector.load %arg17[%c0_99, %c0_100] : memref<48x128xbf16, #tpu.memory_space<vmem>>, vector<40x128xbf16>
    tpu.vector_store %arg17[%c0_99, %c0_100], %114 {strides = array<i32>} : memref<48x128xbf16, #tpu.memory_space<vmem>>, vector<40x128xbf16>,
    %cst_101 = arith.constant 0.000000e+00 : bf16
    %116 = vector.broadcast %cst_101 : bf16 to vector<8x128xbf16>
    %c40 = arith.constant 40 : index
    %c0_102 = arith.constant 0 : index
    %117 = vector.load %arg17[%c40, %c0_102] : memref<48x128xbf16, #tpu.memory_space<vmem>>, vector<8x128xbf16>
    tpu.vector_store %arg17[%c40, %c0_102], %116 {strides = array<i32>} : memref<48x128xbf16, #tpu.memory_space<vmem>>, vector<8x128xbf16>,
    %c0_103 = arith.constant 0 : index
    %c0_104 = arith.constant 0 : index
    %118 = vector.load %arg9[%c0_103, %c0_104] : memref<1x128xf32, #tpu.memory_space<vmem>>, vector<1x128xf32>
    %c0_105 = arith.constant 0 : index
    %c0_106 = arith.constant 0 : index
    %119 = vector.load %arg17[%c0_105, %c0_106] : memref<48x128xbf16, #tpu.memory_space<vmem>>, vector<24x128xbf16>
    %c1_107 = arith.constant 1 : index
    %c0_108 = arith.constant 0 : index
    %120 = vector.load %arg17[%c1_107, %c0_108] : memref<48x128xbf16, #tpu.memory_space<vmem>>, vector<24x128xbf16>
    %121 = tpu.concatenate %119, %120 in 1 : vector<24x128xbf16>, vector<24x128xbf16> -> vector<24x256xbf16>
    %c0_109 = arith.constant 0 : index
    %c0_110 = arith.constant 0 : index
    %c0_111 = arith.constant 0 : index
    %122 = vector.load %arg8[%c0_109, %c0_110, %c0_111] : memref<5x256x128xbf16, #tpu.memory_space<vmem>>, vector<1x256x128xbf16>
    %123 = vector.shape_cast %122 : vector<1x256x128xbf16> to vector<256x128xbf16>
    %cst_112 = arith.constant dense<0.000000e+00> : vector<24x128xf32>
    %124 = tpu.matmul %121, %123, %cst_112 {dimension_numbers = #tpu.dot_dimension_numbers<[1], [0], [0], [1], [0, 0, 1, 1], [], []>} : vector<24x256xbf16>, vector<256x128xbf16>, vector<24x128xf32> -> vector<24x128xf32>
    %c2_113 = arith.constant 2 : index
    %c0_114 = arith.constant 0 : index
    %125 = vector.load %arg17[%c2_113, %c0_114] : memref<48x128xbf16, #tpu.memory_space<vmem>>, vector<24x128xbf16>
    %c8 = arith.constant 8 : index
    %c0_115 = arith.constant 0 : index
    %126 = vector.load %arg17[%c8, %c0_115] : memref<48x128xbf16, #tpu.memory_space<vmem>>, vector<24x128xbf16>
    %127 = tpu.concatenate %125, %126 in 1 : vector<24x128xbf16>, vector<24x128xbf16> -> vector<24x256xbf16>
    %c1_116 = arith.constant 1 : index
    %c0_117 = arith.constant 0 : index
    %c0_118 = arith.constant 0 : index
    %128 = vector.load %arg8[%c1_116, %c0_117, %c0_118] : memref<5x256x128xbf16, #tpu.memory_space<vmem>>, vector<1x256x128xbf16>
    %129 = vector.shape_cast %128 : vector<1x256x128xbf16> to vector<256x128xbf16>
    %cst_119 = arith.constant dense<0.000000e+00> : vector<24x128xf32>
    %130 = tpu.matmul %127, %129, %cst_119 {dimension_numbers = #tpu.dot_dimension_numbers<[1], [0], [0], [1], [0, 0, 1, 1], [], []>} : vector<24x256xbf16>, vector<256x128xbf16>, vector<24x128xf32> -> vector<24x128xf32>
    %131 = arith.addf %124, %130 : vector<24x128xf32>
    %c9 = arith.constant 9 : index
    %c0_120 = arith.constant 0 : index
    %132 = vector.load %arg17[%c9, %c0_120] : memref<48x128xbf16, #tpu.memory_space<vmem>>, vector<24x128xbf16>
    %c10 = arith.constant 10 : index
    %c0_121 = arith.constant 0 : index
    %133 = vector.load %arg17[%c10, %c0_121] : memref<48x128xbf16, #tpu.memory_space<vmem>>, vector<24x128xbf16>
    %134 = tpu.concatenate %132, %133 in 1 : vector<24x128xbf16>, vector<24x128xbf16> -> vector<24x256xbf16>
    %c2_122 = arith.constant 2 : index
    %c0_123 = arith.constant 0 : index
    %c0_124 = arith.constant 0 : index
    %135 = vector.load %arg8[%c2_122, %c0_123, %c0_124] : memref<5x256x128xbf16, #tpu.memory_space<vmem>>, vector<1x256x128xbf16>
    %136 = vector.shape_cast %135 : vector<1x256x128xbf16> to vector<256x128xbf16>
    %cst_125 = arith.constant dense<0.000000e+00> : vector<24x128xf32>
    %137 = tpu.matmul %134, %136, %cst_125 {dimension_numbers = #tpu.dot_dimension_numbers<[1], [0], [0], [1], [0, 0, 1, 1], [], []>} : vector<24x256xbf16>, vector<256x128xbf16>, vector<24x128xf32> -> vector<24x128xf32>
    %138 = arith.addf %131, %137 : vector<24x128xf32>
    %c16_126 = arith.constant 16 : index
    %c0_127 = arith.constant 0 : index
    %139 = vector.load %arg17[%c16_126, %c0_127] : memref<48x128xbf16, #tpu.memory_space<vmem>>, vector<24x128xbf16>
    %c17_128 = arith.constant 17 : index
    %c0_129 = arith.constant 0 : index
    %140 = vector.load %arg17[%c17_128, %c0_129] : memref<48x128xbf16, #tpu.memory_space<vmem>>, vector<24x128xbf16>
    %141 = tpu.concatenate %139, %140 in 1 : vector<24x128xbf16>, vector<24x128xbf16> -> vector<24x256xbf16>
    %c3_130 = arith.constant 3 : index
    %c0_131 = arith.constant 0 : index
    %c0_132 = arith.constant 0 : index
    %142 = vector.load %arg8[%c3_130, %c0_131, %c0_132] : memref<5x256x128xbf16, #tpu.memory_space<vmem>>, vector<1x256x128xbf16>
    %143 = vector.shape_cast %142 : vector<1x256x128xbf16> to vector<256x128xbf16>
    %cst_133 = arith.constant dense<0.000000e+00> : vector<24x128xf32>
    %144 = tpu.matmul %141, %143, %cst_133 {dimension_numbers = #tpu.dot_dimension_numbers<[1], [0], [0], [1], [0, 0, 1, 1], [], []>} : vector<24x256xbf16>, vector<256x128xbf16>, vector<24x128xf32> -> vector<24x128xf32>
    %145 = arith.addf %138, %144 : vector<24x128xf32>
    %c18_134 = arith.constant 18 : index
    %c0_135 = arith.constant 0 : index
    %146 = vector.load %arg17[%c18_134, %c0_135] : memref<48x128xbf16, #tpu.memory_space<vmem>>, vector<24x128xbf16>
    %c4_136 = arith.constant 4 : index
    %c0_137 = arith.constant 0 : index
    %c0_138 = arith.constant 0 : index
    %147 = vector.load %arg8[%c4_136, %c0_137, %c0_138] : memref<5x256x128xbf16, #tpu.memory_space<vmem>>, vector<1x128x128xbf16>
    %148 = vector.shape_cast %147 : vector<1x128x128xbf16> to vector<128x128xbf16>
    %cst_139 = arith.constant dense<0.000000e+00> : vector<24x128xf32>
    %149 = tpu.matmul %146, %148, %cst_139 {dimension_numbers = #tpu.dot_dimension_numbers<[1], [0], [0], [1], [0, 0, 1, 1], [], []>} : vector<24x128xbf16>, vector<128x128xbf16>, vector<24x128xf32> -> vector<24x128xf32>
    %150 = arith.addf %145, %149 : vector<24x128xf32>
    %151 = vector.broadcast %118 : vector<1x128xf32> to vector<24x128xf32>
    %152 = arith.addf %150, %151 : vector<24x128xf32>
    %cst_140 = arith.constant 0.000000e+00 : f32
    %153 = vector.broadcast %cst_140 : f32 to vector<24x128xf32>
    %154 = arith.maximumf %152, %153 : vector<24x128xf32>
    %155 = vector.extract_strided_slice %154 {offsets = [0, 0], sizes = [16, 128], strides = [1, 1]} : vector<24x128xf32> to vector<16x128xf32>
    %156 = vector.shape_cast %155 : vector<16x128xf32> to vector<1x2x8x128xf32>
    %157 = vector.extract_strided_slice %156 {offsets = [0, 0, 0, 0], sizes = [1, 1, 8, 128], strides = [1, 1, 1, 1]} : vector<1x2x8x128xf32> to vector<1x1x8x128xf32>
    %158 = vector.shape_cast %157 : vector<1x1x8x128xf32> to vector<1x8x128xf32>
    %159 = vector.extract_strided_slice %156 {offsets = [0, 1, 0, 0], sizes = [1, 1, 8, 128], strides = [1, 1, 1, 1]} : vector<1x2x8x128xf32> to vector<1x1x8x128xf32>
    %160 = vector.shape_cast %159 : vector<1x1x8x128xf32> to vector<1x8x128xf32>
    %161 = arith.maximumf %158, %160 : vector<1x8x128xf32>
    %162 = vector.shape_cast %161 : vector<1x8x128xf32> to vector<8x128xf32>
    %c0_141 = arith.constant 0 : index
    %c0_142 = arith.constant 0 : index
    %163 = vector.load %arg18[%c0_141, %c0_142] : memref<480x128xf32, #tpu.memory_space<vmem>>, vector<8x128xf32>
    tpu.vector_store %arg18[%c0_141, %c0_142], %162 {strides = array<i32>} : memref<480x128xf32, #tpu.memory_space<vmem>>, vector<8x128xf32>,
    %c0_143 = arith.constant 0 : index
    %c0_144 = arith.constant 0 : index
    %164 = tpu.strided_load %arg18[%c0_143, %c0_144] {strides = array<i32: 2, 1>} : memref<480x128xf32, #tpu.memory_space<vmem>>, vector<4x128xf32>
    %c1_145 = arith.constant 1 : index
    %c0_146 = arith.constant 0 : index
    %165 = tpu.strided_load %arg18[%c1_145, %c0_146] {strides = array<i32: 2, 1>} : memref<480x128xf32, #tpu.memory_space<vmem>>, vector<4x128xf32>
    %166 = arith.maximumf %164, %165 : vector<4x128xf32>
    %167 = vector.extract_strided_slice %166 {offsets = [0, 0], sizes = [1, 128], strides = [1, 1]} : vector<4x128xf32> to vector<1x128xf32>
    %168 = arith.truncf %167 : vector<1x128xf32> to vector<1x128xbf16>
    %c0_147 = arith.constant 0 : index
    %c0_148 = arith.constant 0 : index
    %169 = vector.load %arg10[%c0_147, %c0_148] : memref<128x1024xbf16, #tpu.memory_space<vmem>>, vector<128x1024xbf16>
    %cst_149 = arith.constant dense<0.000000e+00> : vector<1x1024xf32>
    %170 = tpu.matmul %168, %169, %cst_149 {dimension_numbers = #tpu.dot_dimension_numbers<[1], [0], [0], [1], [0, 0, 1, 1], [], []>} : vector<1x128xbf16>, vector<128x1024xbf16>, vector<1x1024xf32> -> vector<1x1024xf32>
    %c0_150 = arith.constant 0 : index
    %c0_151 = arith.constant 0 : index
    %171 = vector.load %arg11[%c0_150, %c0_151] : memref<1x1024xf32, #tpu.memory_space<vmem>>, vector<1x1024xf32>
    %172 = arith.addf %170, %171 : vector<1x1024xf32>
    %cst_152 = arith.constant 0.000000e+00 : f32
    %173 = vector.broadcast %cst_152 : f32 to vector<1x1024xf32>
    %174 = arith.maximumf %172, %173 : vector<1x1024xf32>
    %175 = arith.truncf %174 : vector<1x1024xf32> to vector<1x1024xbf16>
    %c0_153 = arith.constant 0 : index
    %c0_154 = arith.constant 0 : index
    %176 = vector.load %arg12[%c0_153, %c0_154] : memref<1024x128xbf16, #tpu.memory_space<vmem>>, vector<1024x128xbf16>
    %cst_155 = arith.constant dense<0.000000e+00> : vector<1x128xf32>
    %177 = tpu.matmul %175, %176, %cst_155 {dimension_numbers = #tpu.dot_dimension_numbers<[1], [0], [0], [1], [0, 0, 1, 1], [], []>} : vector<1x1024xbf16>, vector<1024x128xbf16>, vector<1x128xf32> -> vector<1x128xf32>
    %c0_156 = arith.constant 0 : index
    %c0_157 = arith.constant 0 : index
    %178 = vector.load %arg13[%c0_156, %c0_157] : memref<1x128xf32, #tpu.memory_space<vmem>>, vector<1x128xf32>
    %179 = arith.addf %177, %178 : vector<1x128xf32>
    %c0_158 = arith.constant 0 : index
    %c0_159 = arith.constant 0 : index
    %c0_160 = arith.constant 0 : index
    %180 = vector.load %arg14[%c0_158, %c0_159, %c0_160] : memref<1x1x128xf32, #tpu.memory_space<vmem>>, vector<1x1x128xf32>
    %181 = vector.shape_cast %180 : vector<1x1x128xf32> to vector<1x128xf32>
    %182 = vector.shape_cast %179 : vector<1x128xf32> to vector<1x1x128xf32>
    tpu.vector_store %arg14[%c0_158, %c0_159, %c0_160], %182 {strides = array<i32>} : memref<1x1x128xf32, #tpu.memory_space<vmem>>, vector<1x1x128xf32>,
    return
  }
  func.func @transform_0(%arg0: i32) -> (i32, i32, i32) {
    %c0_i32 = arith.constant 0 : i32
    %c0_i32_0 = arith.constant 0 : i32
    %c0_i32_1 = arith.constant 0 : i32
    return %arg0, %c0_i32, %c0_i32_0 : i32, i32, i32
  }
  func.func @transform_1(%arg0: i32) -> (i32, i32) {
    %c0_i32 = arith.constant 0 : i32
    %c0_i32_0 = arith.constant 0 : i32
    %c0_i32_1 = arith.constant 0 : i32
    return %c0_i32, %c0_i32_0 : i32, i32
  }
  func.func @transform_2(%arg0: i32) -> (i32, i32) {
    %c0_i32 = arith.constant 0 : i32
    %c0_i32_0 = arith.constant 0 : i32
    %c0_i32_1 = arith.constant 0 : i32
    return %c0_i32, %c0_i32_0 : i32, i32
  }
  func.func @transform_3(%arg0: i32) -> (i32, i32, i32) {
    %c0_i32 = arith.constant 0 : i32
    %c0_i32_0 = arith.constant 0 : i32
    %c0_i32_1 = arith.constant 0 : i32
    %c0_i32_2 = arith.constant 0 : i32
    return %c0_i32, %c0_i32_0, %c0_i32_1 : i32, i32, i32
  }
  func.func @transform_4(%arg0: i32) -> (i32, i32) {
    %c0_i32 = arith.constant 0 : i32
    %c0_i32_0 = arith.constant 0 : i32
    %c0_i32_1 = arith.constant 0 : i32
    return %c0_i32, %c0_i32_0 : i32, i32
  }
  func.func @transform_5(%arg0: i32) -> (i32, i32, i32) {
    %c0_i32 = arith.constant 0 : i32
    %c0_i32_0 = arith.constant 0 : i32
    %c0_i32_1 = arith.constant 0 : i32
    %c0_i32_2 = arith.constant 0 : i32
    return %c0_i32, %c0_i32_0, %c0_i32_1 : i32, i32, i32
  }
  func.func @transform_6(%arg0: i32) -> (i32, i32) {
    %c0_i32 = arith.constant 0 : i32
    %c0_i32_0 = arith.constant 0 : i32
    %c0_i32_1 = arith.constant 0 : i32
    return %c0_i32, %c0_i32_0 : i32, i32
  }
  func.func @transform_7(%arg0: i32) -> (i32, i32, i32) {
    %c0_i32 = arith.constant 0 : i32
    %c0_i32_0 = arith.constant 0 : i32
    %c0_i32_1 = arith.constant 0 : i32
    %c0_i32_2 = arith.constant 0 : i32
    return %c0_i32, %c0_i32_0, %c0_i32_1 : i32, i32, i32
  }
  func.func @transform_8(%arg0: i32) -> (i32, i32) {
    %c0_i32 = arith.constant 0 : i32
    %c0_i32_0 = arith.constant 0 : i32
    %c0_i32_1 = arith.constant 0 : i32
    return %c0_i32, %c0_i32_0 : i32, i32
  }
  func.func @transform_9(%arg0: i32) -> (i32, i32) {
    %c0_i32 = arith.constant 0 : i32
    %c0_i32_0 = arith.constant 0 : i32
    %c0_i32_1 = arith.constant 0 : i32
    return %c0_i32, %c0_i32_0 : i32, i32
  }
  func.func @transform_10(%arg0: i32) -> (i32, i32) {
    %c0_i32 = arith.constant 0 : i32
    %c0_i32_0 = arith.constant 0 : i32
    %c0_i32_1 = arith.constant 0 : i32
    return %c0_i32, %c0_i32_0 : i32, i32
  }
  func.func @transform_11(%arg0: i32) -> (i32, i32) {
    %c0_i32 = arith.constant 0 : i32
    %c0_i32_0 = arith.constant 0 : i32
    %c0_i32_1 = arith.constant 0 : i32
    return %c0_i32, %c0_i32_0 : i32, i32
  }
  func.func @transform_12(%arg0: i32) -> (i32, i32) {
    %c0_i32 = arith.constant 0 : i32
    %c0_i32_0 = arith.constant 0 : i32
    %c0_i32_1 = arith.constant 0 : i32
    return %c0_i32, %c0_i32_0 : i32, i32
  }
  func.func @transform_13(%arg0: i32) -> (i32, i32, i32) {
    %c0_i32 = arith.constant 0 : i32
    %c0_i32_0 = arith.constant 0 : i32
    %c0_i32_1 = arith.constant 0 : i32
    return %arg0, %c0_i32, %c0_i32_0 : i32, i32, i32
  }
}

</mosaic_0001>

<llo_original>
// kernel: cnn_forward.1
$region0: #{cnn_forward.1}
  #allocation0 [shape = 'u32[]', space=smem, size = 0x4, offset = 0x4, fixed_abs, tag = 'smem constant byte address 0x4 - core index']
  #allocation1 [shape = 'u32[144,128]{1,0:T(1,128)}', space=vmem, size = 0x12000, scoped, tag = 'internal scratch']
  #allocation2 [shape = 'bf16[256,128]{1,0:T(8,128)(2,1)}', space=vmem, size = 0x10000, scoped, tag = 'scratch operand']
  #allocation3 [shape = 'bf16[224,128]{1,0:T(8,128)(2,1)}', space=vmem, size = 0xe000, scoped, tag = 'scratch operand']
  #allocation4 [shape = 'bf16[48,128]{1,0:T(8,128)(2,1)}', space=vmem, size = 0x3000, scoped, tag = 'scratch operand']
  #allocation5 [shape = 'f32[480,128]{1,0:T(8,128)}', space=vmem, size = 0x3c000, scoped, tag = 'scratch operand']
  %s0 = inlined_call_operand.vmem [shape: bf16[2,960,36], index: 0, kind: input, shape index: {}]
  %s1 = inlined_call_operand.vmem [shape: bf16[36,128], index: 1, kind: input, shape index: {}]
  %s2 = inlined_call_operand.vmem [shape: f32[1,128], index: 2, kind: input, shape index: {}]
  %s3 = inlined_call_operand.vmem [shape: bf16[5,256,128], index: 3, kind: input, shape index: {}]
  %s4 = inlined_call_operand.vmem [shape: f32[1,128], index: 4, kind: input, shape index: {}]
  %s5 = inlined_call_operand.vmem [shape: bf16[5,256,128], index: 5, kind: input, shape index: {}]
  %s6 = inlined_call_operand.vmem [shape: f32[1,128], index: 6, kind: input, shape index: {}]
  %s7 = inlined_call_operand.vmem [shape: bf16[5,256,128], index: 7, kind: input, shape index: {}]
  %s8 = inlined_call_operand.vmem [shape: f32[1,128], index: 8, kind: input, shape index: {}]
  %s9 = inlined_call_operand.hbm [shape: bf16[128,1024], index: 9, kind: input, shape index: {}]
  %s10 = inlined_call_operand.vmem [shape: f32[1,1024], index: 10, kind: input, shape index: {}]
  %s11 = inlined_call_operand.hbm [shape: bf16[1024,128], index: 11, kind: input, shape index: {}]
  %s12 = inlined_call_operand.vmem [shape: f32[1,128], index: 12, kind: input, shape index: {}]
  %s13 = inlined_call_operand.hbm [shape: f32[2,1,128], index: 13, kind: output, shape index: {}]
  %s14 = sld [smem:[#allocation0]]
  $region93: #{cnn_forward.1} parent=0
    _
  %s16 = ssub.s32 1, %s14
  %s17 = scalar_select 0, %s16, %s14
  $region1: #{cnn_forward.1} parent=0
    #allocation6 [shape = 'u8[262144]{0}', space=vmem, size = 0x40000, scoped, tag = 'input window, operand 9, single buffered']
    #allocation7 [shape = 's32[2]{0}', space=sflag, size = 0x8, scoped, tag = 'scoped memory for cnn_forward.1']
    #allocation8 [shape = 's32[2]{0}', space=sflag, size = 0x8, scoped, tag = 'scoped memory for cnn_forward.1']
    #allocation9 [shape = 'u8[262144]{0}', space=vmem, size = 0x40000, scoped, tag = 'input window, operand 11, single buffered']
    #allocation10 [shape = 's32[1]{0}', space=sflag, size = 0x4, scoped, tag = 'scoped memory for cnn_forward.1']
    #allocation11 [shape = 'u8[1024]{0}', space=vmem, size = 0x400, scoped, tag = 'output window, operand 0']
    %18 = vsyncpa [#allocation7], 0
    %19 = vsyncpa [#allocation10], 0
    %20 = vsyncpa [#allocation8], 0
    %s21 = scalar_lea.sflag [#allocation8], 1
    %22 = vsyncpa %s21, 0
    loop: start=0, step=1, limit=4
    $region2: #{cnn_forward.1} parent=1 // loop_pre_header
      _
    $region3: #{cnn_forward.1} parent=1 // loop_header
      %s24 = sphi 0, %s28
      %p25 = scmp.ge.s32.totalorder %s24, 4
      %s34 = sphi 0, %s36
      %s37 = sphi 0, %s34
      %s38 = sphi 0, %s37
      %s54 = sphi 0, %s38
      %s58 = sphi 0, %s58
      %s60 = sphi 0, %s58
      %s61 = sphi 0, %s60
      %s75 = sphi 0, %s61
      %s79 = sphi 0, %s79
      %s81 = sphi 0, %s79
      %s82 = sphi 0, %s81
      %s96 = sphi 0, %s82
      %s100 = sphi 0, %s100
      %s102 = sphi 0, %s100
      %s103 = sphi 0, %s102
      %s117 = sphi 0, %s103
      %s121 = sphi 0, %s121
      %s123 = sphi 0, %s121
      %s124 = sphi 0, %s123
      %s138 = sphi 0, %s124
      %s142 = sphi 0, %s142
      %s144 = sphi 0, %s142
      %s145 = sphi 0, %s144
      %s159 = sphi 0, %s145
      %s163 = sphi 0, %s163
      %s165 = sphi 0, %s163
      %s166 = sphi 0, %s165
      %s180 = sphi 0, %s166
      %s184 = sphi 0, %s184
      %s186 = sphi 0, %s184
      %s187 = sphi 0, %s186
      %s201 = sphi 0, %s187
      %s205 = sphi 0, %s205
      %s207 = sphi 0, %s205
      %s208 = sphi 0, %s207
      %s222 = sphi 0, %s208
      %s226 = sphi 0, %s226
      %s228 = sphi 0, %s226
      %s229 = sphi 0, %s228
      %s243 = sphi 0, %s229
      %s247 = sphi 0, %s247
      %s249 = sphi 0, %s247
      %s250 = sphi 0, %s249
      %s264 = sphi 0, %s250
      %s268 = sphi 0, %s268
      %s270 = sphi 0, %s268
      %s271 = sphi 0, %s270
      %s285 = sphi 0, %s271
      %s289 = sphi 0, %s289
      %s291 = sphi 0, %s289
      %s292 = sphi 0, %s291
      %s306 = sphi 0, %s292
      %s312 = sphi 0, %s314
      %s315 = sphi 0, %s312
      %s316 = sphi 0, %s315
      %s332 = sphi 0, %s316
    $region4: #{cnn_forward.1} parent=1 // loop_header_branch
      %27 = sbr.rel (%p25) target = $region8
    $region5: #{cnn_forward.1} parent=1 // loop_body
      %s29 = ssub.s32 %s24, 1
      %s30 = ssub.s32 %s24, 2
      %s31 = sadd.s32 %s24, 1
      %s32 = ssub.s32 %s24, %s31
      %p33 = scmp.eq.s32.totalorder %s32, 0
      %s35 = sadd.s32 %s34, 1
      %s36 = scalar_select %p33, %s34, %s35
      %p39 = pneg %p33
      %p40 = scmp.eq.s32.totalorder %s24, 1
      %p41 = por %p39, %p40
      %p42 = scmp.ne.s32.totalorder %s34, %s37
      %p43 = scmp.eq.s32.totalorder %s24, 0
      %p44 = por %p42, %p43
      %p45 = scmp.ne.s32.totalorder %s34, %s37
      %p46 = scmp.eq.s32.totalorder %s29, 1
      %p47 = por %p45, %p46
      %p48 = scmp.ne.s32.totalorder %s37, %s38
      %p49 = scmp.eq.s32.totalorder %s29, 0
      %p50 = por %p48, %p49
      %p51 = scmp.ne.s32.totalorder %s37, %s38
      %p52 = scmp.eq.s32.totalorder %s30, 1
      %p53 = por %p51, %p52
      %p55 = scmp.ne.s32.totalorder %s38, %s54
      %p56 = scmp.eq.s32.totalorder %s30, 0
      %p57 = por %p55, %p56
      %s59 = sadd.s32 %s58, 1
      %p62 = scmp.eq.s32.totalorder %s24, 1
      %p63 = scmp.ne.s32.totalorder %s58, %s60
      %p64 = scmp.eq.s32.totalorder %s24, 0
      %p65 = por %p63, %p64
      %p66 = scmp.ne.s32.totalorder %s58, %s60
      %p67 = scmp.eq.s32.totalorder %s29, 1
      %p68 = por %p66, %p67
      %p69 = scmp.ne.s32.totalorder %s60, %s61
      %p70 = scmp.eq.s32.totalorder %s29, 0
      %p71 = por %p69, %p70
      %p72 = scmp.ne.s32.totalorder %s60, %s61
      %p73 = scmp.eq.s32.totalorder %s30, 1
      %p74 = por %p72, %p73
      %p76 = scmp.ne.s32.totalorder %s61, %s75
      %p77 = scmp.eq.s32.totalorder %s30, 0
      %p78 = por %p76, %p77
      %s80 = sadd.s32 %s79, 1
      %p83 = scmp.eq.s32.totalorder %s24, 1
      %p84 = scmp.ne.s32.totalorder %s79, %s81
      %p85 = scmp.eq.s32.totalorder %s24, 0
      %p86 = por %p84, %p85
      %p87 = scmp.ne.s32.totalorder %s79, %s81
      %p88 = scmp.eq.s32.totalorder %s29, 1
      %p89 = por %p87, %p88
      %p90 = scmp.ne.s32.totalorder %s81, %s82
      %p91 = scmp.eq.s32.totalorder %s29, 0
      %p92 = por %p90, %p91
      %p93 = scmp.ne.s32.totalorder %s81, %s82
      %p94 = scmp.eq.s32.totalorder %s30, 1
      %p95 = por %p93, %p94
      %p97 = scmp.ne.s32.totalorder %s82, %s96
      %p98 = scmp.eq.s32.totalorder %s30, 0
      %p99 = por %p97, %p98
      %s101 = sadd.s32 %s100, 1
      %p104 = scmp.eq.s32.totalorder %s24, 1
      %p105 = scmp.ne.s32.totalorder %s100, %s102
      %p106 = scmp.eq.s32.totalorder %s24, 0
      %p107 = por %p105, %p106
      %p108 = scmp.ne.s32.totalorder %s100, %s102
      %p109 = scmp.eq.s32.totalorder %s29, 1
      %p110 = por %p108, %p109
      %p111 = scmp.ne.s32.totalorder %s102, %s103
      %p112 = scmp.eq.s32.totalorder %s29, 0
      %p113 = por %p111, %p112
      %p114 = scmp.ne.s32.totalorder %s102, %s103
      %p115 = scmp.eq.s32.totalorder %s30, 1
      %p116 = por %p114, %p115
      %p118 = scmp.ne.s32.totalorder %s103, %s117
      %p119 = scmp.eq.s32.totalorder %s30, 0
      %p120 = por %p118, %p119
      %s122 = sadd.s32 %s121, 1
      %p125 = scmp.eq.s32.totalorder %s24, 1
      %p126 = scmp.ne.s32.totalorder %s121, %s123
      %p127 = scmp.eq.s32.totalorder %s24, 0
      %p128 = por %p126, %p127
      %p129 = scmp.ne.s32.totalorder %s121, %s123
      %p130 = scmp.eq.s32.totalorder %s29, 1
      %p131 = por %p129, %p130
      %p132 = scmp.ne.s32.totalorder %s123, %s124
      %p133 = scmp.eq.s32.totalorder %s29, 0
      %p134 = por %p132, %p133
      %p135 = scmp.ne.s32.totalorder %s123, %s124
      %p136 = scmp.eq.s32.totalorder %s30, 1
      %p137 = por %p135, %p136
      %p139 = scmp.ne.s32.totalorder %s124, %s138
      %p140 = scmp.eq.s32.totalorder %s30, 0
      %p141 = por %p139, %p140
      %s143 = sadd.s32 %s142, 1
      %p146 = scmp.eq.s32.totalorder %s24, 1
      %p147 = scmp.ne.s32.totalorder %s142, %s144
      %p148 = scmp.eq.s32.totalorder %s24, 0
      %p149 = por %p147, %p148
      %p150 = scmp.ne.s32.totalorder %s142, %s144
      %p151 = scmp.eq.s32.totalorder %s29, 1
      %p152 = por %p150, %p151
      %p153 = scmp.ne.s32.totalorder %s144, %s145
      %p154 = scmp.eq.s32.totalorder %s29, 0
      %p155 = por %p153, %p154
      %p156 = scmp.ne.s32.totalorder %s144, %s145
      %p157 = scmp.eq.s32.totalorder %s30, 1
      %p158 = por %p156, %p157
      %p160 = scmp.ne.s32.totalorder %s145, %s159
      %p161 = scmp.eq.s32.totalorder %s30, 0
      %p162 = por %p160, %p161
      %s164 = sadd.s32 %s163, 1
      %p167 = scmp.eq.s32.totalorder %s24, 1
      %p168 = scmp.ne.s32.totalorder %s163, %s165
      %p169 = scmp.eq.s32.totalorder %s24, 0
      %p170 = por %p168, %p169
      %p171 = scmp.ne.s32.totalorder %s163, %s165
      %p172 = scmp.eq.s32.totalorder %s29, 1
      %p173 = por %p171, %p172
      %p174 = scmp.ne.s32.totalorder %s165, %s166
      %p175 = scmp.eq.s32.totalorder %s29, 0
      %p176 = por %p174, %p175
      %p177 = scmp.ne.s32.totalorder %s165, %s166
      %p178 = scmp.eq.s32.totalorder %s30, 1
      %p179 = por %p177, %p178
      %p181 = scmp.ne.s32.totalorder %s166, %s180
      %p182 = scmp.eq.s32.totalorder %s30, 0
      %p183 = por %p181, %p182
      %s185 = sadd.s32 %s184, 1
      %p188 = scmp.eq.s32.totalorder %s24, 1
      %p189 = scmp.ne.s32.totalorder %s184, %s186
      %p190 = scmp.eq.s32.totalorder %s24, 0
      %p191 = por %p189, %p190
      %p192 = scmp.ne.s32.totalorder %s184, %s186
      %p193 = scmp.eq.s32.totalorder %s29, 1
      %p194 = por %p192, %p193
      %p195 = scmp.ne.s32.totalorder %s186, %s187
      %p196 = scmp.eq.s32.totalorder %s29, 0
      %p197 = por %p195, %p196
      %p198 = scmp.ne.s32.totalorder %s186, %s187
      %p199 = scmp.eq.s32.totalorder %s30, 1
      %p200 = por %p198, %p199
      %p202 = scmp.ne.s32.totalorder %s187, %s201
      %p203 = scmp.eq.s32.totalorder %s30, 0
      %p204 = por %p202, %p203
      %s206 = sadd.s32 %s205, 1
      %p209 = scmp.eq.s32.totalorder %s24, 1
      %p210 = scmp.ne.s32.totalorder %s205, %s207
      %p211 = scmp.eq.s32.totalorder %s24, 0
      %p212 = por %p210, %p211
      %p213 = scmp.ne.s32.totalorder %s205, %s207
      %p214 = scmp.eq.s32.totalorder %s29, 1
      %p215 = por %p213, %p214
      %p216 = scmp.ne.s32.totalorder %s207, %s208
      %p217 = scmp.eq.s32.totalorder %s29, 0
      %p218 = por %p216, %p217
      %p219 = scmp.ne.s32.totalorder %s207, %s208
      %p220 = scmp.eq.s32.totalorder %s30, 1
      %p221 = por %p219, %p220
      %p223 = scmp.ne.s32.totalorder %s208, %s222
      %p224 = scmp.eq.s32.totalorder %s30, 0
      %p225 = por %p223, %p224
      %s227 = sadd.s32 %s226, 1
      %p230 = scmp.eq.s32.totalorder %s24, 1
      %p231 = scmp.ne.s32.totalorder %s226, %s228
      %p232 = scmp.eq.s32.totalorder %s24, 0
      %p233 = por %p231, %p232
      %p234 = scmp.ne.s32.totalorder %s226, %s228
      %p235 = scmp.eq.s32.totalorder %s29, 1
      %p236 = por %p234, %p235
      %p237 = scmp.ne.s32.totalorder %s228, %s229
      %p238 = scmp.eq.s32.totalorder %s29, 0
      %p239 = por %p237, %p238
      %p240 = scmp.ne.s32.totalorder %s228, %s229
      %p241 = scmp.eq.s32.totalorder %s30, 1
      %p242 = por %p240, %p241
      %p244 = scmp.ne.s32.totalorder %s229, %s243
      %p245 = scmp.eq.s32.totalorder %s30, 0
      %p246 = por %p244, %p245
      %s248 = sadd.s32 %s247, 1
      %p251 = scmp.eq.s32.totalorder %s24, 1
      %p252 = scmp.ne.s32.totalorder %s247, %s249
      %p253 = scmp.eq.s32.totalorder %s24, 0
      %p254 = por %p252, %p253
      %p255 = scmp.ne.s32.totalorder %s247, %s249
      %p256 = scmp.eq.s32.totalorder %s29, 1
      %p257 = por %p255, %p256
      %p258 = scmp.ne.s32.totalorder %s249, %s250
      %p259 = scmp.eq.s32.totalorder %s29, 0
      %p260 = por %p258, %p259
      %p261 = scmp.ne.s32.totalorder %s249, %s250
      %p262 = scmp.eq.s32.totalorder %s30, 1
      %p263 = por %p261, %p262
      %p265 = scmp.ne.s32.totalorder %s250, %s264
      %p266 = scmp.eq.s32.totalorder %s30, 0
      %p267 = por %p265, %p266
      %s269 = sadd.s32 %s268, 1
      %p272 = scmp.eq.s32.totalorder %s24, 1
      %p273 = scmp.ne.s32.totalorder %s268, %s270
      %p274 = scmp.eq.s32.totalorder %s24, 0
      %p275 = por %p273, %p274
      %p276 = scmp.ne.s32.totalorder %s268, %s270
      %p277 = scmp.eq.s32.totalorder %s29, 1
      %p278 = por %p276, %p277
      %p279 = scmp.ne.s32.totalorder %s270, %s271
      %p280 = scmp.eq.s32.totalorder %s29, 0
      %p281 = por %p279, %p280
      %p282 = scmp.ne.s32.totalorder %s270, %s271
      %p283 = scmp.eq.s32.totalorder %s30, 1
      %p284 = por %p282, %p283
      %p286 = scmp.ne.s32.totalorder %s271, %s285
      %p287 = scmp.eq.s32.totalorder %s30, 0
      %p288 = por %p286, %p287
      %s290 = sadd.s32 %s289, 1
      %p293 = scmp.eq.s32.totalorder %s24, 1
      %p294 = scmp.ne.s32.totalorder %s289, %s291
      %p295 = scmp.eq.s32.totalorder %s24, 0
      %p296 = por %p294, %p295
      %p297 = scmp.ne.s32.totalorder %s289, %s291
      %p298 = scmp.eq.s32.totalorder %s29, 1
      %p299 = por %p297, %p298
      %p300 = scmp.ne.s32.totalorder %s291, %s292
      %p301 = scmp.eq.s32.totalorder %s29, 0
      %p302 = por %p300, %p301
      %p303 = scmp.ne.s32.totalorder %s291, %s292
      %p304 = scmp.eq.s32.totalorder %s30, 1
      %p305 = por %p303, %p304
      %p307 = scmp.ne.s32.totalorder %s292, %s306
      %p308 = scmp.eq.s32.totalorder %s30, 0
      %p309 = por %p307, %p308
      %s310 = ssub.s32 %s24, %s31
      %p311 = scmp.eq.s32.totalorder %s310, 0
      %s313 = sadd.s32 %s312, 1
      %s314 = scalar_select %p311, %s312, %s313
      %p317 = pneg %p311
      %p318 = scmp.eq.s32.totalorder %s24, 1
      %p319 = por %p317, %p318
      %p320 = scmp.ne.s32.totalorder %s312, %s315
      %p321 = scmp.eq.s32.totalorder %s24, 0
      %p322 = por %p320, %p321
      %p323 = scmp.ne.s32.totalorder %s312, %s315
      %p324 = scmp.eq.s32.totalorder %s29, 1
      %p325 = por %p323, %p324
      %p326 = scmp.ne.s32.totalorder %s315, %s316
      %p327 = scmp.eq.s32.totalorder %s29, 0
      %p328 = por %p326, %p327
      %p329 = scmp.ne.s32.totalorder %s315, %s316
      %p330 = scmp.eq.s32.totalorder %s30, 1
      %p331 = por %p329, %p330
      %p333 = scmp.ne.s32.totalorder %s316, %s332
      %p334 = scmp.eq.s32.totalorder %s30, 0
      %p335 = por %p333, %p334
      %p336 = scmp.le.s32.totalorder 1, %s24
      %p337 = scmp.lt.s32.totalorder %s24, 3
      %p338 = pnand %p336, %p337
      %p339 = pneg %p338
      // Predicated region
      $region9: #{cnn_forward.1} parent=5 // pred_check
        _
      $region10: #{cnn_forward.1} parent=5 // pred_check_branch
        %341 = sbr.rel (%p338) target = $region12
      $region11: #{cnn_forward.1} parent=5 // pred_region
        %s342 = ssub.s32 %s24, 1
        // Predicated region
        $region13: #{cnn_forward.1} parent=11 // pred_check
          %p343 = pneg %p71
        $region14: #{cnn_forward.1} parent=11 // pred_check_branch
          %345 = sbr.rel (%p343) target = $region16
        $region15: #{cnn_forward.1} parent=11 // pred_region
          _
        $region16: #{cnn_forward.1} parent=11 // pred_fallthru
          _
        // Predicated region
        $region17: #{cnn_forward.1} parent=11 // pred_check
          %p346 = pneg %p92
        $region18: #{cnn_forward.1} parent=11 // pred_check_branch
          %348 = sbr.rel (%p346) target = $region20
        $region19: #{cnn_forward.1} parent=11 // pred_region
          _
        $region20: #{cnn_forward.1} parent=11 // pred_fallthru
          _
        // Predicated region
        $region21: #{cnn_forward.1} parent=11 // pred_check
          %p349 = pneg %p113
        $region22: #{cnn_forward.1} parent=11 // pred_check_branch
          %351 = sbr.rel (%p349) target = $region24
        $region23: #{cnn_forward.1} parent=11 // pred_region
          _
        $region24: #{cnn_forward.1} parent=11 // pred_fallthru
          _
        // Predicated region
        $region25: #{cnn_forward.1} parent=11 // pred_check
          %p352 = pneg %p134
        $region26: #{cnn_forward.1} parent=11 // pred_check_branch
          %354 = sbr.rel (%p352) target = $region28
        $region27: #{cnn_forward.1} parent=11 // pred_region
          _
        $region28: #{cnn_forward.1} parent=11 // pred_fallthru
          _
        // Predicated region
        $region29: #{cnn_forward.1} parent=11 // pred_check
          %p355 = pneg %p155
        $region30: #{cnn_forward.1} parent=11 // pred_check_branch
          %357 = sbr.rel (%p355) target = $region32
        $region31: #{cnn_forward.1} parent=11 // pred_region
          _
        $region32: #{cnn_forward.1} parent=11 // pred_fallthru
          _
        // Predicated region
        $region33: #{cnn_forward.1} parent=11 // pred_check
          %p358 = pneg %p176
        $region34: #{cnn_forward.1} parent=11 // pred_check_branch
          %360 = sbr.rel (%p358) target = $region36
        $region35: #{cnn_forward.1} parent=11 // pred_region
          _
        $region36: #{cnn_forward.1} parent=11 // pred_fallthru
          _
        // Predicated region
        $region37: #{cnn_forward.1} parent=11 // pred_check
          %p361 = pneg %p197
        $region38: #{cnn_forward.1} parent=11 // pred_check_branch
          %363 = sbr.rel (%p361) target = $region40
        $region39: #{cnn_forward.1} parent=11 // pred_region
          _
        $region40: #{cnn_forward.1} parent=11 // pred_fallthru
          _
        // Predicated region
        $region41: #{cnn_forward.1} parent=11 // pred_check
          %p364 = pneg %p218
        $region42: #{cnn_forward.1} parent=11 // pred_check_branch
          %366 = sbr.rel (%p364) target = $region44
        $region43: #{cnn_forward.1} parent=11 // pred_region
          _
        $region44: #{cnn_forward.1} parent=11 // pred_fallthru
          _
        // Predicated region
        $region45: #{cnn_forward.1} parent=11 // pred_check
          %p367 = pneg %p239
        $region46: #{cnn_forward.1} parent=11 // pred_check_branch
          %369 = sbr.rel (%p367) target = $region48
        $region47: #{cnn_forward.1} parent=11 // pred_region
          %s371 = ssub.s32 8192, 8192
          %372 = vsyncadd [#allocation7], %s371
          %s373 = sshll.u32 [#allocation6], 4
          %s374 = int_to_ptr.vmem [resolvable:$true] %s373
          %379 = dma.hbm_to_vmem [thread:$0]  %s9, 8192, %s374, [#allocation7], 512, 512, 32
        $region48: #{cnn_forward.1} parent=11 // pred_fallthru
          _
        // Predicated region
        $region49: #{cnn_forward.1} parent=11 // pred_check
          %p380 = pneg %p260
        $region50: #{cnn_forward.1} parent=11 // pred_check_branch
          %382 = sbr.rel (%p380) target = $region52
        $region51: #{cnn_forward.1} parent=11 // pred_region
          _
        $region52: #{cnn_forward.1} parent=11 // pred_fallthru
          _
        // Predicated region
        $region53: #{cnn_forward.1} parent=11 // pred_check
          %p383 = pneg %p281
        $region54: #{cnn_forward.1} parent=11 // pred_check_branch
          %385 = sbr.rel (%p383) target = $region56
        $region55: #{cnn_forward.1} parent=11 // pred_region
          %s387 = ssub.s32 8192, 8192
          %388 = vsyncadd [#allocation10], %s387
          %s389 = sshll.u32 [#allocation9], 4
          %s390 = int_to_ptr.vmem [resolvable:$true] %s389
          %395 = dma.hbm_to_vmem [thread:$0]  %s11, 8192, %s390, [#allocation10], 64, 64, 4
        $region56: #{cnn_forward.1} parent=11 // pred_fallthru
          _
        // Predicated region
        $region57: #{cnn_forward.1} parent=11 // pred_check
          %p396 = pneg %p302
        $region58: #{cnn_forward.1} parent=11 // pred_check_branch
          %398 = sbr.rel (%p396) target = $region60
        $region59: #{cnn_forward.1} parent=11 // pred_region
          _
        $region60: #{cnn_forward.1} parent=11 // pred_fallthru
          _
      $region12: #{cnn_forward.1} parent=5 // pred_fallthru
        _
      %p399 = scmp.lt.s32.totalorder %s24, 2
      // Predicated region
      $region61: #{cnn_forward.1} parent=5 // pred_check
        %p400 = pneg %p399
      $region62: #{cnn_forward.1} parent=5 // pred_check_branch
        %402 = sbr.rel (%p400) target = $region64
      $region63: #{cnn_forward.1} parent=5 // pred_region
        // Predicated region
        $region65: #{cnn_forward.1} parent=63 // pred_check
          %p403 = pneg %p44
        $region66: #{cnn_forward.1} parent=63 // pred_check_branch
          %405 = sbr.rel (%p403) target = $region68
        $region67: #{cnn_forward.1} parent=63 // pred_region
          %p406 = scmp.lt.s32.totalorder %s24, 1
          %s407 = scalar_select %p406, %s24, 1
          %s408 = smul.addr %s407, 120
          %s409 = smul.addr %s408, 4
          %s410 = scalar_lea.vmem %s0, %s409
        $region68: #{cnn_forward.1} parent=63 // pred_fallthru
          _
      $region64: #{cnn_forward.1} parent=5 // pred_fallthru
        _
      %p411 = scmp.le.s32.totalorder 1, %s24
      %p412 = scmp.lt.s32.totalorder %s24, 3
      %p413 = pnand %p411, %p412
      %p414 = pneg %p413
      // Predicated region
      $region69: #{cnn_forward.1} parent=5 // pred_check
        _
      $region70: #{cnn_forward.1} parent=5 // pred_check_branch
        %416 = sbr.rel (%p413) target = $region72
      $region71: #{cnn_forward.1} parent=5 // pred_region
        %s417 = ssub.s32 %s24, 1
        // Predicated region
        $region73: #{cnn_forward.1} parent=71 // pred_check
          %p418 = pneg %p239
        $region74: #{cnn_forward.1} parent=71 // pred_check_branch
          %420 = sbr.rel (%p418) target = $region76
        $region75: #{cnn_forward.1} parent=71 // pred_region
          %421 = dma.done [#allocation7], 8192
        $region76: #{cnn_forward.1} parent=71 // pred_fallthru
          _
        // Predicated region
        $region77: #{cnn_forward.1} parent=71 // pred_check
          %p422 = pneg %p281
        $region78: #{cnn_forward.1} parent=71 // pred_check_branch
          %424 = sbr.rel (%p422) target = $region80
        $region79: #{cnn_forward.1} parent=71 // pred_region
          %425 = dma.done [#allocation10], 8192
        $region80: #{cnn_forward.1} parent=71 // pred_fallthru
          _
        %p426 = scmp.lt.s32.totalorder %s29, 1
        %s427 = scalar_select %p426, %s29, 1
        %s428 = smul.addr %s427, 120
        %s429 = smul.addr %s428, 4
        %s430 = scalar_lea.vmem %s0, %s429
        %p431 = pneg %p50
        %p432 = pneg %p47
        %p433 = pneg %p71
        %p434 = pneg %p68
        %p435 = pneg %p92
        %p436 = pneg %p89
        %p437 = pneg %p113
        %p438 = pneg %p110
        %p439 = pneg %p134
        %p440 = pneg %p131
        %p441 = pneg %p155
        %p442 = pneg %p152
        %p443 = pneg %p176
        %p444 = pneg %p173
        %p445 = pneg %p197
        %p446 = pneg %p194
        %p447 = pneg %p218
        %p448 = pneg %p215
        %p449 = pneg %p239
        %p450 = pneg %p236
        %p451 = pneg %p260
        %p452 = pneg %p257
        %p453 = pneg %p281
        %p454 = pneg %p278
        %p455 = pneg %p302
        %p456 = pneg %p299
        %p457 = pneg %p328
        %p458 = pneg %p325
        %s459 = sand.u32 %s315, 1
        %s460 = scalar_lea.sflag [#allocation8], %s459
        %s461 = sand.u32 %s315, 1
        %s462 = scalar_lea.vmem [#allocation11], %s461
        %p463 = scmp.lt.s32.totalorder %s29, 1
        %s464 = scalar_select %p463, %s29, 1
        %s465 = smul.addr %s464, 120
        %s466 = smul.addr %s465, 4
        %s467 = scalar_lea.vmem %s0, %s466
        %v469 = vld [vmem:[%s467] sm:$0xf]
        %v470 = vld [vmem:[%s467 + $0x4] sm:$0xf]
        %v471 = vld [vmem:[%s467 + $0x8] sm:$0xf]
        %v472 = vld [vmem:[%s467 + $0xc] sm:$0xf]
        %v473 = vld [vmem:[%s467 + $0x10] sm:$0xf]
        %v474 = vld [vmem:[%s467 + $0x14] sm:$0xf]
        %v475 = vld [vmem:[%s467 + $0x18] sm:$0xf]
        %v476 = vld [vmem:[%s467 + $0x1c] sm:$0xf]
        %v477 = vld [vmem:[%s467 + $0x20] sm:$0xf]
        %v478 = vld [vmem:[%s467 + $0x24] sm:$0xf]
        %v479 = vld [vmem:[%s467 + $0x28] sm:$0xf]
        %v480 = vld [vmem:[%s467 + $0x2c] sm:$0xf]
        %v481 = vld [vmem:[%s467 + $0x30] sm:$0xf]
        %v482 = vld [vmem:[%s467 + $0x34] sm:$0xf]
        %v483 = vld [vmem:[%s467 + $0x38] sm:$0xf]
        %v484 = vld [vmem:[%s467 + $0x3c] sm:$0xf]
        %v485 = vld [vmem:[%s467 + $0x40] sm:$0xf]
        %v486 = vld [vmem:[%s467 + $0x44] sm:$0xf]
        %v487 = vld [vmem:[%s467 + $0x48] sm:$0xf]
        %v488 = vld [vmem:[%s467 + $0x4c] sm:$0xf]
        %v489 = vld [vmem:[%s467 + $0x50] sm:$0xf]
        %v490 = vld [vmem:[%s467 + $0x54] sm:$0xf]
        %v491 = vld [vmem:[%s467 + $0x58] sm:$0xf]
        %v492 = vld [vmem:[%s467 + $0x5c] sm:$0xf]
        %v493 = vld [vmem:[%s467 + $0x60] sm:$0xf]
        %v494 = vld [vmem:[%s467 + $0x64] sm:$0xf]
        %v495 = vld [vmem:[%s467 + $0x68] sm:$0xf]
        %v496 = vld [vmem:[%s467 + $0x6c] sm:$0xf]
        %v497 = vld [vmem:[%s467 + $0x70] sm:$0xf]
        %v498 = vld [vmem:[%s467 + $0x74] sm:$0xf]
        %v499 = vld [vmem:[%s467 + $0x78] sm:$0xf]
        %v500 = vld [vmem:[%s467 + $0x7c] sm:$0xf]
        %v501 = vld [vmem:[%s467 + $0x80] sm:$0xf]
        %v502 = vld [vmem:[%s467 + $0x84] sm:$0xf]
        %v503 = vld [vmem:[%s467 + $0x88] sm:$0xf]
        %v504 = vld [vmem:[%s467 + $0x8c] sm:$0xf]
        %v505 = vld [vmem:[%s467 + $0x90] sm:$0xf]
        %v506 = vld [vmem:[%s467 + $0x94] sm:$0xf]
        %v507 = vld [vmem:[%s467 + $0x98] sm:$0xf]
        %v508 = vld [vmem:[%s467 + $0x9c] sm:$0xf]
        %v509 = vld [vmem:[%s467 + $0xa0] sm:$0xf]
        %v510 = vld [vmem:[%s467 + $0xa4] sm:$0xf]
        %v511 = vld [vmem:[%s467 + $0xa8] sm:$0xf]
        %v512 = vld [vmem:[%s467 + $0xac] sm:$0xf]
        %v513 = vld [vmem:[%s467 + $0xb0] sm:$0xf]
        %v514 = vld [vmem:[%s467 + $0xb4] sm:$0xf]
        %v515 = vld [vmem:[%s467 + $0xb8] sm:$0xf]
        %v516 = vld [vmem:[%s467 + $0xbc] sm:$0xf]
        %v517 = vld [vmem:[%s467 + $0xc0] sm:$0xf]
        %v518 = vld [vmem:[%s467 + $0xc4] sm:$0xf]
        %v519 = vld [vmem:[%s467 + $0xc8] sm:$0xf]
        %v520 = vld [vmem:[%s467 + $0xcc] sm:$0xf]
        %v521 = vld [vmem:[%s467 + $0xd0] sm:$0xf]
        %v522 = vld [vmem:[%s467 + $0xd4] sm:$0xf]
        %v523 = vld [vmem:[%s467 + $0xd8] sm:$0xf]
        %v524 = vld [vmem:[%s467 + $0xdc] sm:$0xf]
        %v525 = vld [vmem:[%s467 + $0xe0] sm:$0xf]
        %v526 = vld [vmem:[%s467 + $0xe4] sm:$0xf]
        %v527 = vld [vmem:[%s467 + $0xe8] sm:$0xf]
        %v528 = vld [vmem:[%s467 + $0xec] sm:$0xf]
        %v529 = vld [vmem:[%s467 + $0xf0] sm:$0xf]
        %v530 = vld [vmem:[%s467 + $0xf4] sm:$0xf]
        %v531 = vld [vmem:[%s467 + $0xf8] sm:$0xf]
        %v532 = vld [vmem:[%s467 + $0xfc] sm:$0xf]
        %v533 = vld [vmem:[%s467 + $0x100] sm:$0xf]
        %v534 = vld [vmem:[%s467 + $0x104] sm:$0xf]
        %v535 = vld [vmem:[%s467 + $0x108] sm:$0xf]
        %v536 = vld [vmem:[%s467 + $0x10c] sm:$0xf]
        %v537 = vld [vmem:[%s467 + $0x110] sm:$0xf]
        %v538 = vld [vmem:[%s467 + $0x114] sm:$0xf]
        %v539 = vld [vmem:[%s467 + $0x118] sm:$0xf]
        %v540 = vld [vmem:[%s467 + $0x11c] sm:$0xf]
        %v541 = vld [vmem:[%s467 + $0x120] sm:$0xf]
        %v542 = vld [vmem:[%s467 + $0x124] sm:$0xf]
        %v543 = vld [vmem:[%s467 + $0x128] sm:$0xf]
        %v544 = vld [vmem:[%s467 + $0x12c] sm:$0xf]
        %v545 = vld [vmem:[%s467 + $0x130] sm:$0xf]
        %v546 = vld [vmem:[%s467 + $0x134] sm:$0xf]
        %v547 = vld [vmem:[%s467 + $0x138] sm:$0xf]
        %v548 = vld [vmem:[%s467 + $0x13c] sm:$0xf]
        %v549 = vld [vmem:[%s467 + $0x140] sm:$0xf]
        %v550 = vld [vmem:[%s467 + $0x144] sm:$0xf]
        %v551 = vld [vmem:[%s467 + $0x148] sm:$0xf]
        %v552 = vld [vmem:[%s467 + $0x14c] sm:$0xf]
        %v553 = vld [vmem:[%s467 + $0x150] sm:$0xf]
        %v554 = vld [vmem:[%s467 + $0x154] sm:$0xf]
        %v555 = vld [vmem:[%s467 + $0x158] sm:$0xf]
        %v556 = vld [vmem:[%s467 + $0x15c] sm:$0xf]
        %v557 = vld [vmem:[%s467 + $0x160] sm:$0xf]
        %v558 = vld [vmem:[%s467 + $0x164] sm:$0xf]
        %v559 = vld [vmem:[%s467 + $0x168] sm:$0xf]
        %v560 = vld [vmem:[%s467 + $0x16c] sm:$0xf]
        %v561 = vld [vmem:[%s467 + $0x170] sm:$0xf]
        %v562 = vld [vmem:[%s467 + $0x174] sm:$0xf]
        %v563 = vld [vmem:[%s467 + $0x178] sm:$0xf]
        %v564 = vld [vmem:[%s467 + $0x17c] sm:$0xf]
        %v565 = vld [vmem:[%s467 + $0x180] sm:$0xf]
        %v566 = vld [vmem:[%s467 + $0x184] sm:$0xf]
        %v567 = vld [vmem:[%s467 + $0x188] sm:$0xf]
        %v568 = vld [vmem:[%s467 + $0x18c] sm:$0xf]
        %v569 = vld [vmem:[%s467 + $0x190] sm:$0xf]
        %v570 = vld [vmem:[%s467 + $0x194] sm:$0xf]
        %v571 = vld [vmem:[%s467 + $0x198] sm:$0xf]
        %v572 = vld [vmem:[%s467 + $0x19c] sm:$0xf]
        %v573 = vld [vmem:[%s467 + $0x1a0] sm:$0xf]
        %v574 = vld [vmem:[%s467 + $0x1a4] sm:$0xf]
        %v575 = vld [vmem:[%s467 + $0x1a8] sm:$0xf]
        %v576 = vld [vmem:[%s467 + $0x1ac] sm:$0xf]
        %v577 = vld [vmem:[%s467 + $0x1b0] sm:$0xf]
        %v578 = vld [vmem:[%s467 + $0x1b4] sm:$0xf]
        %v579 = vld [vmem:[%s467 + $0x1b8] sm:$0xf]
        %v580 = vld [vmem:[%s467 + $0x1bc] sm:$0xf]
        %v581 = vld [vmem:[%s467 + $0x1c0] sm:$0xf]
        %v582 = vld [vmem:[%s467 + $0x1c4] sm:$0xf]
        %v583 = vld [vmem:[%s467 + $0x1c8] sm:$0xf]
        %v584 = vld [vmem:[%s467 + $0x1cc] sm:$0xf]
        %v585 = vld [vmem:[%s467 + $0x1d0] sm:$0xf]
        %v586 = vld [vmem:[%s467 + $0x1d4] sm:$0xf]
        %v587 = vld [vmem:[%s467 + $0x1d8] sm:$0xf]
        %v588 = vld [vmem:[%s467 + $0x1dc] sm:$0xf]
        %v589 = vld [vmem:[%s1] sm:$0xf]
        %v590 = vld [vmem:[%s1 + $0x4] sm:$0xf]
        %v591 = vld [vmem:[%s1 + $0x8] sm:$0xf]
        %v592 = vld [vmem:[%s1 + $0xc] sm:$0xf]
        %v593 = vld [vmem:[%s1 + $0x10] sm:$0x3]
        %v594 = vld [vmem:[%s2] sm:$0x1]
        %v596 = vlaneseq
        %v597 = vshrl.u32 %v596, 7
        %v598 = vsub.s32 0, %v597
        %v599 = vrot.slane %v594, %v598
        %v721 = vunpack.c.l.b16 %v469
        %v722 = vunpack.c.l.b16 %v470
        %v723 = vunpack.c.l.b16 %v471
        %v724 = vunpack.c.l.b16 %v472
        %v725 = vunpack.c.l.b16 %v473
        %v726 = vunpack.c.l.b16 %v474
        %v727 = vunpack.c.l.b16 %v475
        %v728 = vunpack.c.l.b16 %v476
        %v729 = vunpack.c.l.b16 %v477
        %v730 = vunpack.c.l.b16 %v478
        %v731 = vunpack.c.l.b16 %v479
        %v732 = vunpack.c.l.b16 %v480
        %v733 = vunpack.c.l.b16 %v481
        %v734 = vunpack.c.l.b16 %v482
        %v735 = vunpack.c.l.b16 %v483
        %v736 = vunpack.c.l.b16 %v484
        %v737 = vunpack.c.l.b16 %v485
        %v738 = vunpack.c.l.b16 %v486
        %v739 = vunpack.c.l.b16 %v487
        %v740 = vunpack.c.l.b16 %v488
        %v741 = vunpack.c.l.b16 %v489
        %v742 = vunpack.c.l.b16 %v490
        %v743 = vunpack.c.l.b16 %v491
        %v744 = vunpack.c.l.b16 %v492
        %v745 = vunpack.c.l.b16 %v493
        %v746 = vunpack.c.l.b16 %v494
        %v747 = vunpack.c.l.b16 %v495
        %v748 = vunpack.c.l.b16 %v496
        %v749 = vunpack.c.l.b16 %v497
        %v750 = vunpack.c.l.b16 %v498
        %v751 = vunpack.c.l.b16 %v499
        %v752 = vunpack.c.l.b16 %v500
        %v753 = vunpack.c.l.b16 %v501
        %v754 = vunpack.c.l.b16 %v502
        %v755 = vunpack.c.l.b16 %v503
        %v756 = vunpack.c.l.b16 %v504
        %v757 = vunpack.c.l.b16 %v505
        %v758 = vunpack.c.l.b16 %v506
        %v759 = vunpack.c.l.b16 %v507
        %v760 = vunpack.c.l.b16 %v508
        %v761 = vunpack.c.l.b16 %v509
        %v762 = vunpack.c.l.b16 %v510
        %v763 = vunpack.c.l.b16 %v511
        %v764 = vunpack.c.l.b16 %v512
        %v765 = vunpack.c.l.b16 %v513
        %v766 = vunpack.c.l.b16 %v514
        %v767 = vunpack.c.l.b16 %v515
        %v768 = vunpack.c.l.b16 %v516
        %v769 = vunpack.c.l.b16 %v517
        %v770 = vunpack.c.l.b16 %v518
        %v771 = vunpack.c.l.b16 %v519
        %v772 = vunpack.c.l.b16 %v520
        %v773 = vunpack.c.l.b16 %v521
        %v774 = vunpack.c.l.b16 %v522
        %v775 = vunpack.c.l.b16 %v523
        %v776 = vunpack.c.l.b16 %v524
        %v777 = vunpack.c.l.b16 %v525
        %v778 = vunpack.c.l.b16 %v526
        %v779 = vunpack.c.l.b16 %v527
        %v780 = vunpack.c.l.b16 %v528
        %v781 = vunpack.c.l.b16 %v529
        %v782 = vunpack.c.l.b16 %v530
        %v783 = vunpack.c.l.b16 %v531
        %v784 = vunpack.c.l.b16 %v532
        %v785 = vunpack.c.l.b16 %v533
        %v786 = vunpack.c.l.b16 %v534
        %v787 = vunpack.c.l.b16 %v535
        %v788 = vunpack.c.l.b16 %v536
        %v789 = vunpack.c.l.b16 %v537
        %v790 = vunpack.c.l.b16 %v538
        %v791 = vunpack.c.l.b16 %v539
        %v792 = vunpack.c.l.b16 %v540
        %v793 = vunpack.c.l.b16 %v541
        %v794 = vunpack.c.l.b16 %v542
        %v795 = vunpack.c.l.b16 %v543
        %v796 = vunpack.c.l.b16 %v544
        %v797 = vunpack.c.l.b16 %v545
        %v798 = vunpack.c.l.b16 %v546
        %v799 = vunpack.c.l.b16 %v547
        %v800 = vunpack.c.l.b16 %v548
        %v801 = vunpack.c.l.b16 %v549
        %v802 = vunpack.c.l.b16 %v550
        %v803 = vunpack.c.l.b16 %v551
        %v804 = vunpack.c.l.b16 %v552
        %v805 = vunpack.c.l.b16 %v553
        %v806 = vunpack.c.l.b16 %v554
        %v807 = vunpack.c.l.b16 %v555
        %v808 = vunpack.c.l.b16 %v556
        %v809 = vunpack.c.l.b16 %v557
        %v810 = vunpack.c.l.b16 %v558
        %v811 = vunpack.c.l.b16 %v559
        %v812 = vunpack.c.l.b16 %v560
        %v813 = vunpack.c.l.b16 %v561
        %v814 = vunpack.c.l.b16 %v562
        %v815 = vunpack.c.l.b16 %v563
        %v816 = vunpack.c.l.b16 %v564
        %v817 = vunpack.c.l.b16 %v565
        %v818 = vunpack.c.l.b16 %v566
        %v819 = vunpack.c.l.b16 %v567
        %v820 = vunpack.c.l.b16 %v568
        %v821 = vunpack.c.l.b16 %v569
        %v822 = vunpack.c.l.b16 %v570
        %v823 = vunpack.c.l.b16 %v571
        %v824 = vunpack.c.l.b16 %v572
        %v825 = vunpack.c.l.b16 %v573
        %v826 = vunpack.c.l.b16 %v574
        %v827 = vunpack.c.l.b16 %v575
        %v828 = vunpack.c.l.b16 %v576
        %v829 = vunpack.c.l.b16 %v577
        %v830 = vunpack.c.l.b16 %v578
        %v831 = vunpack.c.l.b16 %v579
        %v832 = vunpack.c.l.b16 %v580
        %v833 = vunpack.c.l.b16 %v581
        %v834 = vunpack.c.l.b16 %v582
        %v835 = vunpack.c.l.b16 %v583
        %v836 = vunpack.c.l.b16 %v584
        %v837 = vunpack.c.l.b16 %v585
        %v838 = vunpack.c.l.b16 %v586
        %v839 = vunpack.c.l.b16 %v587
        %v840 = vunpack.c.l.b16 %v588
        %v841 = vpack.c.b16 %v722, %v721
        %v842 = vpack.c.b16 %v724, %v723
        %v843 = vpack.c.b16 %v726, %v725
        %v844 = vpack.c.b16 %v728, %v727
        %v845 = vpack.c.b16 %v730, %v729
        %v846 = vpack.c.b16 %v732, %v731
        %v847 = vpack.c.b16 %v734, %v733
        %v848 = vpack.c.b16 %v736, %v735
        %v849 = vpack.c.b16 %v738, %v737
        %v850 = vpack.c.b16 %v740, %v739
        %v851 = vpack.c.b16 %v742, %v741
        %v852 = vpack.c.b16 %v744, %v743
        %v853 = vpack.c.b16 %v746, %v745
        %v854 = vpack.c.b16 %v748, %v747
        %v855 = vpack.c.b16 %v750, %v749
        %v856 = vpack.c.b16 %v752, %v751
        %v857 = vpack.c.b16 %v754, %v753
        %v858 = vpack.c.b16 %v756, %v755
        %v859 = vpack.c.b16 %v758, %v757
        %v860 = vpack.c.b16 %v760, %v759
        %v861 = vpack.c.b16 %v762, %v761
        %v862 = vpack.c.b16 %v764, %v763
        %v863 = vpack.c.b16 %v766, %v765
        %v864 = vpack.c.b16 %v768, %v767
        %v865 = vpack.c.b16 %v770, %v769
        %v866 = vpack.c.b16 %v772, %v771
        %v867 = vpack.c.b16 %v774, %v773
        %v868 = vpack.c.b16 %v776, %v775
        %v869 = vpack.c.b16 %v778, %v777
        %v870 = vpack.c.b16 %v780, %v779
        %v871 = vpack.c.b16 %v782, %v781
        %v872 = vpack.c.b16 %v784, %v783
        %v873 = vpack.c.b16 %v786, %v785
        %v874 = vpack.c.b16 %v788, %v787
        %v875 = vpack.c.b16 %v790, %v789
        %v876 = vpack.c.b16 %v792, %v791
        %v877 = vpack.c.b16 %v794, %v793
        %v878 = vpack.c.b16 %v796, %v795
        %v879 = vpack.c.b16 %v798, %v797
        %v880 = vpack.c.b16 %v800, %v799
        %v881 = vpack.c.b16 %v802, %v801
        %v882 = vpack.c.b16 %v804, %v803
        %v883 = vpack.c.b16 %v806, %v805
        %v884 = vpack.c.b16 %v808, %v807
        %v885 = vpack.c.b16 %v810, %v809
        %v886 = vpack.c.b16 %v812, %v811
        %v887 = vpack.c.b16 %v814, %v813
        %v888 = vpack.c.b16 %v816, %v815
        %v889 = vpack.c.b16 %v818, %v817
        %v890 = vpack.c.b16 %v820, %v819
        %v891 = vpack.c.b16 %v822, %v821
        %v892 = vpack.c.b16 %v824, %v823
        %v893 = vpack.c.b16 %v826, %v825
        %v894 = vpack.c.b16 %v828, %v827
        %v895 = vpack.c.b16 %v830, %v829
        %v896 = vpack.c.b16 %v832, %v831
        %v897 = vpack.c.b16 %v834, %v833
        %v898 = vpack.c.b16 %v836, %v835
        %v899 = vpack.c.b16 %v838, %v837
        %v900 = vpack.c.b16 %v840, %v839
        %v906 = vunpack.c.l.b16 %v589
        %v907 = vunpack.c.l.b16 %v590
        %v908 = vunpack.c.l.b16 %v591
        %v909 = vunpack.c.l.b16 %v592
        %v910 = vunpack.c.l.b16 %v593
        %v911 = vpack.c.b16 %v907, %v906
        %v912 = vpack.c.b16 %v909, %v908
        %v913 = vpack.c.b16 %v910, %v910
        %vm916 = vcmask 293888
        %v918 = vsel %vm916, %v841, 0
        %v921 = vsel %vm916, %v842, 0
        %v924 = vsel %vm916, %v843, 0
        %v927 = vsel %vm916, %v844, 0
        %v930 = vsel %vm916, %v845, 0
        %v933 = vsel %vm916, %v846, 0
        %v936 = vsel %vm916, %v847, 0
        %v939 = vsel %vm916, %v848, 0
        %v942 = vsel %vm916, %v849, 0
        %v945 = vsel %vm916, %v850, 0
        %v948 = vsel %vm916, %v851, 0
        %v951 = vsel %vm916, %v852, 0
        %v954 = vsel %vm916, %v853, 0
        %v957 = vsel %vm916, %v854, 0
        %v960 = vsel %vm916, %v855, 0
        %v963 = vsel %vm916, %v856, 0
        %v966 = vsel %vm916, %v857, 0
        %v969 = vsel %vm916, %v858, 0
        %v972 = vsel %vm916, %v859, 0
        %v975 = vsel %vm916, %v860, 0
        %v978 = vsel %vm916, %v861, 0
        %v981 = vsel %vm916, %v862, 0
        %v984 = vsel %vm916, %v863, 0
        %v987 = vsel %vm916, %v864, 0
        %v990 = vsel %vm916, %v865, 0
        %v993 = vsel %vm916, %v866, 0
        %v996 = vsel %vm916, %v867, 0
        %v999 = vsel %vm916, %v868, 0
        %v1002 = vsel %vm916, %v869, 0
        %v1005 = vsel %vm916, %v870, 0
        %v1008 = vsel %vm916, %v871, 0
        %v1011 = vsel %vm916, %v872, 0
        %v1014 = vsel %vm916, %v873, 0
        %v1017 = vsel %vm916, %v874, 0
        %v1020 = vsel %vm916, %v875, 0
        %v1023 = vsel %vm916, %v876, 0
        %v1026 = vsel %vm916, %v877, 0
        %v1029 = vsel %vm916, %v878, 0
        %v1032 = vsel %vm916, %v879, 0
        %v1035 = vsel %vm916, %v880, 0
        %v1038 = vsel %vm916, %v881, 0
        %v1041 = vsel %vm916, %v882, 0
        %v1044 = vsel %vm916, %v883, 0
        %v1047 = vsel %vm916, %v884, 0
        %v1050 = vsel %vm916, %v885, 0
        %v1053 = vsel %vm916, %v886, 0
        %v1056 = vsel %vm916, %v887, 0
        %v1059 = vsel %vm916, %v888, 0
        %v1062 = vsel %vm916, %v889, 0
        %v1065 = vsel %vm916, %v890, 0
        %v1068 = vsel %vm916, %v891, 0
        %v1071 = vsel %vm916, %v892, 0
        %v1074 = vsel %vm916, %v893, 0
        %v1077 = vsel %vm916, %v894, 0
        %v1080 = vsel %vm916, %v895, 0
        %v1083 = vsel %vm916, %v896, 0
        %v1086 = vsel %vm916, %v897, 0
        %v1089 = vsel %vm916, %v898, 0
        %v1092 = vsel %vm916, %v899, 0
        %v1095 = vsel %vm916, %v900, 0
        %vm1097 = vcmask 1041408
        %v1099 = vsel %vm1097, %v913, 0
        %1101 = vmatprep.subr.bf16.mxu0 0
        %1102 = vmatpush1.bf16.msra.mxu0 0
        %1103 = vmatprep.subr.bf16.mxu0 0
        %1104 = vmatpush1.bf16.msra.mxu0 0
        %1105 = vmatprep.subr.bf16.mxu0 0
        %1106 = vmatpush1.bf16.msra.mxu0 0
        %1107 = vmatprep.subr.bf16.mxu0 0
        %1108 = vmatpush1.bf16.msra.mxu0 0
        %1109 = vmatprep.subr.bf16.mxu0 0
        %1110 = vmatpush1.bf16.msra.mxu0 0
        %1111 = vmatprep.subr.bf16.mxu0 0
        %1112 = vmatpush1.bf16.msra.mxu0 %v1099
        %1113 = vmatprep.subr.bf16.mxu0 0
        %1114 = vmatpush1.bf16.msra.mxu0 %v912
        %1115 = vmatprep.subr.bf16.mxu0 0
        %1116 = vmatpush1.bf16.msra.mxu0 %v911
        %1117 = vmatprep.subr.bf16.mxu0 0
        %1118 = vmatpush2.bf16.msra.mxu0 0
        %1119 = vmatprep.subr.bf16.mxu0 0
        %1120 = vmatpush2.bf16.msra.mxu0 0
        %1121 = vmatprep.subr.bf16.mxu0 0
        %1122 = vmatpush2.bf16.msra.mxu0 0
        %1123 = vmatprep.subr.bf16.mxu0 0
        %1124 = vmatpush2.bf16.msra.mxu0 0
        %1125 = vmatprep.subr.bf16.mxu0 0
        %1126 = vmatpush2.bf16.msra.mxu0 0
        %1127 = vmatprep.subr.bf16.mxu0 0
        %1128 = vmatpush2.bf16.msra.mxu0 0
        %1129 = vmatprep.subr.bf16.mxu0 0
        %1130 = vmatpush2.bf16.msra.mxu0 0
        %1131 = vmatprep.subr.bf16.mxu0 0
        %1132 = vmatpush2.bf16.msra.mxu0 0
        %1133 = vmatprep.mubr.bf16.mxu0 0
        %1134 = vmatmul.mubr.bf16.gmra.mxu0 %v918
        %v1135 = vpop.f32.mrf.mxu0
        %v1136 = vadd.f32 %v599, %v1135
        %v1137 = vpop.f32.mrf.mxu0
        %v1138 = vpop.f32.mrf.mxu0
        %v1139 = vadd.f32 %v599, %v1138
        %v1140 = vpop.f32.mrf.mxu0
        %1141 = vmatprep.mubr.bf16.mxu0 0
        %1142 = vmatmul.mubr.bf16.gmra.mxu0 %v921
        %v1143 = vpop.f32.mrf.mxu0
        %v1144 = vadd.f32 %v599, %v1143
        %v1145 = vpop.f32.mrf.mxu0
        %v1146 = vpop.f32.mrf.mxu0
        %v1147 = vadd.f32 %v599, %v1146
        %v1148 = vpop.f32.mrf.mxu0
        %1149 = vmatprep.mubr.bf16.mxu0 0
        %1150 = vmatmul.mubr.bf16.gmra.mxu0 %v924
        %v1151 = vpop.f32.mrf.mxu0
        %v1152 = vadd.f32 %v599, %v1151
        %v1153 = vpop.f32.mrf.mxu0
        %v1154 = vpop.f32.mrf.mxu0
        %v1155 = vadd.f32 %v599, %v1154
        %v1156 = vpop.f32.mrf.mxu0
        %1157 = vmatprep.mubr.bf16.mxu0 0
        %1158 = vmatmul.mubr.bf16.gmra.mxu0 %v927
        %v1159 = vpop.f32.mrf.mxu0
        %v1160 = vadd.f32 %v599, %v1159
        %v1161 = vpop.f32.mrf.mxu0
        %v1162 = vpop.f32.mrf.mxu0
        %v1163 = vadd.f32 %v599, %v1162
        %v1164 = vpop.f32.mrf.mxu0
        %1165 = vmatprep.mubr.bf16.mxu0 0
        %1166 = vmatmul.mubr.bf16.gmra.mxu0 %v930
        %v1167 = vpop.f32.mrf.mxu0
        %v1168 = vadd.f32 %v599, %v1167
        %v1169 = vpop.f32.mrf.mxu0
        %v1170 = vpop.f32.mrf.mxu0
        %v1171 = vadd.f32 %v599, %v1170
        %v1172 = vpop.f32.mrf.mxu0
        %1173 = vmatprep.mubr.bf16.mxu0 0
        %1174 = vmatmul.mubr.bf16.gmra.mxu0 %v933
        %v1175 = vpop.f32.mrf.mxu0
        %v1176 = vadd.f32 %v599, %v1175
        %v1177 = vpop.f32.mrf.mxu0
        %v1178 = vpop.f32.mrf.mxu0
        %v1179 = vadd.f32 %v599, %v1178
        %v1180 = vpop.f32.mrf.mxu0
        %1181 = vmatprep.mubr.bf16.mxu0 0
        %1182 = vmatmul.mubr.bf16.gmra.mxu0 %v936
        %v1183 = vpop.f32.mrf.mxu0
        %v1184 = vadd.f32 %v599, %v1183
        %v1185 = vpop.f32.mrf.mxu0
        %v1186 = vpop.f32.mrf.mxu0
        %v1187 = vadd.f32 %v599, %v1186
        %v1188 = vpop.f32.mrf.mxu0
        %1189 = vmatprep.mubr.bf16.mxu0 0
        %1190 = vmatmul.mubr.bf16.gmra.mxu0 %v939
        %v1191 = vpop.f32.mrf.mxu0
        %v1192 = vadd.f32 %v599, %v1191
        %v1193 = vpop.f32.mrf.mxu0
        %v1194 = vpop.f32.mrf.mxu0
        %v1195 = vadd.f32 %v599, %v1194
        %v1196 = vpop.f32.mrf.mxu0
        %1197 = vmatprep.mubr.bf16.mxu0 0
        %1198 = vmatmul.mubr.bf16.gmra.mxu0 %v942
        %v1199 = vpop.f32.mrf.mxu0
        %v1200 = vadd.f32 %v599, %v1199
        %v1201 = vpop.f32.mrf.mxu0
        %v1202 = vpop.f32.mrf.mxu0
        %v1203 = vadd.f32 %v599, %v1202
        %v1204 = vpop.f32.mrf.mxu0
        %1205 = vmatprep.mubr.bf16.mxu0 0
        %1206 = vmatmul.mubr.bf16.gmra.mxu0 %v945
        %v1207 = vpop.f32.mrf.mxu0
        %v1208 = vadd.f32 %v599, %v1207
        %v1209 = vpop.f32.mrf.mxu0
        %v1210 = vpop.f32.mrf.mxu0
        %v1211 = vadd.f32 %v599, %v1210
        %v1212 = vpop.f32.mrf.mxu0
        %1213 = vmatprep.mubr.bf16.mxu0 0
        %1214 = vmatmul.mubr.bf16.gmra.mxu0 %v948
        %v1215 = vpop.f32.mrf.mxu0
        %v1216 = vadd.f32 %v599, %v1215
        %v1217 = vpop.f32.mrf.mxu0
        %v1218 = vpop.f32.mrf.mxu0
        %v1219 = vadd.f32 %v599, %v1218
        %v1220 = vpop.f32.mrf.mxu0
        %1221 = vmatprep.mubr.bf16.mxu0 0
        %1222 = vmatmul.mubr.bf16.gmra.mxu0 %v951
        %v1223 = vpop.f32.mrf.mxu0
        %v1224 = vadd.f32 %v599, %v1223
        %v1225 = vpop.f32.mrf.mxu0
        %v1226 = vpop.f32.mrf.mxu0
        %v1227 = vadd.f32 %v599, %v1226
        %v1228 = vpop.f32.mrf.mxu0
        %1229 = vmatprep.mubr.bf16.mxu0 0
        %1230 = vmatmul.mubr.bf16.gmra.mxu0 %v954
        %v1231 = vpop.f32.mrf.mxu0
        %v1232 = vadd.f32 %v599, %v1231
        %v1233 = vpop.f32.mrf.mxu0
        %v1234 = vpop.f32.mrf.mxu0
        %v1235 = vadd.f32 %v599, %v1234
        %v1236 = vpop.f32.mrf.mxu0
        %1237 = vmatprep.mubr.bf16.mxu0 0
        %1238 = vmatmul.mubr.bf16.gmra.mxu0 %v957
        %v1239 = vpop.f32.mrf.mxu0
        %v1240 = vadd.f32 %v599, %v1239
        %v1241 = vpop.f32.mrf.mxu0
        %v1242 = vpop.f32.mrf.mxu0
        %v1243 = vadd.f32 %v599, %v1242
        %v1244 = vpop.f32.mrf.mxu0
        %1245 = vmatprep.mubr.bf16.mxu0 0
        %1246 = vmatmul.mubr.bf16.gmra.mxu0 %v960
        %v1247 = vpop.f32.mrf.mxu0
        %v1248 = vadd.f32 %v599, %v1247
        %v1249 = vpop.f32.mrf.mxu0
        %v1250 = vpop.f32.mrf.mxu0
        %v1251 = vadd.f32 %v599, %v1250
        %v1252 = vpop.f32.mrf.mxu0
        %1253 = vmatprep.mubr.bf16.mxu0 0
        %1254 = vmatmul.mubr.bf16.gmra.mxu0 %v963
        %v1255 = vpop.f32.mrf.mxu0
        %v1256 = vadd.f32 %v599, %v1255
        %v1257 = vpop.f32.mrf.mxu0
        %v1258 = vpop.f32.mrf.mxu0
        %v1259 = vadd.f32 %v599, %v1258
        %v1260 = vpop.f32.mrf.mxu0
        %1261 = vmatprep.mubr.bf16.mxu0 0
        %1262 = vmatmul.mubr.bf16.gmra.mxu0 %v966
        %v1263 = vpop.f32.mrf.mxu0
        %v1264 = vadd.f32 %v599, %v1263
        %v1265 = vpop.f32.mrf.mxu0
        %v1266 = vpop.f32.mrf.mxu0
        %v1267 = vadd.f32 %v599, %v1266
        %v1268 = vpop.f32.mrf.mxu0
        %1269 = vmatprep.mubr.bf16.mxu0 0
        %1270 = vmatmul.mubr.bf16.gmra.mxu0 %v969
        %v1271 = vpop.f32.mrf.mxu0
        %v1272 = vadd.f32 %v599, %v1271
        %v1273 = vpop.f32.mrf.mxu0
        %v1274 = vpop.f32.mrf.mxu0
        %v1275 = vadd.f32 %v599, %v1274
        %v1276 = vpop.f32.mrf.mxu0
        %1277 = vmatprep.mubr.bf16.mxu0 0
        %1278 = vmatmul.mubr.bf16.gmra.mxu0 %v972
        %v1279 = vpop.f32.mrf.mxu0
        %v1280 = vadd.f32 %v599, %v1279
        %v1281 = vpop.f32.mrf.mxu0
        %v1282 = vpop.f32.mrf.mxu0
        %v1283 = vadd.f32 %v599, %v1282
        %v1284 = vpop.f32.mrf.mxu0
        %1285 = vmatprep.mubr.bf16.mxu0 0
        %1286 = vmatmul.mubr.bf16.gmra.mxu0 %v975
        %v1287 = vpop.f32.mrf.mxu0
        %v1288 = vadd.f32 %v599, %v1287
        %v1289 = vpop.f32.mrf.mxu0
        %v1290 = vpop.f32.mrf.mxu0
        %v1291 = vadd.f32 %v599, %v1290
        %v1292 = vpop.f32.mrf.mxu0
        %1293 = vmatprep.mubr.bf16.mxu0 0
        %1294 = vmatmul.mubr.bf16.gmra.mxu0 %v978
        %v1295 = vpop.f32.mrf.mxu0
        %v1296 = vadd.f32 %v599, %v1295
        %v1297 = vpop.f32.mrf.mxu0
        %v1298 = vpop.f32.mrf.mxu0
        %v1299 = vadd.f32 %v599, %v1298
        %v1300 = vpop.f32.mrf.mxu0
        %1301 = vmatprep.mubr.bf16.mxu0 0
        %1302 = vmatmul.mubr.bf16.gmra.mxu0 %v981
        %v1303 = vpop.f32.mrf.mxu0
        %v1304 = vadd.f32 %v599, %v1303
        %v1305 = vpop.f32.mrf.mxu0
        %v1306 = vpop.f32.mrf.mxu0
        %v1307 = vadd.f32 %v599, %v1306
        %v1308 = vpop.f32.mrf.mxu0
        %1309 = vmatprep.mubr.bf16.mxu0 0
        %1310 = vmatmul.mubr.bf16.gmra.mxu0 %v984
        %v1311 = vpop.f32.mrf.mxu0
        %v1312 = vadd.f32 %v599, %v1311
        %v1313 = vpop.f32.mrf.mxu0
        %v1314 = vpop.f32.mrf.mxu0
        %v1315 = vadd.f32 %v599, %v1314
        %v1316 = vpop.f32.mrf.mxu0
        %1317 = vmatprep.mubr.bf16.mxu0 0
        %1318 = vmatmul.mubr.bf16.gmra.mxu0 %v987
        %v1319 = vpop.f32.mrf.mxu0
        %v1320 = vadd.f32 %v599, %v1319
        %v1321 = vpop.f32.mrf.mxu0
        %v1322 = vpop.f32.mrf.mxu0
        %v1323 = vadd.f32 %v599, %v1322
        %v1324 = vpop.f32.mrf.mxu0
        %1325 = vmatprep.mubr.bf16.mxu0 0
        %1326 = vmatmul.mubr.bf16.gmra.mxu0 %v990
        %v1327 = vpop.f32.mrf.mxu0
        %v1328 = vadd.f32 %v599, %v1327
        %v1329 = vpop.f32.mrf.mxu0
        %v1330 = vpop.f32.mrf.mxu0
        %v1331 = vadd.f32 %v599, %v1330
        %v1332 = vpop.f32.mrf.mxu0
        %1333 = vmatprep.mubr.bf16.mxu0 0
        %1334 = vmatmul.mubr.bf16.gmra.mxu0 %v993
        %v1335 = vpop.f32.mrf.mxu0
        %v1336 = vadd.f32 %v599, %v1335
        %v1337 = vpop.f32.mrf.mxu0
        %v1338 = vpop.f32.mrf.mxu0
        %v1339 = vadd.f32 %v599, %v1338
        %v1340 = vpop.f32.mrf.mxu0
        %1341 = vmatprep.mubr.bf16.mxu0 0
        %1342 = vmatmul.mubr.bf16.gmra.mxu0 %v996
        %v1343 = vpop.f32.mrf.mxu0
        %v1344 = vadd.f32 %v599, %v1343
        %v1345 = vpop.f32.mrf.mxu0
        %v1346 = vpop.f32.mrf.mxu0
        %v1347 = vadd.f32 %v599, %v1346
        %v1348 = vpop.f32.mrf.mxu0
        %1349 = vmatprep.mubr.bf16.mxu0 0
        %1350 = vmatmul.mubr.bf16.gmra.mxu0 %v999
        %v1351 = vpop.f32.mrf.mxu0
        %v1352 = vadd.f32 %v599, %v1351
        %v1353 = vpop.f32.mrf.mxu0
        %v1354 = vpop.f32.mrf.mxu0
        %v1355 = vadd.f32 %v599, %v1354
        %v1356 = vpop.f32.mrf.mxu0
        %1357 = vmatprep.mubr.bf16.mxu0 0
        %1358 = vmatmul.mubr.bf16.gmra.mxu0 %v1002
        %v1359 = vpop.f32.mrf.mxu0
        %v1360 = vadd.f32 %v599, %v1359
        %v1361 = vpop.f32.mrf.mxu0
        %v1362 = vpop.f32.mrf.mxu0
        %v1363 = vadd.f32 %v599, %v1362
        %v1364 = vpop.f32.mrf.mxu0
        %1365 = vmatprep.mubr.bf16.mxu0 0
        %1366 = vmatmul.mubr.bf16.gmra.mxu0 %v1005
        %v1367 = vpop.f32.mrf.mxu0
        %v1368 = vadd.f32 %v599, %v1367
        %v1369 = vpop.f32.mrf.mxu0
        %v1370 = vpop.f32.mrf.mxu0
        %v1371 = vadd.f32 %v599, %v1370
        %v1372 = vpop.f32.mrf.mxu0
        %1373 = vmatprep.mubr.bf16.mxu0 0
        %1374 = vmatmul.mubr.bf16.gmra.mxu0 %v1008
        %v1375 = vpop.f32.mrf.mxu0
        %v1376 = vadd.f32 %v599, %v1375
        %v1377 = vpop.f32.mrf.mxu0
        %v1378 = vpop.f32.mrf.mxu0
        %v1379 = vadd.f32 %v599, %v1378
        %v1380 = vpop.f32.mrf.mxu0
        %1381 = vmatprep.mubr.bf16.mxu0 0
        %1382 = vmatmul.mubr.bf16.gmra.mxu0 %v1011
        %v1383 = vpop.f32.mrf.mxu0
        %v1384 = vadd.f32 %v599, %v1383
        %v1385 = vpop.f32.mrf.mxu0
        %v1386 = vpop.f32.mrf.mxu0
        %v1387 = vadd.f32 %v599, %v1386
        %v1388 = vpop.f32.mrf.mxu0
        %1389 = vmatprep.mubr.bf16.mxu0 0
        %1390 = vmatmul.mubr.bf16.gmra.mxu0 %v1014
        %v1391 = vpop.f32.mrf.mxu0
        %v1392 = vadd.f32 %v599, %v1391
        %v1393 = vpop.f32.mrf.mxu0
        %v1394 = vpop.f32.mrf.mxu0
        %v1395 = vadd.f32 %v599, %v1394
        %v1396 = vpop.f32.mrf.mxu0
        %1397 = vmatprep.mubr.bf16.mxu0 0
        %1398 = vmatmul.mubr.bf16.gmra.mxu0 %v1017
        %v1399 = vpop.f32.mrf.mxu0
        %v1400 = vadd.f32 %v599, %v1399
        %v1401 = vpop.f32.mrf.mxu0
        %v1402 = vpop.f32.mrf.mxu0
        %v1403 = vadd.f32 %v599, %v1402
        %v1404 = vpop.f32.mrf.mxu0
        %1405 = vmatprep.mubr.bf16.mxu0 0
        %1406 = vmatmul.mubr.bf16.gmra.mxu0 %v1020
        %v1407 = vpop.f32.mrf.mxu0
        %v1408 = vadd.f32 %v599, %v1407
        %v1409 = vpop.f32.mrf.mxu0
        %v1410 = vpop.f32.mrf.mxu0
        %v1411 = vadd.f32 %v599, %v1410
        %v1412 = vpop.f32.mrf.mxu0
        %1413 = vmatprep.mubr.bf16.mxu0 0
        %1414 = vmatmul.mubr.bf16.gmra.mxu0 %v1023
        %v1415 = vpop.f32.mrf.mxu0
        %v1416 = vadd.f32 %v599, %v1415
        %v1417 = vpop.f32.mrf.mxu0
        %v1418 = vpop.f32.mrf.mxu0
        %v1419 = vadd.f32 %v599, %v1418
        %v1420 = vpop.f32.mrf.mxu0
        %1421 = vmatprep.mubr.bf16.mxu0 0
        %1422 = vmatmul.mubr.bf16.gmra.mxu0 %v1026
        %v1423 = vpop.f32.mrf.mxu0
        %v1424 = vadd.f32 %v599, %v1423
        %v1425 = vpop.f32.mrf.mxu0
        %v1426 = vpop.f32.mrf.mxu0
        %v1427 = vadd.f32 %v599, %v1426
        %v1428 = vpop.f32.mrf.mxu0
        %1429 = vmatprep.mubr.bf16.mxu0 0
        %1430 = vmatmul.mubr.bf16.gmra.mxu0 %v1029
        %v1431 = vpop.f32.mrf.mxu0
        %v1432 = vadd.f32 %v599, %v1431
        %v1433 = vpop.f32.mrf.mxu0
        %v1434 = vpop.f32.mrf.mxu0
        %v1435 = vadd.f32 %v599, %v1434
        %v1436 = vpop.f32.mrf.mxu0
        %1437 = vmatprep.mubr.bf16.mxu0 0
        %1438 = vmatmul.mubr.bf16.gmra.mxu0 %v1032
        %v1439 = vpop.f32.mrf.mxu0
        %v1440 = vadd.f32 %v599, %v1439
        %v1441 = vpop.f32.mrf.mxu0
        %v1442 = vpop.f32.mrf.mxu0
        %v1443 = vadd.f32 %v599, %v1442
        %v1444 = vpop.f32.mrf.mxu0
        %1445 = vmatprep.mubr.bf16.mxu0 0
        %1446 = vmatmul.mubr.bf16.gmra.mxu0 %v1035
        %v1447 = vpop.f32.mrf.mxu0
        %v1448 = vadd.f32 %v599, %v1447
        %v1449 = vpop.f32.mrf.mxu0
        %v1450 = vpop.f32.mrf.mxu0
        %v1451 = vadd.f32 %v599, %v1450
        %v1452 = vpop.f32.mrf.mxu0
        %1453 = vmatprep.mubr.bf16.mxu0 0
        %1454 = vmatmul.mubr.bf16.gmra.mxu0 %v1038
        %v1455 = vpop.f32.mrf.mxu0
        %v1456 = vadd.f32 %v599, %v1455
        %v1457 = vpop.f32.mrf.mxu0
        %v1458 = vpop.f32.mrf.mxu0
        %v1459 = vadd.f32 %v599, %v1458
        %v1460 = vpop.f32.mrf.mxu0
        %1461 = vmatprep.mubr.bf16.mxu0 0
        %1462 = vmatmul.mubr.bf16.gmra.mxu0 %v1041
        %v1463 = vpop.f32.mrf.mxu0
        %v1464 = vadd.f32 %v599, %v1463
        %v1465 = vpop.f32.mrf.mxu0
        %v1466 = vpop.f32.mrf.mxu0
        %v1467 = vadd.f32 %v599, %v1466
        %v1468 = vpop.f32.mrf.mxu0
        %1469 = vmatprep.mubr.bf16.mxu0 0
        %1470 = vmatmul.mubr.bf16.gmra.mxu0 %v1044
        %v1471 = vpop.f32.mrf.mxu0
        %v1472 = vadd.f32 %v599, %v1471
        %v1473 = vpop.f32.mrf.mxu0
        %v1474 = vpop.f32.mrf.mxu0
        %v1475 = vadd.f32 %v599, %v1474
        %v1476 = vpop.f32.mrf.mxu0
        %1477 = vmatprep.mubr.bf16.mxu0 0
        %1478 = vmatmul.mubr.bf16.gmra.mxu0 %v1047
        %v1479 = vpop.f32.mrf.mxu0
        %v1480 = vadd.f32 %v599, %v1479
        %v1481 = vpop.f32.mrf.mxu0
        %v1482 = vpop.f32.mrf.mxu0
        %v1483 = vadd.f32 %v599, %v1482
        %v1484 = vpop.f32.mrf.mxu0
        %1485 = vmatprep.mubr.bf16.mxu0 0
        %1486 = vmatmul.mubr.bf16.gmra.mxu0 %v1050
        %v1487 = vpop.f32.mrf.mxu0
        %v1488 = vadd.f32 %v599, %v1487
        %v1489 = vpop.f32.mrf.mxu0
        %v1490 = vpop.f32.mrf.mxu0
        %v1491 = vadd.f32 %v599, %v1490
        %v1492 = vpop.f32.mrf.mxu0
        %1493 = vmatprep.mubr.bf16.mxu0 0
        %1494 = vmatmul.mubr.bf16.gmra.mxu0 %v1053
        %v1495 = vpop.f32.mrf.mxu0
        %v1496 = vadd.f32 %v599, %v1495
        %v1497 = vpop.f32.mrf.mxu0
        %v1498 = vpop.f32.mrf.mxu0
        %v1499 = vadd.f32 %v599, %v1498
        %v1500 = vpop.f32.mrf.mxu0
        %1501 = vmatprep.mubr.bf16.mxu0 0
        %1502 = vmatmul.mubr.bf16.gmra.mxu0 %v1056
        %v1503 = vpop.f32.mrf.mxu0
        %v1504 = vadd.f32 %v599, %v1503
        %v1505 = vpop.f32.mrf.mxu0
        %v1506 = vpop.f32.mrf.mxu0
        %v1507 = vadd.f32 %v599, %v1506
        %v1508 = vpop.f32.mrf.mxu0
        %1509 = vmatprep.mubr.bf16.mxu0 0
        %1510 = vmatmul.mubr.bf16.gmra.mxu0 %v1059
        %v1511 = vpop.f32.mrf.mxu0
        %v1512 = vadd.f32 %v599, %v1511
        %v1513 = vpop.f32.mrf.mxu0
        %v1514 = vpop.f32.mrf.mxu0
        %v1515 = vadd.f32 %v599, %v1514
        %v1516 = vpop.f32.mrf.mxu0
        %1517 = vmatprep.mubr.bf16.mxu0 0
        %1518 = vmatmul.mubr.bf16.gmra.mxu0 %v1062
        %v1519 = vpop.f32.mrf.mxu0
        %v1520 = vadd.f32 %v599, %v1519
        %v1521 = vpop.f32.mrf.mxu0
        %v1522 = vpop.f32.mrf.mxu0
        %v1523 = vadd.f32 %v599, %v1522
        %v1524 = vpop.f32.mrf.mxu0
        %1525 = vmatprep.mubr.bf16.mxu0 0
        %1526 = vmatmul.mubr.bf16.gmra.mxu0 %v1065
        %v1527 = vpop.f32.mrf.mxu0
        %v1528 = vadd.f32 %v599, %v1527
        %v1529 = vpop.f32.mrf.mxu0
        %v1530 = vpop.f32.mrf.mxu0
        %v1531 = vadd.f32 %v599, %v1530
        %v1532 = vpop.f32.mrf.mxu0
        %1533 = vmatprep.mubr.bf16.mxu0 0
        %1534 = vmatmul.mubr.bf16.gmra.mxu0 %v1068
        %v1535 = vpop.f32.mrf.mxu0
        %v1536 = vadd.f32 %v599, %v1535
        %v1537 = vpop.f32.mrf.mxu0
        %v1538 = vpop.f32.mrf.mxu0
        %v1539 = vadd.f32 %v599, %v1538
        %v1540 = vpop.f32.mrf.mxu0
        %1541 = vmatprep.mubr.bf16.mxu0 0
        %1542 = vmatmul.mubr.bf16.gmra.mxu0 %v1071
        %v1543 = vpop.f32.mrf.mxu0
        %v1544 = vadd.f32 %v599, %v1543
        %v1545 = vpop.f32.mrf.mxu0
        %v1546 = vpop.f32.mrf.mxu0
        %v1547 = vadd.f32 %v599, %v1546
        %v1548 = vpop.f32.mrf.mxu0
        %1549 = vmatprep.mubr.bf16.mxu0 0
        %1550 = vmatmul.mubr.bf16.gmra.mxu0 %v1074
        %v1551 = vpop.f32.mrf.mxu0
        %v1552 = vadd.f32 %v599, %v1551
        %v1553 = vpop.f32.mrf.mxu0
        %v1554 = vpop.f32.mrf.mxu0
        %v1555 = vadd.f32 %v599, %v1554
        %v1556 = vpop.f32.mrf.mxu0
        %1557 = vmatprep.mubr.bf16.mxu0 0
        %1558 = vmatmul.mubr.bf16.gmra.mxu0 %v1077
        %v1559 = vpop.f32.mrf.mxu0
        %v1560 = vadd.f32 %v599, %v1559
        %v1561 = vpop.f32.mrf.mxu0
        %v1562 = vpop.f32.mrf.mxu0
        %v1563 = vadd.f32 %v599, %v1562
        %v1564 = vpop.f32.mrf.mxu0
        %1565 = vmatprep.mubr.bf16.mxu0 0
        %1566 = vmatmul.mubr.bf16.gmra.mxu0 %v1080
        %v1567 = vpop.f32.mrf.mxu0
        %v1568 = vadd.f32 %v599, %v1567
        %v1569 = vpop.f32.mrf.mxu0
        %v1570 = vpop.f32.mrf.mxu0
        %v1571 = vadd.f32 %v599, %v1570
        %v1572 = vpop.f32.mrf.mxu0
        %1573 = vmatprep.mubr.bf16.mxu0 0
        %1574 = vmatmul.mubr.bf16.gmra.mxu0 %v1083
        %v1575 = vpop.f32.mrf.mxu0
        %v1576 = vadd.f32 %v599, %v1575
        %v1577 = vpop.f32.mrf.mxu0
        %v1578 = vpop.f32.mrf.mxu0
        %v1579 = vadd.f32 %v599, %v1578
        %v1580 = vpop.f32.mrf.mxu0
        %1581 = vmatprep.mubr.bf16.mxu0 0
        %1582 = vmatmul.mubr.bf16.gmra.mxu0 %v1086
        %v1583 = vpop.f32.mrf.mxu0
        %v1584 = vadd.f32 %v599, %v1583
        %v1585 = vpop.f32.mrf.mxu0
        %v1586 = vpop.f32.mrf.mxu0
        %v1587 = vadd.f32 %v599, %v1586
        %v1588 = vpop.f32.mrf.mxu0
        %1589 = vmatprep.mubr.bf16.mxu0 0
        %1590 = vmatmul.mubr.bf16.gmra.mxu0 %v1089
        %v1591 = vpop.f32.mrf.mxu0
        %v1592 = vadd.f32 %v599, %v1591
        %v1593 = vpop.f32.mrf.mxu0
        %v1594 = vpop.f32.mrf.mxu0
        %v1595 = vadd.f32 %v599, %v1594
        %v1596 = vpop.f32.mrf.mxu0
        %1597 = vmatprep.mubr.bf16.mxu0 0
        %1598 = vmatmul.mubr.bf16.gmra.mxu0 %v1092
        %v1599 = vpop.f32.mrf.mxu0
        %v1600 = vadd.f32 %v599, %v1599
        %v1601 = vpop.f32.mrf.mxu0
        %v1602 = vpop.f32.mrf.mxu0
        %v1603 = vadd.f32 %v599, %v1602
        %v1604 = vpop.f32.mrf.mxu0
        %1605 = vmatprep.mubr.bf16.mxu0 0
        %1606 = vmatmul.mubr.bf16.gmra.mxu0 %v1095
        %v1607 = vpop.f32.mrf.mxu0
        %v1608 = vadd.f32 %v599, %v1607
        %v1609 = vpop.f32.mrf.mxu0
        %v1610 = vpop.f32.mrf.mxu0
        %v1611 = vadd.f32 %v599, %v1610
        %v1612 = vpop.f32.mrf.mxu0
        %1613 = vdwg.mxu0
        %v1614 = vmax.f32 %v1136, 0.0
        %v1615 = vmax.f32 %v1139, 0.0
        %v1616 = vmax.f32 %v1144, 0.0
        %v1617 = vmax.f32 %v1147, 0.0
        %v1618 = vmax.f32 %v1152, 0.0
        %v1619 = vmax.f32 %v1155, 0.0
        %v1620 = vmax.f32 %v1160, 0.0
        %v1621 = vmax.f32 %v1163, 0.0
        %v1622 = vmax.f32 %v1168, 0.0
        %v1623 = vmax.f32 %v1171, 0.0
        %v1624 = vmax.f32 %v1176, 0.0
        %v1625 = vmax.f32 %v1179, 0.0
        %v1626 = vmax.f32 %v1184, 0.0
        %v1627 = vmax.f32 %v1187, 0.0
        %v1628 = vmax.f32 %v1192, 0.0
        %v1629 = vmax.f32 %v1195, 0.0
        %v1630 = vmax.f32 %v1200, 0.0
        %v1631 = vmax.f32 %v1203, 0.0
        %v1632 = vmax.f32 %v1208, 0.0
        %v1633 = vmax.f32 %v1211, 0.0
        %v1634 = vmax.f32 %v1216, 0.0
        %v1635 = vmax.f32 %v1219, 0.0
        %v1636 = vmax.f32 %v1224, 0.0
        %v1637 = vmax.f32 %v1227, 0.0
        %v1638 = vmax.f32 %v1232, 0.0
        %v1639 = vmax.f32 %v1235, 0.0
        %v1640 = vmax.f32 %v1240, 0.0
        %v1641 = vmax.f32 %v1243, 0.0
        %v1642 = vmax.f32 %v1248, 0.0
        %v1643 = vmax.f32 %v1251, 0.0
        %v1644 = vmax.f32 %v1256, 0.0
        %v1645 = vmax.f32 %v1259, 0.0
        %v1646 = vmax.f32 %v1264, 0.0
        %v1647 = vmax.f32 %v1267, 0.0
        %v1648 = vmax.f32 %v1272, 0.0
        %v1649 = vmax.f32 %v1275, 0.0
        %v1650 = vmax.f32 %v1280, 0.0
        %v1651 = vmax.f32 %v1283, 0.0
        %v1652 = vmax.f32 %v1288, 0.0
        %v1653 = vmax.f32 %v1291, 0.0
        %v1654 = vmax.f32 %v1296, 0.0
        %v1655 = vmax.f32 %v1299, 0.0
        %v1656 = vmax.f32 %v1304, 0.0
        %v1657 = vmax.f32 %v1307, 0.0
        %v1658 = vmax.f32 %v1312, 0.0
        %v1659 = vmax.f32 %v1315, 0.0
        %v1660 = vmax.f32 %v1320, 0.0
        %v1661 = vmax.f32 %v1323, 0.0
        %v1662 = vmax.f32 %v1328, 0.0
        %v1663 = vmax.f32 %v1331, 0.0
        %v1664 = vmax.f32 %v1336, 0.0
        %v1665 = vmax.f32 %v1339, 0.0
        %v1666 = vmax.f32 %v1344, 0.0
        %v1667 = vmax.f32 %v1347, 0.0
        %v1668 = vmax.f32 %v1352, 0.0
        %v1669 = vmax.f32 %v1355, 0.0
        %v1670 = vmax.f32 %v1360, 0.0
        %v1671 = vmax.f32 %v1363, 0.0
        %v1672 = vmax.f32 %v1368, 0.0
        %v1673 = vmax.f32 %v1371, 0.0
        %v1674 = vmax.f32 %v1376, 0.0
        %v1675 = vmax.f32 %v1379, 0.0
        %v1676 = vmax.f32 %v1384, 0.0
        %v1677 = vmax.f32 %v1387, 0.0
        %v1678 = vmax.f32 %v1392, 0.0
        %v1679 = vmax.f32 %v1395, 0.0
        %v1680 = vmax.f32 %v1400, 0.0
        %v1681 = vmax.f32 %v1403, 0.0
        %v1682 = vmax.f32 %v1408, 0.0
        %v1683 = vmax.f32 %v1411, 0.0
        %v1684 = vmax.f32 %v1416, 0.0
        %v1685 = vmax.f32 %v1419, 0.0
        %v1686 = vmax.f32 %v1424, 0.0
        %v1687 = vmax.f32 %v1427, 0.0
        %v1688 = vmax.f32 %v1432, 0.0
        %v1689 = vmax.f32 %v1435, 0.0
        %v1690 = vmax.f32 %v1440, 0.0
        %v1691 = vmax.f32 %v1443, 0.0
        %v1692 = vmax.f32 %v1448, 0.0
        %v1693 = vmax.f32 %v1451, 0.0
        %v1694 = vmax.f32 %v1456, 0.0
        %v1695 = vmax.f32 %v1459, 0.0
        %v1696 = vmax.f32 %v1464, 0.0
        %v1697 = vmax.f32 %v1467, 0.0
        %v1698 = vmax.f32 %v1472, 0.0
        %v1699 = vmax.f32 %v1475, 0.0
        %v1700 = vmax.f32 %v1480, 0.0
        %v1701 = vmax.f32 %v1483, 0.0
        %v1702 = vmax.f32 %v1488, 0.0
        %v1703 = vmax.f32 %v1491, 0.0
        %v1704 = vmax.f32 %v1496, 0.0
        %v1705 = vmax.f32 %v1499, 0.0
        %v1706 = vmax.f32 %v1504, 0.0
        %v1707 = vmax.f32 %v1507, 0.0
        %v1708 = vmax.f32 %v1512, 0.0
        %v1709 = vmax.f32 %v1515, 0.0
        %v1710 = vmax.f32 %v1520, 0.0
        %v1711 = vmax.f32 %v1523, 0.0
        %v1712 = vmax.f32 %v1528, 0.0
        %v1713 = vmax.f32 %v1531, 0.0
        %v1714 = vmax.f32 %v1536, 0.0
        %v1715 = vmax.f32 %v1539, 0.0
        %v1716 = vmax.f32 %v1544, 0.0
        %v1717 = vmax.f32 %v1547, 0.0
        %v1718 = vmax.f32 %v1552, 0.0
        %v1719 = vmax.f32 %v1555, 0.0
        %v1720 = vmax.f32 %v1560, 0.0
        %v1721 = vmax.f32 %v1563, 0.0
        %v1722 = vmax.f32 %v1568, 0.0
        %v1723 = vmax.f32 %v1571, 0.0
        %v1724 = vmax.f32 %v1576, 0.0
        %v1725 = vmax.f32 %v1579, 0.0
        %v1726 = vmax.f32 %v1584, 0.0
        %v1727 = vmax.f32 %v1587, 0.0
        %v1728 = vmax.f32 %v1592, 0.0
        %v1729 = vmax.f32 %v1595, 0.0
        %v1730 = vmax.f32 %v1600, 0.0
        %v1731 = vmax.f32 %v1603, 0.0
        %v1732 = vmax.f32 %v1608, 0.0
        %v1733 = vmax.f32 %v1611, 0.0
        %v1734 = vmax.f32 %v1614, %v1618
        %v1735 = vmax.f32 %v1615, %v1619
        %v1736 = vmax.f32 %v1616, %v1620
        %v1737 = vmax.f32 %v1617, %v1621
        %v1738 = vmax.f32 %v1622, %v1626
        %v1739 = vmax.f32 %v1623, %v1627
        %v1740 = vmax.f32 %v1624, %v1628
        %v1741 = vmax.f32 %v1625, %v1629
        %v1742 = vmax.f32 %v1630, %v1634
        %v1743 = vmax.f32 %v1631, %v1635
        %v1744 = vmax.f32 %v1632, %v1636
        %v1745 = vmax.f32 %v1633, %v1637
        %v1746 = vmax.f32 %v1638, %v1642
        %v1747 = vmax.f32 %v1639, %v1643
        %v1748 = vmax.f32 %v1640, %v1644
        %v1749 = vmax.f32 %v1641, %v1645
        %v1750 = vmax.f32 %v1646, %v1650
        %v1751 = vmax.f32 %v1647, %v1651
        %v1752 = vmax.f32 %v1648, %v1652
        %v1753 = vmax.f32 %v1649, %v1653
        %v1754 = vmax.f32 %v1654, %v1658
        %v1755 = vmax.f32 %v1655, %v1659
        %v1756 = vmax.f32 %v1656, %v1660
        %v1757 = vmax.f32 %v1657, %v1661
        %v1758 = vmax.f32 %v1662, %v1666
        %v1759 = vmax.f32 %v1663, %v1667
        %v1760 = vmax.f32 %v1664, %v1668
        %v1761 = vmax.f32 %v1665, %v1669
        %v1762 = vmax.f32 %v1670, %v1674
        %v1763 = vmax.f32 %v1671, %v1675
        %v1764 = vmax.f32 %v1672, %v1676
        %v1765 = vmax.f32 %v1673, %v1677
        %v1766 = vmax.f32 %v1678, %v1682
        %v1767 = vmax.f32 %v1679, %v1683
        %v1768 = vmax.f32 %v1680, %v1684
        %v1769 = vmax.f32 %v1681, %v1685
        %v1770 = vmax.f32 %v1686, %v1690
        %v1771 = vmax.f32 %v1687, %v1691
        %v1772 = vmax.f32 %v1688, %v1692
        %v1773 = vmax.f32 %v1689, %v1693
        %v1774 = vmax.f32 %v1694, %v1698
        %v1775 = vmax.f32 %v1695, %v1699
        %v1776 = vmax.f32 %v1696, %v1700
        %v1777 = vmax.f32 %v1697, %v1701
        %v1778 = vmax.f32 %v1702, %v1706
        %v1779 = vmax.f32 %v1703, %v1707
        %v1780 = vmax.f32 %v1704, %v1708
        %v1781 = vmax.f32 %v1705, %v1709
        %v1782 = vmax.f32 %v1710, %v1714
        %v1783 = vmax.f32 %v1711, %v1715
        %v1784 = vmax.f32 %v1712, %v1716
        %v1785 = vmax.f32 %v1713, %v1717
        %v1786 = vmax.f32 %v1718, %v1722
        %v1787 = vmax.f32 %v1719, %v1723
        %v1788 = vmax.f32 %v1720, %v1724
        %v1789 = vmax.f32 %v1721, %v1725
        %v1790 = vmax.f32 %v1726, %v1730
        %v1791 = vmax.f32 %v1727, %v1731
        %v1792 = vmax.f32 %v1728, %v1732
        %v1793 = vmax.f32 %v1729, %v1733
        %1794 = vst [vmem:[#allocation5] sm:$0xff] %v1734
        %1795 = vst [vmem:[#allocation5 + $0x8] sm:$0xff] %v1735
        %1796 = vst [vmem:[#allocation5 + $0x10] sm:$0xff] %v1736
        %1797 = vst [vmem:[#allocation5 + $0x18] sm:$0xff] %v1737
        %1798 = vst [vmem:[#allocation5 + $0x20] sm:$0xff] %v1738
        %1799 = vst [vmem:[#allocation5 + $0x28] sm:$0xff] %v1739
        %1800 = vst [vmem:[#allocation5 + $0x30] sm:$0xff] %v1740
        %1801 = vst [vmem:[#allocation5 + $0x38] sm:$0xff] %v1741
        %1802 = vst [vmem:[#allocation5 + $0x40] sm:$0xff] %v1742
        %1803 = vst [vmem:[#allocation5 + $0x48] sm:$0xff] %v1743
        %1804 = vst [vmem:[#allocation5 + $0x50] sm:$0xff] %v1744
        %1805 = vst [vmem:[#allocation5 + $0x58] sm:$0xff] %v1745
        %1806 = vst [vmem:[#allocation5 + $0x60] sm:$0xff] %v1746
        %1807 = vst [vmem:[#allocation5 + $0x68] sm:$0xff] %v1747
        %1808 = vst [vmem:[#allocation5 + $0x70] sm:$0xff] %v1748
        %1809 = vst [vmem:[#allocation5 + $0x78] sm:$0xff] %v1749
        %1810 = vst [vmem:[#allocation5 + $0x80] sm:$0xff] %v1750
        %1811 = vst [vmem:[#allocation5 + $0x88] sm:$0xff] %v1751
        %1812 = vst [vmem:[#allocation5 + $0x90] sm:$0xff] %v1752
        %1813 = vst [vmem:[#allocation5 + $0x98] sm:$0xff] %v1753
        %1814 = vst [vmem:[#allocation5 + $0xa0] sm:$0xff] %v1754
        %1815 = vst [vmem:[#allocation5 + $0xa8] sm:$0xff] %v1755
        %1816 = vst [vmem:[#allocation5 + $0xb0] sm:$0xff] %v1756
        %1817 = vst [vmem:[#allocation5 + $0xb8] sm:$0xff] %v1757
        %1818 = vst [vmem:[#allocation5 + $0xc0] sm:$0xff] %v1758
        %1819 = vst [vmem:[#allocation5 + $0xc8] sm:$0xff] %v1759
        %1820 = vst [vmem:[#allocation5 + $0xd0] sm:$0xff] %v1760
        %1821 = vst [vmem:[#allocation5 + $0xd8] sm:$0xff] %v1761
        %1822 = vst [vmem:[#allocation5 + $0xe0] sm:$0xff] %v1762
        %1823 = vst [vmem:[#allocation5 + $0xe8] sm:$0xff] %v1763
        %1824 = vst [vmem:[#allocation5 + $0xf0] sm:$0xff] %v1764
        %1825 = vst [vmem:[#allocation5 + $0xf8] sm:$0xff] %v1765
        %1826 = vst [vmem:[#allocation5 + $0x100] sm:$0xff] %v1766
        %1827 = vst [vmem:[#allocation5 + $0x108] sm:$0xff] %v1767
        %1828 = vst [vmem:[#allocation5 + $0x110] sm:$0xff] %v1768
        %1829 = vst [vmem:[#allocation5 + $0x118] sm:$0xff] %v1769
        %1830 = vst [vmem:[#allocation5 + $0x120] sm:$0xff] %v1770
        %1831 = vst [vmem:[#allocation5 + $0x128] sm:$0xff] %v1771
        %1832 = vst [vmem:[#allocation5 + $0x130] sm:$0xff] %v1772
        %1833 = vst [vmem:[#allocation5 + $0x138] sm:$0xff] %v1773
        %1834 = vst [vmem:[#allocation5 + $0x140] sm:$0xff] %v1774
        %1835 = vst [vmem:[#allocation5 + $0x148] sm:$0xff] %v1775
        %1836 = vst [vmem:[#allocation5 + $0x150] sm:$0xff] %v1776
        %1837 = vst [vmem:[#allocation5 + $0x158] sm:$0xff] %v1777
        %1838 = vst [vmem:[#allocation5 + $0x160] sm:$0xff] %v1778
        %1839 = vst [vmem:[#allocation5 + $0x168] sm:$0xff] %v1779
        %1840 = vst [vmem:[#allocation5 + $0x170] sm:$0xff] %v1780
        %1841 = vst [vmem:[#allocation5 + $0x178] sm:$0xff] %v1781
        %1842 = vst [vmem:[#allocation5 + $0x180] sm:$0xff] %v1782
        %1843 = vst [vmem:[#allocation5 + $0x188] sm:$0xff] %v1783
        %1844 = vst [vmem:[#allocation5 + $0x190] sm:$0xff] %v1784
        %1845 = vst [vmem:[#allocation5 + $0x198] sm:$0xff] %v1785
        %1846 = vst [vmem:[#allocation5 + $0x1a0] sm:$0xff] %v1786
        %1847 = vst [vmem:[#allocation5 + $0x1a8] sm:$0xff] %v1787
        %1848 = vst [vmem:[#allocation5 + $0x1b0] sm:$0xff] %v1788
        %1849 = vst [vmem:[#allocation5 + $0x1b8] sm:$0xff] %v1789
        %1850 = vst [vmem:[#allocation5 + $0x1c0] sm:$0xff] %v1790
        %1851 = vst [vmem:[#allocation5 + $0x1c8] sm:$0xff] %v1791
        %1852 = vst [vmem:[#allocation5 + $0x1d0] sm:$0xff] %v1792
        %1853 = vst [vmem:[#allocation5 + $0x1d8] sm:$0xff] %v1793
        %v1854 = vld [vmem:[#allocation5] ss:$2 sm:$0xff]
        %s1855 = scalar_lea.vmem [#allocation5], 16
        %v1856 = vld [vmem:[%s1855] ss:$2 sm:$0xff]
        %s1857 = scalar_lea.vmem [#allocation5], 32
        %v1858 = vld [vmem:[%s1857] ss:$2 sm:$0xff]
        %s1859 = scalar_lea.vmem [#allocation5], 48
        %v1860 = vld [vmem:[%s1859] ss:$2 sm:$0xff]
        %s1861 = scalar_lea.vmem [#allocation5], 64
        %v1862 = vld [vmem:[%s1861] ss:$2 sm:$0xff]
        %s1863 = scalar_lea.vmem [#allocation5], 80
        %v1864 = vld [vmem:[%s1863] ss:$2 sm:$0xff]
        %s1865 = scalar_lea.vmem [#allocation5], 96
        %v1866 = vld [vmem:[%s1865] ss:$2 sm:$0xff]
        %s1867 = scalar_lea.vmem [#allocation5], 112
        %v1868 = vld [vmem:[%s1867] ss:$2 sm:$0xff]
        %s1869 = scalar_lea.vmem [#allocation5], 128
        %v1870 = vld [vmem:[%s1869] ss:$2 sm:$0xff]
        %s1871 = scalar_lea.vmem [#allocation5], 144
        %v1872 = vld [vmem:[%s1871] ss:$2 sm:$0xff]
        %s1873 = scalar_lea.vmem [#allocation5], 160
        %v1874 = vld [vmem:[%s1873] ss:$2 sm:$0xff]
        %s1875 = scalar_lea.vmem [#allocation5], 176
        %v1876 = vld [vmem:[%s1875] ss:$2 sm:$0xff]
        %s1877 = scalar_lea.vmem [#allocation5], 192
        %v1878 = vld [vmem:[%s1877] ss:$2 sm:$0xff]
        %s1879 = scalar_lea.vmem [#allocation5], 208
        %v1880 = vld [vmem:[%s1879] ss:$2 sm:$0xff]
        %s1881 = scalar_lea.vmem [#allocation5], 224
        %v1882 = vld [vmem:[%s1881] ss:$2 sm:$0xff]
        %s1883 = scalar_lea.vmem [#allocation5], 240
        %v1884 = vld [vmem:[%s1883] ss:$2 sm:$0xff]
        %s1885 = scalar_lea.vmem [#allocation5], 256
        %v1886 = vld [vmem:[%s1885] ss:$2 sm:$0xff]
        %s1887 = scalar_lea.vmem [#allocation5], 272
        %v1888 = vld [vmem:[%s1887] ss:$2 sm:$0xff]
        %s1889 = scalar_lea.vmem [#allocation5], 288
        %v1890 = vld [vmem:[%s1889] ss:$2 sm:$0xff]
        %s1891 = scalar_lea.vmem [#allocation5], 304
        %v1892 = vld [vmem:[%s1891] ss:$2 sm:$0xff]
        %s1893 = scalar_lea.vmem [#allocation5], 320
        %v1894 = vld [vmem:[%s1893] ss:$2 sm:$0xff]
        %s1895 = scalar_lea.vmem [#allocation5], 336
        %v1896 = vld [vmem:[%s1895] ss:$2 sm:$0xff]
        %s1897 = scalar_lea.vmem [#allocation5], 352
        %v1898 = vld [vmem:[%s1897] ss:$2 sm:$0xff]
        %s1899 = scalar_lea.vmem [#allocation5], 368
        %v1900 = vld [vmem:[%s1899] ss:$2 sm:$0xff]
        %s1901 = scalar_lea.vmem [#allocation5], 384
        %v1902 = vld [vmem:[%s1901] ss:$2 sm:$0xff]
        %s1903 = scalar_lea.vmem [#allocation5], 400
        %v1904 = vld [vmem:[%s1903] ss:$2 sm:$0xff]
        %s1905 = scalar_lea.vmem [#allocation5], 416
        %v1906 = vld [vmem:[%s1905] ss:$2 sm:$0xff]
        %s1907 = scalar_lea.vmem [#allocation5], 432
        %v1908 = vld [vmem:[%s1907] ss:$2 sm:$0xff]
        %s1909 = scalar_lea.vmem [#allocation5], 448
        %v1910 = vld [vmem:[%s1909] ss:$2 sm:$0xff]
        %s1911 = scalar_lea.vmem [#allocation5], 464
        %v1912 = vld [vmem:[%s1911] ss:$2 sm:$0xff]
        %s1913 = scalar_lea.vmem [#allocation5], 1
        %v1914 = vld [vmem:[%s1913] ss:$2 sm:$0xff]
        %s1915 = scalar_lea.vmem [#allocation5], 17
        %v1916 = vld [vmem:[%s1915] ss:$2 sm:$0xff]
        %s1917 = scalar_lea.vmem [#allocation5], 33
        %v1918 = vld [vmem:[%s1917] ss:$2 sm:$0xff]
        %s1919 = scalar_lea.vmem [#allocation5], 49
        %v1920 = vld [vmem:[%s1919] ss:$2 sm:$0xff]
        %s1921 = scalar_lea.vmem [#allocation5], 65
        %v1922 = vld [vmem:[%s1921] ss:$2 sm:$0xff]
        %s1923 = scalar_lea.vmem [#allocation5], 81
        %v1924 = vld [vmem:[%s1923] ss:$2 sm:$0xff]
        %s1925 = scalar_lea.vmem [#allocation5], 97
        %v1926 = vld [vmem:[%s1925] ss:$2 sm:$0xff]
        %s1927 = scalar_lea.vmem [#allocation5], 113
        %v1928 = vld [vmem:[%s1927] ss:$2 sm:$0xff]
        %s1929 = scalar_lea.vmem [#allocation5], 129
        %v1930 = vld [vmem:[%s1929] ss:$2 sm:$0xff]
        %s1931 = scalar_lea.vmem [#allocation5], 145
        %v1932 = vld [vmem:[%s1931] ss:$2 sm:$0xff]
        %s1933 = scalar_lea.vmem [#allocation5], 161
        %v1934 = vld [vmem:[%s1933] ss:$2 sm:$0xff]
        %s1935 = scalar_lea.vmem [#allocation5], 177
        %v1936 = vld [vmem:[%s1935] ss:$2 sm:$0xff]
        %s1937 = scalar_lea.vmem [#allocation5], 193
        %v1938 = vld [vmem:[%s1937] ss:$2 sm:$0xff]
        %s1939 = scalar_lea.vmem [#allocation5], 209
        %v1940 = vld [vmem:[%s1939] ss:$2 sm:$0xff]
        %s1941 = scalar_lea.vmem [#allocation5], 225
        %v1942 = vld [vmem:[%s1941] ss:$2 sm:$0xff]
        %s1943 = scalar_lea.vmem [#allocation5], 241
        %v1944 = vld [vmem:[%s1943] ss:$2 sm:$0xff]
        %s1945 = scalar_lea.vmem [#allocation5], 257
        %v1946 = vld [vmem:[%s1945] ss:$2 sm:$0xff]
        %s1947 = scalar_lea.vmem [#allocation5], 273
        %v1948 = vld [vmem:[%s1947] ss:$2 sm:$0xff]
        %s1949 = scalar_lea.vmem [#allocation5], 289
        %v1950 = vld [vmem:[%s1949] ss:$2 sm:$0xff]
        %s1951 = scalar_lea.vmem [#allocation5], 305
        %v1952 = vld [vmem:[%s1951] ss:$2 sm:$0xff]
        %s1953 = scalar_lea.vmem [#allocation5], 321
        %v1954 = vld [vmem:[%s1953] ss:$2 sm:$0xff]
        %s1955 = scalar_lea.vmem [#allocation5], 337
        %v1956 = vld [vmem:[%s1955] ss:$2 sm:$0xff]
        %s1957 = scalar_lea.vmem [#allocation5], 353
        %v1958 = vld [vmem:[%s1957] ss:$2 sm:$0xff]
        %s1959 = scalar_lea.vmem [#allocation5], 369
        %v1960 = vld [vmem:[%s1959] ss:$2 sm:$0xff]
        %s1961 = scalar_lea.vmem [#allocation5], 385
        %v1962 = vld [vmem:[%s1961] ss:$2 sm:$0xff]
        %s1963 = scalar_lea.vmem [#allocation5], 401
        %v1964 = vld [vmem:[%s1963] ss:$2 sm:$0xff]
        %s1965 = scalar_lea.vmem [#allocation5], 417
        %v1966 = vld [vmem:[%s1965] ss:$2 sm:$0xff]
        %s1967 = scalar_lea.vmem [#allocation5], 433
        %v1968 = vld [vmem:[%s1967] ss:$2 sm:$0xff]
        %s1969 = scalar_lea.vmem [#allocation5], 449
        %v1970 = vld [vmem:[%s1969] ss:$2 sm:$0xff]
        %s1971 = scalar_lea.vmem [#allocation5], 465
        %v1972 = vld [vmem:[%s1971] ss:$2 sm:$0xff]
        %v1973 = vmax.f32 %v1854, %v1914
        %v1974 = vmax.f32 %v1856, %v1916
        %v1975 = vmax.f32 %v1858, %v1918
        %v1976 = vmax.f32 %v1860, %v1920
        %v1977 = vmax.f32 %v1862, %v1922
        %v1978 = vmax.f32 %v1864, %v1924
        %v1979 = vmax.f32 %v1866, %v1926
        %v1980 = vmax.f32 %v1868, %v1928
        %v1981 = vmax.f32 %v1870, %v1930
        %v1982 = vmax.f32 %v1872, %v1932
        %v1983 = vmax.f32 %v1874, %v1934
        %v1984 = vmax.f32 %v1876, %v1936
        %v1985 = vmax.f32 %v1878, %v1938
        %v1986 = vmax.f32 %v1880, %v1940
        %v1987 = vmax.f32 %v1882, %v1942
        %v1988 = vmax.f32 %v1884, %v1944
        %v1989 = vmax.f32 %v1886, %v1946
        %v1990 = vmax.f32 %v1888, %v1948
        %v1991 = vmax.f32 %v1890, %v1950
        %v1992 = vmax.f32 %v1892, %v1952
        %v1993 = vmax.f32 %v1894, %v1954
        %v1994 = vmax.f32 %v1896, %v1956
        %v1995 = vmax.f32 %v1898, %v1958
        %v1996 = vmax.f32 %v1900, %v1960
        %v1997 = vmax.f32 %v1902, %v1962
        %v1998 = vmax.f32 %v1904, %v1964
        %v1999 = vmax.f32 %v1906, %v1966
        %v2000 = vmax.f32 %v1908, %v1968
        %v2001 = vmax.f32 %v1910, %v1970
        %v2002 = vmax.f32 %v1912, %v1972
        %v2003 = vpack.c.bf16 %v1974, %v1973
        %v2004 = vpack.c.bf16 %v1976, %v1975
        %v2005 = vpack.c.bf16 %v1978, %v1977
        %v2006 = vpack.c.bf16 %v1980, %v1979
        %v2007 = vpack.c.bf16 %v1982, %v1981
        %v2008 = vpack.c.bf16 %v1984, %v1983
        %v2009 = vpack.c.bf16 %v1986, %v1985
        %v2010 = vpack.c.bf16 %v1988, %v1987
        %v2011 = vpack.c.bf16 %v1990, %v1989
        %v2012 = vpack.c.bf16 %v1992, %v1991
        %v2013 = vpack.c.bf16 %v1994, %v1993
        %v2014 = vpack.c.bf16 %v1996, %v1995
        %v2015 = vpack.c.bf16 %v1998, %v1997
        %v2016 = vpack.c.bf16 %v2000, %v1999
        %v2017 = vpack.c.bf16 %v2002, %v2001
        %v2033 = vunpack.c.l.b16 %v2003
        %v2034 = vunpack.c.h.b16 %v2003
        %v2035 = vunpack.c.l.b16 %v2004
        %v2036 = vunpack.c.h.b16 %v2004
        %v2037 = vunpack.c.l.b16 %v2005
        %v2038 = vunpack.c.h.b16 %v2005
        %v2039 = vunpack.c.l.b16 %v2006
        %v2040 = vunpack.c.h.b16 %v2006
        %v2041 = vunpack.c.l.b16 %v2007
        %v2042 = vunpack.c.h.b16 %v2007
        %v2043 = vunpack.c.l.b16 %v2008
        %v2044 = vunpack.c.h.b16 %v2008
        %v2045 = vunpack.c.l.b16 %v2009
        %v2046 = vunpack.c.h.b16 %v2009
        %v2047 = vunpack.c.l.b16 %v2010
        %v2048 = vunpack.c.h.b16 %v2010
        %v2049 = vunpack.c.l.b16 %v2011
        %v2050 = vunpack.c.h.b16 %v2011
        %v2051 = vunpack.c.l.b16 %v2012
        %v2052 = vunpack.c.h.b16 %v2012
        %v2053 = vunpack.c.l.b16 %v2013
        %v2054 = vunpack.c.h.b16 %v2013
        %v2055 = vunpack.c.l.b16 %v2014
        %v2056 = vunpack.c.h.b16 %v2014
        %v2057 = vunpack.c.l.b16 %v2015
        %v2058 = vunpack.c.h.b16 %v2015
        %v2059 = vunpack.c.l.b16 %v2016
        %v2060 = vunpack.c.h.b16 %v2016
        %v2061 = vunpack.c.l.b16 %v2017
        %v2062 = vunpack.c.h.b16 %v2017
        %v2063 = vpack.c.b16 %v2033, %v2033
        %v2064 = vpack.c.b16 %v2034, %v2034
        %v2065 = vpack.c.b16 %v2035, %v2035
        %v2066 = vpack.c.b16 %v2036, %v2036
        %v2067 = vpack.c.b16 %v2037, %v2037
        %v2068 = vpack.c.b16 %v2038, %v2038
        %v2069 = vpack.c.b16 %v2039, %v2039
        %v2070 = vpack.c.b16 %v2040, %v2040
        %v2071 = vpack.c.b16 %v2041, %v2041
        %v2072 = vpack.c.b16 %v2042, %v2042
        %v2073 = vpack.c.b16 %v2043, %v2043
        %v2074 = vpack.c.b16 %v2044, %v2044
        %v2075 = vpack.c.b16 %v2045, %v2045
        %v2076 = vpack.c.b16 %v2046, %v2046
        %v2077 = vpack.c.b16 %v2047, %v2047
        %v2078 = vpack.c.b16 %v2048, %v2048
        %v2079 = vpack.c.b16 %v2049, %v2049
        %v2080 = vpack.c.b16 %v2050, %v2050
        %v2081 = vpack.c.b16 %v2051, %v2051
        %v2082 = vpack.c.b16 %v2052, %v2052
        %v2083 = vpack.c.b16 %v2053, %v2053
        %v2084 = vpack.c.b16 %v2054, %v2054
        %v2085 = vpack.c.b16 %v2055, %v2055
        %v2086 = vpack.c.b16 %v2056, %v2056
        %v2087 = vpack.c.b16 %v2057, %v2057
        %v2088 = vpack.c.b16 %v2058, %v2058
        %v2089 = vpack.c.b16 %v2059, %v2059
        %v2090 = vpack.c.b16 %v2060, %v2060
        %v2091 = vpack.c.b16 %v2061, %v2061
        %v2092 = vpack.c.b16 %v2062, %v2062
        %2123 = vst [vmem:[#allocation2] sm:$0xf] %v2063
        %2124 = vst [vmem:[#allocation2 + $0x4] sm:$0xf] %v2064
        %2125 = vst [vmem:[#allocation2 + $0x8] sm:$0xf] %v2065
        %2126 = vst [vmem:[#allocation2 + $0xc] sm:$0xf] %v2066
        %2127 = vst [vmem:[#allocation2 + $0x10] sm:$0xf] %v2067
        %2128 = vst [vmem:[#allocation2 + $0x14] sm:$0xf] %v2068
        %2129 = vst [vmem:[#allocation2 + $0x18] sm:$0xf] %v2069
        %2130 = vst [vmem:[#allocation2 + $0x1c] sm:$0xf] %v2070
        %2131 = vst [vmem:[#allocation2 + $0x20] sm:$0xf] %v2071
        %2132 = vst [vmem:[#allocation2 + $0x24] sm:$0xf] %v2072
        %2133 = vst [vmem:[#allocation2 + $0x28] sm:$0xf] %v2073
        %2134 = vst [vmem:[#allocation2 + $0x2c] sm:$0xf] %v2074
        %2135 = vst [vmem:[#allocation2 + $0x30] sm:$0xf] %v2075
        %2136 = vst [vmem:[#allocation2 + $0x34] sm:$0xf] %v2076
        %2137 = vst [vmem:[#allocation2 + $0x38] sm:$0xf] %v2077
        %2138 = vst [vmem:[#allocation2 + $0x3c] sm:$0xf] %v2078
        %2139 = vst [vmem:[#allocation2 + $0x40] sm:$0xf] %v2079
        %2140 = vst [vmem:[#allocation2 + $0x44] sm:$0xf] %v2080
        %2141 = vst [vmem:[#allocation2 + $0x48] sm:$0xf] %v2081
        %2142 = vst [vmem:[#allocation2 + $0x4c] sm:$0xf] %v2082
        %2143 = vst [vmem:[#allocation2 + $0x50] sm:$0xf] %v2083
        %2144 = vst [vmem:[#allocation2 + $0x54] sm:$0xf] %v2084
        %2145 = vst [vmem:[#allocation2 + $0x58] sm:$0xf] %v2085
        %2146 = vst [vmem:[#allocation2 + $0x5c] sm:$0xf] %v2086
        %2147 = vst [vmem:[#allocation2 + $0x60] sm:$0xf] %v2087
        %2148 = vst [vmem:[#allocation2 + $0x64] sm:$0xf] %v2088
        %2149 = vst [vmem:[#allocation2 + $0x68] sm:$0xf] %v2089
        %2150 = vst [vmem:[#allocation2 + $0x6c] sm:$0xf] %v2090
        %2151 = vst [vmem:[#allocation2 + $0x70] sm:$0xf] %v2091
        %2152 = vst [vmem:[#allocation2 + $0x74] sm:$0xf] %v2092
        %2153 = vst [vmem:[#allocation2 + $0x78] sm:$0xf] 0
        %2154 = vst [vmem:[#allocation2 + $0x7c] sm:$0xf] 0
        %v2155 = vld [vmem:[%s4] sm:$0x1]
        %v2156 = vld [vmem:[#allocation2] sm:$0xf]
        %v2157 = vld [vmem:[#allocation2 + $0x4] sm:$0xf]
        %v2158 = vld [vmem:[#allocation2 + $0x8] sm:$0xf]
        %v2159 = vld [vmem:[#allocation2 + $0xc] sm:$0xf]
        %v2160 = vld [vmem:[#allocation2 + $0x10] sm:$0xf]
        %v2161 = vld [vmem:[#allocation2 + $0x14] sm:$0xf]
        %v2162 = vld [vmem:[#allocation2 + $0x18] sm:$0xf]
        %v2163 = vld [vmem:[#allocation2 + $0x1c] sm:$0xf]
        %v2164 = vld [vmem:[#allocation2 + $0x20] sm:$0xf]
        %v2165 = vld [vmem:[#allocation2 + $0x24] sm:$0xf]
        %v2166 = vld [vmem:[#allocation2 + $0x28] sm:$0xf]
        %v2167 = vld [vmem:[#allocation2 + $0x2c] sm:$0xf]
        %v2168 = vld [vmem:[#allocation2 + $0x30] sm:$0xf]
        %v2169 = vld [vmem:[#allocation2 + $0x34] sm:$0xf]
        %v2170 = vld [vmem:[#allocation2 + $0x38] sm:$0xf]
        %v2171 = vld [vmem:[#allocation2 + $0x3c] sm:$0xf]
        %v2172 = vld [vmem:[#allocation2 + $0x40] sm:$0xf]
        %v2173 = vld [vmem:[#allocation2 + $0x44] sm:$0xf]
        %v2174 = vld [vmem:[#allocation2 + $0x48] sm:$0xf]
        %v2175 = vld [vmem:[#allocation2 + $0x4c] sm:$0xf]
        %v2176 = vld [vmem:[#allocation2 + $0x50] sm:$0xf]
        %v2177 = vld [vmem:[#allocation2 + $0x54] sm:$0xf]
        %v2178 = vld [vmem:[#allocation2 + $0x58] sm:$0xf]
        %v2179 = vld [vmem:[#allocation2 + $0x5c] sm:$0xf]
        %v2180 = vld [vmem:[#allocation2 + $0x60] sm:$0xf]
        %v2181 = vld [vmem:[#allocation2 + $0x64] sm:$0xf]
        %v2182 = vld [vmem:[#allocation2 + $0x68] sm:$0x1]
        %v2209 = vunpack.c.l.b16 %v2156
        %v2210 = vunpack.c.l.b16 %v2157
        %v2211 = vunpack.c.l.b16 %v2158
        %v2212 = vunpack.c.l.b16 %v2159
        %v2213 = vunpack.c.l.b16 %v2160
        %v2214 = vunpack.c.l.b16 %v2161
        %v2215 = vunpack.c.l.b16 %v2162
        %v2216 = vunpack.c.l.b16 %v2163
        %v2217 = vunpack.c.l.b16 %v2164
        %v2218 = vunpack.c.l.b16 %v2165
        %v2219 = vunpack.c.l.b16 %v2166
        %v2220 = vunpack.c.l.b16 %v2167
        %v2221 = vunpack.c.l.b16 %v2168
        %v2222 = vunpack.c.l.b16 %v2169
        %v2223 = vunpack.c.l.b16 %v2170
        %v2224 = vunpack.c.l.b16 %v2171
        %v2225 = vunpack.c.l.b16 %v2172
        %v2226 = vunpack.c.l.b16 %v2173
        %v2227 = vunpack.c.l.b16 %v2174
        %v2228 = vunpack.c.l.b16 %v2175
        %v2229 = vunpack.c.l.b16 %v2176
        %v2230 = vunpack.c.l.b16 %v2177
        %v2231 = vunpack.c.l.b16 %v2178
        %v2232 = vunpack.c.l.b16 %v2179
        %v2233 = vunpack.c.l.b16 %v2180
        %v2234 = vunpack.c.l.b16 %v2181
        %v2235 = vpack.c.b16 %v2210, %v2209
        %v2236 = vpack.c.b16 %v2212, %v2211
        %v2237 = vpack.c.b16 %v2214, %v2213
        %v2238 = vpack.c.b16 %v2216, %v2215
        %v2239 = vpack.c.b16 %v2218, %v2217
        %v2240 = vpack.c.b16 %v2220, %v2219
        %v2241 = vpack.c.b16 %v2222, %v2221
        %v2242 = vpack.c.b16 %v2224, %v2223
        %v2243 = vpack.c.b16 %v2226, %v2225
        %v2244 = vpack.c.b16 %v2228, %v2227
        %v2245 = vpack.c.b16 %v2230, %v2229
        %v2246 = vpack.c.b16 %v2232, %v2231
        %v2247 = vpack.c.b16 %v2234, %v2233
        %v2262 = vunpack.c.l.b16 %v2182
        %v2263 = vpack.c.b16 %v2262, %v2262
        %vm2264 = vsmask.f32 7424
        %v2266 = vshrl.u32 %v2235, 16
        %v2268 = vshll.u32 %v2235, 16
        %v2270 = vrot.slane %v2268, 1
        %v2271 = vor.u32 %v2266, %v2270
        %v2273 = vshll.u32 %v2236, 16
        %v2275 = vrot.slane %v2273, 1
        %v2276 = vsel %vm2264, %v2271, %v2275
        %v2277 = vshrl.u32 %v2236, 16
        %v2279 = vor.u32 %v2277, %v2275
        %v2281 = vshll.u32 %v2237, 16
        %v2283 = vrot.slane %v2281, 1
        %v2284 = vsel %vm2264, %v2279, %v2283
        %v2285 = vshrl.u32 %v2237, 16
        %v2287 = vor.u32 %v2285, %v2283
        %v2289 = vshll.u32 %v2238, 16
        %v2291 = vrot.slane %v2289, 1
        %v2292 = vsel %vm2264, %v2287, %v2291
        %v2293 = vshrl.u32 %v2238, 16
        %v2295 = vor.u32 %v2293, %v2291
        %v2297 = vshll.u32 %v2239, 16
        %v2299 = vrot.slane %v2297, 1
        %v2300 = vsel %vm2264, %v2295, %v2299
        %v2301 = vshrl.u32 %v2239, 16
        %v2303 = vor.u32 %v2301, %v2299
        %v2305 = vshll.u32 %v2240, 16
        %v2307 = vrot.slane %v2305, 1
        %v2308 = vsel %vm2264, %v2303, %v2307
        %v2309 = vshrl.u32 %v2240, 16
        %v2311 = vor.u32 %v2309, %v2307
        %v2313 = vshll.u32 %v2241, 16
        %v2315 = vrot.slane %v2313, 1
        %v2316 = vsel %vm2264, %v2311, %v2315
        %v2317 = vshrl.u32 %v2241, 16
        %v2319 = vor.u32 %v2317, %v2315
        %v2321 = vshll.u32 %v2242, 16
        %v2323 = vrot.slane %v2321, 1
        %v2324 = vsel %vm2264, %v2319, %v2323
        %v2325 = vshrl.u32 %v2242, 16
        %v2327 = vor.u32 %v2325, %v2323
        %v2329 = vshll.u32 %v2243, 16
        %v2331 = vrot.slane %v2329, 1
        %v2332 = vsel %vm2264, %v2327, %v2331
        %v2333 = vshrl.u32 %v2243, 16
        %v2335 = vor.u32 %v2333, %v2331
        %v2337 = vshll.u32 %v2244, 16
        %v2339 = vrot.slane %v2337, 1
        %v2340 = vsel %vm2264, %v2335, %v2339
        %v2341 = vshrl.u32 %v2244, 16
        %v2343 = vor.u32 %v2341, %v2339
        %v2345 = vshll.u32 %v2245, 16
        %v2347 = vrot.slane %v2345, 1
        %v2348 = vsel %vm2264, %v2343, %v2347
        %v2349 = vshrl.u32 %v2245, 16
        %v2351 = vor.u32 %v2349, %v2347
        %v2353 = vshll.u32 %v2246, 16
        %v2355 = vrot.slane %v2353, 1
        %v2356 = vsel %vm2264, %v2351, %v2355
        %v2357 = vshrl.u32 %v2246, 16
        %v2359 = vor.u32 %v2357, %v2355
        %v2361 = vshll.u32 %v2247, 16
        %v2363 = vrot.slane %v2361, 1
        %v2364 = vsel %vm2264, %v2359, %v2363
        %v2365 = vshrl.u32 %v2247, 16
        %v2367 = vor.u32 %v2365, %v2363
        %v2369 = vshll.u32 %v2263, 16
        %v2371 = vrot.slane %v2369, 1
        %v2372 = vsel %vm2264, %v2367, %v2371
        %v2386 = vld [vmem:[%s3] sm:$0xf]
        %v2387 = vld [vmem:[%s3 + $0x4] sm:$0xf]
        %v2388 = vld [vmem:[%s3 + $0x8] sm:$0xf]
        %v2389 = vld [vmem:[%s3 + $0xc] sm:$0xf]
        %v2390 = vld [vmem:[%s3 + $0x10] sm:$0xf]
        %v2391 = vld [vmem:[%s3 + $0x14] sm:$0xf]
        %v2392 = vld [vmem:[%s3 + $0x18] sm:$0xf]
        %v2393 = vld [vmem:[%s3 + $0x1c] sm:$0xf]
        %v2394 = vld [vmem:[%s3 + $0x20] sm:$0xf]
        %v2395 = vld [vmem:[%s3 + $0x24] sm:$0xf]
        %v2396 = vld [vmem:[%s3 + $0x28] sm:$0xf]
        %v2397 = vld [vmem:[%s3 + $0x2c] sm:$0xf]
        %v2398 = vld [vmem:[%s3 + $0x30] sm:$0xf]
        %v2399 = vld [vmem:[%s3 + $0x34] sm:$0xf]
        %v2400 = vld [vmem:[%s3 + $0x38] sm:$0xf]
        %v2401 = vld [vmem:[%s3 + $0x3c] sm:$0xf]
        %v2402 = vld [vmem:[%s3 + $0x40] sm:$0xf]
        %v2403 = vld [vmem:[%s3 + $0x44] sm:$0xf]
        %v2404 = vld [vmem:[%s3 + $0x48] sm:$0xf]
        %v2405 = vld [vmem:[%s3 + $0x4c] sm:$0xf]
        %v2406 = vld [vmem:[%s3 + $0x50] sm:$0xf]
        %v2407 = vld [vmem:[%s3 + $0x54] sm:$0xf]
        %v2408 = vld [vmem:[%s3 + $0x58] sm:$0xf]
        %v2409 = vld [vmem:[%s3 + $0x5c] sm:$0xf]
        %v2410 = vld [vmem:[%s3 + $0x60] sm:$0xf]
        %v2411 = vld [vmem:[%s3 + $0x64] sm:$0xf]
        %v2412 = vld [vmem:[%s3 + $0x68] sm:$0xf]
        %v2413 = vld [vmem:[%s3 + $0x6c] sm:$0xf]
        %v2414 = vld [vmem:[%s3 + $0x70] sm:$0xf]
        %v2415 = vld [vmem:[%s3 + $0x74] sm:$0xf]
        %v2416 = vld [vmem:[%s3 + $0x78] sm:$0xf]
        %v2417 = vld [vmem:[%s3 + $0x7c] sm:$0xf]
        %v2418 = vld [vmem:[#allocation2] sm:$0xe]
        %v2419 = vld [vmem:[#allocation2 + $0x68] sm:$0xf]
        %v2420 = vld [vmem:[#allocation2 + $0x6c] sm:$0xf]
        %v2422 = vunpack.c.l.b16 %v2418
        %v2423 = vpack.c.b16 %v2210, %v2422
        %v2426 = vunpack.c.l.b16 %v2419
        %v2427 = vunpack.c.l.b16 %v2420
        %v2428 = vpack.c.b16 %v2427, %v2426
        %vm2429 = vcmask 1040384
        %v2430 = vrot.slane %v2236, 7
        %v2431 = vrot.slane %v2237, 7
        %v2432 = vsel %vm2429, %v2430, %v2431
        %v2433 = vrot.slane %v2238, 7
        %v2434 = vsel %vm2429, %v2431, %v2433
        %v2435 = vrot.slane %v2239, 7
        %v2436 = vsel %vm2429, %v2433, %v2435
        %v2437 = vrot.slane %v2240, 7
        %v2438 = vsel %vm2429, %v2435, %v2437
        %v2439 = vrot.slane %v2241, 7
        %v2440 = vsel %vm2429, %v2437, %v2439
        %v2441 = vrot.slane %v2242, 7
        %v2442 = vsel %vm2429, %v2439, %v2441
        %v2443 = vrot.slane %v2243, 7
        %v2444 = vsel %vm2429, %v2441, %v2443
        %v2445 = vrot.slane %v2244, 7
        %v2446 = vsel %vm2429, %v2443, %v2445
        %v2447 = vrot.slane %v2245, 7
        %v2448 = vsel %vm2429, %v2445, %v2447
        %v2449 = vrot.slane %v2246, 7
        %v2450 = vsel %vm2429, %v2447, %v2449
        %v2451 = vrot.slane %v2247, 7
        %v2452 = vsel %vm2429, %v2449, %v2451
        %v2453 = vrot.slane %v2428, 7
        %v2454 = vsel %vm2429, %v2451, %v2453
        %s2455 = scalar_lea.vmem %s3, 128
        %v2456 = vld [vmem:[%s2455] sm:$0xf]
        %v2457 = vld [vmem:[%s2455 + $0x4] sm:$0xf]
        %v2458 = vld [vmem:[%s2455 + $0x8] sm:$0xf]
        %v2459 = vld [vmem:[%s2455 + $0xc] sm:$0xf]
        %v2460 = vld [vmem:[%s2455 + $0x10] sm:$0xf]
        %v2461 = vld [vmem:[%s2455 + $0x14] sm:$0xf]
        %v2462 = vld [vmem:[%s2455 + $0x18] sm:$0xf]
        %v2463 = vld [vmem:[%s2455 + $0x1c] sm:$0xf]
        %v2464 = vld [vmem:[%s2455 + $0x20] sm:$0xf]
        %v2465 = vld [vmem:[%s2455 + $0x24] sm:$0xf]
        %v2466 = vld [vmem:[%s2455 + $0x28] sm:$0xf]
        %v2467 = vld [vmem:[%s2455 + $0x2c] sm:$0xf]
        %v2468 = vld [vmem:[%s2455 + $0x30] sm:$0xf]
        %v2469 = vld [vmem:[%s2455 + $0x34] sm:$0xf]
        %v2470 = vld [vmem:[%s2455 + $0x38] sm:$0xf]
        %v2471 = vld [vmem:[%s2455 + $0x3c] sm:$0xf]
        %v2472 = vld [vmem:[%s2455 + $0x40] sm:$0xf]
        %v2473 = vld [vmem:[%s2455 + $0x44] sm:$0xf]
        %v2474 = vld [vmem:[%s2455 + $0x48] sm:$0xf]
        %v2475 = vld [vmem:[%s2455 + $0x4c] sm:$0xf]
        %v2476 = vld [vmem:[%s2455 + $0x50] sm:$0xf]
        %v2477 = vld [vmem:[%s2455 + $0x54] sm:$0xf]
        %v2478 = vld [vmem:[%s2455 + $0x58] sm:$0xf]
        %v2479 = vld [vmem:[%s2455 + $0x5c] sm:$0xf]
        %v2480 = vld [vmem:[%s2455 + $0x60] sm:$0xf]
        %v2481 = vld [vmem:[%s2455 + $0x64] sm:$0xf]
        %v2482 = vld [vmem:[%s2455 + $0x68] sm:$0xf]
        %v2483 = vld [vmem:[%s2455 + $0x6c] sm:$0xf]
        %v2484 = vld [vmem:[%s2455 + $0x70] sm:$0xf]
        %v2485 = vld [vmem:[%s2455 + $0x74] sm:$0xf]
        %v2486 = vld [vmem:[%s2455 + $0x78] sm:$0xf]
        %v2487 = vld [vmem:[%s2455 + $0x7c] sm:$0xf]
        %vm2488 = vcmask 1046528
        %v2489 = vrot.slane %v2423, 1
        %v2490 = vrot.slane %v2236, 1
        %v2491 = vsel %vm2488, %v2489, %v2490
        %v2492 = vrot.slane %v2430, 1
        %v2493 = vrot.slane %v2432, 1
        %v2494 = vsel %vm2488, %v2492, %v2493
        %v2495 = vrot.slane %v2237, 1
        %v2496 = vsel %vm2488, %v2490, %v2495
        %v2497 = vrot.slane %v2434, 1
        %v2498 = vsel %vm2488, %v2493, %v2497
        %v2499 = vrot.slane %v2238, 1
        %v2500 = vsel %vm2488, %v2495, %v2499
        %v2501 = vrot.slane %v2436, 1
        %v2502 = vsel %vm2488, %v2497, %v2501
        %v2503 = vrot.slane %v2239, 1
        %v2504 = vsel %vm2488, %v2499, %v2503
        %v2505 = vrot.slane %v2438, 1
        %v2506 = vsel %vm2488, %v2501, %v2505
        %v2507 = vrot.slane %v2240, 1
        %v2508 = vsel %vm2488, %v2503, %v2507
        %v2509 = vrot.slane %v2440, 1
        %v2510 = vsel %vm2488, %v2505, %v2509
        %v2511 = vrot.slane %v2241, 1
        %v2512 = vsel %vm2488, %v2507, %v2511
        %v2513 = vrot.slane %v2442, 1
        %v2514 = vsel %vm2488, %v2509, %v2513
        %v2515 = vrot.slane %v2242, 1
        %v2516 = vsel %vm2488, %v2511, %v2515
        %v2517 = vrot.slane %v2444, 1
        %v2518 = vsel %vm2488, %v2513, %v2517
        %v2519 = vrot.slane %v2243, 1
        %v2520 = vsel %vm2488, %v2515, %v2519
        %v2521 = vrot.slane %v2446, 1
        %v2522 = vsel %vm2488, %v2517, %v2521
        %v2523 = vrot.slane %v2244, 1
        %v2524 = vsel %vm2488, %v2519, %v2523
        %v2525 = vrot.slane %v2448, 1
        %v2526 = vsel %vm2488, %v2521, %v2525
        %v2527 = vrot.slane %v2245, 1
        %v2528 = vsel %vm2488, %v2523, %v2527
        %v2529 = vrot.slane %v2450, 1
        %v2530 = vsel %vm2488, %v2525, %v2529
        %v2531 = vrot.slane %v2246, 1
        %v2532 = vsel %vm2488, %v2527, %v2531
        %v2533 = vrot.slane %v2452, 1
        %v2534 = vsel %vm2488, %v2529, %v2533
        %v2535 = vrot.slane %v2247, 1
        %v2536 = vsel %vm2488, %v2531, %v2535
        %v2537 = vrot.slane %v2454, 1
        %v2538 = vsel %vm2488, %v2533, %v2537
        %v2539 = vrot.slane %v2263, 1
        %v2540 = vsel %vm2488, %v2535, %v2539
        %v2541 = vrot.slane %v2453, 1
        %v2542 = vsel %vm2488, %v2537, %v2541
        %v2601 = vunpack.c.l.b16 %v2456
        %v2602 = vunpack.c.l.b16 %v2457
        %v2603 = vunpack.c.l.b16 %v2458
        %v2604 = vunpack.c.l.b16 %v2459
        %v2605 = vunpack.c.l.b16 %v2460
        %v2606 = vunpack.c.l.b16 %v2461
        %v2607 = vunpack.c.l.b16 %v2462
        %v2608 = vunpack.c.l.b16 %v2463
        %v2609 = vunpack.c.l.b16 %v2464
        %v2610 = vunpack.c.l.b16 %v2465
        %v2611 = vunpack.c.l.b16 %v2466
        %v2612 = vunpack.c.l.b16 %v2467
        %v2613 = vunpack.c.l.b16 %v2468
        %v2614 = vunpack.c.l.b16 %v2469
        %v2615 = vunpack.c.l.b16 %v2470
        %v2616 = vunpack.c.l.b16 %v2471
        %v2617 = vunpack.c.l.b16 %v2472
        %v2618 = vunpack.c.l.b16 %v2473
        %v2619 = vunpack.c.l.b16 %v2474
        %v2620 = vunpack.c.l.b16 %v2475
        %v2621 = vunpack.c.l.b16 %v2476
        %v2622 = vunpack.c.l.b16 %v2477
        %v2623 = vunpack.c.l.b16 %v2478
        %v2624 = vunpack.c.l.b16 %v2479
        %v2625 = vunpack.c.l.b16 %v2480
        %v2626 = vunpack.c.l.b16 %v2481
        %v2627 = vunpack.c.l.b16 %v2482
        %v2628 = vunpack.c.l.b16 %v2483
        %v2629 = vunpack.c.l.b16 %v2484
        %v2630 = vunpack.c.l.b16 %v2485
        %v2631 = vunpack.c.l.b16 %v2486
        %v2632 = vunpack.c.l.b16 %v2487
        %v2633 = vpack.c.b16 %v2602, %v2601
        %v2634 = vpack.c.b16 %v2604, %v2603
        %v2635 = vpack.c.b16 %v2606, %v2605
        %v2636 = vpack.c.b16 %v2608, %v2607
        %v2637 = vpack.c.b16 %v2610, %v2609
        %v2638 = vpack.c.b16 %v2612, %v2611
        %v2639 = vpack.c.b16 %v2614, %v2613
        %v2640 = vpack.c.b16 %v2616, %v2615
        %v2641 = vpack.c.b16 %v2618, %v2617
        %v2642 = vpack.c.b16 %v2620, %v2619
        %v2643 = vpack.c.b16 %v2622, %v2621
        %v2644 = vpack.c.b16 %v2624, %v2623
        %v2645 = vpack.c.b16 %v2626, %v2625
        %v2646 = vpack.c.b16 %v2628, %v2627
        %v2647 = vpack.c.b16 %v2630, %v2629
        %v2648 = vpack.c.b16 %v2632, %v2631
        %2665 = vmatprep.subr.bf16.mxu0 0
        %2666 = vmatpush1.bf16.msra.mxu0 %v2640
        %2667 = vmatprep.subr.bf16.mxu0 0
        %2668 = vmatpush1.bf16.msra.mxu0 %v2639
        %2669 = vmatprep.subr.bf16.mxu0 0
        %2670 = vmatpush1.bf16.msra.mxu0 %v2638
        %2671 = vmatprep.subr.bf16.mxu0 0
        %2672 = vmatpush1.bf16.msra.mxu0 %v2637
        %2673 = vmatprep.subr.bf16.mxu0 0
        %2674 = vmatpush1.bf16.msra.mxu0 %v2636
        %2675 = vmatprep.subr.bf16.mxu0 0
        %2676 = vmatpush1.bf16.msra.mxu0 %v2635
        %2677 = vmatprep.subr.bf16.mxu0 0
        %2678 = vmatpush1.bf16.msra.mxu0 %v2634
        %2679 = vmatprep.subr.bf16.mxu0 0
        %2680 = vmatpush1.bf16.msra.mxu0 %v2633
        %2681 = vmatprep.subr.bf16.mxu0 0
        %2682 = vmatpush2.bf16.msra.mxu0 %v2648
        %2683 = vmatprep.subr.bf16.mxu0 0
        %2684 = vmatpush2.bf16.msra.mxu0 %v2647
        %2685 = vmatprep.subr.bf16.mxu0 0
        %2686 = vmatpush2.bf16.msra.mxu0 %v2646
        %2687 = vmatprep.subr.bf16.mxu0 0
        %2688 = vmatpush2.bf16.msra.mxu0 %v2645
        %2689 = vmatprep.subr.bf16.mxu0 0
        %2690 = vmatpush2.bf16.msra.mxu0 %v2644
        %2691 = vmatprep.subr.bf16.mxu0 0
        %2692 = vmatpush2.bf16.msra.mxu0 %v2643
        %2693 = vmatprep.subr.bf16.mxu0 0
        %2694 = vmatpush2.bf16.msra.mxu0 %v2642
        %2695 = vmatprep.subr.bf16.mxu0 0
        %2696 = vmatpush2.bf16.msra.mxu0 %v2641
        %2697 = vmatprep.mubr.bf16.mxu0 %v2494
        %2698 = vmatmul.mubr.bf16.gmra.mxu0 %v2491
        %v2699 = vpop.f32.mrf.mxu0
        %v2700 = vadd.f32 0.0, %v2699
        %v2701 = vpop.f32.mrf.mxu0
        %v2702 = vpop.f32.mrf.mxu0
        %v2703 = vadd.f32 0.0, %v2702
        %v2704 = vpop.f32.mrf.mxu0
        %2705 = vmatprep.mubr.bf16.mxu0 %v2498
        %2706 = vmatmul.mubr.bf16.gmra.mxu0 %v2496
        %v2707 = vpop.f32.mrf.mxu0
        %v2708 = vadd.f32 0.0, %v2707
        %v2709 = vpop.f32.mrf.mxu0
        %v2710 = vpop.f32.mrf.mxu0
        %v2711 = vadd.f32 0.0, %v2710
        %v2712 = vpop.f32.mrf.mxu0
        %2713 = vmatprep.mubr.bf16.mxu0 %v2502
        %2714 = vmatmul.mubr.bf16.gmra.mxu0 %v2500
        %v2715 = vpop.f32.mrf.mxu0
        %v2716 = vadd.f32 0.0, %v2715
        %v2717 = vpop.f32.mrf.mxu0
        %v2718 = vpop.f32.mrf.mxu0
        %v2719 = vadd.f32 0.0, %v2718
        %v2720 = vpop.f32.mrf.mxu0
        %2721 = vmatprep.mubr.bf16.mxu0 %v2506
        %2722 = vmatmul.mubr.bf16.gmra.mxu0 %v2504
        %v2723 = vpop.f32.mrf.mxu0
        %v2724 = vadd.f32 0.0, %v2723
        %v2725 = vpop.f32.mrf.mxu0
        %v2726 = vpop.f32.mrf.mxu0
        %v2727 = vadd.f32 0.0, %v2726
        %v2728 = vpop.f32.mrf.mxu0
        %2729 = vmatprep.mubr.bf16.mxu0 %v2510
        %2730 = vmatmul.mubr.bf16.gmra.mxu0 %v2508
        %v2731 = vpop.f32.mrf.mxu0
        %v2732 = vadd.f32 0.0, %v2731
        %v2733 = vpop.f32.mrf.mxu0
        %v2734 = vpop.f32.mrf.mxu0
        %v2735 = vadd.f32 0.0, %v2734
        %v2736 = vpop.f32.mrf.mxu0
        %2737 = vmatprep.mubr.bf16.mxu0 %v2514
        %2738 = vmatmul.mubr.bf16.gmra.mxu0 %v2512
        %v2739 = vpop.f32.mrf.mxu0
        %v2740 = vadd.f32 0.0, %v2739
        %v2741 = vpop.f32.mrf.mxu0
        %v2742 = vpop.f32.mrf.mxu0
        %v2743 = vadd.f32 0.0, %v2742
        %v2744 = vpop.f32.mrf.mxu0
        %2745 = vmatprep.mubr.bf16.mxu0 %v2518
        %2746 = vmatmul.mubr.bf16.gmra.mxu0 %v2516
        %v2747 = vpop.f32.mrf.mxu0
        %v2748 = vadd.f32 0.0, %v2747
        %v2749 = vpop.f32.mrf.mxu0
        %v2750 = vpop.f32.mrf.mxu0
        %v2751 = vadd.f32 0.0, %v2750
        %v2752 = vpop.f32.mrf.mxu0
        %2753 = vmatprep.mubr.bf16.mxu0 %v2522
        %2754 = vmatmul.mubr.bf16.gmra.mxu0 %v2520
        %v2755 = vpop.f32.mrf.mxu0
        %v2756 = vadd.f32 0.0, %v2755
        %v2757 = vpop.f32.mrf.mxu0
        %v2758 = vpop.f32.mrf.mxu0
        %v2759 = vadd.f32 0.0, %v2758
        %v2760 = vpop.f32.mrf.mxu0
        %2761 = vmatprep.mubr.bf16.mxu0 %v2526
        %2762 = vmatmul.mubr.bf16.gmra.mxu0 %v2524
        %v2763 = vpop.f32.mrf.mxu0
        %v2764 = vadd.f32 0.0, %v2763
        %v2765 = vpop.f32.mrf.mxu0
        %v2766 = vpop.f32.mrf.mxu0
        %v2767 = vadd.f32 0.0, %v2766
        %v2768 = vpop.f32.mrf.mxu0
        %2769 = vmatprep.mubr.bf16.mxu0 %v2530
        %2770 = vmatmul.mubr.bf16.gmra.mxu0 %v2528
        %v2771 = vpop.f32.mrf.mxu0
        %v2772 = vadd.f32 0.0, %v2771
        %v2773 = vpop.f32.mrf.mxu0
        %v2774 = vpop.f32.mrf.mxu0
        %v2775 = vadd.f32 0.0, %v2774
        %v2776 = vpop.f32.mrf.mxu0
        %2777 = vmatprep.mubr.bf16.mxu0 %v2534
        %2778 = vmatmul.mubr.bf16.gmra.mxu0 %v2532
        %v2779 = vpop.f32.mrf.mxu0
        %v2780 = vadd.f32 0.0, %v2779
        %v2781 = vpop.f32.mrf.mxu0
        %v2782 = vpop.f32.mrf.mxu0
        %v2783 = vadd.f32 0.0, %v2782
        %v2784 = vpop.f32.mrf.mxu0
        %2785 = vmatprep.mubr.bf16.mxu0 %v2538
        %2786 = vmatmul.mubr.bf16.gmra.mxu0 %v2536
        %v2787 = vpop.f32.mrf.mxu0
        %v2788 = vadd.f32 0.0, %v2787
        %v2789 = vpop.f32.mrf.mxu0
        %v2790 = vpop.f32.mrf.mxu0
        %v2791 = vadd.f32 0.0, %v2790
        %v2792 = vpop.f32.mrf.mxu0
        %2793 = vmatprep.mubr.bf16.mxu0 %v2542
        %2794 = vmatmul.mubr.bf16.gmra.mxu0 %v2540
        %v2795 = vpop.f32.mrf.mxu0
        %v2796 = vadd.f32 0.0, %v2795
        %v2797 = vpop.f32.mrf.mxu0
        %v2798 = vpop.f32.mrf.mxu0
        %v2799 = vadd.f32 0.0, %v2798
        %v2800 = vpop.f32.mrf.mxu0
        %2801 = vdwg.mxu0
        %v2834 = vunpack.c.l.b16 %v2386
        %v2835 = vunpack.c.l.b16 %v2387
        %v2836 = vunpack.c.l.b16 %v2388
        %v2837 = vunpack.c.l.b16 %v2389
        %v2838 = vunpack.c.l.b16 %v2390
        %v2839 = vunpack.c.l.b16 %v2391
        %v2840 = vunpack.c.l.b16 %v2392
        %v2841 = vunpack.c.l.b16 %v2393
        %v2842 = vunpack.c.l.b16 %v2394
        %v2843 = vunpack.c.l.b16 %v2395
        %v2844 = vunpack.c.l.b16 %v2396
        %v2845 = vunpack.c.l.b16 %v2397
        %v2846 = vunpack.c.l.b16 %v2398
        %v2847 = vunpack.c.l.b16 %v2399
        %v2848 = vunpack.c.l.b16 %v2400
        %v2849 = vunpack.c.l.b16 %v2401
        %v2850 = vunpack.c.l.b16 %v2402
        %v2851 = vunpack.c.l.b16 %v2403
        %v2852 = vunpack.c.l.b16 %v2404
        %v2853 = vunpack.c.l.b16 %v2405
        %v2854 = vunpack.c.l.b16 %v2406
        %v2855 = vunpack.c.l.b16 %v2407
        %v2856 = vunpack.c.l.b16 %v2408
        %v2857 = vunpack.c.l.b16 %v2409
        %v2858 = vunpack.c.l.b16 %v2410
        %v2859 = vunpack.c.l.b16 %v2411
        %v2860 = vunpack.c.l.b16 %v2412
        %v2861 = vunpack.c.l.b16 %v2413
        %v2862 = vunpack.c.l.b16 %v2414
        %v2863 = vunpack.c.l.b16 %v2415
        %v2864 = vunpack.c.l.b16 %v2416
        %v2865 = vunpack.c.l.b16 %v2417
        %v2866 = vpack.c.b16 %v2835, %v2834
        %v2867 = vpack.c.b16 %v2837, %v2836
        %v2868 = vpack.c.b16 %v2839, %v2838
        %v2869 = vpack.c.b16 %v2841, %v2840
        %v2870 = vpack.c.b16 %v2843, %v2842
        %v2871 = vpack.c.b16 %v2845, %v2844
        %v2872 = vpack.c.b16 %v2847, %v2846
        %v2873 = vpack.c.b16 %v2849, %v2848
        %v2874 = vpack.c.b16 %v2851, %v2850
        %v2875 = vpack.c.b16 %v2853, %v2852
        %v2876 = vpack.c.b16 %v2855, %v2854
        %v2877 = vpack.c.b16 %v2857, %v2856
        %v2878 = vpack.c.b16 %v2859, %v2858
        %v2879 = vpack.c.b16 %v2861, %v2860
        %v2880 = vpack.c.b16 %v2863, %v2862
        %v2881 = vpack.c.b16 %v2865, %v2864
        %2898 = vmatprep.subr.bf16.mxu0 0
        %2899 = vmatpush1.bf16.msra.mxu0 %v2873
        %2900 = vmatprep.subr.bf16.mxu0 0
        %2901 = vmatpush1.bf16.msra.mxu0 %v2872
        %2902 = vmatprep.subr.bf16.mxu0 0
        %2903 = vmatpush1.bf16.msra.mxu0 %v2871
        %2904 = vmatprep.subr.bf16.mxu0 0
        %2905 = vmatpush1.bf16.msra.mxu0 %v2870
        %2906 = vmatprep.subr.bf16.mxu0 0
        %2907 = vmatpush1.bf16.msra.mxu0 %v2869
        %2908 = vmatprep.subr.bf16.mxu0 0
        %2909 = vmatpush1.bf16.msra.mxu0 %v2868
        %2910 = vmatprep.subr.bf16.mxu0 0
        %2911 = vmatpush1.bf16.msra.mxu0 %v2867
        %2912 = vmatprep.subr.bf16.mxu0 0
        %2913 = vmatpush1.bf16.msra.mxu0 %v2866
        %2914 = vmatprep.subr.bf16.mxu0 0
        %2915 = vmatpush2.bf16.msra.mxu0 %v2881
        %2916 = vmatprep.subr.bf16.mxu0 0
        %2917 = vmatpush2.bf16.msra.mxu0 %v2880
        %2918 = vmatprep.subr.bf16.mxu0 0
        %2919 = vmatpush2.bf16.msra.mxu0 %v2879
        %2920 = vmatprep.subr.bf16.mxu0 0
        %2921 = vmatpush2.bf16.msra.mxu0 %v2878
        %2922 = vmatprep.subr.bf16.mxu0 0
        %2923 = vmatpush2.bf16.msra.mxu0 %v2877
        %2924 = vmatprep.subr.bf16.mxu0 0
        %2925 = vmatpush2.bf16.msra.mxu0 %v2876
        %2926 = vmatprep.subr.bf16.mxu0 0
        %2927 = vmatpush2.bf16.msra.mxu0 %v2875
        %2928 = vmatprep.subr.bf16.mxu0 0
        %2929 = vmatpush2.bf16.msra.mxu0 %v2874
        %2930 = vmatprep.mubr.bf16.mxu0 %v2276
        %2931 = vmatmul.mubr.bf16.gmra.mxu0 %v2235
        %v2932 = vpop.f32.mrf.mxu0
        %v2933 = vadd.f32 %v2700, %v2932
        %v2934 = vpop.f32.mrf.mxu0
        %v2935 = vpop.f32.mrf.mxu0
        %v2936 = vadd.f32 %v2703, %v2935
        %v2937 = vpop.f32.mrf.mxu0
        %2938 = vmatprep.mubr.bf16.mxu0 %v2284
        %2939 = vmatmul.mubr.bf16.gmra.mxu0 %v2236
        %v2940 = vpop.f32.mrf.mxu0
        %v2941 = vadd.f32 %v2708, %v2940
        %v2942 = vpop.f32.mrf.mxu0
        %v2943 = vpop.f32.mrf.mxu0
        %v2944 = vadd.f32 %v2711, %v2943
        %v2945 = vpop.f32.mrf.mxu0
        %2946 = vmatprep.mubr.bf16.mxu0 %v2292
        %2947 = vmatmul.mubr.bf16.gmra.mxu0 %v2237
        %v2948 = vpop.f32.mrf.mxu0
        %v2949 = vadd.f32 %v2716, %v2948
        %v2950 = vpop.f32.mrf.mxu0
        %v2951 = vpop.f32.mrf.mxu0
        %v2952 = vadd.f32 %v2719, %v2951
        %v2953 = vpop.f32.mrf.mxu0
        %2954 = vmatprep.mubr.bf16.mxu0 %v2300
        %2955 = vmatmul.mubr.bf16.gmra.mxu0 %v2238
        %v2956 = vpop.f32.mrf.mxu0
        %v2957 = vadd.f32 %v2724, %v2956
        %v2958 = vpop.f32.mrf.mxu0
        %v2959 = vpop.f32.mrf.mxu0
        %v2960 = vadd.f32 %v2727, %v2959
        %v2961 = vpop.f32.mrf.mxu0
        %2962 = vmatprep.mubr.bf16.mxu0 %v2308
        %2963 = vmatmul.mubr.bf16.gmra.mxu0 %v2239
        %v2964 = vpop.f32.mrf.mxu0
        %v2965 = vadd.f32 %v2732, %v2964
        %v2966 = vpop.f32.mrf.mxu0
        %v2967 = vpop.f32.mrf.mxu0
        %v2968 = vadd.f32 %v2735, %v2967
        %v2969 = vpop.f32.mrf.mxu0
        %2970 = vmatprep.mubr.bf16.mxu0 %v2316
        %2971 = vmatmul.mubr.bf16.gmra.mxu0 %v2240
        %v2972 = vpop.f32.mrf.mxu0
        %v2973 = vadd.f32 %v2740, %v2972
        %v2974 = vpop.f32.mrf.mxu0
        %v2975 = vpop.f32.mrf.mxu0
        %v2976 = vadd.f32 %v2743, %v2975
        %v2977 = vpop.f32.mrf.mxu0
        %2978 = vmatprep.mubr.bf16.mxu0 %v2324
        %2979 = vmatmul.mubr.bf16.gmra.mxu0 %v2241
        %v2980 = vpop.f32.mrf.mxu0
        %v2981 = vadd.f32 %v2748, %v2980
        %v2982 = vpop.f32.mrf.mxu0
        %v2983 = vpop.f32.mrf.mxu0
        %v2984 = vadd.f32 %v2751, %v2983
        %v2985 = vpop.f32.mrf.mxu0
        %2986 = vmatprep.mubr.bf16.mxu0 %v2332
        %2987 = vmatmul.mubr.bf16.gmra.mxu0 %v2242
        %v2988 = vpop.f32.mrf.mxu0
        %v2989 = vadd.f32 %v2756, %v2988
        %v2990 = vpop.f32.mrf.mxu0
        %v2991 = vpop.f32.mrf.mxu0
        %v2992 = vadd.f32 %v2759, %v2991
        %v2993 = vpop.f32.mrf.mxu0
        %2994 = vmatprep.mubr.bf16.mxu0 %v2340
        %2995 = vmatmul.mubr.bf16.gmra.mxu0 %v2243
        %v2996 = vpop.f32.mrf.mxu0
        %v2997 = vadd.f32 %v2764, %v2996
        %v2998 = vpop.f32.mrf.mxu0
        %v2999 = vpop.f32.mrf.mxu0
        %v3000 = vadd.f32 %v2767, %v2999
        %v3001 = vpop.f32.mrf.mxu0
        %3002 = vmatprep.mubr.bf16.mxu0 %v2348
        %3003 = vmatmul.mubr.bf16.gmra.mxu0 %v2244
        %v3004 = vpop.f32.mrf.mxu0
        %v3005 = vadd.f32 %v2772, %v3004
        %v3006 = vpop.f32.mrf.mxu0
        %v3007 = vpop.f32.mrf.mxu0
        %v3008 = vadd.f32 %v2775, %v3007
        %v3009 = vpop.f32.mrf.mxu0
        %3010 = vmatprep.mubr.bf16.mxu0 %v2356
        %3011 = vmatmul.mubr.bf16.gmra.mxu0 %v2245
        %v3012 = vpop.f32.mrf.mxu0
        %v3013 = vadd.f32 %v2780, %v3012
        %v3014 = vpop.f32.mrf.mxu0
        %v3015 = vpop.f32.mrf.mxu0
        %v3016 = vadd.f32 %v2783, %v3015
        %v3017 = vpop.f32.mrf.mxu0
        %3018 = vmatprep.mubr.bf16.mxu0 %v2364
        %3019 = vmatmul.mubr.bf16.gmra.mxu0 %v2246
        %v3020 = vpop.f32.mrf.mxu0
        %v3021 = vadd.f32 %v2788, %v3020
        %v3022 = vpop.f32.mrf.mxu0
        %v3023 = vpop.f32.mrf.mxu0
        %v3024 = vadd.f32 %v2791, %v3023
        %v3025 = vpop.f32.mrf.mxu0
        %3026 = vmatprep.mubr.bf16.mxu0 %v2372
        %3027 = vmatmul.mubr.bf16.gmra.mxu0 %v2247
        %v3028 = vpop.f32.mrf.mxu0
        %v3029 = vadd.f32 %v2796, %v3028
        %v3030 = vpop.f32.mrf.mxu0
        %v3031 = vpop.f32.mrf.mxu0
        %v3032 = vadd.f32 %v2799, %v3031
        %v3033 = vpop.f32.mrf.mxu0
        %3034 = vdwg.mxu0
        %v3035 = vld [vmem:[#allocation2 + $0x8] sm:$0xf]
        %v3036 = vld [vmem:[#allocation2 + $0xc] sm:$0xf]
        %v3037 = vld [vmem:[#allocation2 + $0x10] sm:$0xf]
        %v3038 = vld [vmem:[#allocation2 + $0x14] sm:$0xf]
        %v3039 = vld [vmem:[#allocation2 + $0x18] sm:$0xf]
        %v3040 = vld [vmem:[#allocation2 + $0x1c] sm:$0xf]
        %v3041 = vld [vmem:[#allocation2 + $0x20] sm:$0xf]
        %v3042 = vld [vmem:[#allocation2 + $0x24] sm:$0xf]
        %v3043 = vld [vmem:[#allocation2 + $0x28] sm:$0xf]
        %v3044 = vld [vmem:[#allocation2 + $0x2c] sm:$0xf]
        %v3045 = vld [vmem:[#allocation2 + $0x30] sm:$0xf]
        %v3046 = vld [vmem:[#allocation2 + $0x34] sm:$0xf]
        %v3047 = vld [vmem:[#allocation2 + $0x38] sm:$0xf]
        %v3048 = vld [vmem:[#allocation2 + $0x3c] sm:$0xf]
        %v3049 = vld [vmem:[#allocation2 + $0x40] sm:$0xf]
        %v3050 = vld [vmem:[#allocation2 + $0x44] sm:$0xf]
        %v3051 = vld [vmem:[#allocation2 + $0x48] sm:$0xf]
        %v3052 = vld [vmem:[#allocation2 + $0x4c] sm:$0xf]
        %v3053 = vld [vmem:[#allocation2 + $0x50] sm:$0xf]
        %v3054 = vld [vmem:[#allocation2 + $0x54] sm:$0xf]
        %v3055 = vld [vmem:[#allocation2 + $0x58] sm:$0xf]
        %v3056 = vld [vmem:[#allocation2 + $0x5c] sm:$0xf]
        %v3057 = vld [vmem:[#allocation2 + $0x60] sm:$0xf]
        %v3058 = vld [vmem:[#allocation2 + $0x64] sm:$0xf]
        %v3059 = vld [vmem:[#allocation2 + $0x68] sm:$0xf]
        %v3060 = vld [vmem:[#allocation2 + $0x6c] sm:$0xf]
        %v3061 = vld [vmem:[#allocation2 + $0x70] sm:$0x1]
        %v3062 = vld [vmem:[#allocation2 + $0x8] sm:$0xe]
        %v3090 = vunpack.c.l.b16 %v3035
        %v3091 = vunpack.c.l.b16 %v3036
        %v3092 = vunpack.c.l.b16 %v3037
        %v3093 = vunpack.c.l.b16 %v3038
        %v3094 = vunpack.c.l.b16 %v3039
        %v3095 = vunpack.c.l.b16 %v3040
        %v3096 = vunpack.c.l.b16 %v3041
        %v3097 = vunpack.c.l.b16 %v3042
        %v3098 = vunpack.c.l.b16 %v3043
        %v3099 = vunpack.c.l.b16 %v3044
        %v3100 = vunpack.c.l.b16 %v3045
        %v3101 = vunpack.c.l.b16 %v3046
        %v3102 = vunpack.c.l.b16 %v3047
        %v3103 = vunpack.c.l.b16 %v3048
        %v3104 = vunpack.c.l.b16 %v3049
        %v3105 = vunpack.c.l.b16 %v3050
        %v3106 = vunpack.c.l.b16 %v3051
        %v3107 = vunpack.c.l.b16 %v3052
        %v3108 = vunpack.c.l.b16 %v3053
        %v3109 = vunpack.c.l.b16 %v3054
        %v3110 = vunpack.c.l.b16 %v3055
        %v3111 = vunpack.c.l.b16 %v3056
        %v3112 = vunpack.c.l.b16 %v3057
        %v3113 = vunpack.c.l.b16 %v3058
        %v3114 = vunpack.c.l.b16 %v3059
        %v3115 = vunpack.c.l.b16 %v3060
        %v3116 = vunpack.c.l.b16 %v3061
        %v3117 = vpack.c.b16 %v3091, %v3090
        %v3118 = vpack.c.b16 %v3093, %v3092
        %v3119 = vpack.c.b16 %v3095, %v3094
        %v3120 = vpack.c.b16 %v3097, %v3096
        %v3121 = vpack.c.b16 %v3099, %v3098
        %v3122 = vpack.c.b16 %v3101, %v3100
        %v3123 = vpack.c.b16 %v3103, %v3102
        %v3124 = vpack.c.b16 %v3105, %v3104
        %v3125 = vpack.c.b16 %v3107, %v3106
        %v3126 = vpack.c.b16 %v3109, %v3108
        %v3127 = vpack.c.b16 %v3111, %v3110
        %v3128 = vpack.c.b16 %v3113, %v3112
        %v3129 = vpack.c.b16 %v3115, %v3114
        %v3130 = vpack.c.b16 %v3116, %v3116
        %v3132 = vunpack.c.l.b16 %v3062
        %v3133 = vpack.c.b16 %v3091, %v3132
        %v3135 = vshrl.u32 %v3133, 16
        %v3137 = vshll.u32 %v3133, 16
        %v3139 = vrot.slane %v3137, 1
        %v3140 = vor.u32 %v3135, %v3139
        %v3142 = vshll.u32 %v3118, 16
        %v3144 = vrot.slane %v3142, 1
        %v3145 = vsel %vm2264, %v3140, %v3144
        %v3146 = vshrl.u32 %v3118, 16
        %v3148 = vor.u32 %v3146, %v3144
        %v3150 = vshll.u32 %v3119, 16
        %v3152 = vrot.slane %v3150, 1
        %v3153 = vsel %vm2264, %v3148, %v3152
        %v3154 = vshrl.u32 %v3119, 16
        %v3156 = vor.u32 %v3154, %v3152
        %v3158 = vshll.u32 %v3120, 16
        %v3160 = vrot.slane %v3158, 1
        %v3161 = vsel %vm2264, %v3156, %v3160
        %v3162 = vshrl.u32 %v3120, 16
        %v3164 = vor.u32 %v3162, %v3160
        %v3166 = vshll.u32 %v3121, 16
        %v3168 = vrot.slane %v3166, 1
        %v3169 = vsel %vm2264, %v3164, %v3168
        %v3170 = vshrl.u32 %v3121, 16
        %v3172 = vor.u32 %v3170, %v3168
        %v3174 = vshll.u32 %v3122, 16
        %v3176 = vrot.slane %v3174, 1
        %v3177 = vsel %vm2264, %v3172, %v3176
        %v3178 = vshrl.u32 %v3122, 16
        %v3180 = vor.u32 %v3178, %v3176
        %v3182 = vshll.u32 %v3123, 16
        %v3184 = vrot.slane %v3182, 1
        %v3185 = vsel %vm2264, %v3180, %v3184
        %v3186 = vshrl.u32 %v3123, 16
        %v3188 = vor.u32 %v3186, %v3184
        %v3190 = vshll.u32 %v3124, 16
        %v3192 = vrot.slane %v3190, 1
        %v3193 = vsel %vm2264, %v3188, %v3192
        %v3194 = vshrl.u32 %v3124, 16
        %v3196 = vor.u32 %v3194, %v3192
        %v3198 = vshll.u32 %v3125, 16
        %v3200 = vrot.slane %v3198, 1
        %v3201 = vsel %vm2264, %v3196, %v3200
        %v3202 = vshrl.u32 %v3125, 16
        %v3204 = vor.u32 %v3202, %v3200
        %v3206 = vshll.u32 %v3126, 16
        %v3208 = vrot.slane %v3206, 1
        %v3209 = vsel %vm2264, %v3204, %v3208
        %v3210 = vshrl.u32 %v3126, 16
        %v3212 = vor.u32 %v3210, %v3208
        %v3214 = vshll.u32 %v3127, 16
        %v3216 = vrot.slane %v3214, 1
        %v3217 = vsel %vm2264, %v3212, %v3216
        %v3218 = vshrl.u32 %v3127, 16
        %v3220 = vor.u32 %v3218, %v3216
        %v3222 = vshll.u32 %v3128, 16
        %v3224 = vrot.slane %v3222, 1
        %v3225 = vsel %vm2264, %v3220, %v3224
        %v3226 = vshrl.u32 %v3128, 16
        %v3228 = vor.u32 %v3226, %v3224
        %v3230 = vshll.u32 %v3129, 16
        %v3232 = vrot.slane %v3230, 1
        %v3233 = vsel %vm2264, %v3228, %v3232
        %v3234 = vshrl.u32 %v3129, 16
        %v3236 = vor.u32 %v3234, %v3232
        %v3238 = vshll.u32 %v3130, 16
        %v3240 = vrot.slane %v3238, 1
        %v3241 = vsel %vm2264, %v3236, %v3240
        %v3242 = vshrl.u32 %v3130, 16
        %s3244 = scalar_lea.vmem %s3, 256
        %v3245 = vld [vmem:[%s3244] sm:$0xf]
        %v3246 = vld [vmem:[%s3244 + $0x4] sm:$0xf]
        %v3247 = vld [vmem:[%s3244 + $0x8] sm:$0xf]
        %v3248 = vld [vmem:[%s3244 + $0xc] sm:$0xf]
        %v3249 = vld [vmem:[%s3244 + $0x10] sm:$0xf]
        %v3250 = vld [vmem:[%s3244 + $0x14] sm:$0xf]
        %v3251 = vld [vmem:[%s3244 + $0x18] sm:$0xf]
        %v3252 = vld [vmem:[%s3244 + $0x1c] sm:$0xf]
        %v3253 = vld [vmem:[%s3244 + $0x20] sm:$0xf]
        %v3254 = vld [vmem:[%s3244 + $0x24] sm:$0xf]
        %v3255 = vld [vmem:[%s3244 + $0x28] sm:$0xf]
        %v3256 = vld [vmem:[%s3244 + $0x2c] sm:$0xf]
        %v3257 = vld [vmem:[%s3244 + $0x30] sm:$0xf]
        %v3258 = vld [vmem:[%s3244 + $0x34] sm:$0xf]
        %v3259 = vld [vmem:[%s3244 + $0x38] sm:$0xf]
        %v3260 = vld [vmem:[%s3244 + $0x3c] sm:$0xf]
        %v3261 = vld [vmem:[%s3244 + $0x40] sm:$0xf]
        %v3262 = vld [vmem:[%s3244 + $0x44] sm:$0xf]
        %v3263 = vld [vmem:[%s3244 + $0x48] sm:$0xf]
        %v3264 = vld [vmem:[%s3244 + $0x4c] sm:$0xf]
        %v3265 = vld [vmem:[%s3244 + $0x50] sm:$0xf]
        %v3266 = vld [vmem:[%s3244 + $0x54] sm:$0xf]
        %v3267 = vld [vmem:[%s3244 + $0x58] sm:$0xf]
        %v3268 = vld [vmem:[%s3244 + $0x5c] sm:$0xf]
        %v3269 = vld [vmem:[%s3244 + $0x60] sm:$0xf]
        %v3270 = vld [vmem:[%s3244 + $0x64] sm:$0xf]
        %v3271 = vld [vmem:[%s3244 + $0x68] sm:$0xf]
        %v3272 = vld [vmem:[%s3244 + $0x6c] sm:$0xf]
        %v3273 = vld [vmem:[%s3244 + $0x70] sm:$0xf]
        %v3274 = vld [vmem:[%s3244 + $0x74] sm:$0xf]
        %v3275 = vld [vmem:[%s3244 + $0x78] sm:$0xf]
        %v3276 = vld [vmem:[%s3244 + $0x7c] sm:$0xf]
        %v3278 = vshrl.u32 %v3117, 16
        %v3280 = vshll.u32 %v3117, 16
        %v3282 = vrot.slane %v3280, 1
        %v3283 = vor.u32 %v3278, %v3282
        %v3284 = vsel %vm2264, %v3283, %v3144
        %v3286 = vshrl.u32 %v3145, 16
        %v3288 = vshll.u32 %v3145, 16
        %v3290 = vrot.slane %v3288, 1
        %v3291 = vor.u32 %v3286, %v3290
        %v3293 = vshll.u32 %v3153, 16
        %v3295 = vrot.slane %v3293, 1
        %v3296 = vsel %vm2264, %v3291, %v3295
        %v3297 = vshrl.u32 %v3153, 16
        %v3299 = vor.u32 %v3297, %v3295
        %v3301 = vshll.u32 %v3161, 16
        %v3303 = vrot.slane %v3301, 1
        %v3304 = vsel %vm2264, %v3299, %v3303
        %v3305 = vshrl.u32 %v3161, 16
        %v3307 = vor.u32 %v3305, %v3303
        %v3309 = vshll.u32 %v3169, 16
        %v3311 = vrot.slane %v3309, 1
        %v3312 = vsel %vm2264, %v3307, %v3311
        %v3313 = vshrl.u32 %v3169, 16
        %v3315 = vor.u32 %v3313, %v3311
        %v3317 = vshll.u32 %v3177, 16
        %v3319 = vrot.slane %v3317, 1
        %v3320 = vsel %vm2264, %v3315, %v3319
        %v3321 = vshrl.u32 %v3177, 16
        %v3323 = vor.u32 %v3321, %v3319
        %v3325 = vshll.u32 %v3185, 16
        %v3327 = vrot.slane %v3325, 1
        %v3328 = vsel %vm2264, %v3323, %v3327
        %v3329 = vshrl.u32 %v3185, 16
        %v3331 = vor.u32 %v3329, %v3327
        %v3333 = vshll.u32 %v3193, 16
        %v3335 = vrot.slane %v3333, 1
        %v3336 = vsel %vm2264, %v3331, %v3335
        %v3337 = vshrl.u32 %v3193, 16
        %v3339 = vor.u32 %v3337, %v3335
        %v3341 = vshll.u32 %v3201, 16
        %v3343 = vrot.slane %v3341, 1
        %v3344 = vsel %vm2264, %v3339, %v3343
        %v3345 = vshrl.u32 %v3201, 16
        %v3347 = vor.u32 %v3345, %v3343
        %v3349 = vshll.u32 %v3209, 16
        %v3351 = vrot.slane %v3349, 1
        %v3352 = vsel %vm2264, %v3347, %v3351
        %v3353 = vshrl.u32 %v3209, 16
        %v3355 = vor.u32 %v3353, %v3351
        %v3357 = vshll.u32 %v3217, 16
        %v3359 = vrot.slane %v3357, 1
        %v3360 = vsel %vm2264, %v3355, %v3359
        %v3361 = vshrl.u32 %v3217, 16
        %v3363 = vor.u32 %v3361, %v3359
        %v3365 = vshll.u32 %v3225, 16
        %v3367 = vrot.slane %v3365, 1
        %v3368 = vsel %vm2264, %v3363, %v3367
        %v3369 = vshrl.u32 %v3225, 16
        %v3371 = vor.u32 %v3369, %v3367
        %v3373 = vshll.u32 %v3233, 16
        %v3375 = vrot.slane %v3373, 1
        %v3376 = vsel %vm2264, %v3371, %v3375
        %v3377 = vshrl.u32 %v3233, 16
        %v3379 = vor.u32 %v3377, %v3375
        %v3381 = vshll.u32 %v3241, 16
        %v3383 = vrot.slane %v3381, 1
        %v3384 = vsel %vm2264, %v3379, %v3383
        %v3385 = vshrl.u32 %v3241, 16
        %v3387 = vor.u32 %v3385, %v3383
        %v3389 = vshll.u32 %v3242, 16
        %v3391 = vrot.slane %v3389, 1
        %v3392 = vsel %vm2264, %v3387, %v3391
        %v3451 = vunpack.c.l.b16 %v3245
        %v3452 = vunpack.c.l.b16 %v3246
        %v3453 = vunpack.c.l.b16 %v3247
        %v3454 = vunpack.c.l.b16 %v3248
        %v3455 = vunpack.c.l.b16 %v3249
        %v3456 = vunpack.c.l.b16 %v3250
        %v3457 = vunpack.c.l.b16 %v3251
        %v3458 = vunpack.c.l.b16 %v3252
        %v3459 = vunpack.c.l.b16 %v3253
        %v3460 = vunpack.c.l.b16 %v3254
        %v3461 = vunpack.c.l.b16 %v3255
        %v3462 = vunpack.c.l.b16 %v3256
        %v3463 = vunpack.c.l.b16 %v3257
        %v3464 = vunpack.c.l.b16 %v3258
        %v3465 = vunpack.c.l.b16 %v3259
        %v3466 = vunpack.c.l.b16 %v3260
        %v3467 = vunpack.c.l.b16 %v3261
        %v3468 = vunpack.c.l.b16 %v3262
        %v3469 = vunpack.c.l.b16 %v3263
        %v3470 = vunpack.c.l.b16 %v3264
        %v3471 = vunpack.c.l.b16 %v3265
        %v3472 = vunpack.c.l.b16 %v3266
        %v3473 = vunpack.c.l.b16 %v3267
        %v3474 = vunpack.c.l.b16 %v3268
        %v3475 = vunpack.c.l.b16 %v3269
        %v3476 = vunpack.c.l.b16 %v3270
        %v3477 = vunpack.c.l.b16 %v3271
        %v3478 = vunpack.c.l.b16 %v3272
        %v3479 = vunpack.c.l.b16 %v3273
        %v3480 = vunpack.c.l.b16 %v3274
        %v3481 = vunpack.c.l.b16 %v3275
        %v3482 = vunpack.c.l.b16 %v3276
        %v3483 = vpack.c.b16 %v3452, %v3451
        %v3484 = vpack.c.b16 %v3454, %v3453
        %v3485 = vpack.c.b16 %v3456, %v3455
        %v3486 = vpack.c.b16 %v3458, %v3457
        %v3487 = vpack.c.b16 %v3460, %v3459
        %v3488 = vpack.c.b16 %v3462, %v3461
        %v3489 = vpack.c.b16 %v3464, %v3463
        %v3490 = vpack.c.b16 %v3466, %v3465
        %v3491 = vpack.c.b16 %v3468, %v3467
        %v3492 = vpack.c.b16 %v3470, %v3469
        %v3493 = vpack.c.b16 %v3472, %v3471
        %v3494 = vpack.c.b16 %v3474, %v3473
        %v3495 = vpack.c.b16 %v3476, %v3475
        %v3496 = vpack.c.b16 %v3478, %v3477
        %v3497 = vpack.c.b16 %v3480, %v3479
        %v3498 = vpack.c.b16 %v3482, %v3481
        %3515 = vmatprep.subr.bf16.mxu0 0
        %3516 = vmatpush1.bf16.msra.mxu0 %v3490
        %3517 = vmatprep.subr.bf16.mxu0 0
        %3518 = vmatpush1.bf16.msra.mxu0 %v3489
        %3519 = vmatprep.subr.bf16.mxu0 0
        %3520 = vmatpush1.bf16.msra.mxu0 %v3488
        %3521 = vmatprep.subr.bf16.mxu0 0
        %3522 = vmatpush1.bf16.msra.mxu0 %v3487
        %3523 = vmatprep.subr.bf16.mxu0 0
        %3524 = vmatpush1.bf16.msra.mxu0 %v3486
        %3525 = vmatprep.subr.bf16.mxu0 0
        %3526 = vmatpush1.bf16.msra.mxu0 %v3485
        %3527 = vmatprep.subr.bf16.mxu0 0
        %3528 = vmatpush1.bf16.msra.mxu0 %v3484
        %3529 = vmatprep.subr.bf16.mxu0 0
        %3530 = vmatpush1.bf16.msra.mxu0 %v3483
        %3531 = vmatprep.subr.bf16.mxu0 0
        %3532 = vmatpush2.bf16.msra.mxu0 %v3498
        %3533 = vmatprep.subr.bf16.mxu0 0
        %3534 = vmatpush2.bf16.msra.mxu0 %v3497
        %3535 = vmatprep.subr.bf16.mxu0 0
        %3536 = vmatpush2.bf16.msra.mxu0 %v3496
        %3537 = vmatprep.subr.bf16.mxu0 0
        %3538 = vmatpush2.bf16.msra.mxu0 %v3495
        %3539 = vmatprep.subr.bf16.mxu0 0
        %3540 = vmatpush2.bf16.msra.mxu0 %v3494
        %3541 = vmatprep.subr.bf16.mxu0 0
        %3542 = vmatpush2.bf16.msra.mxu0 %v3493
        %3543 = vmatprep.subr.bf16.mxu0 0
        %3544 = vmatpush2.bf16.msra.mxu0 %v3492
        %3545 = vmatprep.subr.bf16.mxu0 0
        %3546 = vmatpush2.bf16.msra.mxu0 %v3491
        %3547 = vmatprep.mubr.bf16.mxu0 %v3296
        %3548 = vmatmul.mubr.bf16.gmra.mxu0 %v3284
        %v3549 = vpop.f32.mrf.mxu0
        %v3550 = vadd.f32 0.0, %v3549
        %v3551 = vpop.f32.mrf.mxu0
        %v3552 = vpop.f32.mrf.mxu0
        %v3553 = vadd.f32 0.0, %v3552
        %v3554 = vpop.f32.mrf.mxu0
        %3555 = vmatprep.mubr.bf16.mxu0 %v3304
        %3556 = vmatmul.mubr.bf16.gmra.mxu0 %v3153
        %v3557 = vpop.f32.mrf.mxu0
        %v3558 = vadd.f32 0.0, %v3557
        %v3559 = vpop.f32.mrf.mxu0
        %v3560 = vpop.f32.mrf.mxu0
        %v3561 = vadd.f32 0.0, %v3560
        %v3562 = vpop.f32.mrf.mxu0
        %3563 = vmatprep.mubr.bf16.mxu0 %v3312
        %3564 = vmatmul.mubr.bf16.gmra.mxu0 %v3161
        %v3565 = vpop.f32.mrf.mxu0
        %v3566 = vadd.f32 0.0, %v3565
        %v3567 = vpop.f32.mrf.mxu0
        %v3568 = vpop.f32.mrf.mxu0
        %v3569 = vadd.f32 0.0, %v3568
        %v3570 = vpop.f32.mrf.mxu0
        %3571 = vmatprep.mubr.bf16.mxu0 %v3320
        %3572 = vmatmul.mubr.bf16.gmra.mxu0 %v3169
        %v3573 = vpop.f32.mrf.mxu0
        %v3574 = vadd.f32 0.0, %v3573
        %v3575 = vpop.f32.mrf.mxu0
        %v3576 = vpop.f32.mrf.mxu0
        %v3577 = vadd.f32 0.0, %v3576
        %v3578 = vpop.f32.mrf.mxu0
        %3579 = vmatprep.mubr.bf16.mxu0 %v3328
        %3580 = vmatmul.mubr.bf16.gmra.mxu0 %v3177
        %v3581 = vpop.f32.mrf.mxu0
        %v3582 = vadd.f32 0.0, %v3581
        %v3583 = vpop.f32.mrf.mxu0
        %v3584 = vpop.f32.mrf.mxu0
        %v3585 = vadd.f32 0.0, %v3584
        %v3586 = vpop.f32.mrf.mxu0
        %3587 = vmatprep.mubr.bf16.mxu0 %v3336
        %3588 = vmatmul.mubr.bf16.gmra.mxu0 %v3185
        %v3589 = vpop.f32.mrf.mxu0
        %v3590 = vadd.f32 0.0, %v3589
        %v3591 = vpop.f32.mrf.mxu0
        %v3592 = vpop.f32.mrf.mxu0
        %v3593 = vadd.f32 0.0, %v3592
        %v3594 = vpop.f32.mrf.mxu0
        %3595 = vmatprep.mubr.bf16.mxu0 %v3344
        %3596 = vmatmul.mubr.bf16.gmra.mxu0 %v3193
        %v3597 = vpop.f32.mrf.mxu0
        %v3598 = vadd.f32 0.0, %v3597
        %v3599 = vpop.f32.mrf.mxu0
        %v3600 = vpop.f32.mrf.mxu0
        %v3601 = vadd.f32 0.0, %v3600
        %v3602 = vpop.f32.mrf.mxu0
        %3603 = vmatprep.mubr.bf16.mxu0 %v3352
        %3604 = vmatmul.mubr.bf16.gmra.mxu0 %v3201
        %v3605 = vpop.f32.mrf.mxu0
        %v3606 = vadd.f32 0.0, %v3605
        %v3607 = vpop.f32.mrf.mxu0
        %v3608 = vpop.f32.mrf.mxu0
        %v3609 = vadd.f32 0.0, %v3608
        %v3610 = vpop.f32.mrf.mxu0
        %3611 = vmatprep.mubr.bf16.mxu0 %v3360
        %3612 = vmatmul.mubr.bf16.gmra.mxu0 %v3209
        %v3613 = vpop.f32.mrf.mxu0
        %v3614 = vadd.f32 0.0, %v3613
        %v3615 = vpop.f32.mrf.mxu0
        %v3616 = vpop.f32.mrf.mxu0
        %v3617 = vadd.f32 0.0, %v3616
        %v3618 = vpop.f32.mrf.mxu0
        %3619 = vmatprep.mubr.bf16.mxu0 %v3368
        %3620 = vmatmul.mubr.bf16.gmra.mxu0 %v3217
        %v3621 = vpop.f32.mrf.mxu0
        %v3622 = vadd.f32 0.0, %v3621
        %v3623 = vpop.f32.mrf.mxu0
        %v3624 = vpop.f32.mrf.mxu0
        %v3625 = vadd.f32 0.0, %v3624
        %v3626 = vpop.f32.mrf.mxu0
        %3627 = vmatprep.mubr.bf16.mxu0 %v3376
        %3628 = vmatmul.mubr.bf16.gmra.mxu0 %v3225
        %v3629 = vpop.f32.mrf.mxu0
        %v3630 = vadd.f32 0.0, %v3629
        %v3631 = vpop.f32.mrf.mxu0
        %v3632 = vpop.f32.mrf.mxu0
        %v3633 = vadd.f32 0.0, %v3632
        %v3634 = vpop.f32.mrf.mxu0
        %3635 = vmatprep.mubr.bf16.mxu0 %v3384
        %3636 = vmatmul.mubr.bf16.gmra.mxu0 %v3233
        %v3637 = vpop.f32.mrf.mxu0
        %v3638 = vadd.f32 0.0, %v3637
        %v3639 = vpop.f32.mrf.mxu0
        %v3640 = vpop.f32.mrf.mxu0
        %v3641 = vadd.f32 0.0, %v3640
        %v3642 = vpop.f32.mrf.mxu0
        %3643 = vmatprep.mubr.bf16.mxu0 %v3392
        %3644 = vmatmul.mubr.bf16.gmra.mxu0 %v3241
        %v3645 = vpop.f32.mrf.mxu0
        %v3646 = vadd.f32 0.0, %v3645
        %v3647 = vpop.f32.mrf.mxu0
        %v3648 = vpop.f32.mrf.mxu0
        %v3649 = vadd.f32 0.0, %v3648
        %v3650 = vpop.f32.mrf.mxu0
        %3651 = vdwg.mxu0
        %v3652 = vadd.f32 %v2933, %v3550
        %v3653 = vadd.f32 %v2936, %v3553
        %v3654 = vadd.f32 %v2941, %v3558
        %v3655 = vadd.f32 %v2944, %v3561
        %v3656 = vadd.f32 %v2949, %v3566
        %v3657 = vadd.f32 %v2952, %v3569
        %v3658 = vadd.f32 %v2957, %v3574
        %v3659 = vadd.f32 %v2960, %v3577
        %v3660 = vadd.f32 %v2965, %v3582
        %v3661 = vadd.f32 %v2968, %v3585
        %v3662 = vadd.f32 %v2973, %v3590
        %v3663 = vadd.f32 %v2976, %v3593
        %v3664 = vadd.f32 %v2981, %v3598
        %v3665 = vadd.f32 %v2984, %v3601
        %v3666 = vadd.f32 %v2989, %v3606
        %v3667 = vadd.f32 %v2992, %v3609
        %v3668 = vadd.f32 %v2997, %v3614
        %v3669 = vadd.f32 %v3000, %v3617
        %v3670 = vadd.f32 %v3005, %v3622
        %v3671 = vadd.f32 %v3008, %v3625
        %v3672 = vadd.f32 %v3013, %v3630
        %v3673 = vadd.f32 %v3016, %v3633
        %v3674 = vadd.f32 %v3021, %v3638
        %v3675 = vadd.f32 %v3024, %v3641
        %v3676 = vadd.f32 %v3029, %v3646
        %v3677 = vadd.f32 %v3032, %v3649
        %v3678 = vld [vmem:[#allocation2 + $0x10] sm:$0xf]
        %v3679 = vld [vmem:[#allocation2 + $0x14] sm:$0xf]
        %v3680 = vld [vmem:[#allocation2 + $0x18] sm:$0xf]
        %v3681 = vld [vmem:[#allocation2 + $0x1c] sm:$0xf]
        %v3682 = vld [vmem:[#allocation2 + $0x20] sm:$0xf]
        %v3683 = vld [vmem:[#allocation2 + $0x24] sm:$0xf]
        %v3684 = vld [vmem:[#allocation2 + $0x28] sm:$0xf]
        %v3685 = vld [vmem:[#allocation2 + $0x2c] sm:$0xf]
        %v3686 = vld [vmem:[#allocation2 + $0x30] sm:$0xf]
        %v3687 = vld [vmem:[#allocation2 + $0x34] sm:$0xf]
        %v3688 = vld [vmem:[#allocation2 + $0x38] sm:$0xf]
        %v3689 = vld [vmem:[#allocation2 + $0x3c] sm:$0xf]
        %v3690 = vld [vmem:[#allocation2 + $0x40] sm:$0xf]
        %v3691 = vld [vmem:[#allocation2 + $0x44] sm:$0xf]
        %v3692 = vld [vmem:[#allocation2 + $0x48] sm:$0xf]
        %v3693 = vld [vmem:[#allocation2 + $0x4c] sm:$0xf]
        %v3694 = vld [vmem:[#allocation2 + $0x50] sm:$0xf]
        %v3695 = vld [vmem:[#allocation2 + $0x54] sm:$0xf]
        %v3696 = vld [vmem:[#allocation2 + $0x58] sm:$0xf]
        %v3697 = vld [vmem:[#allocation2 + $0x5c] sm:$0xf]
        %v3698 = vld [vmem:[#allocation2 + $0x60] sm:$0xf]
        %v3699 = vld [vmem:[#allocation2 + $0x64] sm:$0xf]
        %v3700 = vld [vmem:[#allocation2 + $0x68] sm:$0xf]
        %v3701 = vld [vmem:[#allocation2 + $0x6c] sm:$0xf]
        %v3702 = vld [vmem:[#allocation2 + $0x70] sm:$0xf]
        %v3703 = vld [vmem:[#allocation2 + $0x74] sm:$0xf]
        %v3704 = vld [vmem:[#allocation2 + $0x78] sm:$0x1]
        %v3731 = vunpack.c.l.b16 %v3678
        %v3732 = vunpack.c.l.b16 %v3679
        %v3733 = vunpack.c.l.b16 %v3680
        %v3734 = vunpack.c.l.b16 %v3681
        %v3735 = vunpack.c.l.b16 %v3682
        %v3736 = vunpack.c.l.b16 %v3683
        %v3737 = vunpack.c.l.b16 %v3684
        %v3738 = vunpack.c.l.b16 %v3685
        %v3739 = vunpack.c.l.b16 %v3686
        %v3740 = vunpack.c.l.b16 %v3687
        %v3741 = vunpack.c.l.b16 %v3688
        %v3742 = vunpack.c.l.b16 %v3689
        %v3743 = vunpack.c.l.b16 %v3690
        %v3744 = vunpack.c.l.b16 %v3691
        %v3745 = vunpack.c.l.b16 %v3692
        %v3746 = vunpack.c.l.b16 %v3693
        %v3747 = vunpack.c.l.b16 %v3694
        %v3748 = vunpack.c.l.b16 %v3695
        %v3749 = vunpack.c.l.b16 %v3696
        %v3750 = vunpack.c.l.b16 %v3697
        %v3751 = vunpack.c.l.b16 %v3698
        %v3752 = vunpack.c.l.b16 %v3699
        %v3753 = vunpack.c.l.b16 %v3700
        %v3754 = vunpack.c.l.b16 %v3701
        %v3755 = vunpack.c.l.b16 %v3702
        %v3756 = vunpack.c.l.b16 %v3703
        %v3757 = vpack.c.b16 %v3732, %v3731
        %v3758 = vpack.c.b16 %v3734, %v3733
        %v3759 = vpack.c.b16 %v3736, %v3735
        %v3760 = vpack.c.b16 %v3738, %v3737
        %v3761 = vpack.c.b16 %v3740, %v3739
        %v3762 = vpack.c.b16 %v3742, %v3741
        %v3763 = vpack.c.b16 %v3744, %v3743
        %v3764 = vpack.c.b16 %v3746, %v3745
        %v3765 = vpack.c.b16 %v3748, %v3747
        %v3766 = vpack.c.b16 %v3750, %v3749
        %v3767 = vpack.c.b16 %v3752, %v3751
        %v3768 = vpack.c.b16 %v3754, %v3753
        %v3769 = vpack.c.b16 %v3756, %v3755
        %v3784 = vunpack.c.l.b16 %v3704
        %v3785 = vpack.c.b16 %v3784, %v3784
        %v3787 = vshrl.u32 %v3757, 16
        %v3789 = vshll.u32 %v3757, 16
        %v3791 = vrot.slane %v3789, 1
        %v3792 = vor.u32 %v3787, %v3791
        %v3794 = vshll.u32 %v3758, 16
        %v3796 = vrot.slane %v3794, 1
        %v3797 = vsel %vm2264, %v3792, %v3796
        %v3798 = vshrl.u32 %v3758, 16
        %v3800 = vor.u32 %v3798, %v3796
        %v3802 = vshll.u32 %v3759, 16
        %v3804 = vrot.slane %v3802, 1
        %v3805 = vsel %vm2264, %v3800, %v3804
        %v3806 = vshrl.u32 %v3759, 16
        %v3808 = vor.u32 %v3806, %v3804
        %v3810 = vshll.u32 %v3760, 16
        %v3812 = vrot.slane %v3810, 1
        %v3813 = vsel %vm2264, %v3808, %v3812
        %v3814 = vshrl.u32 %v3760, 16
        %v3816 = vor.u32 %v3814, %v3812
        %v3818 = vshll.u32 %v3761, 16
        %v3820 = vrot.slane %v3818, 1
        %v3821 = vsel %vm2264, %v3816, %v3820
        %v3822 = vshrl.u32 %v3761, 16
        %v3824 = vor.u32 %v3822, %v3820
        %v3826 = vshll.u32 %v3762, 16
        %v3828 = vrot.slane %v3826, 1
        %v3829 = vsel %vm2264, %v3824, %v3828
        %v3830 = vshrl.u32 %v3762, 16
        %v3832 = vor.u32 %v3830, %v3828
        %v3834 = vshll.u32 %v3763, 16
        %v3836 = vrot.slane %v3834, 1
        %v3837 = vsel %vm2264, %v3832, %v3836
        %v3838 = vshrl.u32 %v3763, 16
        %v3840 = vor.u32 %v3838, %v3836
        %v3842 = vshll.u32 %v3764, 16
        %v3844 = vrot.slane %v3842, 1
        %v3845 = vsel %vm2264, %v3840, %v3844
        %v3846 = vshrl.u32 %v3764, 16
        %v3848 = vor.u32 %v3846, %v3844
        %v3850 = vshll.u32 %v3765, 16
        %v3852 = vrot.slane %v3850, 1
        %v3853 = vsel %vm2264, %v3848, %v3852
        %v3854 = vshrl.u32 %v3765, 16
        %v3856 = vor.u32 %v3854, %v3852
        %v3858 = vshll.u32 %v3766, 16
        %v3860 = vrot.slane %v3858, 1
        %v3861 = vsel %vm2264, %v3856, %v3860
        %v3862 = vshrl.u32 %v3766, 16
        %v3864 = vor.u32 %v3862, %v3860
        %v3866 = vshll.u32 %v3767, 16
        %v3868 = vrot.slane %v3866, 1
        %v3869 = vsel %vm2264, %v3864, %v3868
        %v3870 = vshrl.u32 %v3767, 16
        %v3872 = vor.u32 %v3870, %v3868
        %v3874 = vshll.u32 %v3768, 16
        %v3876 = vrot.slane %v3874, 1
        %v3877 = vsel %vm2264, %v3872, %v3876
        %v3878 = vshrl.u32 %v3768, 16
        %v3880 = vor.u32 %v3878, %v3876
        %v3882 = vshll.u32 %v3769, 16
        %v3884 = vrot.slane %v3882, 1
        %v3885 = vsel %vm2264, %v3880, %v3884
        %v3886 = vshrl.u32 %v3769, 16
        %v3888 = vor.u32 %v3886, %v3884
        %v3890 = vshll.u32 %v3785, 16
        %v3892 = vrot.slane %v3890, 1
        %v3893 = vsel %vm2264, %v3888, %v3892
        %s3907 = scalar_lea.vmem %s3, 384
        %v3908 = vld [vmem:[%s3907] sm:$0xf]
        %v3909 = vld [vmem:[%s3907 + $0x4] sm:$0xf]
        %v3910 = vld [vmem:[%s3907 + $0x8] sm:$0xf]
        %v3911 = vld [vmem:[%s3907 + $0xc] sm:$0xf]
        %v3912 = vld [vmem:[%s3907 + $0x10] sm:$0xf]
        %v3913 = vld [vmem:[%s3907 + $0x14] sm:$0xf]
        %v3914 = vld [vmem:[%s3907 + $0x18] sm:$0xf]
        %v3915 = vld [vmem:[%s3907 + $0x1c] sm:$0xf]
        %v3916 = vld [vmem:[%s3907 + $0x20] sm:$0xf]
        %v3917 = vld [vmem:[%s3907 + $0x24] sm:$0xf]
        %v3918 = vld [vmem:[%s3907 + $0x28] sm:$0xf]
        %v3919 = vld [vmem:[%s3907 + $0x2c] sm:$0xf]
        %v3920 = vld [vmem:[%s3907 + $0x30] sm:$0xf]
        %v3921 = vld [vmem:[%s3907 + $0x34] sm:$0xf]
        %v3922 = vld [vmem:[%s3907 + $0x38] sm:$0xf]
        %v3923 = vld [vmem:[%s3907 + $0x3c] sm:$0xf]
        %v3924 = vld [vmem:[%s3907 + $0x40] sm:$0xf]
        %v3925 = vld [vmem:[%s3907 + $0x44] sm:$0xf]
        %v3926 = vld [vmem:[%s3907 + $0x48] sm:$0xf]
        %v3927 = vld [vmem:[%s3907 + $0x4c] sm:$0xf]
        %v3928 = vld [vmem:[%s3907 + $0x50] sm:$0xf]
        %v3929 = vld [vmem:[%s3907 + $0x54] sm:$0xf]
        %v3930 = vld [vmem:[%s3907 + $0x58] sm:$0xf]
        %v3931 = vld [vmem:[%s3907 + $0x5c] sm:$0xf]
        %v3932 = vld [vmem:[%s3907 + $0x60] sm:$0xf]
        %v3933 = vld [vmem:[%s3907 + $0x64] sm:$0xf]
        %v3934 = vld [vmem:[%s3907 + $0x68] sm:$0xf]
        %v3935 = vld [vmem:[%s3907 + $0x6c] sm:$0xf]
        %v3936 = vld [vmem:[%s3907 + $0x70] sm:$0xf]
        %v3937 = vld [vmem:[%s3907 + $0x74] sm:$0xf]
        %v3938 = vld [vmem:[%s3907 + $0x78] sm:$0xf]
        %v3939 = vld [vmem:[%s3907 + $0x7c] sm:$0xf]
        %v3972 = vunpack.c.l.b16 %v3908
        %v3973 = vunpack.c.l.b16 %v3909
        %v3974 = vunpack.c.l.b16 %v3910
        %v3975 = vunpack.c.l.b16 %v3911
        %v3976 = vunpack.c.l.b16 %v3912
        %v3977 = vunpack.c.l.b16 %v3913
        %v3978 = vunpack.c.l.b16 %v3914
        %v3979 = vunpack.c.l.b16 %v3915
        %v3980 = vunpack.c.l.b16 %v3916
        %v3981 = vunpack.c.l.b16 %v3917
        %v3982 = vunpack.c.l.b16 %v3918
        %v3983 = vunpack.c.l.b16 %v3919
        %v3984 = vunpack.c.l.b16 %v3920
        %v3985 = vunpack.c.l.b16 %v3921
        %v3986 = vunpack.c.l.b16 %v3922
        %v3987 = vunpack.c.l.b16 %v3923
        %v3988 = vunpack.c.l.b16 %v3924
        %v3989 = vunpack.c.l.b16 %v3925
        %v3990 = vunpack.c.l.b16 %v3926
        %v3991 = vunpack.c.l.b16 %v3927
        %v3992 = vunpack.c.l.b16 %v3928
        %v3993 = vunpack.c.l.b16 %v3929
        %v3994 = vunpack.c.l.b16 %v3930
        %v3995 = vunpack.c.l.b16 %v3931
        %v3996 = vunpack.c.l.b16 %v3932
        %v3997 = vunpack.c.l.b16 %v3933
        %v3998 = vunpack.c.l.b16 %v3934
        %v3999 = vunpack.c.l.b16 %v3935
        %v4000 = vunpack.c.l.b16 %v3936
        %v4001 = vunpack.c.l.b16 %v3937
        %v4002 = vunpack.c.l.b16 %v3938
        %v4003 = vunpack.c.l.b16 %v3939
        %v4004 = vpack.c.b16 %v3973, %v3972
        %v4005 = vpack.c.b16 %v3975, %v3974
        %v4006 = vpack.c.b16 %v3977, %v3976
        %v4007 = vpack.c.b16 %v3979, %v3978
        %v4008 = vpack.c.b16 %v3981, %v3980
        %v4009 = vpack.c.b16 %v3983, %v3982
        %v4010 = vpack.c.b16 %v3985, %v3984
        %v4011 = vpack.c.b16 %v3987, %v3986
        %v4012 = vpack.c.b16 %v3989, %v3988
        %v4013 = vpack.c.b16 %v3991, %v3990
        %v4014 = vpack.c.b16 %v3993, %v3992
        %v4015 = vpack.c.b16 %v3995, %v3994
        %v4016 = vpack.c.b16 %v3997, %v3996
        %v4017 = vpack.c.b16 %v3999, %v3998
        %v4018 = vpack.c.b16 %v4001, %v4000
        %v4019 = vpack.c.b16 %v4003, %v4002
        %4036 = vmatprep.subr.bf16.mxu0 0
        %4037 = vmatpush1.bf16.msra.mxu0 %v4011
        %4038 = vmatprep.subr.bf16.mxu0 0
        %4039 = vmatpush1.bf16.msra.mxu0 %v4010
        %4040 = vmatprep.subr.bf16.mxu0 0
        %4041 = vmatpush1.bf16.msra.mxu0 %v4009
        %4042 = vmatprep.subr.bf16.mxu0 0
        %4043 = vmatpush1.bf16.msra.mxu0 %v4008
        %4044 = vmatprep.subr.bf16.mxu0 0
        %4045 = vmatpush1.bf16.msra.mxu0 %v4007
        %4046 = vmatprep.subr.bf16.mxu0 0
        %4047 = vmatpush1.bf16.msra.mxu0 %v4006
        %4048 = vmatprep.subr.bf16.mxu0 0
        %4049 = vmatpush1.bf16.msra.mxu0 %v4005
        %4050 = vmatprep.subr.bf16.mxu0 0
        %4051 = vmatpush1.bf16.msra.mxu0 %v4004
        %4052 = vmatprep.subr.bf16.mxu0 0
        %4053 = vmatpush2.bf16.msra.mxu0 %v4019
        %4054 = vmatprep.subr.bf16.mxu0 0
        %4055 = vmatpush2.bf16.msra.mxu0 %v4018
        %4056 = vmatprep.subr.bf16.mxu0 0
        %4057 = vmatpush2.bf16.msra.mxu0 %v4017
        %4058 = vmatprep.subr.bf16.mxu0 0
        %4059 = vmatpush2.bf16.msra.mxu0 %v4016
        %4060 = vmatprep.subr.bf16.mxu0 0
        %4061 = vmatpush2.bf16.msra.mxu0 %v4015
        %4062 = vmatprep.subr.bf16.mxu0 0
        %4063 = vmatpush2.bf16.msra.mxu0 %v4014
        %4064 = vmatprep.subr.bf16.mxu0 0
        %4065 = vmatpush2.bf16.msra.mxu0 %v4013
        %4066 = vmatprep.subr.bf16.mxu0 0
        %4067 = vmatpush2.bf16.msra.mxu0 %v4012
        %4068 = vmatprep.mubr.bf16.mxu0 %v3797
        %4069 = vmatmul.mubr.bf16.gmra.mxu0 %v3757
        %v4070 = vpop.f32.mrf.mxu0
        %v4071 = vadd.f32 0.0, %v4070
        %v4072 = vpop.f32.mrf.mxu0
        %v4073 = vpop.f32.mrf.mxu0
        %v4074 = vadd.f32 0.0, %v4073
        %v4075 = vpop.f32.mrf.mxu0
        %4076 = vmatprep.mubr.bf16.mxu0 %v3805
        %4077 = vmatmul.mubr.bf16.gmra.mxu0 %v3758
        %v4078 = vpop.f32.mrf.mxu0
        %v4079 = vadd.f32 0.0, %v4078
        %v4080 = vpop.f32.mrf.mxu0
        %v4081 = vpop.f32.mrf.mxu0
        %v4082 = vadd.f32 0.0, %v4081
        %v4083 = vpop.f32.mrf.mxu0
        %4084 = vmatprep.mubr.bf16.mxu0 %v3813
        %4085 = vmatmul.mubr.bf16.gmra.mxu0 %v3759
        %v4086 = vpop.f32.mrf.mxu0
        %v4087 = vadd.f32 0.0, %v4086
        %v4088 = vpop.f32.mrf.mxu0
        %v4089 = vpop.f32.mrf.mxu0
        %v4090 = vadd.f32 0.0, %v4089
        %v4091 = vpop.f32.mrf.mxu0
        %4092 = vmatprep.mubr.bf16.mxu0 %v3821
        %4093 = vmatmul.mubr.bf16.gmra.mxu0 %v3760
        %v4094 = vpop.f32.mrf.mxu0
        %v4095 = vadd.f32 0.0, %v4094
        %v4096 = vpop.f32.mrf.mxu0
        %v4097 = vpop.f32.mrf.mxu0
        %v4098 = vadd.f32 0.0, %v4097
        %v4099 = vpop.f32.mrf.mxu0
        %4100 = vmatprep.mubr.bf16.mxu0 %v3829
        %4101 = vmatmul.mubr.bf16.gmra.mxu0 %v3761
        %v4102 = vpop.f32.mrf.mxu0
        %v4103 = vadd.f32 0.0, %v4102
        %v4104 = vpop.f32.mrf.mxu0
        %v4105 = vpop.f32.mrf.mxu0
        %v4106 = vadd.f32 0.0, %v4105
        %v4107 = vpop.f32.mrf.mxu0
        %4108 = vmatprep.mubr.bf16.mxu0 %v3837
        %4109 = vmatmul.mubr.bf16.gmra.mxu0 %v3762
        %v4110 = vpop.f32.mrf.mxu0
        %v4111 = vadd.f32 0.0, %v4110
        %v4112 = vpop.f32.mrf.mxu0
        %v4113 = vpop.f32.mrf.mxu0
        %v4114 = vadd.f32 0.0, %v4113
        %v4115 = vpop.f32.mrf.mxu0
        %4116 = vmatprep.mubr.bf16.mxu0 %v3845
        %4117 = vmatmul.mubr.bf16.gmra.mxu0 %v3763
        %v4118 = vpop.f32.mrf.mxu0
        %v4119 = vadd.f32 0.0, %v4118
        %v4120 = vpop.f32.mrf.mxu0
        %v4121 = vpop.f32.mrf.mxu0
        %v4122 = vadd.f32 0.0, %v4121
        %v4123 = vpop.f32.mrf.mxu0
        %4124 = vmatprep.mubr.bf16.mxu0 %v3853
        %4125 = vmatmul.mubr.bf16.gmra.mxu0 %v3764
        %v4126 = vpop.f32.mrf.mxu0
        %v4127 = vadd.f32 0.0, %v4126
        %v4128 = vpop.f32.mrf.mxu0
        %v4129 = vpop.f32.mrf.mxu0
        %v4130 = vadd.f32 0.0, %v4129
        %v4131 = vpop.f32.mrf.mxu0
        %4132 = vmatprep.mubr.bf16.mxu0 %v3861
        %4133 = vmatmul.mubr.bf16.gmra.mxu0 %v3765
        %v4134 = vpop.f32.mrf.mxu0
        %v4135 = vadd.f32 0.0, %v4134
        %v4136 = vpop.f32.mrf.mxu0
        %v4137 = vpop.f32.mrf.mxu0
        %v4138 = vadd.f32 0.0, %v4137
        %v4139 = vpop.f32.mrf.mxu0
        %4140 = vmatprep.mubr.bf16.mxu0 %v3869
        %4141 = vmatmul.mubr.bf16.gmra.mxu0 %v3766
        %v4142 = vpop.f32.mrf.mxu0
        %v4143 = vadd.f32 0.0, %v4142
        %v4144 = vpop.f32.mrf.mxu0
        %v4145 = vpop.f32.mrf.mxu0
        %v4146 = vadd.f32 0.0, %v4145
        %v4147 = vpop.f32.mrf.mxu0
        %4148 = vmatprep.mubr.bf16.mxu0 %v3877
        %4149 = vmatmul.mubr.bf16.gmra.mxu0 %v3767
        %v4150 = vpop.f32.mrf.mxu0
        %v4151 = vadd.f32 0.0, %v4150
        %v4152 = vpop.f32.mrf.mxu0
        %v4153 = vpop.f32.mrf.mxu0
        %v4154 = vadd.f32 0.0, %v4153
        %v4155 = vpop.f32.mrf.mxu0
        %4156 = vmatprep.mubr.bf16.mxu0 %v3885
        %4157 = vmatmul.mubr.bf16.gmra.mxu0 %v3768
        %v4158 = vpop.f32.mrf.mxu0
        %v4159 = vadd.f32 0.0, %v4158
        %v4160 = vpop.f32.mrf.mxu0
        %v4161 = vpop.f32.mrf.mxu0
        %v4162 = vadd.f32 0.0, %v4161
        %v4163 = vpop.f32.mrf.mxu0
        %4164 = vmatprep.mubr.bf16.mxu0 %v3893
        %4165 = vmatmul.mubr.bf16.gmra.mxu0 %v3769
        %v4166 = vpop.f32.mrf.mxu0
        %v4167 = vadd.f32 0.0, %v4166
        %v4168 = vpop.f32.mrf.mxu0
        %v4169 = vpop.f32.mrf.mxu0
        %v4170 = vadd.f32 0.0, %v4169
        %v4171 = vpop.f32.mrf.mxu0
        %4172 = vdwg.mxu0
        %v4173 = vadd.f32 %v3652, %v4071
        %v4174 = vadd.f32 %v3653, %v4074
        %v4175 = vadd.f32 %v3654, %v4079
        %v4176 = vadd.f32 %v3655, %v4082
        %v4177 = vadd.f32 %v3656, %v4087
        %v4178 = vadd.f32 %v3657, %v4090
        %v4179 = vadd.f32 %v3658, %v4095
        %v4180 = vadd.f32 %v3659, %v4098
        %v4181 = vadd.f32 %v3660, %v4103
        %v4182 = vadd.f32 %v3661, %v4106
        %v4183 = vadd.f32 %v3662, %v4111
        %v4184 = vadd.f32 %v3663, %v4114
        %v4185 = vadd.f32 %v3664, %v4119
        %v4186 = vadd.f32 %v3665, %v4122
        %v4187 = vadd.f32 %v3666, %v4127
        %v4188 = vadd.f32 %v3667, %v4130
        %v4189 = vadd.f32 %v3668, %v4135
        %v4190 = vadd.f32 %v3669, %v4138
        %v4191 = vadd.f32 %v3670, %v4143
        %v4192 = vadd.f32 %v3671, %v4146
        %v4193 = vadd.f32 %v3672, %v4151
        %v4194 = vadd.f32 %v3673, %v4154
        %v4195 = vadd.f32 %v3674, %v4159
        %v4196 = vadd.f32 %v3675, %v4162
        %v4197 = vadd.f32 %v3676, %v4167
        %v4198 = vadd.f32 %v3677, %v4170
        %v4199 = vld [vmem:[#allocation2 + $0x10] sm:$0xe]
        %s4200 = scalar_lea.vmem %s3, 512
        %v4201 = vld [vmem:[%s4200] sm:$0xf]
        %v4202 = vld [vmem:[%s4200 + $0x4] sm:$0xf]
        %v4203 = vld [vmem:[%s4200 + $0x8] sm:$0xf]
        %v4204 = vld [vmem:[%s4200 + $0xc] sm:$0xf]
        %v4205 = vld [vmem:[%s4200 + $0x10] sm:$0xf]
        %v4206 = vld [vmem:[%s4200 + $0x14] sm:$0xf]
        %v4207 = vld [vmem:[%s4200 + $0x18] sm:$0xf]
        %v4208 = vld [vmem:[%s4200 + $0x1c] sm:$0xf]
        %v4209 = vld [vmem:[%s4200 + $0x20] sm:$0xf]
        %v4210 = vld [vmem:[%s4200 + $0x24] sm:$0xf]
        %v4211 = vld [vmem:[%s4200 + $0x28] sm:$0xf]
        %v4212 = vld [vmem:[%s4200 + $0x2c] sm:$0xf]
        %v4213 = vld [vmem:[%s4200 + $0x30] sm:$0xf]
        %v4214 = vld [vmem:[%s4200 + $0x34] sm:$0xf]
        %v4215 = vld [vmem:[%s4200 + $0x38] sm:$0xf]
        %v4216 = vld [vmem:[%s4200 + $0x3c] sm:$0xf]
        %v4218 = vunpack.c.l.b16 %v4199
        %v4219 = vpack.c.b16 %v3732, %v4218
        %v4220 = vrot.slane %v4219, 1
        %v4221 = vrot.slane %v3758, 1
        %v4222 = vsel %vm2488, %v4220, %v4221
        %v4223 = vrot.slane %v3759, 1
        %v4224 = vsel %vm2488, %v4221, %v4223
        %v4225 = vrot.slane %v3760, 1
        %v4226 = vsel %vm2488, %v4223, %v4225
        %v4227 = vrot.slane %v3761, 1
        %v4228 = vsel %vm2488, %v4225, %v4227
        %v4229 = vrot.slane %v3762, 1
        %v4230 = vsel %vm2488, %v4227, %v4229
        %v4231 = vrot.slane %v3763, 1
        %v4232 = vsel %vm2488, %v4229, %v4231
        %v4233 = vrot.slane %v3764, 1
        %v4234 = vsel %vm2488, %v4231, %v4233
        %v4235 = vrot.slane %v3765, 1
        %v4236 = vsel %vm2488, %v4233, %v4235
        %v4237 = vrot.slane %v3766, 1
        %v4238 = vsel %vm2488, %v4235, %v4237
        %v4239 = vrot.slane %v3767, 1
        %v4240 = vsel %vm2488, %v4237, %v4239
        %v4241 = vrot.slane %v3768, 1
        %v4242 = vsel %vm2488, %v4239, %v4241
        %v4243 = vrot.slane %v3769, 1
        %v4244 = vsel %vm2488, %v4241, %v4243
        %v4245 = vrot.slane %v3785, 1
        %v4246 = vsel %vm2488, %v4243, %v4245
        %v4276 = vunpack.c.l.b16 %v4201
        %v4277 = vunpack.c.l.b16 %v4202
        %v4278 = vunpack.c.l.b16 %v4203
        %v4279 = vunpack.c.l.b16 %v4204
        %v4280 = vunpack.c.l.b16 %v4205
        %v4281 = vunpack.c.l.b16 %v4206
        %v4282 = vunpack.c.l.b16 %v4207
        %v4283 = vunpack.c.l.b16 %v4208
        %v4284 = vunpack.c.l.b16 %v4209
        %v4285 = vunpack.c.l.b16 %v4210
        %v4286 = vunpack.c.l.b16 %v4211
        %v4287 = vunpack.c.l.b16 %v4212
        %v4288 = vunpack.c.l.b16 %v4213
        %v4289 = vunpack.c.l.b16 %v4214
        %v4290 = vunpack.c.l.b16 %v4215
        %v4291 = vunpack.c.l.b16 %v4216
        %v4292 = vpack.c.b16 %v4277, %v4276
        %v4293 = vpack.c.b16 %v4279, %v4278
        %v4294 = vpack.c.b16 %v4281, %v4280
        %v4295 = vpack.c.b16 %v4283, %v4282
        %v4296 = vpack.c.b16 %v4285, %v4284
        %v4297 = vpack.c.b16 %v4287, %v4286
        %v4298 = vpack.c.b16 %v4289, %v4288
        %v4299 = vpack.c.b16 %v4291, %v4290
        %4308 = vmatprep.subr.bf16.mxu0 0
        %4309 = vmatpush1.bf16.msra.mxu0 %v4299
        %4310 = vmatprep.subr.bf16.mxu0 0
        %4311 = vmatpush1.bf16.msra.mxu0 %v4298
        %4312 = vmatprep.subr.bf16.mxu0 0
        %4313 = vmatpush1.bf16.msra.mxu0 %v4297
        %4314 = vmatprep.subr.bf16.mxu0 0
        %4315 = vmatpush1.bf16.msra.mxu0 %v4296
        %4316 = vmatprep.subr.bf16.mxu0 0
        %4317 = vmatpush1.bf16.msra.mxu0 %v4295
        %4318 = vmatprep.subr.bf16.mxu0 0
        %4319 = vmatpush1.bf16.msra.mxu0 %v4294
        %4320 = vmatprep.subr.bf16.mxu0 0
        %4321 = vmatpush1.bf16.msra.mxu0 %v4293
        %4322 = vmatprep.subr.bf16.mxu0 0
        %4323 = vmatpush1.bf16.msra.mxu0 %v4292
        %4324 = vmatprep.subr.bf16.mxu0 0
        %4325 = vmatpush2.bf16.msra.mxu0 0
        %4326 = vmatprep.subr.bf16.mxu0 0
        %4327 = vmatpush2.bf16.msra.mxu0 0
        %4328 = vmatprep.subr.bf16.mxu0 0
        %4329 = vmatpush2.bf16.msra.mxu0 0
        %4330 = vmatprep.subr.bf16.mxu0 0
        %4331 = vmatpush2.bf16.msra.mxu0 0
        %4332 = vmatprep.subr.bf16.mxu0 0
        %4333 = vmatpush2.bf16.msra.mxu0 0
        %4334 = vmatprep.subr.bf16.mxu0 0
        %4335 = vmatpush2.bf16.msra.mxu0 0
        %4336 = vmatprep.subr.bf16.mxu0 0
        %4337 = vmatpush2.bf16.msra.mxu0 0
        %4338 = vmatprep.subr.bf16.mxu0 0
        %4339 = vmatpush2.bf16.msra.mxu0 0
        %4340 = vmatprep.mubr.bf16.mxu0 0
        %4341 = vmatmul.mubr.bf16.gmra.mxu0 %v4222
        %v4342 = vpop.f32.mrf.mxu0
        %v4343 = vadd.f32 0.0, %v4342
        %v4344 = vpop.f32.mrf.mxu0
        %v4345 = vpop.f32.mrf.mxu0
        %v4346 = vadd.f32 0.0, %v4345
        %v4347 = vpop.f32.mrf.mxu0
        %4348 = vmatprep.mubr.bf16.mxu0 0
        %4349 = vmatmul.mubr.bf16.gmra.mxu0 %v4224
        %v4350 = vpop.f32.mrf.mxu0
        %v4351 = vadd.f32 0.0, %v4350
        %v4352 = vpop.f32.mrf.mxu0
        %v4353 = vpop.f32.mrf.mxu0
        %v4354 = vadd.f32 0.0, %v4353
        %v4355 = vpop.f32.mrf.mxu0
        %4356 = vmatprep.mubr.bf16.mxu0 0
        %4357 = vmatmul.mubr.bf16.gmra.mxu0 %v4226
        %v4358 = vpop.f32.mrf.mxu0
        %v4359 = vadd.f32 0.0, %v4358
        %v4360 = vpop.f32.mrf.mxu0
        %v4361 = vpop.f32.mrf.mxu0
        %v4362 = vadd.f32 0.0, %v4361
        %v4363 = vpop.f32.mrf.mxu0
        %4364 = vmatprep.mubr.bf16.mxu0 0
        %4365 = vmatmul.mubr.bf16.gmra.mxu0 %v4228
        %v4366 = vpop.f32.mrf.mxu0
        %v4367 = vadd.f32 0.0, %v4366
        %v4368 = vpop.f32.mrf.mxu0
        %v4369 = vpop.f32.mrf.mxu0
        %v4370 = vadd.f32 0.0, %v4369
        %v4371 = vpop.f32.mrf.mxu0
        %4372 = vmatprep.mubr.bf16.mxu0 0
        %4373 = vmatmul.mubr.bf16.gmra.mxu0 %v4230
        %v4374 = vpop.f32.mrf.mxu0
        %v4375 = vadd.f32 0.0, %v4374
        %v4376 = vpop.f32.mrf.mxu0
        %v4377 = vpop.f32.mrf.mxu0
        %v4378 = vadd.f32 0.0, %v4377
        %v4379 = vpop.f32.mrf.mxu0
        %4380 = vmatprep.mubr.bf16.mxu0 0
        %4381 = vmatmul.mubr.bf16.gmra.mxu0 %v4232
        %v4382 = vpop.f32.mrf.mxu0
        %v4383 = vadd.f32 0.0, %v4382
        %v4384 = vpop.f32.mrf.mxu0
        %v4385 = vpop.f32.mrf.mxu0
        %v4386 = vadd.f32 0.0, %v4385
        %v4387 = vpop.f32.mrf.mxu0
        %4388 = vmatprep.mubr.bf16.mxu0 0
        %4389 = vmatmul.mubr.bf16.gmra.mxu0 %v4234
        %v4390 = vpop.f32.mrf.mxu0
        %v4391 = vadd.f32 0.0, %v4390
        %v4392 = vpop.f32.mrf.mxu0
        %v4393 = vpop.f32.mrf.mxu0
        %v4394 = vadd.f32 0.0, %v4393
        %v4395 = vpop.f32.mrf.mxu0
        %4396 = vmatprep.mubr.bf16.mxu0 0
        %4397 = vmatmul.mubr.bf16.gmra.mxu0 %v4236
        %v4398 = vpop.f32.mrf.mxu0
        %v4399 = vadd.f32 0.0, %v4398
        %v4400 = vpop.f32.mrf.mxu0
        %v4401 = vpop.f32.mrf.mxu0
        %v4402 = vadd.f32 0.0, %v4401
        %v4403 = vpop.f32.mrf.mxu0
        %4404 = vmatprep.mubr.bf16.mxu0 0
        %4405 = vmatmul.mubr.bf16.gmra.mxu0 %v4238
        %v4406 = vpop.f32.mrf.mxu0
        %v4407 = vadd.f32 0.0, %v4406
        %v4408 = vpop.f32.mrf.mxu0
        %v4409 = vpop.f32.mrf.mxu0
        %v4410 = vadd.f32 0.0, %v4409
        %v4411 = vpop.f32.mrf.mxu0
        %4412 = vmatprep.mubr.bf16.mxu0 0
        %4413 = vmatmul.mubr.bf16.gmra.mxu0 %v4240
        %v4414 = vpop.f32.mrf.mxu0
        %v4415 = vadd.f32 0.0, %v4414
        %v4416 = vpop.f32.mrf.mxu0
        %v4417 = vpop.f32.mrf.mxu0
        %v4418 = vadd.f32 0.0, %v4417
        %v4419 = vpop.f32.mrf.mxu0
        %4420 = vmatprep.mubr.bf16.mxu0 0
        %4421 = vmatmul.mubr.bf16.gmra.mxu0 %v4242
        %v4422 = vpop.f32.mrf.mxu0
        %v4423 = vadd.f32 0.0, %v4422
        %v4424 = vpop.f32.mrf.mxu0
        %v4425 = vpop.f32.mrf.mxu0
        %v4426 = vadd.f32 0.0, %v4425
        %v4427 = vpop.f32.mrf.mxu0
        %4428 = vmatprep.mubr.bf16.mxu0 0
        %4429 = vmatmul.mubr.bf16.gmra.mxu0 %v4244
        %v4430 = vpop.f32.mrf.mxu0
        %v4431 = vadd.f32 0.0, %v4430
        %v4432 = vpop.f32.mrf.mxu0
        %v4433 = vpop.f32.mrf.mxu0
        %v4434 = vadd.f32 0.0, %v4433
        %v4435 = vpop.f32.mrf.mxu0
        %4436 = vmatprep.mubr.bf16.mxu0 0
        %4437 = vmatmul.mubr.bf16.gmra.mxu0 %v4246
        %v4438 = vpop.f32.mrf.mxu0
        %v4439 = vadd.f32 0.0, %v4438
        %v4440 = vpop.f32.mrf.mxu0
        %v4441 = vpop.f32.mrf.mxu0
        %v4442 = vadd.f32 0.0, %v4441
        %v4443 = vpop.f32.mrf.mxu0
        %4444 = vdwg.mxu0
        %v4445 = vadd.f32 %v4173, %v4343
        %v4446 = vadd.f32 %v4174, %v4346
        %v4447 = vadd.f32 %v4175, %v4351
        %v4448 = vadd.f32 %v4176, %v4354
        %v4449 = vadd.f32 %v4177, %v4359
        %v4450 = vadd.f32 %v4178, %v4362
        %v4451 = vadd.f32 %v4179, %v4367
        %v4452 = vadd.f32 %v4180, %v4370
        %v4453 = vadd.f32 %v4181, %v4375
        %v4454 = vadd.f32 %v4182, %v4378
        %v4455 = vadd.f32 %v4183, %v4383
        %v4456 = vadd.f32 %v4184, %v4386
        %v4457 = vadd.f32 %v4185, %v4391
        %v4458 = vadd.f32 %v4186, %v4394
        %v4459 = vadd.f32 %v4187, %v4399
        %v4460 = vadd.f32 %v4188, %v4402
        %v4461 = vadd.f32 %v4189, %v4407
        %v4462 = vadd.f32 %v4190, %v4410
        %v4463 = vadd.f32 %v4191, %v4415
        %v4464 = vadd.f32 %v4192, %v4418
        %v4465 = vadd.f32 %v4193, %v4423
        %v4466 = vadd.f32 %v4194, %v4426
        %v4467 = vadd.f32 %v4195, %v4431
        %v4468 = vadd.f32 %v4196, %v4434
        %v4469 = vadd.f32 %v4197, %v4439
        %v4470 = vadd.f32 %v4198, %v4442
        %v4472 = vlaneseq
        %v4473 = vshrl.u32 %v4472, 7
        %v4474 = vsub.s32 0, %v4473
        %v4475 = vrot.slane %v2155, %v4474
        %v4477 = vadd.f32 %v4445, %v4475
        %v4478 = vadd.f32 %v4446, %v4475
        %v4479 = vadd.f32 %v4447, %v4475
        %v4480 = vadd.f32 %v4448, %v4475
        %v4481 = vadd.f32 %v4449, %v4475
        %v4482 = vadd.f32 %v4450, %v4475
        %v4483 = vadd.f32 %v4451, %v4475
        %v4484 = vadd.f32 %v4452, %v4475
        %v4485 = vadd.f32 %v4453, %v4475
        %v4486 = vadd.f32 %v4454, %v4475
        %v4487 = vadd.f32 %v4455, %v4475
        %v4488 = vadd.f32 %v4456, %v4475
        %v4489 = vadd.f32 %v4457, %v4475
        %v4490 = vadd.f32 %v4458, %v4475
        %v4491 = vadd.f32 %v4459, %v4475
        %v4492 = vadd.f32 %v4460, %v4475
        %v4493 = vadd.f32 %v4461, %v4475
        %v4494 = vadd.f32 %v4462, %v4475
        %v4495 = vadd.f32 %v4463, %v4475
        %v4496 = vadd.f32 %v4464, %v4475
        %v4497 = vadd.f32 %v4465, %v4475
        %v4498 = vadd.f32 %v4466, %v4475
        %v4499 = vadd.f32 %v4467, %v4475
        %v4500 = vadd.f32 %v4468, %v4475
        %v4501 = vadd.f32 %v4469, %v4475
        %v4502 = vadd.f32 %v4470, %v4475
        %v4503 = vmax.f32 %v4477, 0.0
        %v4504 = vmax.f32 %v4478, 0.0
        %v4505 = vmax.f32 %v4479, 0.0
        %v4506 = vmax.f32 %v4480, 0.0
        %v4507 = vmax.f32 %v4481, 0.0
        %v4508 = vmax.f32 %v4482, 0.0
        %v4509 = vmax.f32 %v4483, 0.0
        %v4510 = vmax.f32 %v4484, 0.0
        %v4511 = vmax.f32 %v4485, 0.0
        %v4512 = vmax.f32 %v4486, 0.0
        %v4513 = vmax.f32 %v4487, 0.0
        %v4514 = vmax.f32 %v4488, 0.0
        %v4515 = vmax.f32 %v4489, 0.0
        %v4516 = vmax.f32 %v4490, 0.0
        %v4517 = vmax.f32 %v4491, 0.0
        %v4518 = vmax.f32 %v4492, 0.0
        %v4519 = vmax.f32 %v4493, 0.0
        %v4520 = vmax.f32 %v4494, 0.0
        %v4521 = vmax.f32 %v4495, 0.0
        %v4522 = vmax.f32 %v4496, 0.0
        %v4523 = vmax.f32 %v4497, 0.0
        %v4524 = vmax.f32 %v4498, 0.0
        %v4525 = vmax.f32 %v4499, 0.0
        %v4526 = vmax.f32 %v4500, 0.0
        %v4527 = vmax.f32 %v4501, 0.0
        %v4528 = vmax.f32 %v4502, 0.0
        %v4529 = vpack.c.bf16 %v4504, %v4503
        %v4530 = vpack.c.bf16 %v4506, %v4505
        %v4531 = vpack.c.bf16 %v4508, %v4507
        %v4532 = vpack.c.bf16 %v4510, %v4509
        %v4533 = vpack.c.bf16 %v4512, %v4511
        %v4534 = vpack.c.bf16 %v4514, %v4513
        %v4535 = vpack.c.bf16 %v4516, %v4515
        %v4536 = vpack.c.bf16 %v4518, %v4517
        %v4537 = vpack.c.bf16 %v4520, %v4519
        %v4538 = vpack.c.bf16 %v4522, %v4521
        %v4539 = vpack.c.bf16 %v4524, %v4523
        %v4540 = vpack.c.bf16 %v4526, %v4525
        %v4541 = vpack.c.bf16 %v4528, %v4527
        %v4555 = vunpack.c.l.b16 %v4529
        %v4556 = vunpack.c.h.b16 %v4529
        %v4557 = vunpack.c.l.b16 %v4530
        %v4558 = vunpack.c.h.b16 %v4530
        %v4559 = vunpack.c.l.b16 %v4531
        %v4560 = vunpack.c.h.b16 %v4531
        %v4561 = vunpack.c.l.b16 %v4532
        %v4562 = vunpack.c.h.b16 %v4532
        %v4563 = vunpack.c.l.b16 %v4533
        %v4564 = vunpack.c.h.b16 %v4533
        %v4565 = vunpack.c.l.b16 %v4534
        %v4566 = vunpack.c.h.b16 %v4534
        %v4567 = vunpack.c.l.b16 %v4535
        %v4568 = vunpack.c.h.b16 %v4535
        %v4569 = vunpack.c.l.b16 %v4536
        %v4570 = vunpack.c.h.b16 %v4536
        %v4571 = vunpack.c.l.b16 %v4537
        %v4572 = vunpack.c.h.b16 %v4537
        %v4573 = vunpack.c.l.b16 %v4538
        %v4574 = vunpack.c.h.b16 %v4538
        %v4575 = vunpack.c.l.b16 %v4539
        %v4576 = vunpack.c.h.b16 %v4539
        %v4577 = vunpack.c.l.b16 %v4540
        %v4578 = vunpack.c.h.b16 %v4540
        %v4579 = vunpack.c.l.b16 %v4541
        %v4580 = vunpack.c.h.b16 %v4541
        %v4581 = vpack.c.b16 %v4555, %v4555
        %v4582 = vpack.c.b16 %v4556, %v4556
        %v4583 = vpack.c.b16 %v4557, %v4557
        %v4584 = vpack.c.b16 %v4558, %v4558
        %v4585 = vpack.c.b16 %v4559, %v4559
        %v4586 = vpack.c.b16 %v4560, %v4560
        %v4587 = vpack.c.b16 %v4561, %v4561
        %v4588 = vpack.c.b16 %v4562, %v4562
        %v4589 = vpack.c.b16 %v4563, %v4563
        %v4590 = vpack.c.b16 %v4564, %v4564
        %v4591 = vpack.c.b16 %v4565, %v4565
        %v4592 = vpack.c.b16 %v4566, %v4566
        %v4593 = vpack.c.b16 %v4567, %v4567
        %v4594 = vpack.c.b16 %v4568, %v4568
        %v4595 = vpack.c.b16 %v4569, %v4569
        %v4596 = vpack.c.b16 %v4570, %v4570
        %v4597 = vpack.c.b16 %v4571, %v4571
        %v4598 = vpack.c.b16 %v4572, %v4572
        %v4599 = vpack.c.b16 %v4573, %v4573
        %v4600 = vpack.c.b16 %v4574, %v4574
        %v4601 = vpack.c.b16 %v4575, %v4575
        %v4602 = vpack.c.b16 %v4576, %v4576
        %v4603 = vpack.c.b16 %v4577, %v4577
        %v4604 = vpack.c.b16 %v4578, %v4578
        %v4605 = vpack.c.b16 %v4579, %v4579
        %v4606 = vpack.c.b16 %v4580, %v4580
        %4633 = vst [vmem:[#allocation3] sm:$0xf] %v4581
        %4634 = vst [vmem:[#allocation3 + $0x4] sm:$0xf] %v4582
        %4635 = vst [vmem:[#allocation3 + $0x8] sm:$0xf] %v4583
        %4636 = vst [vmem:[#allocation3 + $0xc] sm:$0xf] %v4584
        %4637 = vst [vmem:[#allocation3 + $0x10] sm:$0xf] %v4585
        %4638 = vst [vmem:[#allocation3 + $0x14] sm:$0xf] %v4586
        %4639 = vst [vmem:[#allocation3 + $0x18] sm:$0xf] %v4587
        %4640 = vst [vmem:[#allocation3 + $0x1c] sm:$0xf] %v4588
        %4641 = vst [vmem:[#allocation3 + $0x20] sm:$0xf] %v4589
        %4642 = vst [vmem:[#allocation3 + $0x24] sm:$0xf] %v4590
        %4643 = vst [vmem:[#allocation3 + $0x28] sm:$0xf] %v4591
        %4644 = vst [vmem:[#allocation3 + $0x2c] sm:$0xf] %v4592
        %4645 = vst [vmem:[#allocation3 + $0x30] sm:$0xf] %v4593
        %4646 = vst [vmem:[#allocation3 + $0x34] sm:$0xf] %v4594
        %4647 = vst [vmem:[#allocation3 + $0x38] sm:$0xf] %v4595
        %4648 = vst [vmem:[#allocation3 + $0x3c] sm:$0xf] %v4596
        %4649 = vst [vmem:[#allocation3 + $0x40] sm:$0xf] %v4597
        %4650 = vst [vmem:[#allocation3 + $0x44] sm:$0xf] %v4598
        %4651 = vst [vmem:[#allocation3 + $0x48] sm:$0xf] %v4599
        %4652 = vst [vmem:[#allocation3 + $0x4c] sm:$0xf] %v4600
        %4653 = vst [vmem:[#allocation3 + $0x50] sm:$0xf] %v4601
        %4654 = vst [vmem:[#allocation3 + $0x54] sm:$0xf] %v4602
        %4655 = vst [vmem:[#allocation3 + $0x58] sm:$0xf] %v4603
        %4656 = vst [vmem:[#allocation3 + $0x5c] sm:$0xf] %v4604
        %4657 = vst [vmem:[#allocation3 + $0x60] sm:$0xf] %v4605
        %4658 = vst [vmem:[#allocation3 + $0x64] sm:$0xf] %v4606
        %4659 = vst [vmem:[#allocation3 + $0x68] sm:$0xf] 0
        %4660 = vst [vmem:[#allocation3 + $0x6c] sm:$0xf] 0
        %v4661 = vld [vmem:[%s6] sm:$0x1]
        %v4662 = vld [vmem:[#allocation3] sm:$0xf]
        %v4663 = vld [vmem:[#allocation3 + $0x4] sm:$0xf]
        %v4664 = vld [vmem:[#allocation3 + $0x8] sm:$0xf]
        %v4665 = vld [vmem:[#allocation3 + $0xc] sm:$0xf]
        %v4666 = vld [vmem:[#allocation3 + $0x10] sm:$0xf]
        %v4667 = vld [vmem:[#allocation3 + $0x14] sm:$0xf]
        %v4668 = vld [vmem:[#allocation3 + $0x18] sm:$0xf]
        %v4669 = vld [vmem:[#allocation3 + $0x1c] sm:$0xf]
        %v4670 = vld [vmem:[#allocation3 + $0x20] sm:$0xf]
        %v4671 = vld [vmem:[#allocation3 + $0x24] sm:$0xf]
        %v4672 = vld [vmem:[#allocation3 + $0x28] sm:$0xf]
        %v4673 = vld [vmem:[#allocation3 + $0x2c] sm:$0xf]
        %v4674 = vld [vmem:[#allocation3 + $0x30] sm:$0xf]
        %v4675 = vld [vmem:[#allocation3 + $0x34] sm:$0xf]
        %v4676 = vld [vmem:[#allocation3 + $0x38] sm:$0xf]
        %v4677 = vld [vmem:[#allocation3 + $0x3c] sm:$0xf]
        %v4678 = vld [vmem:[#allocation3 + $0x40] sm:$0xf]
        %v4679 = vld [vmem:[#allocation3 + $0x44] sm:$0xf]
        %v4680 = vld [vmem:[#allocation3 + $0x48] sm:$0xf]
        %v4681 = vld [vmem:[#allocation3 + $0x4c] sm:$0xf]
        %v4682 = vld [vmem:[#allocation3 + $0x50] sm:$0xf]
        %v4683 = vld [vmem:[#allocation3 + $0x54] sm:$0xf]
        %v4684 = vld [vmem:[#allocation3 + $0x58] sm:$0x1]
        %v4707 = vunpack.c.l.b16 %v4662
        %v4708 = vunpack.c.l.b16 %v4663
        %v4709 = vunpack.c.l.b16 %v4664
        %v4710 = vunpack.c.l.b16 %v4665
        %v4711 = vunpack.c.l.b16 %v4666
        %v4712 = vunpack.c.l.b16 %v4667
        %v4713 = vunpack.c.l.b16 %v4668
        %v4714 = vunpack.c.l.b16 %v4669
        %v4715 = vunpack.c.l.b16 %v4670
        %v4716 = vunpack.c.l.b16 %v4671
        %v4717 = vunpack.c.l.b16 %v4672
        %v4718 = vunpack.c.l.b16 %v4673
        %v4719 = vunpack.c.l.b16 %v4674
        %v4720 = vunpack.c.l.b16 %v4675
        %v4721 = vunpack.c.l.b16 %v4676
        %v4722 = vunpack.c.l.b16 %v4677
        %v4723 = vunpack.c.l.b16 %v4678
        %v4724 = vunpack.c.l.b16 %v4679
        %v4725 = vunpack.c.l.b16 %v4680
        %v4726 = vunpack.c.l.b16 %v4681
        %v4727 = vunpack.c.l.b16 %v4682
        %v4728 = vunpack.c.l.b16 %v4683
        %v4729 = vpack.c.b16 %v4708, %v4707
        %v4730 = vpack.c.b16 %v4710, %v4709
        %v4731 = vpack.c.b16 %v4712, %v4711
        %v4732 = vpack.c.b16 %v4714, %v4713
        %v4733 = vpack.c.b16 %v4716, %v4715
        %v4734 = vpack.c.b16 %v4718, %v4717
        %v4735 = vpack.c.b16 %v4720, %v4719
        %v4736 = vpack.c.b16 %v4722, %v4721
        %v4737 = vpack.c.b16 %v4724, %v4723
        %v4738 = vpack.c.b16 %v4726, %v4725
        %v4739 = vpack.c.b16 %v4728, %v4727
        %v4752 = vunpack.c.l.b16 %v4684
        %v4753 = vpack.c.b16 %v4752, %v4752
        %v4755 = vshrl.u32 %v4729, 16
        %v4757 = vshll.u32 %v4729, 16
        %v4759 = vrot.slane %v4757, 1
        %v4760 = vor.u32 %v4755, %v4759
        %v4762 = vshll.u32 %v4730, 16
        %v4764 = vrot.slane %v4762, 1
        %v4765 = vsel %vm2264, %v4760, %v4764
        %v4766 = vshrl.u32 %v4730, 16
        %v4768 = vor.u32 %v4766, %v4764
        %v4770 = vshll.u32 %v4731, 16
        %v4772 = vrot.slane %v4770, 1
        %v4773 = vsel %vm2264, %v4768, %v4772
        %v4774 = vshrl.u32 %v4731, 16
        %v4776 = vor.u32 %v4774, %v4772
        %v4778 = vshll.u32 %v4732, 16
        %v4780 = vrot.slane %v4778, 1
        %v4781 = vsel %vm2264, %v4776, %v4780
        %v4782 = vshrl.u32 %v4732, 16
        %v4784 = vor.u32 %v4782, %v4780
        %v4786 = vshll.u32 %v4733, 16
        %v4788 = vrot.slane %v4786, 1
        %v4789 = vsel %vm2264, %v4784, %v4788
        %v4790 = vshrl.u32 %v4733, 16
        %v4792 = vor.u32 %v4790, %v4788
        %v4794 = vshll.u32 %v4734, 16
        %v4796 = vrot.slane %v4794, 1
        %v4797 = vsel %vm2264, %v4792, %v4796
        %v4798 = vshrl.u32 %v4734, 16
        %v4800 = vor.u32 %v4798, %v4796
        %v4802 = vshll.u32 %v4735, 16
        %v4804 = vrot.slane %v4802, 1
        %v4805 = vsel %vm2264, %v4800, %v4804
        %v4806 = vshrl.u32 %v4735, 16
        %v4808 = vor.u32 %v4806, %v4804
        %v4810 = vshll.u32 %v4736, 16
        %v4812 = vrot.slane %v4810, 1
        %v4813 = vsel %vm2264, %v4808, %v4812
        %v4814 = vshrl.u32 %v4736, 16
        %v4816 = vor.u32 %v4814, %v4812
        %v4818 = vshll.u32 %v4737, 16
        %v4820 = vrot.slane %v4818, 1
        %v4821 = vsel %vm2264, %v4816, %v4820
        %v4822 = vshrl.u32 %v4737, 16
        %v4824 = vor.u32 %v4822, %v4820
        %v4826 = vshll.u32 %v4738, 16
        %v4828 = vrot.slane %v4826, 1
        %v4829 = vsel %vm2264, %v4824, %v4828
        %v4830 = vshrl.u32 %v4738, 16
        %v4832 = vor.u32 %v4830, %v4828
        %v4834 = vshll.u32 %v4739, 16
        %v4836 = vrot.slane %v4834, 1
        %v4837 = vsel %vm2264, %v4832, %v4836
        %v4838 = vshrl.u32 %v4739, 16
        %v4840 = vor.u32 %v4838, %v4836
        %v4842 = vshll.u32 %v4753, 16
        %v4844 = vrot.slane %v4842, 1
        %v4845 = vsel %vm2264, %v4840, %v4844
        %v4857 = vld [vmem:[%s5] sm:$0xf]
        %v4858 = vld [vmem:[%s5 + $0x4] sm:$0xf]
        %v4859 = vld [vmem:[%s5 + $0x8] sm:$0xf]
        %v4860 = vld [vmem:[%s5 + $0xc] sm:$0xf]
        %v4861 = vld [vmem:[%s5 + $0x10] sm:$0xf]
        %v4862 = vld [vmem:[%s5 + $0x14] sm:$0xf]
        %v4863 = vld [vmem:[%s5 + $0x18] sm:$0xf]
        %v4864 = vld [vmem:[%s5 + $0x1c] sm:$0xf]
        %v4865 = vld [vmem:[%s5 + $0x20] sm:$0xf]
        %v4866 = vld [vmem:[%s5 + $0x24] sm:$0xf]
        %v4867 = vld [vmem:[%s5 + $0x28] sm:$0xf]
        %v4868 = vld [vmem:[%s5 + $0x2c] sm:$0xf]
        %v4869 = vld [vmem:[%s5 + $0x30] sm:$0xf]
        %v4870 = vld [vmem:[%s5 + $0x34] sm:$0xf]
        %v4871 = vld [vmem:[%s5 + $0x38] sm:$0xf]
        %v4872 = vld [vmem:[%s5 + $0x3c] sm:$0xf]
        %v4873 = vld [vmem:[%s5 + $0x40] sm:$0xf]
        %v4874 = vld [vmem:[%s5 + $0x44] sm:$0xf]
        %v4875 = vld [vmem:[%s5 + $0x48] sm:$0xf]
        %v4876 = vld [vmem:[%s5 + $0x4c] sm:$0xf]
        %v4877 = vld [vmem:[%s5 + $0x50] sm:$0xf]
        %v4878 = vld [vmem:[%s5 + $0x54] sm:$0xf]
        %v4879 = vld [vmem:[%s5 + $0x58] sm:$0xf]
        %v4880 = vld [vmem:[%s5 + $0x5c] sm:$0xf]
        %v4881 = vld [vmem:[%s5 + $0x60] sm:$0xf]
        %v4882 = vld [vmem:[%s5 + $0x64] sm:$0xf]
        %v4883 = vld [vmem:[%s5 + $0x68] sm:$0xf]
        %v4884 = vld [vmem:[%s5 + $0x6c] sm:$0xf]
        %v4885 = vld [vmem:[%s5 + $0x70] sm:$0xf]
        %v4886 = vld [vmem:[%s5 + $0x74] sm:$0xf]
        %v4887 = vld [vmem:[%s5 + $0x78] sm:$0xf]
        %v4888 = vld [vmem:[%s5 + $0x7c] sm:$0xf]
        %v4889 = vld [vmem:[#allocation3] sm:$0xe]
        %v4890 = vld [vmem:[#allocation3 + $0x58] sm:$0xf]
        %v4891 = vld [vmem:[#allocation3 + $0x5c] sm:$0xf]
        %v4893 = vunpack.c.l.b16 %v4889
        %v4894 = vpack.c.b16 %v4708, %v4893
        %v4897 = vunpack.c.l.b16 %v4890
        %v4898 = vunpack.c.l.b16 %v4891
        %v4899 = vpack.c.b16 %v4898, %v4897
        %v4900 = vrot.slane %v4730, 7
        %v4901 = vrot.slane %v4731, 7
        %v4902 = vsel %vm2429, %v4900, %v4901
        %v4903 = vrot.slane %v4732, 7
        %v4904 = vsel %vm2429, %v4901, %v4903
        %v4905 = vrot.slane %v4733, 7
        %v4906 = vsel %vm2429, %v4903, %v4905
        %v4907 = vrot.slane %v4734, 7
        %v4908 = vsel %vm2429, %v4905, %v4907
        %v4909 = vrot.slane %v4735, 7
        %v4910 = vsel %vm2429, %v4907, %v4909
        %v4911 = vrot.slane %v4736, 7
        %v4912 = vsel %vm2429, %v4909, %v4911
        %v4913 = vrot.slane %v4737, 7
        %v4914 = vsel %vm2429, %v4911, %v4913
        %v4915 = vrot.slane %v4738, 7
        %v4916 = vsel %vm2429, %v4913, %v4915
        %v4917 = vrot.slane %v4739, 7
        %v4918 = vsel %vm2429, %v4915, %v4917
        %v4919 = vrot.slane %v4899, 7
        %v4920 = vsel %vm2429, %v4917, %v4919
        %s4921 = scalar_lea.vmem %s5, 128
        %v4922 = vld [vmem:[%s4921] sm:$0xf]
        %v4923 = vld [vmem:[%s4921 + $0x4] sm:$0xf]
        %v4924 = vld [vmem:[%s4921 + $0x8] sm:$0xf]
        %v4925 = vld [vmem:[%s4921 + $0xc] sm:$0xf]
        %v4926 = vld [vmem:[%s4921 + $0x10] sm:$0xf]
        %v4927 = vld [vmem:[%s4921 + $0x14] sm:$0xf]
        %v4928 = vld [vmem:[%s4921 + $0x18] sm:$0xf]
        %v4929 = vld [vmem:[%s4921 + $0x1c] sm:$0xf]
        %v4930 = vld [vmem:[%s4921 + $0x20] sm:$0xf]
        %v4931 = vld [vmem:[%s4921 + $0x24] sm:$0xf]
        %v4932 = vld [vmem:[%s4921 + $0x28] sm:$0xf]
        %v4933 = vld [vmem:[%s4921 + $0x2c] sm:$0xf]
        %v4934 = vld [vmem:[%s4921 + $0x30] sm:$0xf]
        %v4935 = vld [vmem:[%s4921 + $0x34] sm:$0xf]
        %v4936 = vld [vmem:[%s4921 + $0x38] sm:$0xf]
        %v4937 = vld [vmem:[%s4921 + $0x3c] sm:$0xf]
        %v4938 = vld [vmem:[%s4921 + $0x40] sm:$0xf]
        %v4939 = vld [vmem:[%s4921 + $0x44] sm:$0xf]
        %v4940 = vld [vmem:[%s4921 + $0x48] sm:$0xf]
        %v4941 = vld [vmem:[%s4921 + $0x4c] sm:$0xf]
        %v4942 = vld [vmem:[%s4921 + $0x50] sm:$0xf]
        %v4943 = vld [vmem:[%s4921 + $0x54] sm:$0xf]
        %v4944 = vld [vmem:[%s4921 + $0x58] sm:$0xf]
        %v4945 = vld [vmem:[%s4921 + $0x5c] sm:$0xf]
        %v4946 = vld [vmem:[%s4921 + $0x60] sm:$0xf]
        %v4947 = vld [vmem:[%s4921 + $0x64] sm:$0xf]
        %v4948 = vld [vmem:[%s4921 + $0x68] sm:$0xf]
        %v4949 = vld [vmem:[%s4921 + $0x6c] sm:$0xf]
        %v4950 = vld [vmem:[%s4921 + $0x70] sm:$0xf]
        %v4951 = vld [vmem:[%s4921 + $0x74] sm:$0xf]
        %v4952 = vld [vmem:[%s4921 + $0x78] sm:$0xf]
        %v4953 = vld [vmem:[%s4921 + $0x7c] sm:$0xf]
        %v4954 = vrot.slane %v4894, 1
        %v4955 = vrot.slane %v4730, 1
        %v4956 = vsel %vm2488, %v4954, %v4955
        %v4957 = vrot.slane %v4900, 1
        %v4958 = vrot.slane %v4902, 1
        %v4959 = vsel %vm2488, %v4957, %v4958
        %v4960 = vrot.slane %v4731, 1
        %v4961 = vsel %vm2488, %v4955, %v4960
        %v4962 = vrot.slane %v4904, 1
        %v4963 = vsel %vm2488, %v4958, %v4962
        %v4964 = vrot.slane %v4732, 1
        %v4965 = vsel %vm2488, %v4960, %v4964
        %v4966 = vrot.slane %v4906, 1
        %v4967 = vsel %vm2488, %v4962, %v4966
        %v4968 = vrot.slane %v4733, 1
        %v4969 = vsel %vm2488, %v4964, %v4968
        %v4970 = vrot.slane %v4908, 1
        %v4971 = vsel %vm2488, %v4966, %v4970
        %v4972 = vrot.slane %v4734, 1
        %v4973 = vsel %vm2488, %v4968, %v4972
        %v4974 = vrot.slane %v4910, 1
        %v4975 = vsel %vm2488, %v4970, %v4974
        %v4976 = vrot.slane %v4735, 1
        %v4977 = vsel %vm2488, %v4972, %v4976
        %v4978 = vrot.slane %v4912, 1
        %v4979 = vsel %vm2488, %v4974, %v4978
        %v4980 = vrot.slane %v4736, 1
        %v4981 = vsel %vm2488, %v4976, %v4980
        %v4982 = vrot.slane %v4914, 1
        %v4983 = vsel %vm2488, %v4978, %v4982
        %v4984 = vrot.slane %v4737, 1
        %v4985 = vsel %vm2488, %v4980, %v4984
        %v4986 = vrot.slane %v4916, 1
        %v4987 = vsel %vm2488, %v4982, %v4986
        %v4988 = vrot.slane %v4738, 1
        %v4989 = vsel %vm2488, %v4984, %v4988
        %v4990 = vrot.slane %v4918, 1
        %v4991 = vsel %vm2488, %v4986, %v4990
        %v4992 = vrot.slane %v4739, 1
        %v4993 = vsel %vm2488, %v4988, %v4992
        %v4994 = vrot.slane %v4920, 1
        %v4995 = vsel %vm2488, %v4990, %v4994
        %v4996 = vrot.slane %v4753, 1
        %v4997 = vsel %vm2488, %v4992, %v4996
        %v4998 = vrot.slane %v4919, 1
        %v4999 = vsel %vm2488, %v4994, %v4998
        %v5054 = vunpack.c.l.b16 %v4922
        %v5055 = vunpack.c.l.b16 %v4923
        %v5056 = vunpack.c.l.b16 %v4924
        %v5057 = vunpack.c.l.b16 %v4925
        %v5058 = vunpack.c.l.b16 %v4926
        %v5059 = vunpack.c.l.b16 %v4927
        %v5060 = vunpack.c.l.b16 %v4928
        %v5061 = vunpack.c.l.b16 %v4929
        %v5062 = vunpack.c.l.b16 %v4930
        %v5063 = vunpack.c.l.b16 %v4931
        %v5064 = vunpack.c.l.b16 %v4932
        %v5065 = vunpack.c.l.b16 %v4933
        %v5066 = vunpack.c.l.b16 %v4934
        %v5067 = vunpack.c.l.b16 %v4935
        %v5068 = vunpack.c.l.b16 %v4936
        %v5069 = vunpack.c.l.b16 %v4937
        %v5070 = vunpack.c.l.b16 %v4938
        %v5071 = vunpack.c.l.b16 %v4939
        %v5072 = vunpack.c.l.b16 %v4940
        %v5073 = vunpack.c.l.b16 %v4941
        %v5074 = vunpack.c.l.b16 %v4942
        %v5075 = vunpack.c.l.b16 %v4943
        %v5076 = vunpack.c.l.b16 %v4944
        %v5077 = vunpack.c.l.b16 %v4945
        %v5078 = vunpack.c.l.b16 %v4946
        %v5079 = vunpack.c.l.b16 %v4947
        %v5080 = vunpack.c.l.b16 %v4948
        %v5081 = vunpack.c.l.b16 %v4949
        %v5082 = vunpack.c.l.b16 %v4950
        %v5083 = vunpack.c.l.b16 %v4951
        %v5084 = vunpack.c.l.b16 %v4952
        %v5085 = vunpack.c.l.b16 %v4953
        %v5086 = vpack.c.b16 %v5055, %v5054
        %v5087 = vpack.c.b16 %v5057, %v5056
        %v5088 = vpack.c.b16 %v5059, %v5058
        %v5089 = vpack.c.b16 %v5061, %v5060
        %v5090 = vpack.c.b16 %v5063, %v5062
        %v5091 = vpack.c.b16 %v5065, %v5064
        %v5092 = vpack.c.b16 %v5067, %v5066
        %v5093 = vpack.c.b16 %v5069, %v5068
        %v5094 = vpack.c.b16 %v5071, %v5070
        %v5095 = vpack.c.b16 %v5073, %v5072
        %v5096 = vpack.c.b16 %v5075, %v5074
        %v5097 = vpack.c.b16 %v5077, %v5076
        %v5098 = vpack.c.b16 %v5079, %v5078
        %v5099 = vpack.c.b16 %v5081, %v5080
        %v5100 = vpack.c.b16 %v5083, %v5082
        %v5101 = vpack.c.b16 %v5085, %v5084
        %5118 = vmatprep.subr.bf16.mxu0 0
        %5119 = vmatpush1.bf16.msra.mxu0 %v5093
        %5120 = vmatprep.subr.bf16.mxu0 0
        %5121 = vmatpush1.bf16.msra.mxu0 %v5092
        %5122 = vmatprep.subr.bf16.mxu0 0
        %5123 = vmatpush1.bf16.msra.mxu0 %v5091
        %5124 = vmatprep.subr.bf16.mxu0 0
        %5125 = vmatpush1.bf16.msra.mxu0 %v5090
        %5126 = vmatprep.subr.bf16.mxu0 0
        %5127 = vmatpush1.bf16.msra.mxu0 %v5089
        %5128 = vmatprep.subr.bf16.mxu0 0
        %5129 = vmatpush1.bf16.msra.mxu0 %v5088
        %5130 = vmatprep.subr.bf16.mxu0 0
        %5131 = vmatpush1.bf16.msra.mxu0 %v5087
        %5132 = vmatprep.subr.bf16.mxu0 0
        %5133 = vmatpush1.bf16.msra.mxu0 %v5086
        %5134 = vmatprep.subr.bf16.mxu0 0
        %5135 = vmatpush2.bf16.msra.mxu0 %v5101
        %5136 = vmatprep.subr.bf16.mxu0 0
        %5137 = vmatpush2.bf16.msra.mxu0 %v5100
        %5138 = vmatprep.subr.bf16.mxu0 0
        %5139 = vmatpush2.bf16.msra.mxu0 %v5099
        %5140 = vmatprep.subr.bf16.mxu0 0
        %5141 = vmatpush2.bf16.msra.mxu0 %v5098
        %5142 = vmatprep.subr.bf16.mxu0 0
        %5143 = vmatpush2.bf16.msra.mxu0 %v5097
        %5144 = vmatprep.subr.bf16.mxu0 0
        %5145 = vmatpush2.bf16.msra.mxu0 %v5096
        %5146 = vmatprep.subr.bf16.mxu0 0
        %5147 = vmatpush2.bf16.msra.mxu0 %v5095
        %5148 = vmatprep.subr.bf16.mxu0 0
        %5149 = vmatpush2.bf16.msra.mxu0 %v5094
        %5150 = vmatprep.mubr.bf16.mxu0 %v4959
        %5151 = vmatmul.mubr.bf16.gmra.mxu0 %v4956
        %v5152 = vpop.f32.mrf.mxu0
        %v5153 = vadd.f32 0.0, %v5152
        %v5154 = vpop.f32.mrf.mxu0
        %v5155 = vpop.f32.mrf.mxu0
        %v5156 = vadd.f32 0.0, %v5155
        %v5157 = vpop.f32.mrf.mxu0
        %5158 = vmatprep.mubr.bf16.mxu0 %v4963
        %5159 = vmatmul.mubr.bf16.gmra.mxu0 %v4961
        %v5160 = vpop.f32.mrf.mxu0
        %v5161 = vadd.f32 0.0, %v5160
        %v5162 = vpop.f32.mrf.mxu0
        %v5163 = vpop.f32.mrf.mxu0
        %v5164 = vadd.f32 0.0, %v5163
        %v5165 = vpop.f32.mrf.mxu0
        %5166 = vmatprep.mubr.bf16.mxu0 %v4967
        %5167 = vmatmul.mubr.bf16.gmra.mxu0 %v4965
        %v5168 = vpop.f32.mrf.mxu0
        %v5169 = vadd.f32 0.0, %v5168
        %v5170 = vpop.f32.mrf.mxu0
        %v5171 = vpop.f32.mrf.mxu0
        %v5172 = vadd.f32 0.0, %v5171
        %v5173 = vpop.f32.mrf.mxu0
        %5174 = vmatprep.mubr.bf16.mxu0 %v4971
        %5175 = vmatmul.mubr.bf16.gmra.mxu0 %v4969
        %v5176 = vpop.f32.mrf.mxu0
        %v5177 = vadd.f32 0.0, %v5176
        %v5178 = vpop.f32.mrf.mxu0
        %v5179 = vpop.f32.mrf.mxu0
        %v5180 = vadd.f32 0.0, %v5179
        %v5181 = vpop.f32.mrf.mxu0
        %5182 = vmatprep.mubr.bf16.mxu0 %v4975
        %5183 = vmatmul.mubr.bf16.gmra.mxu0 %v4973
        %v5184 = vpop.f32.mrf.mxu0
        %v5185 = vadd.f32 0.0, %v5184
        %v5186 = vpop.f32.mrf.mxu0
        %v5187 = vpop.f32.mrf.mxu0
        %v5188 = vadd.f32 0.0, %v5187
        %v5189 = vpop.f32.mrf.mxu0
        %5190 = vmatprep.mubr.bf16.mxu0 %v4979
        %5191 = vmatmul.mubr.bf16.gmra.mxu0 %v4977
        %v5192 = vpop.f32.mrf.mxu0
        %v5193 = vadd.f32 0.0, %v5192
        %v5194 = vpop.f32.mrf.mxu0
        %v5195 = vpop.f32.mrf.mxu0
        %v5196 = vadd.f32 0.0, %v5195
        %v5197 = vpop.f32.mrf.mxu0
        %5198 = vmatprep.mubr.bf16.mxu0 %v4983
        %5199 = vmatmul.mubr.bf16.gmra.mxu0 %v4981
        %v5200 = vpop.f32.mrf.mxu0
        %v5201 = vadd.f32 0.0, %v5200
        %v5202 = vpop.f32.mrf.mxu0
        %v5203 = vpop.f32.mrf.mxu0
        %v5204 = vadd.f32 0.0, %v5203
        %v5205 = vpop.f32.mrf.mxu0
        %5206 = vmatprep.mubr.bf16.mxu0 %v4987
        %5207 = vmatmul.mubr.bf16.gmra.mxu0 %v4985
        %v5208 = vpop.f32.mrf.mxu0
        %v5209 = vadd.f32 0.0, %v5208
        %v5210 = vpop.f32.mrf.mxu0
        %v5211 = vpop.f32.mrf.mxu0
        %v5212 = vadd.f32 0.0, %v5211
        %v5213 = vpop.f32.mrf.mxu0
        %5214 = vmatprep.mubr.bf16.mxu0 %v4991
        %5215 = vmatmul.mubr.bf16.gmra.mxu0 %v4989
        %v5216 = vpop.f32.mrf.mxu0
        %v5217 = vadd.f32 0.0, %v5216
        %v5218 = vpop.f32.mrf.mxu0
        %v5219 = vpop.f32.mrf.mxu0
        %v5220 = vadd.f32 0.0, %v5219
        %v5221 = vpop.f32.mrf.mxu0
        %5222 = vmatprep.mubr.bf16.mxu0 %v4995
        %5223 = vmatmul.mubr.bf16.gmra.mxu0 %v4993
        %v5224 = vpop.f32.mrf.mxu0
        %v5225 = vadd.f32 0.0, %v5224
        %v5226 = vpop.f32.mrf.mxu0
        %v5227 = vpop.f32.mrf.mxu0
        %v5228 = vadd.f32 0.0, %v5227
        %v5229 = vpop.f32.mrf.mxu0
        %5230 = vmatprep.mubr.bf16.mxu0 %v4999
        %5231 = vmatmul.mubr.bf16.gmra.mxu0 %v4997
        %v5232 = vpop.f32.mrf.mxu0
        %v5233 = vpop.f32.mrf.mxu0
        %v5234 = vpop.f32.mrf.mxu0
        %v5235 = vpop.f32.mrf.mxu0
        %5236 = vdwg.mxu0
        %v5269 = vunpack.c.l.b16 %v4857
        %v5270 = vunpack.c.l.b16 %v4858
        %v5271 = vunpack.c.l.b16 %v4859
        %v5272 = vunpack.c.l.b16 %v4860
        %v5273 = vunpack.c.l.b16 %v4861
        %v5274 = vunpack.c.l.b16 %v4862
        %v5275 = vunpack.c.l.b16 %v4863
        %v5276 = vunpack.c.l.b16 %v4864
        %v5277 = vunpack.c.l.b16 %v4865
        %v5278 = vunpack.c.l.b16 %v4866
        %v5279 = vunpack.c.l.b16 %v4867
        %v5280 = vunpack.c.l.b16 %v4868
        %v5281 = vunpack.c.l.b16 %v4869
        %v5282 = vunpack.c.l.b16 %v4870
        %v5283 = vunpack.c.l.b16 %v4871
        %v5284 = vunpack.c.l.b16 %v4872
        %v5285 = vunpack.c.l.b16 %v4873
        %v5286 = vunpack.c.l.b16 %v4874
        %v5287 = vunpack.c.l.b16 %v4875
        %v5288 = vunpack.c.l.b16 %v4876
        %v5289 = vunpack.c.l.b16 %v4877
        %v5290 = vunpack.c.l.b16 %v4878
        %v5291 = vunpack.c.l.b16 %v4879
        %v5292 = vunpack.c.l.b16 %v4880
        %v5293 = vunpack.c.l.b16 %v4881
        %v5294 = vunpack.c.l.b16 %v4882
        %v5295 = vunpack.c.l.b16 %v4883
        %v5296 = vunpack.c.l.b16 %v4884
        %v5297 = vunpack.c.l.b16 %v4885
        %v5298 = vunpack.c.l.b16 %v4886
        %v5299 = vunpack.c.l.b16 %v4887
        %v5300 = vunpack.c.l.b16 %v4888
        %v5301 = vpack.c.b16 %v5270, %v5269
        %v5302 = vpack.c.b16 %v5272, %v5271
        %v5303 = vpack.c.b16 %v5274, %v5273
        %v5304 = vpack.c.b16 %v5276, %v5275
        %v5305 = vpack.c.b16 %v5278, %v5277
        %v5306 = vpack.c.b16 %v5280, %v5279
        %v5307 = vpack.c.b16 %v5282, %v5281
        %v5308 = vpack.c.b16 %v5284, %v5283
        %v5309 = vpack.c.b16 %v5286, %v5285
        %v5310 = vpack.c.b16 %v5288, %v5287
        %v5311 = vpack.c.b16 %v5290, %v5289
        %v5312 = vpack.c.b16 %v5292, %v5291
        %v5313 = vpack.c.b16 %v5294, %v5293
        %v5314 = vpack.c.b16 %v5296, %v5295
        %v5315 = vpack.c.b16 %v5298, %v5297
        %v5316 = vpack.c.b16 %v5300, %v5299
        %5333 = vmatprep.subr.bf16.mxu0 0
        %5334 = vmatpush1.bf16.msra.mxu0 %v5308
        %5335 = vmatprep.subr.bf16.mxu0 0
        %5336 = vmatpush1.bf16.msra.mxu0 %v5307
        %5337 = vmatprep.subr.bf16.mxu0 0
        %5338 = vmatpush1.bf16.msra.mxu0 %v5306
        %5339 = vmatprep.subr.bf16.mxu0 0
        %5340 = vmatpush1.bf16.msra.mxu0 %v5305
        %5341 = vmatprep.subr.bf16.mxu0 0
        %5342 = vmatpush1.bf16.msra.mxu0 %v5304
        %5343 = vmatprep.subr.bf16.mxu0 0
        %5344 = vmatpush1.bf16.msra.mxu0 %v5303
        %5345 = vmatprep.subr.bf16.mxu0 0
        %5346 = vmatpush1.bf16.msra.mxu0 %v5302
        %5347 = vmatprep.subr.bf16.mxu0 0
        %5348 = vmatpush1.bf16.msra.mxu0 %v5301
        %5349 = vmatprep.subr.bf16.mxu0 0
        %5350 = vmatpush2.bf16.msra.mxu0 %v5316
        %5351 = vmatprep.subr.bf16.mxu0 0
        %5352 = vmatpush2.bf16.msra.mxu0 %v5315
        %5353 = vmatprep.subr.bf16.mxu0 0
        %5354 = vmatpush2.bf16.msra.mxu0 %v5314
        %5355 = vmatprep.subr.bf16.mxu0 0
        %5356 = vmatpush2.bf16.msra.mxu0 %v5313
        %5357 = vmatprep.subr.bf16.mxu0 0
        %5358 = vmatpush2.bf16.msra.mxu0 %v5312
        %5359 = vmatprep.subr.bf16.mxu0 0
        %5360 = vmatpush2.bf16.msra.mxu0 %v5311
        %5361 = vmatprep.subr.bf16.mxu0 0
        %5362 = vmatpush2.bf16.msra.mxu0 %v5310
        %5363 = vmatprep.subr.bf16.mxu0 0
        %5364 = vmatpush2.bf16.msra.mxu0 %v5309
        %5365 = vmatprep.mubr.bf16.mxu0 %v4765
        %5366 = vmatmul.mubr.bf16.gmra.mxu0 %v4729
        %v5367 = vpop.f32.mrf.mxu0
        %v5368 = vadd.f32 %v5153, %v5367
        %v5369 = vpop.f32.mrf.mxu0
        %v5370 = vpop.f32.mrf.mxu0
        %v5371 = vadd.f32 %v5156, %v5370
        %v5372 = vpop.f32.mrf.mxu0
        %5373 = vmatprep.mubr.bf16.mxu0 %v4773
        %5374 = vmatmul.mubr.bf16.gmra.mxu0 %v4730
        %v5375 = vpop.f32.mrf.mxu0
        %v5376 = vadd.f32 %v5161, %v5375
        %v5377 = vpop.f32.mrf.mxu0
        %v5378 = vpop.f32.mrf.mxu0
        %v5379 = vadd.f32 %v5164, %v5378
        %v5380 = vpop.f32.mrf.mxu0
        %5381 = vmatprep.mubr.bf16.mxu0 %v4781
        %5382 = vmatmul.mubr.bf16.gmra.mxu0 %v4731
        %v5383 = vpop.f32.mrf.mxu0
        %v5384 = vadd.f32 %v5169, %v5383
        %v5385 = vpop.f32.mrf.mxu0
        %v5386 = vpop.f32.mrf.mxu0
        %v5387 = vadd.f32 %v5172, %v5386
        %v5388 = vpop.f32.mrf.mxu0
        %5389 = vmatprep.mubr.bf16.mxu0 %v4789
        %5390 = vmatmul.mubr.bf16.gmra.mxu0 %v4732
        %v5391 = vpop.f32.mrf.mxu0
        %v5392 = vadd.f32 %v5177, %v5391
        %v5393 = vpop.f32.mrf.mxu0
        %v5394 = vpop.f32.mrf.mxu0
        %v5395 = vadd.f32 %v5180, %v5394
        %v5396 = vpop.f32.mrf.mxu0
        %5397 = vmatprep.mubr.bf16.mxu0 %v4797
        %5398 = vmatmul.mubr.bf16.gmra.mxu0 %v4733
        %v5399 = vpop.f32.mrf.mxu0
        %v5400 = vadd.f32 %v5185, %v5399
        %v5401 = vpop.f32.mrf.mxu0
        %v5402 = vpop.f32.mrf.mxu0
        %v5403 = vadd.f32 %v5188, %v5402
        %v5404 = vpop.f32.mrf.mxu0
        %5405 = vmatprep.mubr.bf16.mxu0 %v4805
        %5406 = vmatmul.mubr.bf16.gmra.mxu0 %v4734
        %v5407 = vpop.f32.mrf.mxu0
        %v5408 = vadd.f32 %v5193, %v5407
        %v5409 = vpop.f32.mrf.mxu0
        %v5410 = vpop.f32.mrf.mxu0
        %v5411 = vadd.f32 %v5196, %v5410
        %v5412 = vpop.f32.mrf.mxu0
        %5413 = vmatprep.mubr.bf16.mxu0 %v4813
        %5414 = vmatmul.mubr.bf16.gmra.mxu0 %v4735
        %v5415 = vpop.f32.mrf.mxu0
        %v5416 = vadd.f32 %v5201, %v5415
        %v5417 = vpop.f32.mrf.mxu0
        %v5418 = vpop.f32.mrf.mxu0
        %v5419 = vadd.f32 %v5204, %v5418
        %v5420 = vpop.f32.mrf.mxu0
        %5421 = vmatprep.mubr.bf16.mxu0 %v4821
        %5422 = vmatmul.mubr.bf16.gmra.mxu0 %v4736
        %v5423 = vpop.f32.mrf.mxu0
        %v5424 = vadd.f32 %v5209, %v5423
        %v5425 = vpop.f32.mrf.mxu0
        %v5426 = vpop.f32.mrf.mxu0
        %v5427 = vadd.f32 %v5212, %v5426
        %v5428 = vpop.f32.mrf.mxu0
        %5429 = vmatprep.mubr.bf16.mxu0 %v4829
        %5430 = vmatmul.mubr.bf16.gmra.mxu0 %v4737
        %v5431 = vpop.f32.mrf.mxu0
        %v5432 = vadd.f32 %v5217, %v5431
        %v5433 = vpop.f32.mrf.mxu0
        %v5434 = vpop.f32.mrf.mxu0
        %v5435 = vadd.f32 %v5220, %v5434
        %v5436 = vpop.f32.mrf.mxu0
        %5437 = vmatprep.mubr.bf16.mxu0 %v4837
        %5438 = vmatmul.mubr.bf16.gmra.mxu0 %v4738
        %v5439 = vpop.f32.mrf.mxu0
        %v5440 = vadd.f32 %v5225, %v5439
        %v5441 = vpop.f32.mrf.mxu0
        %v5442 = vpop.f32.mrf.mxu0
        %v5443 = vadd.f32 %v5228, %v5442
        %v5444 = vpop.f32.mrf.mxu0
        %5445 = vmatprep.mubr.bf16.mxu0 %v4845
        %5446 = vmatmul.mubr.bf16.gmra.mxu0 %v4739
        %v5447 = vpop.f32.mrf.mxu0
        %v5448 = vpop.f32.mrf.mxu0
        %v5449 = vpop.f32.mrf.mxu0
        %v5450 = vpop.f32.mrf.mxu0
        %5451 = vdwg.mxu0
        %v5452 = vld [vmem:[#allocation3 + $0x8] sm:$0xf]
        %v5453 = vld [vmem:[#allocation3 + $0xc] sm:$0xf]
        %v5454 = vld [vmem:[#allocation3 + $0x10] sm:$0xf]
        %v5455 = vld [vmem:[#allocation3 + $0x14] sm:$0xf]
        %v5456 = vld [vmem:[#allocation3 + $0x18] sm:$0xf]
        %v5457 = vld [vmem:[#allocation3 + $0x1c] sm:$0xf]
        %v5458 = vld [vmem:[#allocation3 + $0x20] sm:$0xf]
        %v5459 = vld [vmem:[#allocation3 + $0x24] sm:$0xf]
        %v5460 = vld [vmem:[#allocation3 + $0x28] sm:$0xf]
        %v5461 = vld [vmem:[#allocation3 + $0x2c] sm:$0xf]
        %v5462 = vld [vmem:[#allocation3 + $0x30] sm:$0xf]
        %v5463 = vld [vmem:[#allocation3 + $0x34] sm:$0xf]
        %v5464 = vld [vmem:[#allocation3 + $0x38] sm:$0xf]
        %v5465 = vld [vmem:[#allocation3 + $0x3c] sm:$0xf]
        %v5466 = vld [vmem:[#allocation3 + $0x40] sm:$0xf]
        %v5467 = vld [vmem:[#allocation3 + $0x44] sm:$0xf]
        %v5468 = vld [vmem:[#allocation3 + $0x48] sm:$0xf]
        %v5469 = vld [vmem:[#allocation3 + $0x4c] sm:$0xf]
        %v5470 = vld [vmem:[#allocation3 + $0x50] sm:$0xf]
        %v5471 = vld [vmem:[#allocation3 + $0x54] sm:$0xf]
        %v5472 = vld [vmem:[#allocation3 + $0x58] sm:$0xf]
        %v5473 = vld [vmem:[#allocation3 + $0x5c] sm:$0xf]
        %v5474 = vld [vmem:[#allocation3 + $0x60] sm:$0x1]
        %v5475 = vld [vmem:[#allocation3 + $0x8] sm:$0xe]
        %v5499 = vunpack.c.l.b16 %v5452
        %v5500 = vunpack.c.l.b16 %v5453
        %v5501 = vunpack.c.l.b16 %v5454
        %v5502 = vunpack.c.l.b16 %v5455
        %v5503 = vunpack.c.l.b16 %v5456
        %v5504 = vunpack.c.l.b16 %v5457
        %v5505 = vunpack.c.l.b16 %v5458
        %v5506 = vunpack.c.l.b16 %v5459
        %v5507 = vunpack.c.l.b16 %v5460
        %v5508 = vunpack.c.l.b16 %v5461
        %v5509 = vunpack.c.l.b16 %v5462
        %v5510 = vunpack.c.l.b16 %v5463
        %v5511 = vunpack.c.l.b16 %v5464
        %v5512 = vunpack.c.l.b16 %v5465
        %v5513 = vunpack.c.l.b16 %v5466
        %v5514 = vunpack.c.l.b16 %v5467
        %v5515 = vunpack.c.l.b16 %v5468
        %v5516 = vunpack.c.l.b16 %v5469
        %v5517 = vunpack.c.l.b16 %v5470
        %v5518 = vunpack.c.l.b16 %v5471
        %v5519 = vunpack.c.l.b16 %v5472
        %v5520 = vunpack.c.l.b16 %v5473
        %v5521 = vunpack.c.l.b16 %v5474
        %v5522 = vpack.c.b16 %v5500, %v5499
        %v5523 = vpack.c.b16 %v5502, %v5501
        %v5524 = vpack.c.b16 %v5504, %v5503
        %v5525 = vpack.c.b16 %v5506, %v5505
        %v5526 = vpack.c.b16 %v5508, %v5507
        %v5527 = vpack.c.b16 %v5510, %v5509
        %v5528 = vpack.c.b16 %v5512, %v5511
        %v5529 = vpack.c.b16 %v5514, %v5513
        %v5530 = vpack.c.b16 %v5516, %v5515
        %v5531 = vpack.c.b16 %v5518, %v5517
        %v5532 = vpack.c.b16 %v5520, %v5519
        %v5533 = vpack.c.b16 %v5521, %v5521
        %v5535 = vunpack.c.l.b16 %v5475
        %v5536 = vpack.c.b16 %v5500, %v5535
        %v5538 = vshrl.u32 %v5536, 16
        %v5540 = vshll.u32 %v5536, 16
        %v5542 = vrot.slane %v5540, 1
        %v5543 = vor.u32 %v5538, %v5542
        %v5545 = vshll.u32 %v5523, 16
        %v5547 = vrot.slane %v5545, 1
        %v5548 = vsel %vm2264, %v5543, %v5547
        %v5549 = vshrl.u32 %v5523, 16
        %v5551 = vor.u32 %v5549, %v5547
        %v5553 = vshll.u32 %v5524, 16
        %v5555 = vrot.slane %v5553, 1
        %v5556 = vsel %vm2264, %v5551, %v5555
        %v5557 = vshrl.u32 %v5524, 16
        %v5559 = vor.u32 %v5557, %v5555
        %v5561 = vshll.u32 %v5525, 16
        %v5563 = vrot.slane %v5561, 1
        %v5564 = vsel %vm2264, %v5559, %v5563
        %v5565 = vshrl.u32 %v5525, 16
        %v5567 = vor.u32 %v5565, %v5563
        %v5569 = vshll.u32 %v5526, 16
        %v5571 = vrot.slane %v5569, 1
        %v5572 = vsel %vm2264, %v5567, %v5571
        %v5573 = vshrl.u32 %v5526, 16
        %v5575 = vor.u32 %v5573, %v5571
        %v5577 = vshll.u32 %v5527, 16
        %v5579 = vrot.slane %v5577, 1
        %v5580 = vsel %vm2264, %v5575, %v5579
        %v5581 = vshrl.u32 %v5527, 16
        %v5583 = vor.u32 %v5581, %v5579
        %v5585 = vshll.u32 %v5528, 16
        %v5587 = vrot.slane %v5585, 1
        %v5588 = vsel %vm2264, %v5583, %v5587
        %v5589 = vshrl.u32 %v5528, 16
        %v5591 = vor.u32 %v5589, %v5587
        %v5593 = vshll.u32 %v5529, 16
        %v5595 = vrot.slane %v5593, 1
        %v5596 = vsel %vm2264, %v5591, %v5595
        %v5597 = vshrl.u32 %v5529, 16
        %v5599 = vor.u32 %v5597, %v5595
        %v5601 = vshll.u32 %v5530, 16
        %v5603 = vrot.slane %v5601, 1
        %v5604 = vsel %vm2264, %v5599, %v5603
        %v5605 = vshrl.u32 %v5530, 16
        %v5607 = vor.u32 %v5605, %v5603
        %v5609 = vshll.u32 %v5531, 16
        %v5611 = vrot.slane %v5609, 1
        %v5612 = vsel %vm2264, %v5607, %v5611
        %v5613 = vshrl.u32 %v5531, 16
        %v5615 = vor.u32 %v5613, %v5611
        %v5617 = vshll.u32 %v5532, 16
        %v5619 = vrot.slane %v5617, 1
        %v5620 = vsel %vm2264, %v5615, %v5619
        %v5621 = vshrl.u32 %v5532, 16
        %v5623 = vor.u32 %v5621, %v5619
        %v5625 = vshll.u32 %v5533, 16
        %v5627 = vrot.slane %v5625, 1
        %v5628 = vsel %vm2264, %v5623, %v5627
        %v5629 = vshrl.u32 %v5533, 16
        %s5631 = scalar_lea.vmem %s5, 256
        %v5632 = vld [vmem:[%s5631] sm:$0xf]
        %v5633 = vld [vmem:[%s5631 + $0x4] sm:$0xf]
        %v5634 = vld [vmem:[%s5631 + $0x8] sm:$0xf]
        %v5635 = vld [vmem:[%s5631 + $0xc] sm:$0xf]
        %v5636 = vld [vmem:[%s5631 + $0x10] sm:$0xf]
        %v5637 = vld [vmem:[%s5631 + $0x14] sm:$0xf]
        %v5638 = vld [vmem:[%s5631 + $0x18] sm:$0xf]
        %v5639 = vld [vmem:[%s5631 + $0x1c] sm:$0xf]
        %v5640 = vld [vmem:[%s5631 + $0x20] sm:$0xf]
        %v5641 = vld [vmem:[%s5631 + $0x24] sm:$0xf]
        %v5642 = vld [vmem:[%s5631 + $0x28] sm:$0xf]
        %v5643 = vld [vmem:[%s5631 + $0x2c] sm:$0xf]
        %v5644 = vld [vmem:[%s5631 + $0x30] sm:$0xf]
        %v5645 = vld [vmem:[%s5631 + $0x34] sm:$0xf]
        %v5646 = vld [vmem:[%s5631 + $0x38] sm:$0xf]
        %v5647 = vld [vmem:[%s5631 + $0x3c] sm:$0xf]
        %v5648 = vld [vmem:[%s5631 + $0x40] sm:$0xf]
        %v5649 = vld [vmem:[%s5631 + $0x44] sm:$0xf]
        %v5650 = vld [vmem:[%s5631 + $0x48] sm:$0xf]
        %v5651 = vld [vmem:[%s5631 + $0x4c] sm:$0xf]
        %v5652 = vld [vmem:[%s5631 + $0x50] sm:$0xf]
        %v5653 = vld [vmem:[%s5631 + $0x54] sm:$0xf]
        %v5654 = vld [vmem:[%s5631 + $0x58] sm:$0xf]
        %v5655 = vld [vmem:[%s5631 + $0x5c] sm:$0xf]
        %v5656 = vld [vmem:[%s5631 + $0x60] sm:$0xf]
        %v5657 = vld [vmem:[%s5631 + $0x64] sm:$0xf]
        %v5658 = vld [vmem:[%s5631 + $0x68] sm:$0xf]
        %v5659 = vld [vmem:[%s5631 + $0x6c] sm:$0xf]
        %v5660 = vld [vmem:[%s5631 + $0x70] sm:$0xf]
        %v5661 = vld [vmem:[%s5631 + $0x74] sm:$0xf]
        %v5662 = vld [vmem:[%s5631 + $0x78] sm:$0xf]
        %v5663 = vld [vmem:[%s5631 + $0x7c] sm:$0xf]
        %v5665 = vshrl.u32 %v5522, 16
        %v5667 = vshll.u32 %v5522, 16
        %v5669 = vrot.slane %v5667, 1
        %v5670 = vor.u32 %v5665, %v5669
        %v5671 = vsel %vm2264, %v5670, %v5547
        %v5673 = vshrl.u32 %v5548, 16
        %v5675 = vshll.u32 %v5548, 16
        %v5677 = vrot.slane %v5675, 1
        %v5678 = vor.u32 %v5673, %v5677
        %v5680 = vshll.u32 %v5556, 16
        %v5682 = vrot.slane %v5680, 1
        %v5683 = vsel %vm2264, %v5678, %v5682
        %v5684 = vshrl.u32 %v5556, 16
        %v5686 = vor.u32 %v5684, %v5682
        %v5688 = vshll.u32 %v5564, 16
        %v5690 = vrot.slane %v5688, 1
        %v5691 = vsel %vm2264, %v5686, %v5690
        %v5692 = vshrl.u32 %v5564, 16
        %v5694 = vor.u32 %v5692, %v5690
        %v5696 = vshll.u32 %v5572, 16
        %v5698 = vrot.slane %v5696, 1
        %v5699 = vsel %vm2264, %v5694, %v5698
        %v5700 = vshrl.u32 %v5572, 16
        %v5702 = vor.u32 %v5700, %v5698
        %v5704 = vshll.u32 %v5580, 16
        %v5706 = vrot.slane %v5704, 1
        %v5707 = vsel %vm2264, %v5702, %v5706
        %v5708 = vshrl.u32 %v5580, 16
        %v5710 = vor.u32 %v5708, %v5706
        %v5712 = vshll.u32 %v5588, 16
        %v5714 = vrot.slane %v5712, 1
        %v5715 = vsel %vm2264, %v5710, %v5714
        %v5716 = vshrl.u32 %v5588, 16
        %v5718 = vor.u32 %v5716, %v5714
        %v5720 = vshll.u32 %v5596, 16
        %v5722 = vrot.slane %v5720, 1
        %v5723 = vsel %vm2264, %v5718, %v5722
        %v5724 = vshrl.u32 %v5596, 16
        %v5726 = vor.u32 %v5724, %v5722
        %v5728 = vshll.u32 %v5604, 16
        %v5730 = vrot.slane %v5728, 1
        %v5731 = vsel %vm2264, %v5726, %v5730
        %v5732 = vshrl.u32 %v5604, 16
        %v5734 = vor.u32 %v5732, %v5730
        %v5736 = vshll.u32 %v5612, 16
        %v5738 = vrot.slane %v5736, 1
        %v5739 = vsel %vm2264, %v5734, %v5738
        %v5740 = vshrl.u32 %v5612, 16
        %v5742 = vor.u32 %v5740, %v5738
        %v5744 = vshll.u32 %v5620, 16
        %v5746 = vrot.slane %v5744, 1
        %v5747 = vsel %vm2264, %v5742, %v5746
        %v5748 = vshrl.u32 %v5620, 16
        %v5750 = vor.u32 %v5748, %v5746
        %v5752 = vshll.u32 %v5628, 16
        %v5754 = vrot.slane %v5752, 1
        %v5755 = vsel %vm2264, %v5750, %v5754
        %v5756 = vshrl.u32 %v5628, 16
        %v5758 = vor.u32 %v5756, %v5754
        %v5760 = vshll.u32 %v5629, 16
        %v5762 = vrot.slane %v5760, 1
        %v5763 = vsel %vm2264, %v5758, %v5762
        %v5818 = vunpack.c.l.b16 %v5632
        %v5819 = vunpack.c.l.b16 %v5633
        %v5820 = vunpack.c.l.b16 %v5634
        %v5821 = vunpack.c.l.b16 %v5635
        %v5822 = vunpack.c.l.b16 %v5636
        %v5823 = vunpack.c.l.b16 %v5637
        %v5824 = vunpack.c.l.b16 %v5638
        %v5825 = vunpack.c.l.b16 %v5639
        %v5826 = vunpack.c.l.b16 %v5640
        %v5827 = vunpack.c.l.b16 %v5641
        %v5828 = vunpack.c.l.b16 %v5642
        %v5829 = vunpack.c.l.b16 %v5643
        %v5830 = vunpack.c.l.b16 %v5644
        %v5831 = vunpack.c.l.b16 %v5645
        %v5832 = vunpack.c.l.b16 %v5646
        %v5833 = vunpack.c.l.b16 %v5647
        %v5834 = vunpack.c.l.b16 %v5648
        %v5835 = vunpack.c.l.b16 %v5649
        %v5836 = vunpack.c.l.b16 %v5650
        %v5837 = vunpack.c.l.b16 %v5651
        %v5838 = vunpack.c.l.b16 %v5652
        %v5839 = vunpack.c.l.b16 %v5653
        %v5840 = vunpack.c.l.b16 %v5654
        %v5841 = vunpack.c.l.b16 %v5655
        %v5842 = vunpack.c.l.b16 %v5656
        %v5843 = vunpack.c.l.b16 %v5657
        %v5844 = vunpack.c.l.b16 %v5658
        %v5845 = vunpack.c.l.b16 %v5659
        %v5846 = vunpack.c.l.b16 %v5660
        %v5847 = vunpack.c.l.b16 %v5661
        %v5848 = vunpack.c.l.b16 %v5662
        %v5849 = vunpack.c.l.b16 %v5663
        %v5850 = vpack.c.b16 %v5819, %v5818
        %v5851 = vpack.c.b16 %v5821, %v5820
        %v5852 = vpack.c.b16 %v5823, %v5822
        %v5853 = vpack.c.b16 %v5825, %v5824
        %v5854 = vpack.c.b16 %v5827, %v5826
        %v5855 = vpack.c.b16 %v5829, %v5828
        %v5856 = vpack.c.b16 %v5831, %v5830
        %v5857 = vpack.c.b16 %v5833, %v5832
        %v5858 = vpack.c.b16 %v5835, %v5834
        %v5859 = vpack.c.b16 %v5837, %v5836
        %v5860 = vpack.c.b16 %v5839, %v5838
        %v5861 = vpack.c.b16 %v5841, %v5840
        %v5862 = vpack.c.b16 %v5843, %v5842
        %v5863 = vpack.c.b16 %v5845, %v5844
        %v5864 = vpack.c.b16 %v5847, %v5846
        %v5865 = vpack.c.b16 %v5849, %v5848
        %5882 = vmatprep.subr.bf16.mxu0 0
        %5883 = vmatpush1.bf16.msra.mxu0 %v5857
        %5884 = vmatprep.subr.bf16.mxu0 0
        %5885 = vmatpush1.bf16.msra.mxu0 %v5856
        %5886 = vmatprep.subr.bf16.mxu0 0
        %5887 = vmatpush1.bf16.msra.mxu0 %v5855
        %5888 = vmatprep.subr.bf16.mxu0 0
        %5889 = vmatpush1.bf16.msra.mxu0 %v5854
        %5890 = vmatprep.subr.bf16.mxu0 0
        %5891 = vmatpush1.bf16.msra.mxu0 %v5853
        %5892 = vmatprep.subr.bf16.mxu0 0
        %5893 = vmatpush1.bf16.msra.mxu0 %v5852
        %5894 = vmatprep.subr.bf16.mxu0 0
        %5895 = vmatpush1.bf16.msra.mxu0 %v5851
        %5896 = vmatprep.subr.bf16.mxu0 0
        %5897 = vmatpush1.bf16.msra.mxu0 %v5850
        %5898 = vmatprep.subr.bf16.mxu0 0
        %5899 = vmatpush2.bf16.msra.mxu0 %v5865
        %5900 = vmatprep.subr.bf16.mxu0 0
        %5901 = vmatpush2.bf16.msra.mxu0 %v5864
        %5902 = vmatprep.subr.bf16.mxu0 0
        %5903 = vmatpush2.bf16.msra.mxu0 %v5863
        %5904 = vmatprep.subr.bf16.mxu0 0
        %5905 = vmatpush2.bf16.msra.mxu0 %v5862
        %5906 = vmatprep.subr.bf16.mxu0 0
        %5907 = vmatpush2.bf16.msra.mxu0 %v5861
        %5908 = vmatprep.subr.bf16.mxu0 0
        %5909 = vmatpush2.bf16.msra.mxu0 %v5860
        %5910 = vmatprep.subr.bf16.mxu0 0
        %5911 = vmatpush2.bf16.msra.mxu0 %v5859
        %5912 = vmatprep.subr.bf16.mxu0 0
        %5913 = vmatpush2.bf16.msra.mxu0 %v5858
        %5914 = vmatprep.mubr.bf16.mxu0 %v5683
        %5915 = vmatmul.mubr.bf16.gmra.mxu0 %v5671
        %v5916 = vpop.f32.mrf.mxu0
        %v5917 = vadd.f32 0.0, %v5916
        %v5918 = vpop.f32.mrf.mxu0
        %v5919 = vpop.f32.mrf.mxu0
        %v5920 = vadd.f32 0.0, %v5919
        %v5921 = vpop.f32.mrf.mxu0
        %5922 = vmatprep.mubr.bf16.mxu0 %v5691
        %5923 = vmatmul.mubr.bf16.gmra.mxu0 %v5556
        %v5924 = vpop.f32.mrf.mxu0
        %v5925 = vadd.f32 0.0, %v5924
        %v5926 = vpop.f32.mrf.mxu0
        %v5927 = vpop.f32.mrf.mxu0
        %v5928 = vadd.f32 0.0, %v5927
        %v5929 = vpop.f32.mrf.mxu0
        %5930 = vmatprep.mubr.bf16.mxu0 %v5699
        %5931 = vmatmul.mubr.bf16.gmra.mxu0 %v5564
        %v5932 = vpop.f32.mrf.mxu0
        %v5933 = vadd.f32 0.0, %v5932
        %v5934 = vpop.f32.mrf.mxu0
        %v5935 = vpop.f32.mrf.mxu0
        %v5936 = vadd.f32 0.0, %v5935
        %v5937 = vpop.f32.mrf.mxu0
        %5938 = vmatprep.mubr.bf16.mxu0 %v5707
        %5939 = vmatmul.mubr.bf16.gmra.mxu0 %v5572
        %v5940 = vpop.f32.mrf.mxu0
        %v5941 = vadd.f32 0.0, %v5940
        %v5942 = vpop.f32.mrf.mxu0
        %v5943 = vpop.f32.mrf.mxu0
        %v5944 = vadd.f32 0.0, %v5943
        %v5945 = vpop.f32.mrf.mxu0
        %5946 = vmatprep.mubr.bf16.mxu0 %v5715
        %5947 = vmatmul.mubr.bf16.gmra.mxu0 %v5580
        %v5948 = vpop.f32.mrf.mxu0
        %v5949 = vadd.f32 0.0, %v5948
        %v5950 = vpop.f32.mrf.mxu0
        %v5951 = vpop.f32.mrf.mxu0
        %v5952 = vadd.f32 0.0, %v5951
        %v5953 = vpop.f32.mrf.mxu0
        %5954 = vmatprep.mubr.bf16.mxu0 %v5723
        %5955 = vmatmul.mubr.bf16.gmra.mxu0 %v5588
        %v5956 = vpop.f32.mrf.mxu0
        %v5957 = vadd.f32 0.0, %v5956
        %v5958 = vpop.f32.mrf.mxu0
        %v5959 = vpop.f32.mrf.mxu0
        %v5960 = vadd.f32 0.0, %v5959
        %v5961 = vpop.f32.mrf.mxu0
        %5962 = vmatprep.mubr.bf16.mxu0 %v5731
        %5963 = vmatmul.mubr.bf16.gmra.mxu0 %v5596
        %v5964 = vpop.f32.mrf.mxu0
        %v5965 = vadd.f32 0.0, %v5964
        %v5966 = vpop.f32.mrf.mxu0
        %v5967 = vpop.f32.mrf.mxu0
        %v5968 = vadd.f32 0.0, %v5967
        %v5969 = vpop.f32.mrf.mxu0
        %5970 = vmatprep.mubr.bf16.mxu0 %v5739
        %5971 = vmatmul.mubr.bf16.gmra.mxu0 %v5604
        %v5972 = vpop.f32.mrf.mxu0
        %v5973 = vadd.f32 0.0, %v5972
        %v5974 = vpop.f32.mrf.mxu0
        %v5975 = vpop.f32.mrf.mxu0
        %v5976 = vadd.f32 0.0, %v5975
        %v5977 = vpop.f32.mrf.mxu0
        %5978 = vmatprep.mubr.bf16.mxu0 %v5747
        %5979 = vmatmul.mubr.bf16.gmra.mxu0 %v5612
        %v5980 = vpop.f32.mrf.mxu0
        %v5981 = vadd.f32 0.0, %v5980
        %v5982 = vpop.f32.mrf.mxu0
        %v5983 = vpop.f32.mrf.mxu0
        %v5984 = vadd.f32 0.0, %v5983
        %v5985 = vpop.f32.mrf.mxu0
        %5986 = vmatprep.mubr.bf16.mxu0 %v5755
        %5987 = vmatmul.mubr.bf16.gmra.mxu0 %v5620
        %v5988 = vpop.f32.mrf.mxu0
        %v5989 = vadd.f32 0.0, %v5988
        %v5990 = vpop.f32.mrf.mxu0
        %v5991 = vpop.f32.mrf.mxu0
        %v5992 = vadd.f32 0.0, %v5991
        %v5993 = vpop.f32.mrf.mxu0
        %5994 = vmatprep.mubr.bf16.mxu0 %v5763
        %5995 = vmatmul.mubr.bf16.gmra.mxu0 %v5628
        %v5996 = vpop.f32.mrf.mxu0
        %v5997 = vpop.f32.mrf.mxu0
        %v5998 = vpop.f32.mrf.mxu0
        %v5999 = vpop.f32.mrf.mxu0
        %6000 = vdwg.mxu0
        %v6001 = vadd.f32 %v5368, %v5917
        %v6002 = vadd.f32 %v5371, %v5920
        %v6003 = vadd.f32 %v5376, %v5925
        %v6004 = vadd.f32 %v5379, %v5928
        %v6005 = vadd.f32 %v5384, %v5933
        %v6006 = vadd.f32 %v5387, %v5936
        %v6007 = vadd.f32 %v5392, %v5941
        %v6008 = vadd.f32 %v5395, %v5944
        %v6009 = vadd.f32 %v5400, %v5949
        %v6010 = vadd.f32 %v5403, %v5952
        %v6011 = vadd.f32 %v5408, %v5957
        %v6012 = vadd.f32 %v5411, %v5960
        %v6013 = vadd.f32 %v5416, %v5965
        %v6014 = vadd.f32 %v5419, %v5968
        %v6015 = vadd.f32 %v5424, %v5973
        %v6016 = vadd.f32 %v5427, %v5976
        %v6017 = vadd.f32 %v5432, %v5981
        %v6018 = vadd.f32 %v5435, %v5984
        %v6019 = vadd.f32 %v5440, %v5989
        %v6020 = vadd.f32 %v5443, %v5992
        %v6021 = vld [vmem:[#allocation3 + $0x10] sm:$0xf]
        %v6022 = vld [vmem:[#allocation3 + $0x14] sm:$0xf]
        %v6023 = vld [vmem:[#allocation3 + $0x18] sm:$0xf]
        %v6024 = vld [vmem:[#allocation3 + $0x1c] sm:$0xf]
        %v6025 = vld [vmem:[#allocation3 + $0x20] sm:$0xf]
        %v6026 = vld [vmem:[#allocation3 + $0x24] sm:$0xf]
        %v6027 = vld [vmem:[#allocation3 + $0x28] sm:$0xf]
        %v6028 = vld [vmem:[#allocation3 + $0x2c] sm:$0xf]
        %v6029 = vld [vmem:[#allocation3 + $0x30] sm:$0xf]
        %v6030 = vld [vmem:[#allocation3 + $0x34] sm:$0xf]
        %v6031 = vld [vmem:[#allocation3 + $0x38] sm:$0xf]
        %v6032 = vld [vmem:[#allocation3 + $0x3c] sm:$0xf]
        %v6033 = vld [vmem:[#allocation3 + $0x40] sm:$0xf]
        %v6034 = vld [vmem:[#allocation3 + $0x44] sm:$0xf]
        %v6035 = vld [vmem:[#allocation3 + $0x48] sm:$0xf]
        %v6036 = vld [vmem:[#allocation3 + $0x4c] sm:$0xf]
        %v6037 = vld [vmem:[#allocation3 + $0x50] sm:$0xf]
        %v6038 = vld [vmem:[#allocation3 + $0x54] sm:$0xf]
        %v6039 = vld [vmem:[#allocation3 + $0x58] sm:$0xf]
        %v6040 = vld [vmem:[#allocation3 + $0x5c] sm:$0xf]
        %v6041 = vld [vmem:[#allocation3 + $0x60] sm:$0xf]
        %v6042 = vld [vmem:[#allocation3 + $0x64] sm:$0xf]
        %v6043 = vld [vmem:[#allocation3 + $0x68] sm:$0x1]
        %v6066 = vunpack.c.l.b16 %v6021
        %v6067 = vunpack.c.l.b16 %v6022
        %v6068 = vunpack.c.l.b16 %v6023
        %v6069 = vunpack.c.l.b16 %v6024
        %v6070 = vunpack.c.l.b16 %v6025
        %v6071 = vunpack.c.l.b16 %v6026
        %v6072 = vunpack.c.l.b16 %v6027
        %v6073 = vunpack.c.l.b16 %v6028
        %v6074 = vunpack.c.l.b16 %v6029
        %v6075 = vunpack.c.l.b16 %v6030
        %v6076 = vunpack.c.l.b16 %v6031
        %v6077 = vunpack.c.l.b16 %v6032
        %v6078 = vunpack.c.l.b16 %v6033
        %v6079 = vunpack.c.l.b16 %v6034
        %v6080 = vunpack.c.l.b16 %v6035
        %v6081 = vunpack.c.l.b16 %v6036
        %v6082 = vunpack.c.l.b16 %v6037
        %v6083 = vunpack.c.l.b16 %v6038
        %v6084 = vunpack.c.l.b16 %v6039
        %v6085 = vunpack.c.l.b16 %v6040
        %v6086 = vunpack.c.l.b16 %v6041
        %v6087 = vunpack.c.l.b16 %v6042
        %v6088 = vpack.c.b16 %v6067, %v6066
        %v6089 = vpack.c.b16 %v6069, %v6068
        %v6090 = vpack.c.b16 %v6071, %v6070
        %v6091 = vpack.c.b16 %v6073, %v6072
        %v6092 = vpack.c.b16 %v6075, %v6074
        %v6093 = vpack.c.b16 %v6077, %v6076
        %v6094 = vpack.c.b16 %v6079, %v6078
        %v6095 = vpack.c.b16 %v6081, %v6080
        %v6096 = vpack.c.b16 %v6083, %v6082
        %v6097 = vpack.c.b16 %v6085, %v6084
        %v6098 = vpack.c.b16 %v6087, %v6086
        %v6111 = vunpack.c.l.b16 %v6043
        %v6112 = vpack.c.b16 %v6111, %v6111
        %v6114 = vshrl.u32 %v6088, 16
        %v6116 = vshll.u32 %v6088, 16
        %v6118 = vrot.slane %v6116, 1
        %v6119 = vor.u32 %v6114, %v6118
        %v6121 = vshll.u32 %v6089, 16
        %v6123 = vrot.slane %v6121, 1
        %v6124 = vsel %vm2264, %v6119, %v6123
        %v6125 = vshrl.u32 %v6089, 16
        %v6127 = vor.u32 %v6125, %v6123
        %v6129 = vshll.u32 %v6090, 16
        %v6131 = vrot.slane %v6129, 1
        %v6132 = vsel %vm2264, %v6127, %v6131
        %v6133 = vshrl.u32 %v6090, 16
        %v6135 = vor.u32 %v6133, %v6131
        %v6137 = vshll.u32 %v6091, 16
        %v6139 = vrot.slane %v6137, 1
        %v6140 = vsel %vm2264, %v6135, %v6139
        %v6141 = vshrl.u32 %v6091, 16
        %v6143 = vor.u32 %v6141, %v6139
        %v6145 = vshll.u32 %v6092, 16
        %v6147 = vrot.slane %v6145, 1
        %v6148 = vsel %vm2264, %v6143, %v6147
        %v6149 = vshrl.u32 %v6092, 16
        %v6151 = vor.u32 %v6149, %v6147
        %v6153 = vshll.u32 %v6093, 16
        %v6155 = vrot.slane %v6153, 1
        %v6156 = vsel %vm2264, %v6151, %v6155
        %v6157 = vshrl.u32 %v6093, 16
        %v6159 = vor.u32 %v6157, %v6155
        %v6161 = vshll.u32 %v6094, 16
        %v6163 = vrot.slane %v6161, 1
        %v6164 = vsel %vm2264, %v6159, %v6163
        %v6165 = vshrl.u32 %v6094, 16
        %v6167 = vor.u32 %v6165, %v6163
        %v6169 = vshll.u32 %v6095, 16
        %v6171 = vrot.slane %v6169, 1
        %v6172 = vsel %vm2264, %v6167, %v6171
        %v6173 = vshrl.u32 %v6095, 16
        %v6175 = vor.u32 %v6173, %v6171
        %v6177 = vshll.u32 %v6096, 16
        %v6179 = vrot.slane %v6177, 1
        %v6180 = vsel %vm2264, %v6175, %v6179
        %v6181 = vshrl.u32 %v6096, 16
        %v6183 = vor.u32 %v6181, %v6179
        %v6185 = vshll.u32 %v6097, 16
        %v6187 = vrot.slane %v6185, 1
        %v6188 = vsel %vm2264, %v6183, %v6187
        %v6189 = vshrl.u32 %v6097, 16
        %v6191 = vor.u32 %v6189, %v6187
        %v6193 = vshll.u32 %v6098, 16
        %v6195 = vrot.slane %v6193, 1
        %v6196 = vsel %vm2264, %v6191, %v6195
        %v6197 = vshrl.u32 %v6098, 16
        %v6199 = vor.u32 %v6197, %v6195
        %v6201 = vshll.u32 %v6112, 16
        %v6203 = vrot.slane %v6201, 1
        %v6204 = vsel %vm2264, %v6199, %v6203
        %s6216 = scalar_lea.vmem %s5, 384
        %v6217 = vld [vmem:[%s6216] sm:$0xf]
        %v6218 = vld [vmem:[%s6216 + $0x4] sm:$0xf]
        %v6219 = vld [vmem:[%s6216 + $0x8] sm:$0xf]
        %v6220 = vld [vmem:[%s6216 + $0xc] sm:$0xf]
        %v6221 = vld [vmem:[%s6216 + $0x10] sm:$0xf]
        %v6222 = vld [vmem:[%s6216 + $0x14] sm:$0xf]
        %v6223 = vld [vmem:[%s6216 + $0x18] sm:$0xf]
        %v6224 = vld [vmem:[%s6216 + $0x1c] sm:$0xf]
        %v6225 = vld [vmem:[%s6216 + $0x20] sm:$0xf]
        %v6226 = vld [vmem:[%s6216 + $0x24] sm:$0xf]
        %v6227 = vld [vmem:[%s6216 + $0x28] sm:$0xf]
        %v6228 = vld [vmem:[%s6216 + $0x2c] sm:$0xf]
        %v6229 = vld [vmem:[%s6216 + $0x30] sm:$0xf]
        %v6230 = vld [vmem:[%s6216 + $0x34] sm:$0xf]
        %v6231 = vld [vmem:[%s6216 + $0x38] sm:$0xf]
        %v6232 = vld [vmem:[%s6216 + $0x3c] sm:$0xf]
        %v6233 = vld [vmem:[%s6216 + $0x40] sm:$0xf]
        %v6234 = vld [vmem:[%s6216 + $0x44] sm:$0xf]
        %v6235 = vld [vmem:[%s6216 + $0x48] sm:$0xf]
        %v6236 = vld [vmem:[%s6216 + $0x4c] sm:$0xf]
        %v6237 = vld [vmem:[%s6216 + $0x50] sm:$0xf]
        %v6238 = vld [vmem:[%s6216 + $0x54] sm:$0xf]
        %v6239 = vld [vmem:[%s6216 + $0x58] sm:$0xf]
        %v6240 = vld [vmem:[%s6216 + $0x5c] sm:$0xf]
        %v6241 = vld [vmem:[%s6216 + $0x60] sm:$0xf]
        %v6242 = vld [vmem:[%s6216 + $0x64] sm:$0xf]
        %v6243 = vld [vmem:[%s6216 + $0x68] sm:$0xf]
        %v6244 = vld [vmem:[%s6216 + $0x6c] sm:$0xf]
        %v6245 = vld [vmem:[%s6216 + $0x70] sm:$0xf]
        %v6246 = vld [vmem:[%s6216 + $0x74] sm:$0xf]
        %v6247 = vld [vmem:[%s6216 + $0x78] sm:$0xf]
        %v6248 = vld [vmem:[%s6216 + $0x7c] sm:$0xf]
        %v6281 = vunpack.c.l.b16 %v6217
        %v6282 = vunpack.c.l.b16 %v6218
        %v6283 = vunpack.c.l.b16 %v6219
        %v6284 = vunpack.c.l.b16 %v6220
        %v6285 = vunpack.c.l.b16 %v6221
        %v6286 = vunpack.c.l.b16 %v6222
        %v6287 = vunpack.c.l.b16 %v6223
        %v6288 = vunpack.c.l.b16 %v6224
        %v6289 = vunpack.c.l.b16 %v6225
        %v6290 = vunpack.c.l.b16 %v6226
        %v6291 = vunpack.c.l.b16 %v6227
        %v6292 = vunpack.c.l.b16 %v6228
        %v6293 = vunpack.c.l.b16 %v6229
        %v6294 = vunpack.c.l.b16 %v6230
        %v6295 = vunpack.c.l.b16 %v6231
        %v6296 = vunpack.c.l.b16 %v6232
        %v6297 = vunpack.c.l.b16 %v6233
        %v6298 = vunpack.c.l.b16 %v6234
        %v6299 = vunpack.c.l.b16 %v6235
        %v6300 = vunpack.c.l.b16 %v6236
        %v6301 = vunpack.c.l.b16 %v6237
        %v6302 = vunpack.c.l.b16 %v6238
        %v6303 = vunpack.c.l.b16 %v6239
        %v6304 = vunpack.c.l.b16 %v6240
        %v6305 = vunpack.c.l.b16 %v6241
        %v6306 = vunpack.c.l.b16 %v6242
        %v6307 = vunpack.c.l.b16 %v6243
        %v6308 = vunpack.c.l.b16 %v6244
        %v6309 = vunpack.c.l.b16 %v6245
        %v6310 = vunpack.c.l.b16 %v6246
        %v6311 = vunpack.c.l.b16 %v6247
        %v6312 = vunpack.c.l.b16 %v6248
        %v6313 = vpack.c.b16 %v6282, %v6281
        %v6314 = vpack.c.b16 %v6284, %v6283
        %v6315 = vpack.c.b16 %v6286, %v6285
        %v6316 = vpack.c.b16 %v6288, %v6287
        %v6317 = vpack.c.b16 %v6290, %v6289
        %v6318 = vpack.c.b16 %v6292, %v6291
        %v6319 = vpack.c.b16 %v6294, %v6293
        %v6320 = vpack.c.b16 %v6296, %v6295
        %v6321 = vpack.c.b16 %v6298, %v6297
        %v6322 = vpack.c.b16 %v6300, %v6299
        %v6323 = vpack.c.b16 %v6302, %v6301
        %v6324 = vpack.c.b16 %v6304, %v6303
        %v6325 = vpack.c.b16 %v6306, %v6305
        %v6326 = vpack.c.b16 %v6308, %v6307
        %v6327 = vpack.c.b16 %v6310, %v6309
        %v6328 = vpack.c.b16 %v6312, %v6311
        %6345 = vmatprep.subr.bf16.mxu0 0
        %6346 = vmatpush1.bf16.msra.mxu0 %v6320
        %6347 = vmatprep.subr.bf16.mxu0 0
        %6348 = vmatpush1.bf16.msra.mxu0 %v6319
        %6349 = vmatprep.subr.bf16.mxu0 0
        %6350 = vmatpush1.bf16.msra.mxu0 %v6318
        %6351 = vmatprep.subr.bf16.mxu0 0
        %6352 = vmatpush1.bf16.msra.mxu0 %v6317
        %6353 = vmatprep.subr.bf16.mxu0 0
        %6354 = vmatpush1.bf16.msra.mxu0 %v6316
        %6355 = vmatprep.subr.bf16.mxu0 0
        %6356 = vmatpush1.bf16.msra.mxu0 %v6315
        %6357 = vmatprep.subr.bf16.mxu0 0
        %6358 = vmatpush1.bf16.msra.mxu0 %v6314
        %6359 = vmatprep.subr.bf16.mxu0 0
        %6360 = vmatpush1.bf16.msra.mxu0 %v6313
        %6361 = vmatprep.subr.bf16.mxu0 0
        %6362 = vmatpush2.bf16.msra.mxu0 %v6328
        %6363 = vmatprep.subr.bf16.mxu0 0
        %6364 = vmatpush2.bf16.msra.mxu0 %v6327
        %6365 = vmatprep.subr.bf16.mxu0 0
        %6366 = vmatpush2.bf16.msra.mxu0 %v6326
        %6367 = vmatprep.subr.bf16.mxu0 0
        %6368 = vmatpush2.bf16.msra.mxu0 %v6325
        %6369 = vmatprep.subr.bf16.mxu0 0
        %6370 = vmatpush2.bf16.msra.mxu0 %v6324
        %6371 = vmatprep.subr.bf16.mxu0 0
        %6372 = vmatpush2.bf16.msra.mxu0 %v6323
        %6373 = vmatprep.subr.bf16.mxu0 0
        %6374 = vmatpush2.bf16.msra.mxu0 %v6322
        %6375 = vmatprep.subr.bf16.mxu0 0
        %6376 = vmatpush2.bf16.msra.mxu0 %v6321
        %6377 = vmatprep.mubr.bf16.mxu0 %v6124
        %6378 = vmatmul.mubr.bf16.gmra.mxu0 %v6088
        %v6379 = vpop.f32.mrf.mxu0
        %v6380 = vadd.f32 0.0, %v6379
        %v6381 = vpop.f32.mrf.mxu0
        %v6382 = vpop.f32.mrf.mxu0
        %v6383 = vadd.f32 0.0, %v6382
        %v6384 = vpop.f32.mrf.mxu0
        %6385 = vmatprep.mubr.bf16.mxu0 %v6132
        %6386 = vmatmul.mubr.bf16.gmra.mxu0 %v6089
        %v6387 = vpop.f32.mrf.mxu0
        %v6388 = vadd.f32 0.0, %v6387
        %v6389 = vpop.f32.mrf.mxu0
        %v6390 = vpop.f32.mrf.mxu0
        %v6391 = vadd.f32 0.0, %v6390
        %v6392 = vpop.f32.mrf.mxu0
        %6393 = vmatprep.mubr.bf16.mxu0 %v6140
        %6394 = vmatmul.mubr.bf16.gmra.mxu0 %v6090
        %v6395 = vpop.f32.mrf.mxu0
        %v6396 = vadd.f32 0.0, %v6395
        %v6397 = vpop.f32.mrf.mxu0
        %v6398 = vpop.f32.mrf.mxu0
        %v6399 = vadd.f32 0.0, %v6398
        %v6400 = vpop.f32.mrf.mxu0
        %6401 = vmatprep.mubr.bf16.mxu0 %v6148
        %6402 = vmatmul.mubr.bf16.gmra.mxu0 %v6091
        %v6403 = vpop.f32.mrf.mxu0
        %v6404 = vadd.f32 0.0, %v6403
        %v6405 = vpop.f32.mrf.mxu0
        %v6406 = vpop.f32.mrf.mxu0
        %v6407 = vadd.f32 0.0, %v6406
        %v6408 = vpop.f32.mrf.mxu0
        %6409 = vmatprep.mubr.bf16.mxu0 %v6156
        %6410 = vmatmul.mubr.bf16.gmra.mxu0 %v6092
        %v6411 = vpop.f32.mrf.mxu0
        %v6412 = vadd.f32 0.0, %v6411
        %v6413 = vpop.f32.mrf.mxu0
        %v6414 = vpop.f32.mrf.mxu0
        %v6415 = vadd.f32 0.0, %v6414
        %v6416 = vpop.f32.mrf.mxu0
        %6417 = vmatprep.mubr.bf16.mxu0 %v6164
        %6418 = vmatmul.mubr.bf16.gmra.mxu0 %v6093
        %v6419 = vpop.f32.mrf.mxu0
        %v6420 = vadd.f32 0.0, %v6419
        %v6421 = vpop.f32.mrf.mxu0
        %v6422 = vpop.f32.mrf.mxu0
        %v6423 = vadd.f32 0.0, %v6422
        %v6424 = vpop.f32.mrf.mxu0
        %6425 = vmatprep.mubr.bf16.mxu0 %v6172
        %6426 = vmatmul.mubr.bf16.gmra.mxu0 %v6094
        %v6427 = vpop.f32.mrf.mxu0
        %v6428 = vadd.f32 0.0, %v6427
        %v6429 = vpop.f32.mrf.mxu0
        %v6430 = vpop.f32.mrf.mxu0
        %v6431 = vadd.f32 0.0, %v6430
        %v6432 = vpop.f32.mrf.mxu0
        %6433 = vmatprep.mubr.bf16.mxu0 %v6180
        %6434 = vmatmul.mubr.bf16.gmra.mxu0 %v6095
        %v6435 = vpop.f32.mrf.mxu0
        %v6436 = vadd.f32 0.0, %v6435
        %v6437 = vpop.f32.mrf.mxu0
        %v6438 = vpop.f32.mrf.mxu0
        %v6439 = vadd.f32 0.0, %v6438
        %v6440 = vpop.f32.mrf.mxu0
        %6441 = vmatprep.mubr.bf16.mxu0 %v6188
        %6442 = vmatmul.mubr.bf16.gmra.mxu0 %v6096
        %v6443 = vpop.f32.mrf.mxu0
        %v6444 = vadd.f32 0.0, %v6443
        %v6445 = vpop.f32.mrf.mxu0
        %v6446 = vpop.f32.mrf.mxu0
        %v6447 = vadd.f32 0.0, %v6446
        %v6448 = vpop.f32.mrf.mxu0
        %6449 = vmatprep.mubr.bf16.mxu0 %v6196
        %6450 = vmatmul.mubr.bf16.gmra.mxu0 %v6097
        %v6451 = vpop.f32.mrf.mxu0
        %v6452 = vadd.f32 0.0, %v6451
        %v6453 = vpop.f32.mrf.mxu0
        %v6454 = vpop.f32.mrf.mxu0
        %v6455 = vadd.f32 0.0, %v6454
        %v6456 = vpop.f32.mrf.mxu0
        %6457 = vmatprep.mubr.bf16.mxu0 %v6204
        %6458 = vmatmul.mubr.bf16.gmra.mxu0 %v6098
        %v6459 = vpop.f32.mrf.mxu0
        %v6460 = vpop.f32.mrf.mxu0
        %v6461 = vpop.f32.mrf.mxu0
        %v6462 = vpop.f32.mrf.mxu0
        %6463 = vdwg.mxu0
        %v6464 = vadd.f32 %v6001, %v6380
        %v6465 = vadd.f32 %v6002, %v6383
        %v6466 = vadd.f32 %v6003, %v6388
        %v6467 = vadd.f32 %v6004, %v6391
        %v6468 = vadd.f32 %v6005, %v6396
        %v6469 = vadd.f32 %v6006, %v6399
        %v6470 = vadd.f32 %v6007, %v6404
        %v6471 = vadd.f32 %v6008, %v6407
        %v6472 = vadd.f32 %v6009, %v6412
        %v6473 = vadd.f32 %v6010, %v6415
        %v6474 = vadd.f32 %v6011, %v6420
        %v6475 = vadd.f32 %v6012, %v6423
        %v6476 = vadd.f32 %v6013, %v6428
        %v6477 = vadd.f32 %v6014, %v6431
        %v6478 = vadd.f32 %v6015, %v6436
        %v6479 = vadd.f32 %v6016, %v6439
        %v6480 = vadd.f32 %v6017, %v6444
        %v6481 = vadd.f32 %v6018, %v6447
        %v6482 = vadd.f32 %v6019, %v6452
        %v6483 = vadd.f32 %v6020, %v6455
        %v6484 = vld [vmem:[#allocation3 + $0x10] sm:$0xe]
        %s6485 = scalar_lea.vmem %s5, 512
        %v6486 = vld [vmem:[%s6485] sm:$0xf]
        %v6487 = vld [vmem:[%s6485 + $0x4] sm:$0xf]
        %v6488 = vld [vmem:[%s6485 + $0x8] sm:$0xf]
        %v6489 = vld [vmem:[%s6485 + $0xc] sm:$0xf]
        %v6490 = vld [vmem:[%s6485 + $0x10] sm:$0xf]
        %v6491 = vld [vmem:[%s6485 + $0x14] sm:$0xf]
        %v6492 = vld [vmem:[%s6485 + $0x18] sm:$0xf]
        %v6493 = vld [vmem:[%s6485 + $0x1c] sm:$0xf]
        %v6494 = vld [vmem:[%s6485 + $0x20] sm:$0xf]
        %v6495 = vld [vmem:[%s6485 + $0x24] sm:$0xf]
        %v6496 = vld [vmem:[%s6485 + $0x28] sm:$0xf]
        %v6497 = vld [vmem:[%s6485 + $0x2c] sm:$0xf]
        %v6498 = vld [vmem:[%s6485 + $0x30] sm:$0xf]
        %v6499 = vld [vmem:[%s6485 + $0x34] sm:$0xf]
        %v6500 = vld [vmem:[%s6485 + $0x38] sm:$0xf]
        %v6501 = vld [vmem:[%s6485 + $0x3c] sm:$0xf]
        %v6503 = vunpack.c.l.b16 %v6484
        %v6504 = vpack.c.b16 %v6067, %v6503
        %v6505 = vrot.slane %v6504, 1
        %v6506 = vrot.slane %v6089, 1
        %v6507 = vsel %vm2488, %v6505, %v6506
        %v6508 = vrot.slane %v6090, 1
        %v6509 = vsel %vm2488, %v6506, %v6508
        %v6510 = vrot.slane %v6091, 1
        %v6511 = vsel %vm2488, %v6508, %v6510
        %v6512 = vrot.slane %v6092, 1
        %v6513 = vsel %vm2488, %v6510, %v6512
        %v6514 = vrot.slane %v6093, 1
        %v6515 = vsel %vm2488, %v6512, %v6514
        %v6516 = vrot.slane %v6094, 1
        %v6517 = vsel %vm2488, %v6514, %v6516
        %v6518 = vrot.slane %v6095, 1
        %v6519 = vsel %vm2488, %v6516, %v6518
        %v6520 = vrot.slane %v6096, 1
        %v6521 = vsel %vm2488, %v6518, %v6520
        %v6522 = vrot.slane %v6097, 1
        %v6523 = vsel %vm2488, %v6520, %v6522
        %v6524 = vrot.slane %v6098, 1
        %v6525 = vsel %vm2488, %v6522, %v6524
        %v6526 = vrot.slane %v6112, 1
        %v6527 = vsel %vm2488, %v6524, %v6526
        %v6555 = vunpack.c.l.b16 %v6486
        %v6556 = vunpack.c.l.b16 %v6487
        %v6557 = vunpack.c.l.b16 %v6488
        %v6558 = vunpack.c.l.b16 %v6489
        %v6559 = vunpack.c.l.b16 %v6490
        %v6560 = vunpack.c.l.b16 %v6491
        %v6561 = vunpack.c.l.b16 %v6492
        %v6562 = vunpack.c.l.b16 %v6493
        %v6563 = vunpack.c.l.b16 %v6494
        %v6564 = vunpack.c.l.b16 %v6495
        %v6565 = vunpack.c.l.b16 %v6496
        %v6566 = vunpack.c.l.b16 %v6497
        %v6567 = vunpack.c.l.b16 %v6498
        %v6568 = vunpack.c.l.b16 %v6499
        %v6569 = vunpack.c.l.b16 %v6500
        %v6570 = vunpack.c.l.b16 %v6501
        %v6571 = vpack.c.b16 %v6556, %v6555
        %v6572 = vpack.c.b16 %v6558, %v6557
        %v6573 = vpack.c.b16 %v6560, %v6559
        %v6574 = vpack.c.b16 %v6562, %v6561
        %v6575 = vpack.c.b16 %v6564, %v6563
        %v6576 = vpack.c.b16 %v6566, %v6565
        %v6577 = vpack.c.b16 %v6568, %v6567
        %v6578 = vpack.c.b16 %v6570, %v6569
        %6587 = vmatprep.subr.bf16.mxu0 0
        %6588 = vmatpush1.bf16.msra.mxu0 %v6578
        %6589 = vmatprep.subr.bf16.mxu0 0
        %6590 = vmatpush1.bf16.msra.mxu0 %v6577
        %6591 = vmatprep.subr.bf16.mxu0 0
        %6592 = vmatpush1.bf16.msra.mxu0 %v6576
        %6593 = vmatprep.subr.bf16.mxu0 0
        %6594 = vmatpush1.bf16.msra.mxu0 %v6575
        %6595 = vmatprep.subr.bf16.mxu0 0
        %6596 = vmatpush1.bf16.msra.mxu0 %v6574
        %6597 = vmatprep.subr.bf16.mxu0 0
        %6598 = vmatpush1.bf16.msra.mxu0 %v6573
        %6599 = vmatprep.subr.bf16.mxu0 0
        %6600 = vmatpush1.bf16.msra.mxu0 %v6572
        %6601 = vmatprep.subr.bf16.mxu0 0
        %6602 = vmatpush1.bf16.msra.mxu0 %v6571
        %6603 = vmatprep.subr.bf16.mxu0 0
        %6604 = vmatpush2.bf16.msra.mxu0 0
        %6605 = vmatprep.subr.bf16.mxu0 0
        %6606 = vmatpush2.bf16.msra.mxu0 0
        %6607 = vmatprep.subr.bf16.mxu0 0
        %6608 = vmatpush2.bf16.msra.mxu0 0
        %6609 = vmatprep.subr.bf16.mxu0 0
        %6610 = vmatpush2.bf16.msra.mxu0 0
        %6611 = vmatprep.subr.bf16.mxu0 0
        %6612 = vmatpush2.bf16.msra.mxu0 0
        %6613 = vmatprep.subr.bf16.mxu0 0
        %6614 = vmatpush2.bf16.msra.mxu0 0
        %6615 = vmatprep.subr.bf16.mxu0 0
        %6616 = vmatpush2.bf16.msra.mxu0 0
        %6617 = vmatprep.subr.bf16.mxu0 0
        %6618 = vmatpush2.bf16.msra.mxu0 0
        %6619 = vmatprep.mubr.bf16.mxu0 0
        %6620 = vmatmul.mubr.bf16.gmra.mxu0 %v6507
        %v6621 = vpop.f32.mrf.mxu0
        %v6622 = vadd.f32 0.0, %v6621
        %v6623 = vpop.f32.mrf.mxu0
        %v6624 = vpop.f32.mrf.mxu0
        %v6625 = vadd.f32 0.0, %v6624
        %v6626 = vpop.f32.mrf.mxu0
        %6627 = vmatprep.mubr.bf16.mxu0 0
        %6628 = vmatmul.mubr.bf16.gmra.mxu0 %v6509
        %v6629 = vpop.f32.mrf.mxu0
        %v6630 = vadd.f32 0.0, %v6629
        %v6631 = vpop.f32.mrf.mxu0
        %v6632 = vpop.f32.mrf.mxu0
        %v6633 = vadd.f32 0.0, %v6632
        %v6634 = vpop.f32.mrf.mxu0
        %6635 = vmatprep.mubr.bf16.mxu0 0
        %6636 = vmatmul.mubr.bf16.gmra.mxu0 %v6511
        %v6637 = vpop.f32.mrf.mxu0
        %v6638 = vadd.f32 0.0, %v6637
        %v6639 = vpop.f32.mrf.mxu0
        %v6640 = vpop.f32.mrf.mxu0
        %v6641 = vadd.f32 0.0, %v6640
        %v6642 = vpop.f32.mrf.mxu0
        %6643 = vmatprep.mubr.bf16.mxu0 0
        %6644 = vmatmul.mubr.bf16.gmra.mxu0 %v6513
        %v6645 = vpop.f32.mrf.mxu0
        %v6646 = vadd.f32 0.0, %v6645
        %v6647 = vpop.f32.mrf.mxu0
        %v6648 = vpop.f32.mrf.mxu0
        %v6649 = vadd.f32 0.0, %v6648
        %v6650 = vpop.f32.mrf.mxu0
        %6651 = vmatprep.mubr.bf16.mxu0 0
        %6652 = vmatmul.mubr.bf16.gmra.mxu0 %v6515
        %v6653 = vpop.f32.mrf.mxu0
        %v6654 = vadd.f32 0.0, %v6653
        %v6655 = vpop.f32.mrf.mxu0
        %v6656 = vpop.f32.mrf.mxu0
        %v6657 = vadd.f32 0.0, %v6656
        %v6658 = vpop.f32.mrf.mxu0
        %6659 = vmatprep.mubr.bf16.mxu0 0
        %6660 = vmatmul.mubr.bf16.gmra.mxu0 %v6517
        %v6661 = vpop.f32.mrf.mxu0
        %v6662 = vadd.f32 0.0, %v6661
        %v6663 = vpop.f32.mrf.mxu0
        %v6664 = vpop.f32.mrf.mxu0
        %v6665 = vadd.f32 0.0, %v6664
        %v6666 = vpop.f32.mrf.mxu0
        %6667 = vmatprep.mubr.bf16.mxu0 0
        %6668 = vmatmul.mubr.bf16.gmra.mxu0 %v6519
        %v6669 = vpop.f32.mrf.mxu0
        %v6670 = vadd.f32 0.0, %v6669
        %v6671 = vpop.f32.mrf.mxu0
        %v6672 = vpop.f32.mrf.mxu0
        %v6673 = vadd.f32 0.0, %v6672
        %v6674 = vpop.f32.mrf.mxu0
        %6675 = vmatprep.mubr.bf16.mxu0 0
        %6676 = vmatmul.mubr.bf16.gmra.mxu0 %v6521
        %v6677 = vpop.f32.mrf.mxu0
        %v6678 = vadd.f32 0.0, %v6677
        %v6679 = vpop.f32.mrf.mxu0
        %v6680 = vpop.f32.mrf.mxu0
        %v6681 = vadd.f32 0.0, %v6680
        %v6682 = vpop.f32.mrf.mxu0
        %6683 = vmatprep.mubr.bf16.mxu0 0
        %6684 = vmatmul.mubr.bf16.gmra.mxu0 %v6523
        %v6685 = vpop.f32.mrf.mxu0
        %v6686 = vadd.f32 0.0, %v6685
        %v6687 = vpop.f32.mrf.mxu0
        %v6688 = vpop.f32.mrf.mxu0
        %v6689 = vadd.f32 0.0, %v6688
        %v6690 = vpop.f32.mrf.mxu0
        %6691 = vmatprep.mubr.bf16.mxu0 0
        %6692 = vmatmul.mubr.bf16.gmra.mxu0 %v6525
        %v6693 = vpop.f32.mrf.mxu0
        %v6694 = vadd.f32 0.0, %v6693
        %v6695 = vpop.f32.mrf.mxu0
        %v6696 = vpop.f32.mrf.mxu0
        %v6697 = vadd.f32 0.0, %v6696
        %v6698 = vpop.f32.mrf.mxu0
        %6699 = vmatprep.mubr.bf16.mxu0 0
        %6700 = vmatmul.mubr.bf16.gmra.mxu0 %v6527
        %v6701 = vpop.f32.mrf.mxu0
        %v6702 = vpop.f32.mrf.mxu0
        %v6703 = vpop.f32.mrf.mxu0
        %v6704 = vpop.f32.mrf.mxu0
        %6705 = vdwg.mxu0
        %v6706 = vadd.f32 %v6464, %v6622
        %v6707 = vadd.f32 %v6465, %v6625
        %v6708 = vadd.f32 %v6466, %v6630
        %v6709 = vadd.f32 %v6467, %v6633
        %v6710 = vadd.f32 %v6468, %v6638
        %v6711 = vadd.f32 %v6469, %v6641
        %v6712 = vadd.f32 %v6470, %v6646
        %v6713 = vadd.f32 %v6471, %v6649
        %v6714 = vadd.f32 %v6472, %v6654
        %v6715 = vadd.f32 %v6473, %v6657
        %v6716 = vadd.f32 %v6474, %v6662
        %v6717 = vadd.f32 %v6475, %v6665
        %v6718 = vadd.f32 %v6476, %v6670
        %v6719 = vadd.f32 %v6477, %v6673
        %v6720 = vadd.f32 %v6478, %v6678
        %v6721 = vadd.f32 %v6479, %v6681
        %v6722 = vadd.f32 %v6480, %v6686
        %v6723 = vadd.f32 %v6481, %v6689
        %v6724 = vadd.f32 %v6482, %v6694
        %v6725 = vadd.f32 %v6483, %v6697
        %v6727 = vlaneseq
        %v6728 = vshrl.u32 %v6727, 7
        %v6729 = vsub.s32 0, %v6728
        %v6730 = vrot.slane %v4661, %v6729
        %v6732 = vadd.f32 %v6706, %v6730
        %v6733 = vadd.f32 %v6707, %v6730
        %v6734 = vadd.f32 %v6708, %v6730
        %v6735 = vadd.f32 %v6709, %v6730
        %v6736 = vadd.f32 %v6710, %v6730
        %v6737 = vadd.f32 %v6711, %v6730
        %v6738 = vadd.f32 %v6712, %v6730
        %v6739 = vadd.f32 %v6713, %v6730
        %v6740 = vadd.f32 %v6714, %v6730
        %v6741 = vadd.f32 %v6715, %v6730
        %v6742 = vadd.f32 %v6716, %v6730
        %v6743 = vadd.f32 %v6717, %v6730
        %v6744 = vadd.f32 %v6718, %v6730
        %v6745 = vadd.f32 %v6719, %v6730
        %v6746 = vadd.f32 %v6720, %v6730
        %v6747 = vadd.f32 %v6721, %v6730
        %v6748 = vadd.f32 %v6722, %v6730
        %v6749 = vadd.f32 %v6723, %v6730
        %v6750 = vadd.f32 %v6724, %v6730
        %v6751 = vadd.f32 %v6725, %v6730
        %v6752 = vmax.f32 %v6732, 0.0
        %v6753 = vmax.f32 %v6733, 0.0
        %v6754 = vmax.f32 %v6734, 0.0
        %v6755 = vmax.f32 %v6735, 0.0
        %v6756 = vmax.f32 %v6736, 0.0
        %v6757 = vmax.f32 %v6737, 0.0
        %v6758 = vmax.f32 %v6738, 0.0
        %v6759 = vmax.f32 %v6739, 0.0
        %v6760 = vmax.f32 %v6740, 0.0
        %v6761 = vmax.f32 %v6741, 0.0
        %v6762 = vmax.f32 %v6742, 0.0
        %v6763 = vmax.f32 %v6743, 0.0
        %v6764 = vmax.f32 %v6744, 0.0
        %v6765 = vmax.f32 %v6745, 0.0
        %v6766 = vmax.f32 %v6746, 0.0
        %v6767 = vmax.f32 %v6747, 0.0
        %v6768 = vmax.f32 %v6748, 0.0
        %v6769 = vmax.f32 %v6749, 0.0
        %v6770 = vmax.f32 %v6750, 0.0
        %v6771 = vmax.f32 %v6751, 0.0
        %v6772 = vmax.f32 %v6752, %v6754
        %v6773 = vmax.f32 %v6753, %v6755
        %v6774 = vmax.f32 %v6756, %v6758
        %v6775 = vmax.f32 %v6757, %v6759
        %v6776 = vmax.f32 %v6760, %v6762
        %v6777 = vmax.f32 %v6761, %v6763
        %v6778 = vmax.f32 %v6764, %v6766
        %v6779 = vmax.f32 %v6765, %v6767
        %v6780 = vmax.f32 %v6768, %v6770
        %v6781 = vmax.f32 %v6769, %v6771
        %6782 = vst [vmem:[#allocation5] sm:$0xff] %v6772
        %6783 = vst [vmem:[#allocation5 + $0x8] sm:$0xff] %v6773
        %6784 = vst [vmem:[#allocation5 + $0x10] sm:$0xff] %v6774
        %6785 = vst [vmem:[#allocation5 + $0x18] sm:$0xff] %v6775
        %6786 = vst [vmem:[#allocation5 + $0x20] sm:$0xff] %v6776
        %6787 = vst [vmem:[#allocation5 + $0x28] sm:$0xff] %v6777
        %6788 = vst [vmem:[#allocation5 + $0x30] sm:$0xff] %v6778
        %6789 = vst [vmem:[#allocation5 + $0x38] sm:$0xff] %v6779
        %6790 = vst [vmem:[#allocation5 + $0x40] sm:$0xff] %v6780
        %6791 = vst [vmem:[#allocation5 + $0x48] sm:$0xff] %v6781
        %v6792 = vld [vmem:[#allocation5] ss:$2 sm:$0xff]
        %s6793 = scalar_lea.vmem [#allocation5], 16
        %v6794 = vld [vmem:[%s6793] ss:$2 sm:$0xff]
        %s6795 = scalar_lea.vmem [#allocation5], 32
        %v6796 = vld [vmem:[%s6795] ss:$2 sm:$0xff]
        %s6797 = scalar_lea.vmem [#allocation5], 48
        %v6798 = vld [vmem:[%s6797] ss:$2 sm:$0xff]
        %s6799 = scalar_lea.vmem [#allocation5], 64
        %v6800 = vld [vmem:[%s6799] ss:$2 sm:$0xff]
        %v6801 = vld [vmem:[%s1913] ss:$2 sm:$0xff]
        %v6802 = vld [vmem:[%s1915] ss:$2 sm:$0xff]
        %v6803 = vld [vmem:[%s1917] ss:$2 sm:$0xff]
        %v6804 = vld [vmem:[%s1919] ss:$2 sm:$0xff]
        %v6805 = vld [vmem:[%s1921] ss:$2 sm:$0xff]
        %v6806 = vmax.f32 %v6792, %v6801
        %v6807 = vmax.f32 %v6794, %v6802
        %v6808 = vmax.f32 %v6796, %v6803
        %v6809 = vmax.f32 %v6798, %v6804
        %v6810 = vmax.f32 %v6800, %v6805
        %v6811 = vpack.c.bf16 %v6807, %v6806
        %v6812 = vpack.c.bf16 %v6809, %v6808
        %v6813 = vpack.c.bf16 %v6810, %v6810
        %v6817 = vunpack.c.l.b16 %v6811
        %v6818 = vunpack.c.h.b16 %v6811
        %v6819 = vunpack.c.l.b16 %v6812
        %v6820 = vunpack.c.h.b16 %v6812
        %v6821 = vunpack.c.l.b16 %v6813
        %v6822 = vpack.c.b16 %v6817, %v6817
        %v6823 = vpack.c.b16 %v6818, %v6818
        %v6824 = vpack.c.b16 %v6819, %v6819
        %v6825 = vpack.c.b16 %v6820, %v6820
        %v6826 = vpack.c.b16 %v6821, %v6821
        %6832 = vst [vmem:[#allocation4] sm:$0xf] %v6822
        %6833 = vst [vmem:[#allocation4 + $0x4] sm:$0xf] %v6823
        %6834 = vst [vmem:[#allocation4 + $0x8] sm:$0xf] %v6824
        %6835 = vst [vmem:[#allocation4 + $0xc] sm:$0xf] %v6825
        %6836 = vst [vmem:[#allocation4 + $0x10] sm:$0xf] %v6826
        %6837 = vst [vmem:[#allocation4 + $0x14] sm:$0xf] 0
        %v6838 = vld [vmem:[%s8] sm:$0x1]
        %v6839 = vld [vmem:[#allocation4] sm:$0xf]
        %v6840 = vld [vmem:[#allocation4 + $0x4] sm:$0xf]
        %v6841 = vld [vmem:[#allocation4 + $0x8] sm:$0xf]
        %v6842 = vld [vmem:[#allocation4 + $0xc] sm:$0x1]
        %v6846 = vunpack.c.l.b16 %v6839
        %v6847 = vunpack.c.l.b16 %v6840
        %v6848 = vunpack.c.l.b16 %v6841
        %v6849 = vpack.c.b16 %v6847, %v6846
        %v6850 = vpack.c.b16 %v6848, %v6848
        %v6854 = vunpack.c.l.b16 %v6842
        %v6855 = vpack.c.b16 %v6854, %v6848
        %v6857 = vshrl.u32 %v6849, 16
        %v6859 = vshll.u32 %v6849, 16
        %v6861 = vrot.slane %v6859, 1
        %v6862 = vor.u32 %v6857, %v6861
        %v6864 = vshll.u32 %v6855, 16
        %v6866 = vrot.slane %v6864, 1
        %v6867 = vsel %vm2264, %v6862, %v6866
        %v6868 = vshrl.u32 %v6855, 16
        %v6870 = vor.u32 %v6868, %v6866
        %v6873 = vld [vmem:[%s7] sm:$0xf]
        %v6874 = vld [vmem:[%s7 + $0x4] sm:$0xf]
        %v6875 = vld [vmem:[%s7 + $0x8] sm:$0xf]
        %v6876 = vld [vmem:[%s7 + $0xc] sm:$0xf]
        %v6877 = vld [vmem:[%s7 + $0x10] sm:$0xf]
        %v6878 = vld [vmem:[%s7 + $0x14] sm:$0xf]
        %v6879 = vld [vmem:[%s7 + $0x18] sm:$0xf]
        %v6880 = vld [vmem:[%s7 + $0x1c] sm:$0xf]
        %v6881 = vld [vmem:[%s7 + $0x20] sm:$0xf]
        %v6882 = vld [vmem:[%s7 + $0x24] sm:$0xf]
        %v6883 = vld [vmem:[%s7 + $0x28] sm:$0xf]
        %v6884 = vld [vmem:[%s7 + $0x2c] sm:$0xf]
        %v6885 = vld [vmem:[%s7 + $0x30] sm:$0xf]
        %v6886 = vld [vmem:[%s7 + $0x34] sm:$0xf]
        %v6887 = vld [vmem:[%s7 + $0x38] sm:$0xf]
        %v6888 = vld [vmem:[%s7 + $0x3c] sm:$0xf]
        %v6889 = vld [vmem:[%s7 + $0x40] sm:$0xf]
        %v6890 = vld [vmem:[%s7 + $0x44] sm:$0xf]
        %v6891 = vld [vmem:[%s7 + $0x48] sm:$0xf]
        %v6892 = vld [vmem:[%s7 + $0x4c] sm:$0xf]
        %v6893 = vld [vmem:[%s7 + $0x50] sm:$0xf]
        %v6894 = vld [vmem:[%s7 + $0x54] sm:$0xf]
        %v6895 = vld [vmem:[%s7 + $0x58] sm:$0xf]
        %v6896 = vld [vmem:[%s7 + $0x5c] sm:$0xf]
        %v6897 = vld [vmem:[%s7 + $0x60] sm:$0xf]
        %v6898 = vld [vmem:[%s7 + $0x64] sm:$0xf]
        %v6899 = vld [vmem:[%s7 + $0x68] sm:$0xf]
        %v6900 = vld [vmem:[%s7 + $0x6c] sm:$0xf]
        %v6901 = vld [vmem:[%s7 + $0x70] sm:$0xf]
        %v6902 = vld [vmem:[%s7 + $0x74] sm:$0xf]
        %v6903 = vld [vmem:[%s7 + $0x78] sm:$0xf]
        %v6904 = vld [vmem:[%s7 + $0x7c] sm:$0xf]
        %v6905 = vld [vmem:[#allocation4] sm:$0xe]
        %v6906 = vld [vmem:[#allocation4 + $0xc] sm:$0xf]
        %v6908 = vunpack.c.l.b16 %v6905
        %v6909 = vpack.c.b16 %v6847, %v6908
        %v6911 = vunpack.c.l.b16 %v6906
        %v6912 = vpack.c.b16 %v6848, %v6847
        %v6913 = vpack.c.b16 %v6911, %v6911
        %v6914 = vrot.slane %v6912, 7
        %v6915 = vrot.slane %v6913, 7
        %v6916 = vsel %vm2429, %v6914, %v6915
        %s6917 = scalar_lea.vmem %s7, 128
        %v6918 = vld [vmem:[%s6917] sm:$0xf]
        %v6919 = vld [vmem:[%s6917 + $0x4] sm:$0xf]
        %v6920 = vld [vmem:[%s6917 + $0x8] sm:$0xf]
        %v6921 = vld [vmem:[%s6917 + $0xc] sm:$0xf]
        %v6922 = vld [vmem:[%s6917 + $0x10] sm:$0xf]
        %v6923 = vld [vmem:[%s6917 + $0x14] sm:$0xf]
        %v6924 = vld [vmem:[%s6917 + $0x18] sm:$0xf]
        %v6925 = vld [vmem:[%s6917 + $0x1c] sm:$0xf]
        %v6926 = vld [vmem:[%s6917 + $0x20] sm:$0xf]
        %v6927 = vld [vmem:[%s6917 + $0x24] sm:$0xf]
        %v6928 = vld [vmem:[%s6917 + $0x28] sm:$0xf]
        %v6929 = vld [vmem:[%s6917 + $0x2c] sm:$0xf]
        %v6930 = vld [vmem:[%s6917 + $0x30] sm:$0xf]
        %v6931 = vld [vmem:[%s6917 + $0x34] sm:$0xf]
        %v6932 = vld [vmem:[%s6917 + $0x38] sm:$0xf]
        %v6933 = vld [vmem:[%s6917 + $0x3c] sm:$0xf]
        %v6934 = vld [vmem:[%s6917 + $0x40] sm:$0xf]
        %v6935 = vld [vmem:[%s6917 + $0x44] sm:$0xf]
        %v6936 = vld [vmem:[%s6917 + $0x48] sm:$0xf]
        %v6937 = vld [vmem:[%s6917 + $0x4c] sm:$0xf]
        %v6938 = vld [vmem:[%s6917 + $0x50] sm:$0xf]
        %v6939 = vld [vmem:[%s6917 + $0x54] sm:$0xf]
        %v6940 = vld [vmem:[%s6917 + $0x58] sm:$0xf]
        %v6941 = vld [vmem:[%s6917 + $0x5c] sm:$0xf]
        %v6942 = vld [vmem:[%s6917 + $0x60] sm:$0xf]
        %v6943 = vld [vmem:[%s6917 + $0x64] sm:$0xf]
        %v6944 = vld [vmem:[%s6917 + $0x68] sm:$0xf]
        %v6945 = vld [vmem:[%s6917 + $0x6c] sm:$0xf]
        %v6946 = vld [vmem:[%s6917 + $0x70] sm:$0xf]
        %v6947 = vld [vmem:[%s6917 + $0x74] sm:$0xf]
        %v6948 = vld [vmem:[%s6917 + $0x78] sm:$0xf]
        %v6949 = vld [vmem:[%s6917 + $0x7c] sm:$0xf]
        %v6950 = vrot.slane %v6909, 1
        %v6951 = vrot.slane %v6855, 1
        %v6952 = vsel %vm2488, %v6950, %v6951
        %v6953 = vrot.slane %v6914, 1
        %v6954 = vrot.slane %v6916, 1
        %v6955 = vsel %vm2488, %v6953, %v6954
        %v6992 = vunpack.c.l.b16 %v6918
        %v6993 = vunpack.c.l.b16 %v6919
        %v6994 = vunpack.c.l.b16 %v6920
        %v6995 = vunpack.c.l.b16 %v6921
        %v6996 = vunpack.c.l.b16 %v6922
        %v6997 = vunpack.c.l.b16 %v6923
        %v6998 = vunpack.c.l.b16 %v6924
        %v6999 = vunpack.c.l.b16 %v6925
        %v7000 = vunpack.c.l.b16 %v6926
        %v7001 = vunpack.c.l.b16 %v6927
        %v7002 = vunpack.c.l.b16 %v6928
        %v7003 = vunpack.c.l.b16 %v6929
        %v7004 = vunpack.c.l.b16 %v6930
        %v7005 = vunpack.c.l.b16 %v6931
        %v7006 = vunpack.c.l.b16 %v6932
        %v7007 = vunpack.c.l.b16 %v6933
        %v7008 = vunpack.c.l.b16 %v6934
        %v7009 = vunpack.c.l.b16 %v6935
        %v7010 = vunpack.c.l.b16 %v6936
        %v7011 = vunpack.c.l.b16 %v6937
        %v7012 = vunpack.c.l.b16 %v6938
        %v7013 = vunpack.c.l.b16 %v6939
        %v7014 = vunpack.c.l.b16 %v6940
        %v7015 = vunpack.c.l.b16 %v6941
        %v7016 = vunpack.c.l.b16 %v6942
        %v7017 = vunpack.c.l.b16 %v6943
        %v7018 = vunpack.c.l.b16 %v6944
        %v7019 = vunpack.c.l.b16 %v6945
        %v7020 = vunpack.c.l.b16 %v6946
        %v7021 = vunpack.c.l.b16 %v6947
        %v7022 = vunpack.c.l.b16 %v6948
        %v7023 = vunpack.c.l.b16 %v6949
        %v7024 = vpack.c.b16 %v6993, %v6992
        %v7025 = vpack.c.b16 %v6995, %v6994
        %v7026 = vpack.c.b16 %v6997, %v6996
        %v7027 = vpack.c.b16 %v6999, %v6998
        %v7028 = vpack.c.b16 %v7001, %v7000
        %v7029 = vpack.c.b16 %v7003, %v7002
        %v7030 = vpack.c.b16 %v7005, %v7004
        %v7031 = vpack.c.b16 %v7007, %v7006
        %v7032 = vpack.c.b16 %v7009, %v7008
        %v7033 = vpack.c.b16 %v7011, %v7010
        %v7034 = vpack.c.b16 %v7013, %v7012
        %v7035 = vpack.c.b16 %v7015, %v7014
        %v7036 = vpack.c.b16 %v7017, %v7016
        %v7037 = vpack.c.b16 %v7019, %v7018
        %v7038 = vpack.c.b16 %v7021, %v7020
        %v7039 = vpack.c.b16 %v7023, %v7022
        %7056 = vmatprep.subr.bf16.mxu0 0
        %7057 = vmatpush1.bf16.msra.mxu0 %v7031
        %7058 = vmatprep.subr.bf16.mxu0 0
        %7059 = vmatpush1.bf16.msra.mxu0 %v7030
        %7060 = vmatprep.subr.bf16.mxu0 0
        %7061 = vmatpush1.bf16.msra.mxu0 %v7029
        %7062 = vmatprep.subr.bf16.mxu0 0
        %7063 = vmatpush1.bf16.msra.mxu0 %v7028
        %7064 = vmatprep.subr.bf16.mxu0 0
        %7065 = vmatpush1.bf16.msra.mxu0 %v7027
        %7066 = vmatprep.subr.bf16.mxu0 0
        %7067 = vmatpush1.bf16.msra.mxu0 %v7026
        %7068 = vmatprep.subr.bf16.mxu0 0
        %7069 = vmatpush1.bf16.msra.mxu0 %v7025
        %7070 = vmatprep.subr.bf16.mxu0 0
        %7071 = vmatpush1.bf16.msra.mxu0 %v7024
        %7072 = vmatprep.subr.bf16.mxu0 0
        %7073 = vmatpush2.bf16.msra.mxu0 %v7039
        %7074 = vmatprep.subr.bf16.mxu0 0
        %7075 = vmatpush2.bf16.msra.mxu0 %v7038
        %7076 = vmatprep.subr.bf16.mxu0 0
        %7077 = vmatpush2.bf16.msra.mxu0 %v7037
        %7078 = vmatprep.subr.bf16.mxu0 0
        %7079 = vmatpush2.bf16.msra.mxu0 %v7036
        %7080 = vmatprep.subr.bf16.mxu0 0
        %7081 = vmatpush2.bf16.msra.mxu0 %v7035
        %7082 = vmatprep.subr.bf16.mxu0 0
        %7083 = vmatpush2.bf16.msra.mxu0 %v7034
        %7084 = vmatprep.subr.bf16.mxu0 0
        %7085 = vmatpush2.bf16.msra.mxu0 %v7033
        %7086 = vmatprep.subr.bf16.mxu0 0
        %7087 = vmatpush2.bf16.msra.mxu0 %v7032
        %7088 = vmatprep.mubr.bf16.mxu0 %v6955
        %7089 = vmatmul.mubr.bf16.gmra.mxu0 %v6952
        %v7090 = vpop.f32.mrf.mxu0
        %v7091 = vadd.f32 0.0, %v7090
        %v7092 = vpop.f32.mrf.mxu0
        %v7093 = vpop.f32.mrf.mxu0
        %v7094 = vadd.f32 0.0, %v7093
        %v7095 = vpop.f32.mrf.mxu0
        %7096 = vmatprep.mubr.bf16.mxu0 %v6954
        %7097 = vmatmul.mubr.bf16.gmra.mxu0 %v6951
        %v7098 = vpop.f32.mrf.mxu0
        %v7099 = vpop.f32.mrf.mxu0
        %v7100 = vpop.f32.mrf.mxu0
        %v7101 = vpop.f32.mrf.mxu0
        %7102 = vdwg.mxu0
        %v7135 = vunpack.c.l.b16 %v6873
        %v7136 = vunpack.c.l.b16 %v6874
        %v7137 = vunpack.c.l.b16 %v6875
        %v7138 = vunpack.c.l.b16 %v6876
        %v7139 = vunpack.c.l.b16 %v6877
        %v7140 = vunpack.c.l.b16 %v6878
        %v7141 = vunpack.c.l.b16 %v6879
        %v7142 = vunpack.c.l.b16 %v6880
        %v7143 = vunpack.c.l.b16 %v6881
        %v7144 = vunpack.c.l.b16 %v6882
        %v7145 = vunpack.c.l.b16 %v6883
        %v7146 = vunpack.c.l.b16 %v6884
        %v7147 = vunpack.c.l.b16 %v6885
        %v7148 = vunpack.c.l.b16 %v6886
        %v7149 = vunpack.c.l.b16 %v6887
        %v7150 = vunpack.c.l.b16 %v6888
        %v7151 = vunpack.c.l.b16 %v6889
        %v7152 = vunpack.c.l.b16 %v6890
        %v7153 = vunpack.c.l.b16 %v6891
        %v7154 = vunpack.c.l.b16 %v6892
        %v7155 = vunpack.c.l.b16 %v6893
        %v7156 = vunpack.c.l.b16 %v6894
        %v7157 = vunpack.c.l.b16 %v6895
        %v7158 = vunpack.c.l.b16 %v6896
        %v7159 = vunpack.c.l.b16 %v6897
        %v7160 = vunpack.c.l.b16 %v6898
        %v7161 = vunpack.c.l.b16 %v6899
        %v7162 = vunpack.c.l.b16 %v6900
        %v7163 = vunpack.c.l.b16 %v6901
        %v7164 = vunpack.c.l.b16 %v6902
        %v7165 = vunpack.c.l.b16 %v6903
        %v7166 = vunpack.c.l.b16 %v6904
        %v7167 = vpack.c.b16 %v7136, %v7135
        %v7168 = vpack.c.b16 %v7138, %v7137
        %v7169 = vpack.c.b16 %v7140, %v7139
        %v7170 = vpack.c.b16 %v7142, %v7141
        %v7171 = vpack.c.b16 %v7144, %v7143
        %v7172 = vpack.c.b16 %v7146, %v7145
        %v7173 = vpack.c.b16 %v7148, %v7147
        %v7174 = vpack.c.b16 %v7150, %v7149
        %v7175 = vpack.c.b16 %v7152, %v7151
        %v7176 = vpack.c.b16 %v7154, %v7153
        %v7177 = vpack.c.b16 %v7156, %v7155
        %v7178 = vpack.c.b16 %v7158, %v7157
        %v7179 = vpack.c.b16 %v7160, %v7159
        %v7180 = vpack.c.b16 %v7162, %v7161
        %v7181 = vpack.c.b16 %v7164, %v7163
        %v7182 = vpack.c.b16 %v7166, %v7165
        %7199 = vmatprep.subr.bf16.mxu0 0
        %7200 = vmatpush1.bf16.msra.mxu0 %v7174
        %7201 = vmatprep.subr.bf16.mxu0 0
        %7202 = vmatpush1.bf16.msra.mxu0 %v7173
        %7203 = vmatprep.subr.bf16.mxu0 0
        %7204 = vmatpush1.bf16.msra.mxu0 %v7172
        %7205 = vmatprep.subr.bf16.mxu0 0
        %7206 = vmatpush1.bf16.msra.mxu0 %v7171
        %7207 = vmatprep.subr.bf16.mxu0 0
        %7208 = vmatpush1.bf16.msra.mxu0 %v7170
        %7209 = vmatprep.subr.bf16.mxu0 0
        %7210 = vmatpush1.bf16.msra.mxu0 %v7169
        %7211 = vmatprep.subr.bf16.mxu0 0
        %7212 = vmatpush1.bf16.msra.mxu0 %v7168
        %7213 = vmatprep.subr.bf16.mxu0 0
        %7214 = vmatpush1.bf16.msra.mxu0 %v7167
        %7215 = vmatprep.subr.bf16.mxu0 0
        %7216 = vmatpush2.bf16.msra.mxu0 %v7182
        %7217 = vmatprep.subr.bf16.mxu0 0
        %7218 = vmatpush2.bf16.msra.mxu0 %v7181
        %7219 = vmatprep.subr.bf16.mxu0 0
        %7220 = vmatpush2.bf16.msra.mxu0 %v7180
        %7221 = vmatprep.subr.bf16.mxu0 0
        %7222 = vmatpush2.bf16.msra.mxu0 %v7179
        %7223 = vmatprep.subr.bf16.mxu0 0
        %7224 = vmatpush2.bf16.msra.mxu0 %v7178
        %7225 = vmatprep.subr.bf16.mxu0 0
        %7226 = vmatpush2.bf16.msra.mxu0 %v7177
        %7227 = vmatprep.subr.bf16.mxu0 0
        %7228 = vmatpush2.bf16.msra.mxu0 %v7176
        %7229 = vmatprep.subr.bf16.mxu0 0
        %7230 = vmatpush2.bf16.msra.mxu0 %v7175
        %7231 = vmatprep.mubr.bf16.mxu0 %v6867
        %7232 = vmatmul.mubr.bf16.gmra.mxu0 %v6849
        %v7233 = vpop.f32.mrf.mxu0
        %v7234 = vadd.f32 %v7091, %v7233
        %v7235 = vpop.f32.mrf.mxu0
        %v7236 = vpop.f32.mrf.mxu0
        %v7237 = vadd.f32 %v7094, %v7236
        %v7238 = vpop.f32.mrf.mxu0
        %7239 = vmatprep.mubr.bf16.mxu0 %v6870
        %7240 = vmatmul.mubr.bf16.gmra.mxu0 %v6850
        %v7241 = vpop.f32.mrf.mxu0
        %v7242 = vpop.f32.mrf.mxu0
        %v7243 = vpop.f32.mrf.mxu0
        %v7244 = vpop.f32.mrf.mxu0
        %7245 = vdwg.mxu0
        %v7246 = vld [vmem:[#allocation4 + $0x4] sm:$0xf]
        %v7247 = vld [vmem:[#allocation4 + $0x8] sm:$0xf]
        %v7248 = vld [vmem:[#allocation4 + $0xc] sm:$0xf]
        %v7249 = vld [vmem:[#allocation4 + $0x10] sm:$0x1]
        %v7250 = vld [vmem:[#allocation4 + $0x4] sm:$0xe]
        %v7255 = vunpack.c.l.b16 %v7246
        %v7256 = vunpack.c.l.b16 %v7247
        %v7257 = vunpack.c.l.b16 %v7248
        %v7258 = vunpack.c.l.b16 %v7249
        %v7259 = vpack.c.b16 %v7256, %v7255
        %v7260 = vpack.c.b16 %v7258, %v7257
        %v7262 = vunpack.c.l.b16 %v7250
        %v7263 = vpack.c.b16 %v7256, %v7262
        %v7265 = vshrl.u32 %v7263, 16
        %v7267 = vshll.u32 %v7263, 16
        %v7269 = vrot.slane %v7267, 1
        %v7270 = vor.u32 %v7265, %v7269
        %v7272 = vshll.u32 %v7260, 16
        %v7274 = vrot.slane %v7272, 1
        %v7275 = vsel %vm2264, %v7270, %v7274
        %v7276 = vshrl.u32 %v7260, 16
        %v7278 = vor.u32 %v7276, %v7274
        %s7279 = scalar_lea.vmem %s7, 256
        %v7280 = vld [vmem:[%s7279] sm:$0xf]
        %v7281 = vld [vmem:[%s7279 + $0x4] sm:$0xf]
        %v7282 = vld [vmem:[%s7279 + $0x8] sm:$0xf]
        %v7283 = vld [vmem:[%s7279 + $0xc] sm:$0xf]
        %v7284 = vld [vmem:[%s7279 + $0x10] sm:$0xf]
        %v7285 = vld [vmem:[%s7279 + $0x14] sm:$0xf]
        %v7286 = vld [vmem:[%s7279 + $0x18] sm:$0xf]
        %v7287 = vld [vmem:[%s7279 + $0x1c] sm:$0xf]
        %v7288 = vld [vmem:[%s7279 + $0x20] sm:$0xf]
        %v7289 = vld [vmem:[%s7279 + $0x24] sm:$0xf]
        %v7290 = vld [vmem:[%s7279 + $0x28] sm:$0xf]
        %v7291 = vld [vmem:[%s7279 + $0x2c] sm:$0xf]
        %v7292 = vld [vmem:[%s7279 + $0x30] sm:$0xf]
        %v7293 = vld [vmem:[%s7279 + $0x34] sm:$0xf]
        %v7294 = vld [vmem:[%s7279 + $0x38] sm:$0xf]
        %v7295 = vld [vmem:[%s7279 + $0x3c] sm:$0xf]
        %v7296 = vld [vmem:[%s7279 + $0x40] sm:$0xf]
        %v7297 = vld [vmem:[%s7279 + $0x44] sm:$0xf]
        %v7298 = vld [vmem:[%s7279 + $0x48] sm:$0xf]
        %v7299 = vld [vmem:[%s7279 + $0x4c] sm:$0xf]
        %v7300 = vld [vmem:[%s7279 + $0x50] sm:$0xf]
        %v7301 = vld [vmem:[%s7279 + $0x54] sm:$0xf]
        %v7302 = vld [vmem:[%s7279 + $0x58] sm:$0xf]
        %v7303 = vld [vmem:[%s7279 + $0x5c] sm:$0xf]
        %v7304 = vld [vmem:[%s7279 + $0x60] sm:$0xf]
        %v7305 = vld [vmem:[%s7279 + $0x64] sm:$0xf]
        %v7306 = vld [vmem:[%s7279 + $0x68] sm:$0xf]
        %v7307 = vld [vmem:[%s7279 + $0x6c] sm:$0xf]
        %v7308 = vld [vmem:[%s7279 + $0x70] sm:$0xf]
        %v7309 = vld [vmem:[%s7279 + $0x74] sm:$0xf]
        %v7310 = vld [vmem:[%s7279 + $0x78] sm:$0xf]
        %v7311 = vld [vmem:[%s7279 + $0x7c] sm:$0xf]
        %v7313 = vshrl.u32 %v7259, 16
        %v7315 = vshll.u32 %v7259, 16
        %v7317 = vrot.slane %v7315, 1
        %v7318 = vor.u32 %v7313, %v7317
        %v7319 = vsel %vm2264, %v7318, %v7274
        %v7321 = vshrl.u32 %v7275, 16
        %v7323 = vshll.u32 %v7275, 16
        %v7325 = vrot.slane %v7323, 1
        %v7326 = vor.u32 %v7321, %v7325
        %v7328 = vshll.u32 %v7278, 16
        %v7330 = vrot.slane %v7328, 1
        %v7331 = vsel %vm2264, %v7326, %v7330
        %v7332 = vshrl.u32 %v7278, 16
        %v7334 = vor.u32 %v7332, %v7330
        %v7371 = vunpack.c.l.b16 %v7280
        %v7372 = vunpack.c.l.b16 %v7281
        %v7373 = vunpack.c.l.b16 %v7282
        %v7374 = vunpack.c.l.b16 %v7283
        %v7375 = vunpack.c.l.b16 %v7284
        %v7376 = vunpack.c.l.b16 %v7285
        %v7377 = vunpack.c.l.b16 %v7286
        %v7378 = vunpack.c.l.b16 %v7287
        %v7379 = vunpack.c.l.b16 %v7288
        %v7380 = vunpack.c.l.b16 %v7289
        %v7381 = vunpack.c.l.b16 %v7290
        %v7382 = vunpack.c.l.b16 %v7291
        %v7383 = vunpack.c.l.b16 %v7292
        %v7384 = vunpack.c.l.b16 %v7293
        %v7385 = vunpack.c.l.b16 %v7294
        %v7386 = vunpack.c.l.b16 %v7295
        %v7387 = vunpack.c.l.b16 %v7296
        %v7388 = vunpack.c.l.b16 %v7297
        %v7389 = vunpack.c.l.b16 %v7298
        %v7390 = vunpack.c.l.b16 %v7299
        %v7391 = vunpack.c.l.b16 %v7300
        %v7392 = vunpack.c.l.b16 %v7301
        %v7393 = vunpack.c.l.b16 %v7302
        %v7394 = vunpack.c.l.b16 %v7303
        %v7395 = vunpack.c.l.b16 %v7304
        %v7396 = vunpack.c.l.b16 %v7305
        %v7397 = vunpack.c.l.b16 %v7306
        %v7398 = vunpack.c.l.b16 %v7307
        %v7399 = vunpack.c.l.b16 %v7308
        %v7400 = vunpack.c.l.b16 %v7309
        %v7401 = vunpack.c.l.b16 %v7310
        %v7402 = vunpack.c.l.b16 %v7311
        %v7403 = vpack.c.b16 %v7372, %v7371
        %v7404 = vpack.c.b16 %v7374, %v7373
        %v7405 = vpack.c.b16 %v7376, %v7375
        %v7406 = vpack.c.b16 %v7378, %v7377
        %v7407 = vpack.c.b16 %v7380, %v7379
        %v7408 = vpack.c.b16 %v7382, %v7381
        %v7409 = vpack.c.b16 %v7384, %v7383
        %v7410 = vpack.c.b16 %v7386, %v7385
        %v7411 = vpack.c.b16 %v7388, %v7387
        %v7412 = vpack.c.b16 %v7390, %v7389
        %v7413 = vpack.c.b16 %v7392, %v7391
        %v7414 = vpack.c.b16 %v7394, %v7393
        %v7415 = vpack.c.b16 %v7396, %v7395
        %v7416 = vpack.c.b16 %v7398, %v7397
        %v7417 = vpack.c.b16 %v7400, %v7399
        %v7418 = vpack.c.b16 %v7402, %v7401
        %7435 = vmatprep.subr.bf16.mxu0 0
        %7436 = vmatpush1.bf16.msra.mxu0 %v7410
        %7437 = vmatprep.subr.bf16.mxu0 0
        %7438 = vmatpush1.bf16.msra.mxu0 %v7409
        %7439 = vmatprep.subr.bf16.mxu0 0
        %7440 = vmatpush1.bf16.msra.mxu0 %v7408
        %7441 = vmatprep.subr.bf16.mxu0 0
        %7442 = vmatpush1.bf16.msra.mxu0 %v7407
        %7443 = vmatprep.subr.bf16.mxu0 0
        %7444 = vmatpush1.bf16.msra.mxu0 %v7406
        %7445 = vmatprep.subr.bf16.mxu0 0
        %7446 = vmatpush1.bf16.msra.mxu0 %v7405
        %7447 = vmatprep.subr.bf16.mxu0 0
        %7448 = vmatpush1.bf16.msra.mxu0 %v7404
        %7449 = vmatprep.subr.bf16.mxu0 0
        %7450 = vmatpush1.bf16.msra.mxu0 %v7403
        %7451 = vmatprep.subr.bf16.mxu0 0
        %7452 = vmatpush2.bf16.msra.mxu0 %v7418
        %7453 = vmatprep.subr.bf16.mxu0 0
        %7454 = vmatpush2.bf16.msra.mxu0 %v7417
        %7455 = vmatprep.subr.bf16.mxu0 0
        %7456 = vmatpush2.bf16.msra.mxu0 %v7416
        %7457 = vmatprep.subr.bf16.mxu0 0
        %7458 = vmatpush2.bf16.msra.mxu0 %v7415
        %7459 = vmatprep.subr.bf16.mxu0 0
        %7460 = vmatpush2.bf16.msra.mxu0 %v7414
        %7461 = vmatprep.subr.bf16.mxu0 0
        %7462 = vmatpush2.bf16.msra.mxu0 %v7413
        %7463 = vmatprep.subr.bf16.mxu0 0
        %7464 = vmatpush2.bf16.msra.mxu0 %v7412
        %7465 = vmatprep.subr.bf16.mxu0 0
        %7466 = vmatpush2.bf16.msra.mxu0 %v7411
        %7467 = vmatprep.mubr.bf16.mxu0 %v7331
        %7468 = vmatmul.mubr.bf16.gmra.mxu0 %v7319
        %v7469 = vpop.f32.mrf.mxu0
        %v7470 = vadd.f32 0.0, %v7469
        %v7471 = vpop.f32.mrf.mxu0
        %v7472 = vpop.f32.mrf.mxu0
        %v7473 = vadd.f32 0.0, %v7472
        %v7474 = vpop.f32.mrf.mxu0
        %7475 = vmatprep.mubr.bf16.mxu0 %v7334
        %7476 = vmatmul.mubr.bf16.gmra.mxu0 %v7278
        %v7477 = vpop.f32.mrf.mxu0
        %v7478 = vpop.f32.mrf.mxu0
        %v7479 = vpop.f32.mrf.mxu0
        %v7480 = vpop.f32.mrf.mxu0
        %7481 = vdwg.mxu0
        %v7482 = vadd.f32 %v7234, %v7470
        %v7483 = vadd.f32 %v7237, %v7473
        %v7484 = vld [vmem:[#allocation4 + $0x10] sm:$0xf]
        %v7485 = vld [vmem:[#allocation4 + $0x8] sm:$0xf]
        %v7486 = vld [vmem:[#allocation4 + $0xc] sm:$0xf]
        %v7487 = vld [vmem:[#allocation4 + $0x10] sm:$0xf]
        %v7488 = vld [vmem:[#allocation4 + $0x14] sm:$0x1]
        %v7490 = vunpack.c.l.b16 %v7484
        %v7491 = vpack.c.b16 %v7257, %v7256
        %v7492 = vpack.c.b16 %v7490, %v7490
        %v7499 = vunpack.c.l.b16 %v7485
        %v7500 = vunpack.c.l.b16 %v7486
        %v7501 = vunpack.c.l.b16 %v7487
        %v7502 = vunpack.c.l.b16 %v7488
        %v7503 = vpack.c.b16 %v7500, %v7499
        %v7504 = vpack.c.b16 %v7502, %v7501
        %v7506 = vshrl.u32 %v7503, 16
        %v7508 = vshll.u32 %v7503, 16
        %v7510 = vrot.slane %v7508, 1
        %v7511 = vor.u32 %v7506, %v7510
        %v7513 = vshll.u32 %v7504, 16
        %v7515 = vrot.slane %v7513, 1
        %v7516 = vsel %vm2264, %v7511, %v7515
        %v7517 = vshrl.u32 %v7504, 16
        %v7519 = vor.u32 %v7517, %v7515
        %s7522 = scalar_lea.vmem %s7, 384
        %v7523 = vld [vmem:[%s7522] sm:$0xf]
        %v7524 = vld [vmem:[%s7522 + $0x4] sm:$0xf]
        %v7525 = vld [vmem:[%s7522 + $0x8] sm:$0xf]
        %v7526 = vld [vmem:[%s7522 + $0xc] sm:$0xf]
        %v7527 = vld [vmem:[%s7522 + $0x10] sm:$0xf]
        %v7528 = vld [vmem:[%s7522 + $0x14] sm:$0xf]
        %v7529 = vld [vmem:[%s7522 + $0x18] sm:$0xf]
        %v7530 = vld [vmem:[%s7522 + $0x1c] sm:$0xf]
        %v7531 = vld [vmem:[%s7522 + $0x20] sm:$0xf]
        %v7532 = vld [vmem:[%s7522 + $0x24] sm:$0xf]
        %v7533 = vld [vmem:[%s7522 + $0x28] sm:$0xf]
        %v7534 = vld [vmem:[%s7522 + $0x2c] sm:$0xf]
        %v7535 = vld [vmem:[%s7522 + $0x30] sm:$0xf]
        %v7536 = vld [vmem:[%s7522 + $0x34] sm:$0xf]
        %v7537 = vld [vmem:[%s7522 + $0x38] sm:$0xf]
        %v7538 = vld [vmem:[%s7522 + $0x3c] sm:$0xf]
        %v7539 = vld [vmem:[%s7522 + $0x40] sm:$0xf]
        %v7540 = vld [vmem:[%s7522 + $0x44] sm:$0xf]
        %v7541 = vld [vmem:[%s7522 + $0x48] sm:$0xf]
        %v7542 = vld [vmem:[%s7522 + $0x4c] sm:$0xf]
        %v7543 = vld [vmem:[%s7522 + $0x50] sm:$0xf]
        %v7544 = vld [vmem:[%s7522 + $0x54] sm:$0xf]
        %v7545 = vld [vmem:[%s7522 + $0x58] sm:$0xf]
        %v7546 = vld [vmem:[%s7522 + $0x5c] sm:$0xf]
        %v7547 = vld [vmem:[%s7522 + $0x60] sm:$0xf]
        %v7548 = vld [vmem:[%s7522 + $0x64] sm:$0xf]
        %v7549 = vld [vmem:[%s7522 + $0x68] sm:$0xf]
        %v7550 = vld [vmem:[%s7522 + $0x6c] sm:$0xf]
        %v7551 = vld [vmem:[%s7522 + $0x70] sm:$0xf]
        %v7552 = vld [vmem:[%s7522 + $0x74] sm:$0xf]
        %v7553 = vld [vmem:[%s7522 + $0x78] sm:$0xf]
        %v7554 = vld [vmem:[%s7522 + $0x7c] sm:$0xf]
        %v7587 = vunpack.c.l.b16 %v7523
        %v7588 = vunpack.c.l.b16 %v7524
        %v7589 = vunpack.c.l.b16 %v7525
        %v7590 = vunpack.c.l.b16 %v7526
        %v7591 = vunpack.c.l.b16 %v7527
        %v7592 = vunpack.c.l.b16 %v7528
        %v7593 = vunpack.c.l.b16 %v7529
        %v7594 = vunpack.c.l.b16 %v7530
        %v7595 = vunpack.c.l.b16 %v7531
        %v7596 = vunpack.c.l.b16 %v7532
        %v7597 = vunpack.c.l.b16 %v7533
        %v7598 = vunpack.c.l.b16 %v7534
        %v7599 = vunpack.c.l.b16 %v7535
        %v7600 = vunpack.c.l.b16 %v7536
        %v7601 = vunpack.c.l.b16 %v7537
        %v7602 = vunpack.c.l.b16 %v7538
        %v7603 = vunpack.c.l.b16 %v7539
        %v7604 = vunpack.c.l.b16 %v7540
        %v7605 = vunpack.c.l.b16 %v7541
        %v7606 = vunpack.c.l.b16 %v7542
        %v7607 = vunpack.c.l.b16 %v7543
        %v7608 = vunpack.c.l.b16 %v7544
        %v7609 = vunpack.c.l.b16 %v7545
        %v7610 = vunpack.c.l.b16 %v7546
        %v7611 = vunpack.c.l.b16 %v7547
        %v7612 = vunpack.c.l.b16 %v7548
        %v7613 = vunpack.c.l.b16 %v7549
        %v7614 = vunpack.c.l.b16 %v7550
        %v7615 = vunpack.c.l.b16 %v7551
        %v7616 = vunpack.c.l.b16 %v7552
        %v7617 = vunpack.c.l.b16 %v7553
        %v7618 = vunpack.c.l.b16 %v7554
        %v7619 = vpack.c.b16 %v7588, %v7587
        %v7620 = vpack.c.b16 %v7590, %v7589
        %v7621 = vpack.c.b16 %v7592, %v7591
        %v7622 = vpack.c.b16 %v7594, %v7593
        %v7623 = vpack.c.b16 %v7596, %v7595
        %v7624 = vpack.c.b16 %v7598, %v7597
        %v7625 = vpack.c.b16 %v7600, %v7599
        %v7626 = vpack.c.b16 %v7602, %v7601
        %v7627 = vpack.c.b16 %v7604, %v7603
        %v7628 = vpack.c.b16 %v7606, %v7605
        %v7629 = vpack.c.b16 %v7608, %v7607
        %v7630 = vpack.c.b16 %v7610, %v7609
        %v7631 = vpack.c.b16 %v7612, %v7611
        %v7632 = vpack.c.b16 %v7614, %v7613
        %v7633 = vpack.c.b16 %v7616, %v7615
        %v7634 = vpack.c.b16 %v7618, %v7617
        %7651 = vmatprep.subr.bf16.mxu0 0
        %7652 = vmatpush1.bf16.msra.mxu0 %v7626
        %7653 = vmatprep.subr.bf16.mxu0 0
        %7654 = vmatpush1.bf16.msra.mxu0 %v7625
        %7655 = vmatprep.subr.bf16.mxu0 0
        %7656 = vmatpush1.bf16.msra.mxu0 %v7624
        %7657 = vmatprep.subr.bf16.mxu0 0
        %7658 = vmatpush1.bf16.msra.mxu0 %v7623
        %7659 = vmatprep.subr.bf16.mxu0 0
        %7660 = vmatpush1.bf16.msra.mxu0 %v7622
        %7661 = vmatprep.subr.bf16.mxu0 0
        %7662 = vmatpush1.bf16.msra.mxu0 %v7621
        %7663 = vmatprep.subr.bf16.mxu0 0
        %7664 = vmatpush1.bf16.msra.mxu0 %v7620
        %7665 = vmatprep.subr.bf16.mxu0 0
        %7666 = vmatpush1.bf16.msra.mxu0 %v7619
        %7667 = vmatprep.subr.bf16.mxu0 0
        %7668 = vmatpush2.bf16.msra.mxu0 %v7634
        %7669 = vmatprep.subr.bf16.mxu0 0
        %7670 = vmatpush2.bf16.msra.mxu0 %v7633
        %7671 = vmatprep.subr.bf16.mxu0 0
        %7672 = vmatpush2.bf16.msra.mxu0 %v7632
        %7673 = vmatprep.subr.bf16.mxu0 0
        %7674 = vmatpush2.bf16.msra.mxu0 %v7631
        %7675 = vmatprep.subr.bf16.mxu0 0
        %7676 = vmatpush2.bf16.msra.mxu0 %v7630
        %7677 = vmatprep.subr.bf16.mxu0 0
        %7678 = vmatpush2.bf16.msra.mxu0 %v7629
        %7679 = vmatprep.subr.bf16.mxu0 0
        %7680 = vmatpush2.bf16.msra.mxu0 %v7628
        %7681 = vmatprep.subr.bf16.mxu0 0
        %7682 = vmatpush2.bf16.msra.mxu0 %v7627
        %7683 = vmatprep.mubr.bf16.mxu0 %v7516
        %7684 = vmatmul.mubr.bf16.gmra.mxu0 %v7491
        %v7685 = vpop.f32.mrf.mxu0
        %v7686 = vadd.f32 0.0, %v7685
        %v7687 = vpop.f32.mrf.mxu0
        %v7688 = vpop.f32.mrf.mxu0
        %v7689 = vadd.f32 0.0, %v7688
        %v7690 = vpop.f32.mrf.mxu0
        %7691 = vmatprep.mubr.bf16.mxu0 %v7519
        %7692 = vmatmul.mubr.bf16.gmra.mxu0 %v7492
        %v7693 = vpop.f32.mrf.mxu0
        %v7694 = vpop.f32.mrf.mxu0
        %v7695 = vpop.f32.mrf.mxu0
        %v7696 = vpop.f32.mrf.mxu0
        %7697 = vdwg.mxu0
        %v7698 = vadd.f32 %v7482, %v7686
        %v7699 = vadd.f32 %v7483, %v7689
        %v7700 = vld [vmem:[#allocation4 + $0x8] sm:$0xe]
        %s7701 = scalar_lea.vmem %s7, 512
        %v7702 = vld [vmem:[%s7701] sm:$0xf]
        %v7703 = vld [vmem:[%s7701 + $0x4] sm:$0xf]
        %v7704 = vld [vmem:[%s7701 + $0x8] sm:$0xf]
        %v7705 = vld [vmem:[%s7701 + $0xc] sm:$0xf]
        %v7706 = vld [vmem:[%s7701 + $0x10] sm:$0xf]
        %v7707 = vld [vmem:[%s7701 + $0x14] sm:$0xf]
        %v7708 = vld [vmem:[%s7701 + $0x18] sm:$0xf]
        %v7709 = vld [vmem:[%s7701 + $0x1c] sm:$0xf]
        %v7710 = vld [vmem:[%s7701 + $0x20] sm:$0xf]
        %v7711 = vld [vmem:[%s7701 + $0x24] sm:$0xf]
        %v7712 = vld [vmem:[%s7701 + $0x28] sm:$0xf]
        %v7713 = vld [vmem:[%s7701 + $0x2c] sm:$0xf]
        %v7714 = vld [vmem:[%s7701 + $0x30] sm:$0xf]
        %v7715 = vld [vmem:[%s7701 + $0x34] sm:$0xf]
        %v7716 = vld [vmem:[%s7701 + $0x38] sm:$0xf]
        %v7717 = vld [vmem:[%s7701 + $0x3c] sm:$0xf]
        %v7719 = vunpack.c.l.b16 %v7700
        %v7720 = vpack.c.b16 %v7500, %v7719
        %v7721 = vrot.slane %v7720, 1
        %v7722 = vrot.slane %v7504, 1
        %v7723 = vsel %vm2488, %v7721, %v7722
        %v7742 = vunpack.c.l.b16 %v7702
        %v7743 = vunpack.c.l.b16 %v7703
        %v7744 = vunpack.c.l.b16 %v7704
        %v7745 = vunpack.c.l.b16 %v7705
        %v7746 = vunpack.c.l.b16 %v7706
        %v7747 = vunpack.c.l.b16 %v7707
        %v7748 = vunpack.c.l.b16 %v7708
        %v7749 = vunpack.c.l.b16 %v7709
        %v7750 = vunpack.c.l.b16 %v7710
        %v7751 = vunpack.c.l.b16 %v7711
        %v7752 = vunpack.c.l.b16 %v7712
        %v7753 = vunpack.c.l.b16 %v7713
        %v7754 = vunpack.c.l.b16 %v7714
        %v7755 = vunpack.c.l.b16 %v7715
        %v7756 = vunpack.c.l.b16 %v7716
        %v7757 = vunpack.c.l.b16 %v7717
        %v7758 = vpack.c.b16 %v7743, %v7742
        %v7759 = vpack.c.b16 %v7745, %v7744
        %v7760 = vpack.c.b16 %v7747, %v7746
        %v7761 = vpack.c.b16 %v7749, %v7748
        %v7762 = vpack.c.b16 %v7751, %v7750
        %v7763 = vpack.c.b16 %v7753, %v7752
        %v7764 = vpack.c.b16 %v7755, %v7754
        %v7765 = vpack.c.b16 %v7757, %v7756
        %7774 = vmatprep.subr.bf16.mxu0 0
        %7775 = vmatpush1.bf16.msra.mxu0 %v7765
        %7776 = vmatprep.subr.bf16.mxu0 0
        %7777 = vmatpush1.bf16.msra.mxu0 %v7764
        %7778 = vmatprep.subr.bf16.mxu0 0
        %7779 = vmatpush1.bf16.msra.mxu0 %v7763
        %7780 = vmatprep.subr.bf16.mxu0 0
        %7781 = vmatpush1.bf16.msra.mxu0 %v7762
        %7782 = vmatprep.subr.bf16.mxu0 0
        %7783 = vmatpush1.bf16.msra.mxu0 %v7761
        %7784 = vmatprep.subr.bf16.mxu0 0
        %7785 = vmatpush1.bf16.msra.mxu0 %v7760
        %7786 = vmatprep.subr.bf16.mxu0 0
        %7787 = vmatpush1.bf16.msra.mxu0 %v7759
        %7788 = vmatprep.subr.bf16.mxu0 0
        %7789 = vmatpush1.bf16.msra.mxu0 %v7758
        %7790 = vmatprep.subr.bf16.mxu0 0
        %7791 = vmatpush2.bf16.msra.mxu0 0
        %7792 = vmatprep.subr.bf16.mxu0 0
        %7793 = vmatpush2.bf16.msra.mxu0 0
        %7794 = vmatprep.subr.bf16.mxu0 0
        %7795 = vmatpush2.bf16.msra.mxu0 0
        %7796 = vmatprep.subr.bf16.mxu0 0
        %7797 = vmatpush2.bf16.msra.mxu0 0
        %7798 = vmatprep.subr.bf16.mxu0 0
        %7799 = vmatpush2.bf16.msra.mxu0 0
        %7800 = vmatprep.subr.bf16.mxu0 0
        %7801 = vmatpush2.bf16.msra.mxu0 0
        %7802 = vmatprep.subr.bf16.mxu0 0
        %7803 = vmatpush2.bf16.msra.mxu0 0
        %7804 = vmatprep.subr.bf16.mxu0 0
        %7805 = vmatpush2.bf16.msra.mxu0 0
        %7806 = vmatprep.mubr.bf16.mxu0 0
        %7807 = vmatmul.mubr.bf16.gmra.mxu0 %v7723
        %v7808 = vpop.f32.mrf.mxu0
        %v7809 = vadd.f32 0.0, %v7808
        %v7810 = vpop.f32.mrf.mxu0
        %v7811 = vpop.f32.mrf.mxu0
        %v7812 = vadd.f32 0.0, %v7811
        %v7813 = vpop.f32.mrf.mxu0
        %7814 = vmatprep.mubr.bf16.mxu0 0
        %7815 = vmatmul.mubr.bf16.gmra.mxu0 %v7722
        %v7816 = vpop.f32.mrf.mxu0
        %v7817 = vpop.f32.mrf.mxu0
        %v7818 = vpop.f32.mrf.mxu0
        %v7819 = vpop.f32.mrf.mxu0
        %7820 = vdwg.mxu0
        %v7821 = vadd.f32 %v7698, %v7809
        %v7822 = vadd.f32 %v7699, %v7812
        %v7824 = vlaneseq
        %v7825 = vshrl.u32 %v7824, 7
        %v7826 = vsub.s32 0, %v7825
        %v7827 = vrot.slane %v6838, %v7826
        %v7829 = vadd.f32 %v7821, %v7827
        %v7830 = vadd.f32 %v7822, %v7827
        %v7831 = vmax.f32 %v7829, 0.0
        %v7832 = vmax.f32 %v7830, 0.0
        %v7833 = vmax.f32 %v7831, %v7832
        %7834 = vst [vmem:[#allocation5] sm:$0xff] %v7833
        %v7835 = vld [vmem:[#allocation5] ss:$2 sm:$0xf]
        %v7836 = vld [vmem:[%s1913] ss:$2 sm:$0xf]
        %v7837 = vmax.f32 %v7835, %v7836
        %v7838 = vpack.c.bf16 %v7837, %v7837
        %v7839 = vld [vmem:[#allocation6] sm:$0xff]
        %v7840 = vld [vmem:[#allocation6 + $0x8] sm:$0xff]
        %v7841 = vld [vmem:[#allocation6 + $0x10] sm:$0xff]
        %v7842 = vld [vmem:[#allocation6 + $0x18] sm:$0xff]
        %v7843 = vld [vmem:[#allocation6 + $0x20] sm:$0xff]
        %v7844 = vld [vmem:[#allocation6 + $0x28] sm:$0xff]
        %v7845 = vld [vmem:[#allocation6 + $0x30] sm:$0xff]
        %v7846 = vld [vmem:[#allocation6 + $0x38] sm:$0xff]
        %v7847 = vld [vmem:[#allocation6 + $0x40] sm:$0xff]
        %v7848 = vld [vmem:[#allocation6 + $0x48] sm:$0xff]
        %v7849 = vld [vmem:[#allocation6 + $0x50] sm:$0xff]
        %v7850 = vld [vmem:[#allocation6 + $0x58] sm:$0xff]
        %v7851 = vld [vmem:[#allocation6 + $0x60] sm:$0xff]
        %v7852 = vld [vmem:[#allocation6 + $0x68] sm:$0xff]
        %v7853 = vld [vmem:[#allocation6 + $0x70] sm:$0xff]
        %v7854 = vld [vmem:[#allocation6 + $0x78] sm:$0xff]
        %v7855 = vld [vmem:[#allocation6 + $0x80] sm:$0xff]
        %v7856 = vld [vmem:[#allocation6 + $0x88] sm:$0xff]
        %v7857 = vld [vmem:[#allocation6 + $0x90] sm:$0xff]
        %v7858 = vld [vmem:[#allocation6 + $0x98] sm:$0xff]
        %v7859 = vld [vmem:[#allocation6 + $0xa0] sm:$0xff]
        %v7860 = vld [vmem:[#allocation6 + $0xa8] sm:$0xff]
        %v7861 = vld [vmem:[#allocation6 + $0xb0] sm:$0xff]
        %v7862 = vld [vmem:[#allocation6 + $0xb8] sm:$0xff]
        %v7863 = vld [vmem:[#allocation6 + $0xc0] sm:$0xff]
        %v7864 = vld [vmem:[#allocation6 + $0xc8] sm:$0xff]
        %v7865 = vld [vmem:[#allocation6 + $0xd0] sm:$0xff]
        %v7866 = vld [vmem:[#allocation6 + $0xd8] sm:$0xff]
        %v7867 = vld [vmem:[#allocation6 + $0xe0] sm:$0xff]
        %v7868 = vld [vmem:[#allocation6 + $0xe8] sm:$0xff]
        %v7869 = vld [vmem:[#allocation6 + $0xf0] sm:$0xff]
        %v7870 = vld [vmem:[#allocation6 + $0xf8] sm:$0xff]
        %v7871 = vld [vmem:[#allocation6 + $0x100] sm:$0xff]
        %v7872 = vld [vmem:[#allocation6 + $0x108] sm:$0xff]
        %v7873 = vld [vmem:[#allocation6 + $0x110] sm:$0xff]
        %v7874 = vld [vmem:[#allocation6 + $0x118] sm:$0xff]
        %v7875 = vld [vmem:[#allocation6 + $0x120] sm:$0xff]
        %v7876 = vld [vmem:[#allocation6 + $0x128] sm:$0xff]
        %v7877 = vld [vmem:[#allocation6 + $0x130] sm:$0xff]
        %v7878 = vld [vmem:[#allocation6 + $0x138] sm:$0xff]
        %v7879 = vld [vmem:[#allocation6 + $0x140] sm:$0xff]
        %v7880 = vld [vmem:[#allocation6 + $0x148] sm:$0xff]
        %v7881 = vld [vmem:[#allocation6 + $0x150] sm:$0xff]
        %v7882 = vld [vmem:[#allocation6 + $0x158] sm:$0xff]
        %v7883 = vld [vmem:[#allocation6 + $0x160] sm:$0xff]
        %v7884 = vld [vmem:[#allocation6 + $0x168] sm:$0xff]
        %v7885 = vld [vmem:[#allocation6 + $0x170] sm:$0xff]
        %v7886 = vld [vmem:[#allocation6 + $0x178] sm:$0xff]
        %v7887 = vld [vmem:[#allocation6 + $0x180] sm:$0xff]
        %v7888 = vld [vmem:[#allocation6 + $0x188] sm:$0xff]
        %v7889 = vld [vmem:[#allocation6 + $0x190] sm:$0xff]
        %v7890 = vld [vmem:[#allocation6 + $0x198] sm:$0xff]
        %v7891 = vld [vmem:[#allocation6 + $0x1a0] sm:$0xff]
        %v7892 = vld [vmem:[#allocation6 + $0x1a8] sm:$0xff]
        %v7893 = vld [vmem:[#allocation6 + $0x1b0] sm:$0xff]
        %v7894 = vld [vmem:[#allocation6 + $0x1b8] sm:$0xff]
        %v7895 = vld [vmem:[#allocation6 + $0x1c0] sm:$0xff]
        %v7896 = vld [vmem:[#allocation6 + $0x1c8] sm:$0xff]
        %v7897 = vld [vmem:[#allocation6 + $0x1d0] sm:$0xff]
        %v7898 = vld [vmem:[#allocation6 + $0x1d8] sm:$0xff]
        %v7899 = vld [vmem:[#allocation6 + $0x1e0] sm:$0xff]
        %v7900 = vld [vmem:[#allocation6 + $0x1e8] sm:$0xff]
        %v7901 = vld [vmem:[#allocation6 + $0x1f0] sm:$0xff]
        %v7902 = vld [vmem:[#allocation6 + $0x1f8] sm:$0xff]
        %v7903 = vld [vmem:[%s10] sm:$0xff]
        %v7968 = vunpack.c.l.b16 %v7839
        %v7969 = vunpack.c.h.b16 %v7839
        %v7970 = vunpack.c.l.b16 %v7840
        %v7971 = vunpack.c.h.b16 %v7840
        %v7972 = vunpack.c.l.b16 %v7841
        %v7973 = vunpack.c.h.b16 %v7841
        %v7974 = vunpack.c.l.b16 %v7842
        %v7975 = vunpack.c.h.b16 %v7842
        %v7976 = vunpack.c.l.b16 %v7843
        %v7977 = vunpack.c.h.b16 %v7843
        %v7978 = vunpack.c.l.b16 %v7844
        %v7979 = vunpack.c.h.b16 %v7844
        %v7980 = vunpack.c.l.b16 %v7845
        %v7981 = vunpack.c.h.b16 %v7845
        %v7982 = vunpack.c.l.b16 %v7846
        %v7983 = vunpack.c.h.b16 %v7846
        %v7984 = vunpack.c.l.b16 %v7847
        %v7985 = vunpack.c.h.b16 %v7847
        %v7986 = vunpack.c.l.b16 %v7848
        %v7987 = vunpack.c.h.b16 %v7848
        %v7988 = vunpack.c.l.b16 %v7849
        %v7989 = vunpack.c.h.b16 %v7849
        %v7990 = vunpack.c.l.b16 %v7850
        %v7991 = vunpack.c.h.b16 %v7850
        %v7992 = vunpack.c.l.b16 %v7851
        %v7993 = vunpack.c.h.b16 %v7851
        %v7994 = vunpack.c.l.b16 %v7852
        %v7995 = vunpack.c.h.b16 %v7852
        %v7996 = vunpack.c.l.b16 %v7853
        %v7997 = vunpack.c.h.b16 %v7853
        %v7998 = vunpack.c.l.b16 %v7854
        %v7999 = vunpack.c.h.b16 %v7854
        %v8000 = vunpack.c.l.b16 %v7855
        %v8001 = vunpack.c.h.b16 %v7855
        %v8002 = vunpack.c.l.b16 %v7856
        %v8003 = vunpack.c.h.b16 %v7856
        %v8004 = vunpack.c.l.b16 %v7857
        %v8005 = vunpack.c.h.b16 %v7857
        %v8006 = vunpack.c.l.b16 %v7858
        %v8007 = vunpack.c.h.b16 %v7858
        %v8008 = vunpack.c.l.b16 %v7859
        %v8009 = vunpack.c.h.b16 %v7859
        %v8010 = vunpack.c.l.b16 %v7860
        %v8011 = vunpack.c.h.b16 %v7860
        %v8012 = vunpack.c.l.b16 %v7861
        %v8013 = vunpack.c.h.b16 %v7861
        %v8014 = vunpack.c.l.b16 %v7862
        %v8015 = vunpack.c.h.b16 %v7862
        %v8016 = vunpack.c.l.b16 %v7863
        %v8017 = vunpack.c.h.b16 %v7863
        %v8018 = vunpack.c.l.b16 %v7864
        %v8019 = vunpack.c.h.b16 %v7864
        %v8020 = vunpack.c.l.b16 %v7865
        %v8021 = vunpack.c.h.b16 %v7865
        %v8022 = vunpack.c.l.b16 %v7866
        %v8023 = vunpack.c.h.b16 %v7866
        %v8024 = vunpack.c.l.b16 %v7867
        %v8025 = vunpack.c.h.b16 %v7867
        %v8026 = vunpack.c.l.b16 %v7868
        %v8027 = vunpack.c.h.b16 %v7868
        %v8028 = vunpack.c.l.b16 %v7869
        %v8029 = vunpack.c.h.b16 %v7869
        %v8030 = vunpack.c.l.b16 %v7870
        %v8031 = vunpack.c.h.b16 %v7870
        %v8032 = vunpack.c.l.b16 %v7871
        %v8033 = vunpack.c.h.b16 %v7871
        %v8034 = vunpack.c.l.b16 %v7872
        %v8035 = vunpack.c.h.b16 %v7872
        %v8036 = vunpack.c.l.b16 %v7873
        %v8037 = vunpack.c.h.b16 %v7873
        %v8038 = vunpack.c.l.b16 %v7874
        %v8039 = vunpack.c.h.b16 %v7874
        %v8040 = vunpack.c.l.b16 %v7875
        %v8041 = vunpack.c.h.b16 %v7875
        %v8042 = vunpack.c.l.b16 %v7876
        %v8043 = vunpack.c.h.b16 %v7876
        %v8044 = vunpack.c.l.b16 %v7877
        %v8045 = vunpack.c.h.b16 %v7877
        %v8046 = vunpack.c.l.b16 %v7878
        %v8047 = vunpack.c.h.b16 %v7878
        %v8048 = vunpack.c.l.b16 %v7879
        %v8049 = vunpack.c.h.b16 %v7879
        %v8050 = vunpack.c.l.b16 %v7880
        %v8051 = vunpack.c.h.b16 %v7880
        %v8052 = vunpack.c.l.b16 %v7881
        %v8053 = vunpack.c.h.b16 %v7881
        %v8054 = vunpack.c.l.b16 %v7882
        %v8055 = vunpack.c.h.b16 %v7882
        %v8056 = vunpack.c.l.b16 %v7883
        %v8057 = vunpack.c.h.b16 %v7883
        %v8058 = vunpack.c.l.b16 %v7884
        %v8059 = vunpack.c.h.b16 %v7884
        %v8060 = vunpack.c.l.b16 %v7885
        %v8061 = vunpack.c.h.b16 %v7885
        %v8062 = vunpack.c.l.b16 %v7886
        %v8063 = vunpack.c.h.b16 %v7886
        %v8064 = vunpack.c.l.b16 %v7887
        %v8065 = vunpack.c.h.b16 %v7887
        %v8066 = vunpack.c.l.b16 %v7888
        %v8067 = vunpack.c.h.b16 %v7888
        %v8068 = vunpack.c.l.b16 %v7889
        %v8069 = vunpack.c.h.b16 %v7889
        %v8070 = vunpack.c.l.b16 %v7890
        %v8071 = vunpack.c.h.b16 %v7890
        %v8072 = vunpack.c.l.b16 %v7891
        %v8073 = vunpack.c.h.b16 %v7891
        %v8074 = vunpack.c.l.b16 %v7892
        %v8075 = vunpack.c.h.b16 %v7892
        %v8076 = vunpack.c.l.b16 %v7893
        %v8077 = vunpack.c.h.b16 %v7893
        %v8078 = vunpack.c.l.b16 %v7894
        %v8079 = vunpack.c.h.b16 %v7894
        %v8080 = vunpack.c.l.b16 %v7895
        %v8081 = vunpack.c.h.b16 %v7895
        %v8082 = vunpack.c.l.b16 %v7896
        %v8083 = vunpack.c.h.b16 %v7896
        %v8084 = vunpack.c.l.b16 %v7897
        %v8085 = vunpack.c.h.b16 %v7897
        %v8086 = vunpack.c.l.b16 %v7898
        %v8087 = vunpack.c.h.b16 %v7898
        %v8088 = vunpack.c.l.b16 %v7899
        %v8089 = vunpack.c.h.b16 %v7899
        %v8090 = vunpack.c.l.b16 %v7900
        %v8091 = vunpack.c.h.b16 %v7900
        %v8092 = vunpack.c.l.b16 %v7901
        %v8093 = vunpack.c.h.b16 %v7901
        %v8094 = vunpack.c.l.b16 %v7902
        %v8095 = vunpack.c.h.b16 %v7902
        %v8096 = vpack.c.b16 %v7976, %v7968
        %v8097 = vpack.c.b16 %v7977, %v7969
        %v8098 = vpack.c.b16 %v7978, %v7970
        %v8099 = vpack.c.b16 %v7979, %v7971
        %v8100 = vpack.c.b16 %v7980, %v7972
        %v8101 = vpack.c.b16 %v7981, %v7973
        %v8102 = vpack.c.b16 %v7982, %v7974
        %v8103 = vpack.c.b16 %v7983, %v7975
        %v8104 = vpack.c.b16 %v7992, %v7984
        %v8105 = vpack.c.b16 %v7993, %v7985
        %v8106 = vpack.c.b16 %v7994, %v7986
        %v8107 = vpack.c.b16 %v7995, %v7987
        %v8108 = vpack.c.b16 %v7996, %v7988
        %v8109 = vpack.c.b16 %v7997, %v7989
        %v8110 = vpack.c.b16 %v7998, %v7990
        %v8111 = vpack.c.b16 %v7999, %v7991
        %v8112 = vpack.c.b16 %v8008, %v8000
        %v8113 = vpack.c.b16 %v8009, %v8001
        %v8114 = vpack.c.b16 %v8010, %v8002
        %v8115 = vpack.c.b16 %v8011, %v8003
        %v8116 = vpack.c.b16 %v8012, %v8004
        %v8117 = vpack.c.b16 %v8013, %v8005
        %v8118 = vpack.c.b16 %v8014, %v8006
        %v8119 = vpack.c.b16 %v8015, %v8007
        %v8120 = vpack.c.b16 %v8024, %v8016
        %v8121 = vpack.c.b16 %v8025, %v8017
        %v8122 = vpack.c.b16 %v8026, %v8018
        %v8123 = vpack.c.b16 %v8027, %v8019
        %v8124 = vpack.c.b16 %v8028, %v8020
        %v8125 = vpack.c.b16 %v8029, %v8021
        %v8126 = vpack.c.b16 %v8030, %v8022
        %v8127 = vpack.c.b16 %v8031, %v8023
        %v8128 = vpack.c.b16 %v8040, %v8032
        %v8129 = vpack.c.b16 %v8041, %v8033
        %v8130 = vpack.c.b16 %v8042, %v8034
        %v8131 = vpack.c.b16 %v8043, %v8035
        %v8132 = vpack.c.b16 %v8044, %v8036
        %v8133 = vpack.c.b16 %v8045, %v8037
        %v8134 = vpack.c.b16 %v8046, %v8038
        %v8135 = vpack.c.b16 %v8047, %v8039
        %v8136 = vpack.c.b16 %v8056, %v8048
        %v8137 = vpack.c.b16 %v8057, %v8049
        %v8138 = vpack.c.b16 %v8058, %v8050
        %v8139 = vpack.c.b16 %v8059, %v8051
        %v8140 = vpack.c.b16 %v8060, %v8052
        %v8141 = vpack.c.b16 %v8061, %v8053
        %v8142 = vpack.c.b16 %v8062, %v8054
        %v8143 = vpack.c.b16 %v8063, %v8055
        %v8144 = vpack.c.b16 %v8072, %v8064
        %v8145 = vpack.c.b16 %v8073, %v8065
        %v8146 = vpack.c.b16 %v8074, %v8066
        %v8147 = vpack.c.b16 %v8075, %v8067
        %v8148 = vpack.c.b16 %v8076, %v8068
        %v8149 = vpack.c.b16 %v8077, %v8069
        %v8150 = vpack.c.b16 %v8078, %v8070
        %v8151 = vpack.c.b16 %v8079, %v8071
        %v8152 = vpack.c.b16 %v8088, %v8080
        %v8153 = vpack.c.b16 %v8089, %v8081
        %v8154 = vpack.c.b16 %v8090, %v8082
        %v8155 = vpack.c.b16 %v8091, %v8083
        %v8156 = vpack.c.b16 %v8092, %v8084
        %v8157 = vpack.c.b16 %v8093, %v8085
        %v8158 = vpack.c.b16 %v8094, %v8086
        %v8159 = vpack.c.b16 %v8095, %v8087
        %v8225 = vlaneseq
        %v8226 = vshrl.u32 %v8225, 7
        %v8227 = vsub.s32 0, %v8226
        %v8228 = vrot.slane %v7903, %v8227
        %v8229 = vlaneseq
        %v8230 = vshrl.u32 %v8229, 7
        %v8231 = vsub.s32 1, %v8230
        %v8232 = vrot.slane %v7903, %v8231
        %v8233 = vlaneseq
        %v8234 = vshrl.u32 %v8233, 7
        %v8235 = vsub.s32 2, %v8234
        %v8236 = vrot.slane %v7903, %v8235
        %v8237 = vlaneseq
        %v8238 = vshrl.u32 %v8237, 7
        %v8239 = vsub.s32 3, %v8238
        %v8240 = vrot.slane %v7903, %v8239
        %v8241 = vlaneseq
        %v8242 = vshrl.u32 %v8241, 7
        %v8243 = vsub.s32 4, %v8242
        %v8244 = vrot.slane %v7903, %v8243
        %v8245 = vlaneseq
        %v8246 = vshrl.u32 %v8245, 7
        %v8247 = vsub.s32 5, %v8246
        %v8248 = vrot.slane %v7903, %v8247
        %v8249 = vlaneseq
        %v8250 = vshrl.u32 %v8249, 7
        %v8251 = vsub.s32 6, %v8250
        %v8252 = vrot.slane %v7903, %v8251
        %v8253 = vlaneseq
        %v8254 = vshrl.u32 %v8253, 7
        %v8255 = vsub.s32 7, %v8254
        %v8256 = vrot.slane %v7903, %v8255
        %8265 = vmatprep.subr.bf16.mxu0 %v8153
        %8266 = vmatpush1.bf16.msra.mxu0 %v8152
        %8267 = vmatprep.subr.bf16.mxu0 %v8145
        %8268 = vmatpush1.bf16.msra.mxu0 %v8144
        %8269 = vmatprep.subr.bf16.mxu0 %v8137
        %8270 = vmatpush1.bf16.msra.mxu0 %v8136
        %8271 = vmatprep.subr.bf16.mxu0 %v8129
        %8272 = vmatpush1.bf16.msra.mxu0 %v8128
        %8273 = vmatprep.subr.bf16.mxu0 %v8121
        %8274 = vmatpush1.bf16.msra.mxu0 %v8120
        %8275 = vmatprep.subr.bf16.mxu0 %v8113
        %8276 = vmatpush1.bf16.msra.mxu0 %v8112
        %8277 = vmatprep.subr.bf16.mxu0 %v8105
        %8278 = vmatpush1.bf16.msra.mxu0 %v8104
        %8279 = vmatprep.subr.bf16.mxu0 %v8097
        %8280 = vmatpush1.bf16.msra.mxu0 %v8096
        %8281 = vmatprep.subr.bf16.mxu0 0
        %8282 = vmatpush2.bf16.msra.mxu0 0
        %8283 = vmatprep.subr.bf16.mxu0 0
        %8284 = vmatpush2.bf16.msra.mxu0 0
        %8285 = vmatprep.subr.bf16.mxu0 0
        %8286 = vmatpush2.bf16.msra.mxu0 0
        %8287 = vmatprep.subr.bf16.mxu0 0
        %8288 = vmatpush2.bf16.msra.mxu0 0
        %8289 = vmatprep.subr.bf16.mxu0 0
        %8290 = vmatpush2.bf16.msra.mxu0 0
        %8291 = vmatprep.subr.bf16.mxu0 0
        %8292 = vmatpush2.bf16.msra.mxu0 0
        %8293 = vmatprep.subr.bf16.mxu0 0
        %8294 = vmatpush2.bf16.msra.mxu0 0
        %8295 = vmatprep.subr.bf16.mxu0 0
        %8296 = vmatpush2.bf16.msra.mxu0 0
        %8297 = vmatprep.mubr.bf16.mxu0 0
        %8298 = vmatmul.mubr.bf16.gmra.mxu0 %v7838
        %v8299 = vpop.f32.mrf.mxu0
        %v8300 = vadd.f32 %v8228, %v8299
        %v8301 = vpop.f32.mrf.mxu0
        %v8302 = vadd.f32 %v8232, %v8301
        %v8303 = vpop.f32.mrf.mxu0
        %v8304 = vpop.f32.mrf.mxu0
        %8305 = vdwg.mxu0
        %8306 = vmatprep.subr.bf16.mxu0 %v8155
        %8307 = vmatpush1.bf16.msra.mxu0 %v8154
        %8308 = vmatprep.subr.bf16.mxu0 %v8147
        %8309 = vmatpush1.bf16.msra.mxu0 %v8146
        %8310 = vmatprep.subr.bf16.mxu0 %v8139
        %8311 = vmatpush1.bf16.msra.mxu0 %v8138
        %8312 = vmatprep.subr.bf16.mxu0 %v8131
        %8313 = vmatpush1.bf16.msra.mxu0 %v8130
        %8314 = vmatprep.subr.bf16.mxu0 %v8123
        %8315 = vmatpush1.bf16.msra.mxu0 %v8122
        %8316 = vmatprep.subr.bf16.mxu0 %v8115
        %8317 = vmatpush1.bf16.msra.mxu0 %v8114
        %8318 = vmatprep.subr.bf16.mxu0 %v8107
        %8319 = vmatpush1.bf16.msra.mxu0 %v8106
        %8320 = vmatprep.subr.bf16.mxu0 %v8099
        %8321 = vmatpush1.bf16.msra.mxu0 %v8098
        %8322 = vmatprep.subr.bf16.mxu0 0
        %8323 = vmatpush2.bf16.msra.mxu0 0
        %8324 = vmatprep.subr.bf16.mxu0 0
        %8325 = vmatpush2.bf16.msra.mxu0 0
        %8326 = vmatprep.subr.bf16.mxu0 0
        %8327 = vmatpush2.bf16.msra.mxu0 0
        %8328 = vmatprep.subr.bf16.mxu0 0
        %8329 = vmatpush2.bf16.msra.mxu0 0
        %8330 = vmatprep.subr.bf16.mxu0 0
        %8331 = vmatpush2.bf16.msra.mxu0 0
        %8332 = vmatprep.subr.bf16.mxu0 0
        %8333 = vmatpush2.bf16.msra.mxu0 0
        %8334 = vmatprep.subr.bf16.mxu0 0
        %8335 = vmatpush2.bf16.msra.mxu0 0
        %8336 = vmatprep.subr.bf16.mxu0 0
        %8337 = vmatpush2.bf16.msra.mxu0 0
        %8338 = vmatprep.mubr.bf16.mxu0 0
        %8339 = vmatmul.mubr.bf16.gmra.mxu0 %v7838
        %v8340 = vpop.f32.mrf.mxu0
        %v8341 = vadd.f32 %v8236, %v8340
        %v8342 = vpop.f32.mrf.mxu0
        %v8343 = vadd.f32 %v8240, %v8342
        %v8344 = vpop.f32.mrf.mxu0
        %v8345 = vpop.f32.mrf.mxu0
        %8346 = vdwg.mxu0
        %8347 = vmatprep.subr.bf16.mxu0 %v8157
        %8348 = vmatpush1.bf16.msra.mxu0 %v8156
        %8349 = vmatprep.subr.bf16.mxu0 %v8149
        %8350 = vmatpush1.bf16.msra.mxu0 %v8148
        %8351 = vmatprep.subr.bf16.mxu0 %v8141
        %8352 = vmatpush1.bf16.msra.mxu0 %v8140
        %8353 = vmatprep.subr.bf16.mxu0 %v8133
        %8354 = vmatpush1.bf16.msra.mxu0 %v8132
        %8355 = vmatprep.subr.bf16.mxu0 %v8125
        %8356 = vmatpush1.bf16.msra.mxu0 %v8124
        %8357 = vmatprep.subr.bf16.mxu0 %v8117
        %8358 = vmatpush1.bf16.msra.mxu0 %v8116
        %8359 = vmatprep.subr.bf16.mxu0 %v8109
        %8360 = vmatpush1.bf16.msra.mxu0 %v8108
        %8361 = vmatprep.subr.bf16.mxu0 %v8101
        %8362 = vmatpush1.bf16.msra.mxu0 %v8100
        %8363 = vmatprep.subr.bf16.mxu0 0
        %8364 = vmatpush2.bf16.msra.mxu0 0
        %8365 = vmatprep.subr.bf16.mxu0 0
        %8366 = vmatpush2.bf16.msra.mxu0 0
        %8367 = vmatprep.subr.bf16.mxu0 0
        %8368 = vmatpush2.bf16.msra.mxu0 0
        %8369 = vmatprep.subr.bf16.mxu0 0
        %8370 = vmatpush2.bf16.msra.mxu0 0
        %8371 = vmatprep.subr.bf16.mxu0 0
        %8372 = vmatpush2.bf16.msra.mxu0 0
        %8373 = vmatprep.subr.bf16.mxu0 0
        %8374 = vmatpush2.bf16.msra.mxu0 0
        %8375 = vmatprep.subr.bf16.mxu0 0
        %8376 = vmatpush2.bf16.msra.mxu0 0
        %8377 = vmatprep.subr.bf16.mxu0 0
        %8378 = vmatpush2.bf16.msra.mxu0 0
        %8379 = vmatprep.mubr.bf16.mxu0 0
        %8380 = vmatmul.mubr.bf16.gmra.mxu0 %v7838
        %v8381 = vpop.f32.mrf.mxu0
        %v8382 = vadd.f32 %v8244, %v8381
        %v8383 = vpop.f32.mrf.mxu0
        %v8384 = vadd.f32 %v8248, %v8383
        %v8385 = vpop.f32.mrf.mxu0
        %v8386 = vpop.f32.mrf.mxu0
        %8387 = vdwg.mxu0
        %8388 = vmatprep.subr.bf16.mxu0 %v8159
        %8389 = vmatpush1.bf16.msra.mxu0 %v8158
        %8390 = vmatprep.subr.bf16.mxu0 %v8151
        %8391 = vmatpush1.bf16.msra.mxu0 %v8150
        %8392 = vmatprep.subr.bf16.mxu0 %v8143
        %8393 = vmatpush1.bf16.msra.mxu0 %v8142
        %8394 = vmatprep.subr.bf16.mxu0 %v8135
        %8395 = vmatpush1.bf16.msra.mxu0 %v8134
        %8396 = vmatprep.subr.bf16.mxu0 %v8127
        %8397 = vmatpush1.bf16.msra.mxu0 %v8126
        %8398 = vmatprep.subr.bf16.mxu0 %v8119
        %8399 = vmatpush1.bf16.msra.mxu0 %v8118
        %8400 = vmatprep.subr.bf16.mxu0 %v8111
        %8401 = vmatpush1.bf16.msra.mxu0 %v8110
        %8402 = vmatprep.subr.bf16.mxu0 %v8103
        %8403 = vmatpush1.bf16.msra.mxu0 %v8102
        %8404 = vmatprep.subr.bf16.mxu0 0
        %8405 = vmatpush2.bf16.msra.mxu0 0
        %8406 = vmatprep.subr.bf16.mxu0 0
        %8407 = vmatpush2.bf16.msra.mxu0 0
        %8408 = vmatprep.subr.bf16.mxu0 0
        %8409 = vmatpush2.bf16.msra.mxu0 0
        %8410 = vmatprep.subr.bf16.mxu0 0
        %8411 = vmatpush2.bf16.msra.mxu0 0
        %8412 = vmatprep.subr.bf16.mxu0 0
        %8413 = vmatpush2.bf16.msra.mxu0 0
        %8414 = vmatprep.subr.bf16.mxu0 0
        %8415 = vmatpush2.bf16.msra.mxu0 0
        %8416 = vmatprep.subr.bf16.mxu0 0
        %8417 = vmatpush2.bf16.msra.mxu0 0
        %8418 = vmatprep.subr.bf16.mxu0 0
        %8419 = vmatpush2.bf16.msra.mxu0 0
        %8420 = vmatprep.mubr.bf16.mxu0 0
        %8421 = vmatmul.mubr.bf16.gmra.mxu0 %v7838
        %v8422 = vpop.f32.mrf.mxu0
        %v8423 = vadd.f32 %v8252, %v8422
        %v8424 = vpop.f32.mrf.mxu0
        %v8425 = vadd.f32 %v8256, %v8424
        %v8426 = vpop.f32.mrf.mxu0
        %v8427 = vpop.f32.mrf.mxu0
        %8428 = vdwg.mxu0
        %v8429 = vmax.f32 %v8300, 0.0
        %v8430 = vmax.f32 %v8302, 0.0
        %v8431 = vmax.f32 %v8341, 0.0
        %v8432 = vmax.f32 %v8343, 0.0
        %v8433 = vmax.f32 %v8382, 0.0
        %v8434 = vmax.f32 %v8384, 0.0
        %v8435 = vmax.f32 %v8423, 0.0
        %v8436 = vmax.f32 %v8425, 0.0
        %v8437 = vpack.c.bf16 %v8429, %v8429
        %v8438 = vpack.c.bf16 %v8430, %v8430
        %v8439 = vpack.c.bf16 %v8431, %v8431
        %v8440 = vpack.c.bf16 %v8432, %v8432
        %v8441 = vpack.c.bf16 %v8433, %v8433
        %v8442 = vpack.c.bf16 %v8434, %v8434
        %v8443 = vpack.c.bf16 %v8435, %v8435
        %v8444 = vpack.c.bf16 %v8436, %v8436
        %v8445 = vld [vmem:[#allocation9] sm:$0xf]
        %v8446 = vld [vmem:[#allocation9 + $0x4] sm:$0xf]
        %v8447 = vld [vmem:[#allocation9 + $0x8] sm:$0xf]
        %v8448 = vld [vmem:[#allocation9 + $0xc] sm:$0xf]
        %v8449 = vld [vmem:[#allocation9 + $0x10] sm:$0xf]
        %v8450 = vld [vmem:[#allocation9 + $0x14] sm:$0xf]
        %v8451 = vld [vmem:[#allocation9 + $0x18] sm:$0xf]
        %v8452 = vld [vmem:[#allocation9 + $0x1c] sm:$0xf]
        %v8453 = vld [vmem:[#allocation9 + $0x20] sm:$0xf]
        %v8454 = vld [vmem:[#allocation9 + $0x24] sm:$0xf]
        %v8455 = vld [vmem:[#allocation9 + $0x28] sm:$0xf]
        %v8456 = vld [vmem:[#allocation9 + $0x2c] sm:$0xf]
        %v8457 = vld [vmem:[#allocation9 + $0x30] sm:$0xf]
        %v8458 = vld [vmem:[#allocation9 + $0x34] sm:$0xf]
        %v8459 = vld [vmem:[#allocation9 + $0x38] sm:$0xf]
        %v8460 = vld [vmem:[#allocation9 + $0x3c] sm:$0xf]
        %v8461 = vld [vmem:[#allocation9 + $0x40] sm:$0xf]
        %v8462 = vld [vmem:[#allocation9 + $0x44] sm:$0xf]
        %v8463 = vld [vmem:[#allocation9 + $0x48] sm:$0xf]
        %v8464 = vld [vmem:[#allocation9 + $0x4c] sm:$0xf]
        %v8465 = vld [vmem:[#allocation9 + $0x50] sm:$0xf]
        %v8466 = vld [vmem:[#allocation9 + $0x54] sm:$0xf]
        %v8467 = vld [vmem:[#allocation9 + $0x58] sm:$0xf]
        %v8468 = vld [vmem:[#allocation9 + $0x5c] sm:$0xf]
        %v8469 = vld [vmem:[#allocation9 + $0x60] sm:$0xf]
        %v8470 = vld [vmem:[#allocation9 + $0x64] sm:$0xf]
        %v8471 = vld [vmem:[#allocation9 + $0x68] sm:$0xf]
        %v8472 = vld [vmem:[#allocation9 + $0x6c] sm:$0xf]
        %v8473 = vld [vmem:[#allocation9 + $0x70] sm:$0xf]
        %v8474 = vld [vmem:[#allocation9 + $0x74] sm:$0xf]
        %v8475 = vld [vmem:[#allocation9 + $0x78] sm:$0xf]
        %v8476 = vld [vmem:[#allocation9 + $0x7c] sm:$0xf]
        %v8477 = vld [vmem:[#allocation9 + $0x80] sm:$0xf]
        %v8478 = vld [vmem:[#allocation9 + $0x84] sm:$0xf]
        %v8479 = vld [vmem:[#allocation9 + $0x88] sm:$0xf]
        %v8480 = vld [vmem:[#allocation9 + $0x8c] sm:$0xf]
        %v8481 = vld [vmem:[#allocation9 + $0x90] sm:$0xf]
        %v8482 = vld [vmem:[#allocation9 + $0x94] sm:$0xf]
        %v8483 = vld [vmem:[#allocation9 + $0x98] sm:$0xf]
        %v8484 = vld [vmem:[#allocation9 + $0x9c] sm:$0xf]
        %v8485 = vld [vmem:[#allocation9 + $0xa0] sm:$0xf]
        %v8486 = vld [vmem:[#allocation9 + $0xa4] sm:$0xf]
        %v8487 = vld [vmem:[#allocation9 + $0xa8] sm:$0xf]
        %v8488 = vld [vmem:[#allocation9 + $0xac] sm:$0xf]
        %v8489 = vld [vmem:[#allocation9 + $0xb0] sm:$0xf]
        %v8490 = vld [vmem:[#allocation9 + $0xb4] sm:$0xf]
        %v8491 = vld [vmem:[#allocation9 + $0xb8] sm:$0xf]
        %v8492 = vld [vmem:[#allocation9 + $0xbc] sm:$0xf]
        %v8493 = vld [vmem:[#allocation9 + $0xc0] sm:$0xf]
        %v8494 = vld [vmem:[#allocation9 + $0xc4] sm:$0xf]
        %v8495 = vld [vmem:[#allocation9 + $0xc8] sm:$0xf]
        %v8496 = vld [vmem:[#allocation9 + $0xcc] sm:$0xf]
        %v8497 = vld [vmem:[#allocation9 + $0xd0] sm:$0xf]
        %v8498 = vld [vmem:[#allocation9 + $0xd4] sm:$0xf]
        %v8499 = vld [vmem:[#allocation9 + $0xd8] sm:$0xf]
        %v8500 = vld [vmem:[#allocation9 + $0xdc] sm:$0xf]
        %v8501 = vld [vmem:[#allocation9 + $0xe0] sm:$0xf]
        %v8502 = vld [vmem:[#allocation9 + $0xe4] sm:$0xf]
        %v8503 = vld [vmem:[#allocation9 + $0xe8] sm:$0xf]
        %v8504 = vld [vmem:[#allocation9 + $0xec] sm:$0xf]
        %v8505 = vld [vmem:[#allocation9 + $0xf0] sm:$0xf]
        %v8506 = vld [vmem:[#allocation9 + $0xf4] sm:$0xf]
        %v8507 = vld [vmem:[#allocation9 + $0xf8] sm:$0xf]
        %v8508 = vld [vmem:[#allocation9 + $0xfc] sm:$0xf]
        %v8509 = vld [vmem:[#allocation9 + $0x100] sm:$0xf]
        %v8510 = vld [vmem:[#allocation9 + $0x104] sm:$0xf]
        %v8511 = vld [vmem:[#allocation9 + $0x108] sm:$0xf]
        %v8512 = vld [vmem:[#allocation9 + $0x10c] sm:$0xf]
        %v8513 = vld [vmem:[#allocation9 + $0x110] sm:$0xf]
        %v8514 = vld [vmem:[#allocation9 + $0x114] sm:$0xf]
        %v8515 = vld [vmem:[#allocation9 + $0x118] sm:$0xf]
        %v8516 = vld [vmem:[#allocation9 + $0x11c] sm:$0xf]
        %v8517 = vld [vmem:[#allocation9 + $0x120] sm:$0xf]
        %v8518 = vld [vmem:[#allocation9 + $0x124] sm:$0xf]
        %v8519 = vld [vmem:[#allocation9 + $0x128] sm:$0xf]
        %v8520 = vld [vmem:[#allocation9 + $0x12c] sm:$0xf]
        %v8521 = vld [vmem:[#allocation9 + $0x130] sm:$0xf]
        %v8522 = vld [vmem:[#allocation9 + $0x134] sm:$0xf]
        %v8523 = vld [vmem:[#allocation9 + $0x138] sm:$0xf]
        %v8524 = vld [vmem:[#allocation9 + $0x13c] sm:$0xf]
        %v8525 = vld [vmem:[#allocation9 + $0x140] sm:$0xf]
        %v8526 = vld [vmem:[#allocation9 + $0x144] sm:$0xf]
        %v8527 = vld [vmem:[#allocation9 + $0x148] sm:$0xf]
        %v8528 = vld [vmem:[#allocation9 + $0x14c] sm:$0xf]
        %v8529 = vld [vmem:[#allocation9 + $0x150] sm:$0xf]
        %v8530 = vld [vmem:[#allocation9 + $0x154] sm:$0xf]
        %v8531 = vld [vmem:[#allocation9 + $0x158] sm:$0xf]
        %v8532 = vld [vmem:[#allocation9 + $0x15c] sm:$0xf]
        %v8533 = vld [vmem:[#allocation9 + $0x160] sm:$0xf]
        %v8534 = vld [vmem:[#allocation9 + $0x164] sm:$0xf]
        %v8535 = vld [vmem:[#allocation9 + $0x168] sm:$0xf]
        %v8536 = vld [vmem:[#allocation9 + $0x16c] sm:$0xf]
        %v8537 = vld [vmem:[#allocation9 + $0x170] sm:$0xf]
        %v8538 = vld [vmem:[#allocation9 + $0x174] sm:$0xf]
        %v8539 = vld [vmem:[#allocation9 + $0x178] sm:$0xf]
        %v8540 = vld [vmem:[#allocation9 + $0x17c] sm:$0xf]
        %v8541 = vld [vmem:[#allocation9 + $0x180] sm:$0xf]
        %v8542 = vld [vmem:[#allocation9 + $0x184] sm:$0xf]
        %v8543 = vld [vmem:[#allocation9 + $0x188] sm:$0xf]
        %v8544 = vld [vmem:[#allocation9 + $0x18c] sm:$0xf]
        %v8545 = vld [vmem:[#allocation9 + $0x190] sm:$0xf]
        %v8546 = vld [vmem:[#allocation9 + $0x194] sm:$0xf]
        %v8547 = vld [vmem:[#allocation9 + $0x198] sm:$0xf]
        %v8548 = vld [vmem:[#allocation9 + $0x19c] sm:$0xf]
        %v8549 = vld [vmem:[#allocation9 + $0x1a0] sm:$0xf]
        %v8550 = vld [vmem:[#allocation9 + $0x1a4] sm:$0xf]
        %v8551 = vld [vmem:[#allocation9 + $0x1a8] sm:$0xf]
        %v8552 = vld [vmem:[#allocation9 + $0x1ac] sm:$0xf]
        %v8553 = vld [vmem:[#allocation9 + $0x1b0] sm:$0xf]
        %v8554 = vld [vmem:[#allocation9 + $0x1b4] sm:$0xf]
        %v8555 = vld [vmem:[#allocation9 + $0x1b8] sm:$0xf]
        %v8556 = vld [vmem:[#allocation9 + $0x1bc] sm:$0xf]
        %v8557 = vld [vmem:[#allocation9 + $0x1c0] sm:$0xf]
        %v8558 = vld [vmem:[#allocation9 + $0x1c4] sm:$0xf]
        %v8559 = vld [vmem:[#allocation9 + $0x1c8] sm:$0xf]
        %v8560 = vld [vmem:[#allocation9 + $0x1cc] sm:$0xf]
        %v8561 = vld [vmem:[#allocation9 + $0x1d0] sm:$0xf]
        %v8562 = vld [vmem:[#allocation9 + $0x1d4] sm:$0xf]
        %v8563 = vld [vmem:[#allocation9 + $0x1d8] sm:$0xf]
        %v8564 = vld [vmem:[#allocation9 + $0x1dc] sm:$0xf]
        %v8565 = vld [vmem:[#allocation9 + $0x1e0] sm:$0xf]
        %v8566 = vld [vmem:[#allocation9 + $0x1e4] sm:$0xf]
        %v8567 = vld [vmem:[#allocation9 + $0x1e8] sm:$0xf]
        %v8568 = vld [vmem:[#allocation9 + $0x1ec] sm:$0xf]
        %v8569 = vld [vmem:[#allocation9 + $0x1f0] sm:$0xf]
        %v8570 = vld [vmem:[#allocation9 + $0x1f4] sm:$0xf]
        %v8571 = vld [vmem:[#allocation9 + $0x1f8] sm:$0xf]
        %v8572 = vld [vmem:[#allocation9 + $0x1fc] sm:$0xf]
        %v8573 = vld [vmem:[%s12] sm:$0x1]
        %v8702 = vunpack.c.l.b16 %v8445
        %v8703 = vunpack.c.l.b16 %v8446
        %v8704 = vunpack.c.l.b16 %v8447
        %v8705 = vunpack.c.l.b16 %v8448
        %v8706 = vunpack.c.l.b16 %v8449
        %v8707 = vunpack.c.l.b16 %v8450
        %v8708 = vunpack.c.l.b16 %v8451
        %v8709 = vunpack.c.l.b16 %v8452
        %v8710 = vunpack.c.l.b16 %v8453
        %v8711 = vunpack.c.l.b16 %v8454
        %v8712 = vunpack.c.l.b16 %v8455
        %v8713 = vunpack.c.l.b16 %v8456
        %v8714 = vunpack.c.l.b16 %v8457
        %v8715 = vunpack.c.l.b16 %v8458
        %v8716 = vunpack.c.l.b16 %v8459
        %v8717 = vunpack.c.l.b16 %v8460
        %v8718 = vunpack.c.l.b16 %v8461
        %v8719 = vunpack.c.l.b16 %v8462
        %v8720 = vunpack.c.l.b16 %v8463
        %v8721 = vunpack.c.l.b16 %v8464
        %v8722 = vunpack.c.l.b16 %v8465
        %v8723 = vunpack.c.l.b16 %v8466
        %v8724 = vunpack.c.l.b16 %v8467
        %v8725 = vunpack.c.l.b16 %v8468
        %v8726 = vunpack.c.l.b16 %v8469
        %v8727 = vunpack.c.l.b16 %v8470
        %v8728 = vunpack.c.l.b16 %v8471
        %v8729 = vunpack.c.l.b16 %v8472
        %v8730 = vunpack.c.l.b16 %v8473
        %v8731 = vunpack.c.l.b16 %v8474
        %v8732 = vunpack.c.l.b16 %v8475
        %v8733 = vunpack.c.l.b16 %v8476
        %v8734 = vunpack.c.l.b16 %v8477
        %v8735 = vunpack.c.l.b16 %v8478
        %v8736 = vunpack.c.l.b16 %v8479
        %v8737 = vunpack.c.l.b16 %v8480
        %v8738 = vunpack.c.l.b16 %v8481
        %v8739 = vunpack.c.l.b16 %v8482
        %v8740 = vunpack.c.l.b16 %v8483
        %v8741 = vunpack.c.l.b16 %v8484
        %v8742 = vunpack.c.l.b16 %v8485
        %v8743 = vunpack.c.l.b16 %v8486
        %v8744 = vunpack.c.l.b16 %v8487
        %v8745 = vunpack.c.l.b16 %v8488
        %v8746 = vunpack.c.l.b16 %v8489
        %v8747 = vunpack.c.l.b16 %v8490
        %v8748 = vunpack.c.l.b16 %v8491
        %v8749 = vunpack.c.l.b16 %v8492
        %v8750 = vunpack.c.l.b16 %v8493
        %v8751 = vunpack.c.l.b16 %v8494
        %v8752 = vunpack.c.l.b16 %v8495
        %v8753 = vunpack.c.l.b16 %v8496
        %v8754 = vunpack.c.l.b16 %v8497
        %v8755 = vunpack.c.l.b16 %v8498
        %v8756 = vunpack.c.l.b16 %v8499
        %v8757 = vunpack.c.l.b16 %v8500
        %v8758 = vunpack.c.l.b16 %v8501
        %v8759 = vunpack.c.l.b16 %v8502
        %v8760 = vunpack.c.l.b16 %v8503
        %v8761 = vunpack.c.l.b16 %v8504
        %v8762 = vunpack.c.l.b16 %v8505
        %v8763 = vunpack.c.l.b16 %v8506
        %v8764 = vunpack.c.l.b16 %v8507
        %v8765 = vunpack.c.l.b16 %v8508
        %v8766 = vunpack.c.l.b16 %v8509
        %v8767 = vunpack.c.l.b16 %v8510
        %v8768 = vunpack.c.l.b16 %v8511
        %v8769 = vunpack.c.l.b16 %v8512
        %v8770 = vunpack.c.l.b16 %v8513
        %v8771 = vunpack.c.l.b16 %v8514
        %v8772 = vunpack.c.l.b16 %v8515
        %v8773 = vunpack.c.l.b16 %v8516
        %v8774 = vunpack.c.l.b16 %v8517
        %v8775 = vunpack.c.l.b16 %v8518
        %v8776 = vunpack.c.l.b16 %v8519
        %v8777 = vunpack.c.l.b16 %v8520
        %v8778 = vunpack.c.l.b16 %v8521
        %v8779 = vunpack.c.l.b16 %v8522
        %v8780 = vunpack.c.l.b16 %v8523
        %v8781 = vunpack.c.l.b16 %v8524
        %v8782 = vunpack.c.l.b16 %v8525
        %v8783 = vunpack.c.l.b16 %v8526
        %v8784 = vunpack.c.l.b16 %v8527
        %v8785 = vunpack.c.l.b16 %v8528
        %v8786 = vunpack.c.l.b16 %v8529
        %v8787 = vunpack.c.l.b16 %v8530
        %v8788 = vunpack.c.l.b16 %v8531
        %v8789 = vunpack.c.l.b16 %v8532
        %v8790 = vunpack.c.l.b16 %v8533
        %v8791 = vunpack.c.l.b16 %v8534
        %v8792 = vunpack.c.l.b16 %v8535
        %v8793 = vunpack.c.l.b16 %v8536
        %v8794 = vunpack.c.l.b16 %v8537
        %v8795 = vunpack.c.l.b16 %v8538
        %v8796 = vunpack.c.l.b16 %v8539
        %v8797 = vunpack.c.l.b16 %v8540
        %v8798 = vunpack.c.l.b16 %v8541
        %v8799 = vunpack.c.l.b16 %v8542
        %v8800 = vunpack.c.l.b16 %v8543
        %v8801 = vunpack.c.l.b16 %v8544
        %v8802 = vunpack.c.l.b16 %v8545
        %v8803 = vunpack.c.l.b16 %v8546
        %v8804 = vunpack.c.l.b16 %v8547
        %v8805 = vunpack.c.l.b16 %v8548
        %v8806 = vunpack.c.l.b16 %v8549
        %v8807 = vunpack.c.l.b16 %v8550
        %v8808 = vunpack.c.l.b16 %v8551
        %v8809 = vunpack.c.l.b16 %v8552
        %v8810 = vunpack.c.l.b16 %v8553
        %v8811 = vunpack.c.l.b16 %v8554
        %v8812 = vunpack.c.l.b16 %v8555
        %v8813 = vunpack.c.l.b16 %v8556
        %v8814 = vunpack.c.l.b16 %v8557
        %v8815 = vunpack.c.l.b16 %v8558
        %v8816 = vunpack.c.l.b16 %v8559
        %v8817 = vunpack.c.l.b16 %v8560
        %v8818 = vunpack.c.l.b16 %v8561
        %v8819 = vunpack.c.l.b16 %v8562
        %v8820 = vunpack.c.l.b16 %v8563
        %v8821 = vunpack.c.l.b16 %v8564
        %v8822 = vunpack.c.l.b16 %v8565
        %v8823 = vunpack.c.l.b16 %v8566
        %v8824 = vunpack.c.l.b16 %v8567
        %v8825 = vunpack.c.l.b16 %v8568
        %v8826 = vunpack.c.l.b16 %v8569
        %v8827 = vunpack.c.l.b16 %v8570
        %v8828 = vunpack.c.l.b16 %v8571
        %v8829 = vunpack.c.l.b16 %v8572
        %v8830 = vpack.c.b16 %v8703, %v8702
        %v8831 = vpack.c.b16 %v8705, %v8704
        %v8832 = vpack.c.b16 %v8707, %v8706
        %v8833 = vpack.c.b16 %v8709, %v8708
        %v8834 = vpack.c.b16 %v8711, %v8710
        %v8835 = vpack.c.b16 %v8713, %v8712
        %v8836 = vpack.c.b16 %v8715, %v8714
        %v8837 = vpack.c.b16 %v8717, %v8716
        %v8838 = vpack.c.b16 %v8719, %v8718
        %v8839 = vpack.c.b16 %v8721, %v8720
        %v8840 = vpack.c.b16 %v8723, %v8722
        %v8841 = vpack.c.b16 %v8725, %v8724
        %v8842 = vpack.c.b16 %v8727, %v8726
        %v8843 = vpack.c.b16 %v8729, %v8728
        %v8844 = vpack.c.b16 %v8731, %v8730
        %v8845 = vpack.c.b16 %v8733, %v8732
        %v8846 = vpack.c.b16 %v8735, %v8734
        %v8847 = vpack.c.b16 %v8737, %v8736
        %v8848 = vpack.c.b16 %v8739, %v8738
        %v8849 = vpack.c.b16 %v8741, %v8740
        %v8850 = vpack.c.b16 %v8743, %v8742
        %v8851 = vpack.c.b16 %v8745, %v8744
        %v8852 = vpack.c.b16 %v8747, %v8746
        %v8853 = vpack.c.b16 %v8749, %v8748
        %v8854 = vpack.c.b16 %v8751, %v8750
        %v8855 = vpack.c.b16 %v8753, %v8752
        %v8856 = vpack.c.b16 %v8755, %v8754
        %v8857 = vpack.c.b16 %v8757, %v8756
        %v8858 = vpack.c.b16 %v8759, %v8758
        %v8859 = vpack.c.b16 %v8761, %v8760
        %v8860 = vpack.c.b16 %v8763, %v8762
        %v8861 = vpack.c.b16 %v8765, %v8764
        %v8862 = vpack.c.b16 %v8767, %v8766
        %v8863 = vpack.c.b16 %v8769, %v8768
        %v8864 = vpack.c.b16 %v8771, %v8770
        %v8865 = vpack.c.b16 %v8773, %v8772
        %v8866 = vpack.c.b16 %v8775, %v8774
        %v8867 = vpack.c.b16 %v8777, %v8776
        %v8868 = vpack.c.b16 %v8779, %v8778
        %v8869 = vpack.c.b16 %v8781, %v8780
        %v8870 = vpack.c.b16 %v8783, %v8782
        %v8871 = vpack.c.b16 %v8785, %v8784
        %v8872 = vpack.c.b16 %v8787, %v8786
        %v8873 = vpack.c.b16 %v8789, %v8788
        %v8874 = vpack.c.b16 %v8791, %v8790
        %v8875 = vpack.c.b16 %v8793, %v8792
        %v8876 = vpack.c.b16 %v8795, %v8794
        %v8877 = vpack.c.b16 %v8797, %v8796
        %v8878 = vpack.c.b16 %v8799, %v8798
        %v8879 = vpack.c.b16 %v8801, %v8800
        %v8880 = vpack.c.b16 %v8803, %v8802
        %v8881 = vpack.c.b16 %v8805, %v8804
        %v8882 = vpack.c.b16 %v8807, %v8806
        %v8883 = vpack.c.b16 %v8809, %v8808
        %v8884 = vpack.c.b16 %v8811, %v8810
        %v8885 = vpack.c.b16 %v8813, %v8812
        %v8886 = vpack.c.b16 %v8815, %v8814
        %v8887 = vpack.c.b16 %v8817, %v8816
        %v8888 = vpack.c.b16 %v8819, %v8818
        %v8889 = vpack.c.b16 %v8821, %v8820
        %v8890 = vpack.c.b16 %v8823, %v8822
        %v8891 = vpack.c.b16 %v8825, %v8824
        %v8892 = vpack.c.b16 %v8827, %v8826
        %v8893 = vpack.c.b16 %v8829, %v8828
        %8958 = vmatprep.subr.bf16.mxu0 0
        %8959 = vmatpush1.bf16.msra.mxu0 %v8837
        %8960 = vmatprep.subr.bf16.mxu0 0
        %8961 = vmatpush1.bf16.msra.mxu0 %v8836
        %8962 = vmatprep.subr.bf16.mxu0 0
        %8963 = vmatpush1.bf16.msra.mxu0 %v8835
        %8964 = vmatprep.subr.bf16.mxu0 0
        %8965 = vmatpush1.bf16.msra.mxu0 %v8834
        %8966 = vmatprep.subr.bf16.mxu0 0
        %8967 = vmatpush1.bf16.msra.mxu0 %v8833
        %8968 = vmatprep.subr.bf16.mxu0 0
        %8969 = vmatpush1.bf16.msra.mxu0 %v8832
        %8970 = vmatprep.subr.bf16.mxu0 0
        %8971 = vmatpush1.bf16.msra.mxu0 %v8831
        %8972 = vmatprep.subr.bf16.mxu0 0
        %8973 = vmatpush1.bf16.msra.mxu0 %v8830
        %8974 = vmatprep.subr.bf16.mxu0 0
        %8975 = vmatpush2.bf16.msra.mxu0 %v8845
        %8976 = vmatprep.subr.bf16.mxu0 0
        %8977 = vmatpush2.bf16.msra.mxu0 %v8844
        %8978 = vmatprep.subr.bf16.mxu0 0
        %8979 = vmatpush2.bf16.msra.mxu0 %v8843
        %8980 = vmatprep.subr.bf16.mxu0 0
        %8981 = vmatpush2.bf16.msra.mxu0 %v8842
        %8982 = vmatprep.subr.bf16.mxu0 0
        %8983 = vmatpush2.bf16.msra.mxu0 %v8841
        %8984 = vmatprep.subr.bf16.mxu0 0
        %8985 = vmatpush2.bf16.msra.mxu0 %v8840
        %8986 = vmatprep.subr.bf16.mxu0 0
        %8987 = vmatpush2.bf16.msra.mxu0 %v8839
        %8988 = vmatprep.subr.bf16.mxu0 0
        %8989 = vmatpush2.bf16.msra.mxu0 %v8838
        %8990 = vmatprep.mubr.bf16.mxu0 %v8438
        %8991 = vmatmul.mubr.bf16.gmra.mxu0 %v8437
        %v8992 = vpop.f32.mrf.mxu0
        %v8993 = vadd.f32 %v8573, %v8992
        %v8994 = vpop.f32.mrf.mxu0
        %v8995 = vpop.f32.mrf.mxu0
        %v8996 = vpop.f32.mrf.mxu0
        %8997 = vdwg.mxu0
        %8998 = vmatprep.subr.bf16.mxu0 0
        %8999 = vmatpush1.bf16.msra.mxu0 %v8853
        %9000 = vmatprep.subr.bf16.mxu0 0
        %9001 = vmatpush1.bf16.msra.mxu0 %v8852
        %9002 = vmatprep.subr.bf16.mxu0 0
        %9003 = vmatpush1.bf16.msra.mxu0 %v8851
        %9004 = vmatprep.subr.bf16.mxu0 0
        %9005 = vmatpush1.bf16.msra.mxu0 %v8850
        %9006 = vmatprep.subr.bf16.mxu0 0
        %9007 = vmatpush1.bf16.msra.mxu0 %v8849
        %9008 = vmatprep.subr.bf16.mxu0 0
        %9009 = vmatpush1.bf16.msra.mxu0 %v8848
        %9010 = vmatprep.subr.bf16.mxu0 0
        %9011 = vmatpush1.bf16.msra.mxu0 %v8847
        %9012 = vmatprep.subr.bf16.mxu0 0
        %9013 = vmatpush1.bf16.msra.mxu0 %v8846
        %9014 = vmatprep.subr.bf16.mxu0 0
        %9015 = vmatpush2.bf16.msra.mxu0 %v8861
        %9016 = vmatprep.subr.bf16.mxu0 0
        %9017 = vmatpush2.bf16.msra.mxu0 %v8860
        %9018 = vmatprep.subr.bf16.mxu0 0
        %9019 = vmatpush2.bf16.msra.mxu0 %v8859
        %9020 = vmatprep.subr.bf16.mxu0 0
        %9021 = vmatpush2.bf16.msra.mxu0 %v8858
        %9022 = vmatprep.subr.bf16.mxu0 0
        %9023 = vmatpush2.bf16.msra.mxu0 %v8857
        %9024 = vmatprep.subr.bf16.mxu0 0
        %9025 = vmatpush2.bf16.msra.mxu0 %v8856
        %9026 = vmatprep.subr.bf16.mxu0 0
        %9027 = vmatpush2.bf16.msra.mxu0 %v8855
        %9028 = vmatprep.subr.bf16.mxu0 0
        %9029 = vmatpush2.bf16.msra.mxu0 %v8854
        %9030 = vmatprep.mubr.bf16.mxu0 %v8440
        %9031 = vmatmul.mubr.bf16.gmra.mxu0 %v8439
        %v9032 = vpop.f32.mrf.mxu0
        %v9033 = vadd.f32 %v8993, %v9032
        %v9034 = vpop.f32.mrf.mxu0
        %v9035 = vpop.f32.mrf.mxu0
        %v9036 = vpop.f32.mrf.mxu0
        %9037 = vdwg.mxu0
        %9038 = vmatprep.subr.bf16.mxu0 0
        %9039 = vmatpush1.bf16.msra.mxu0 %v8869
        %9040 = vmatprep.subr.bf16.mxu0 0
        %9041 = vmatpush1.bf16.msra.mxu0 %v8868
        %9042 = vmatprep.subr.bf16.mxu0 0
        %9043 = vmatpush1.bf16.msra.mxu0 %v8867
        %9044 = vmatprep.subr.bf16.mxu0 0
        %9045 = vmatpush1.bf16.msra.mxu0 %v8866
        %9046 = vmatprep.subr.bf16.mxu0 0
        %9047 = vmatpush1.bf16.msra.mxu0 %v8865
        %9048 = vmatprep.subr.bf16.mxu0 0
        %9049 = vmatpush1.bf16.msra.mxu0 %v8864
        %9050 = vmatprep.subr.bf16.mxu0 0
        %9051 = vmatpush1.bf16.msra.mxu0 %v8863
        %9052 = vmatprep.subr.bf16.mxu0 0
        %9053 = vmatpush1.bf16.msra.mxu0 %v8862
        %9054 = vmatprep.subr.bf16.mxu0 0
        %9055 = vmatpush2.bf16.msra.mxu0 %v8877
        %9056 = vmatprep.subr.bf16.mxu0 0
        %9057 = vmatpush2.bf16.msra.mxu0 %v8876
        %9058 = vmatprep.subr.bf16.mxu0 0
        %9059 = vmatpush2.bf16.msra.mxu0 %v8875
        %9060 = vmatprep.subr.bf16.mxu0 0
        %9061 = vmatpush2.bf16.msra.mxu0 %v8874
        %9062 = vmatprep.subr.bf16.mxu0 0
        %9063 = vmatpush2.bf16.msra.mxu0 %v8873
        %9064 = vmatprep.subr.bf16.mxu0 0
        %9065 = vmatpush2.bf16.msra.mxu0 %v8872
        %9066 = vmatprep.subr.bf16.mxu0 0
        %9067 = vmatpush2.bf16.msra.mxu0 %v8871
        %9068 = vmatprep.subr.bf16.mxu0 0
        %9069 = vmatpush2.bf16.msra.mxu0 %v8870
        %9070 = vmatprep.mubr.bf16.mxu0 %v8442
        %9071 = vmatmul.mubr.bf16.gmra.mxu0 %v8441
        %v9072 = vpop.f32.mrf.mxu0
        %v9073 = vadd.f32 %v9033, %v9072
        %v9074 = vpop.f32.mrf.mxu0
        %v9075 = vpop.f32.mrf.mxu0
        %v9076 = vpop.f32.mrf.mxu0
        %9077 = vdwg.mxu0
        %9078 = vmatprep.subr.bf16.mxu0 0
        %9079 = vmatpush1.bf16.msra.mxu0 %v8885
        %9080 = vmatprep.subr.bf16.mxu0 0
        %9081 = vmatpush1.bf16.msra.mxu0 %v8884
        %9082 = vmatprep.subr.bf16.mxu0 0
        %9083 = vmatpush1.bf16.msra.mxu0 %v8883
        %9084 = vmatprep.subr.bf16.mxu0 0
        %9085 = vmatpush1.bf16.msra.mxu0 %v8882
        %9086 = vmatprep.subr.bf16.mxu0 0
        %9087 = vmatpush1.bf16.msra.mxu0 %v8881
        %9088 = vmatprep.subr.bf16.mxu0 0
        %9089 = vmatpush1.bf16.msra.mxu0 %v8880
        %9090 = vmatprep.subr.bf16.mxu0 0
        %9091 = vmatpush1.bf16.msra.mxu0 %v8879
        %9092 = vmatprep.subr.bf16.mxu0 0
        %9093 = vmatpush1.bf16.msra.mxu0 %v8878
        %9094 = vmatprep.subr.bf16.mxu0 0
        %9095 = vmatpush2.bf16.msra.mxu0 %v8893
        %9096 = vmatprep.subr.bf16.mxu0 0
        %9097 = vmatpush2.bf16.msra.mxu0 %v8892
        %9098 = vmatprep.subr.bf16.mxu0 0
        %9099 = vmatpush2.bf16.msra.mxu0 %v8891
        %9100 = vmatprep.subr.bf16.mxu0 0
        %9101 = vmatpush2.bf16.msra.mxu0 %v8890
        %9102 = vmatprep.subr.bf16.mxu0 0
        %9103 = vmatpush2.bf16.msra.mxu0 %v8889
        %9104 = vmatprep.subr.bf16.mxu0 0
        %9105 = vmatpush2.bf16.msra.mxu0 %v8888
        %9106 = vmatprep.subr.bf16.mxu0 0
        %9107 = vmatpush2.bf16.msra.mxu0 %v8887
        %9108 = vmatprep.subr.bf16.mxu0 0
        %9109 = vmatpush2.bf16.msra.mxu0 %v8886
        %9110 = vmatprep.mubr.bf16.mxu0 %v8444
        %9111 = vmatmul.mubr.bf16.gmra.mxu0 %v8443
        %v9112 = vpop.f32.mrf.mxu0
        %v9113 = vadd.f32 %v9073, %v9112
        %v9114 = vpop.f32.mrf.mxu0
        %v9115 = vpop.f32.mrf.mxu0
        %v9116 = vpop.f32.mrf.mxu0
        %9117 = vdwg.mxu0
        %9118 = vst [vmem:[%s462] sm:$0x1] %v9113
        %s9119 = sand.u32 %s315, 1
        %s9120 = scalar_lea.sflag [#allocation8], %s9119
        %s9121 = sand.u32 %s315, 1
        %s9122 = scalar_lea.vmem [#allocation11], %s9121
        // Predicated region
        $region81: #{cnn_forward.1} parent=71 // pred_check
          %p9123 = pneg %p325
        $region82: #{cnn_forward.1} parent=71 // pred_check_branch
          %9125 = sbr.rel (%p9123) target = $region84
        $region83: #{cnn_forward.1} parent=71 // pred_region
          %s9127 = ssub.s32 16, 16
          %9128 = vsyncadd %s9120, %s9127
          %s9129 = smul.addr %s29, 16
          %s9130 = scalar_lea.hbm %s13, %s9129
          %s9132 = sshll.u32 %s9122, 4
          %s9133 = int_to_ptr.vmem [resolvable:$true] %s9132
          %9135 = dma.vmem_to_hbm [thread:$0]  %s9133, 16, %s9130, %s9120
        $region84: #{cnn_forward.1} parent=71 // pred_fallthru
          _
      $region72: #{cnn_forward.1} parent=5 // pred_fallthru
        _
      %p9136 = scmp.le.s32.totalorder 2, %s24
      // Predicated region
      $region85: #{cnn_forward.1} parent=5 // pred_check
        %p9137 = pneg %p9136
      $region86: #{cnn_forward.1} parent=5 // pred_check_branch
        %9139 = sbr.rel (%p9137) target = $region88
      $region87: #{cnn_forward.1} parent=5 // pred_region
        %s9140 = ssub.s32 %s24, 2
        // Predicated region
        $region89: #{cnn_forward.1} parent=87 // pred_check
          %p9141 = pneg %p331
        $region90: #{cnn_forward.1} parent=87 // pred_check_branch
          %9143 = sbr.rel (%p9141) target = $region92
        $region91: #{cnn_forward.1} parent=87 // pred_region
          %s9144 = sand.u32 %s316, 1
          %s9145 = scalar_lea.sflag [#allocation8], %s9144
          %s9146 = sand.u32 %s316, 1
          %s9147 = scalar_lea.vmem [#allocation11], %s9146
          %9148 = dma.done %s9145, 16
        $region92: #{cnn_forward.1} parent=87 // pred_fallthru
          _
      $region88: #{cnn_forward.1} parent=5 // pred_fallthru
        _
    $region6: #{cnn_forward.1} parent=1 // loop_footer
      %s28 = sadd.s32 1, %s24
    $region7: #{cnn_forward.1} parent=1 // loop_footer_branch
      %23 = sbr.rel target = $region3
    $region8: #{cnn_forward.1} parent=1 // loop_exit
      _
    %9149 = vsyncpa [#allocation7], 1
    %s9150 = scalar_lea.sflag [#allocation7], 1
    %9151 = vsyncpa %s9150, 1
    %9152 = vsyncpa [#allocation10], 1
    %9153 = vsyncpa [#allocation8], 1
    %s9154 = scalar_lea.sflag [#allocation8], 1
    %9155 = vsyncpa %s9154, 1

</llo_original>
